<compile_context>
chip_gen: v6e
topology: v6e:2x2x1
jax: 0.10.0
libtpu: 0.0.40
codegen_flags: <defaults>
</compile_context>

<pallas_src>
import functools

import jax
import jax.numpy as jnp
from jax import lax
from jax.experimental import pallas as pl
from jax.experimental.pallas import tpu as pltpu

LANE = 128  # TPU lane width; channel dims are padded up to a multiple of this.


def _round_up(x, m):
    return ((x + m - 1) // m) * m


def _pick_row_strip(H, W, Cip, Cmp, Cop, budget_bytes=8 * 2**20):
    """Largest row-strip height TH dividing H whose per-strip live values fit."""
    def strip_bytes(th):
        m = th * W
        c1 = m * (Cmp * 4 * 2 + Cip * 2)   # conv1: f32 acc + silu temp, bf16 tap lhs
        c2 = m * (Cop * 4 * 2 + Cmp * 2)   # conv2
        return max(c1, c2)

    best = 1
    for th in range(1, H + 1):
        if H % th == 0 and strip_bytes(th) <= budget_bytes:
            best = th
    return best


def _vmem_limit_bytes(H, W, TH, Cip, Cmp, Cop):
    """Generation-aware scoped-VMEM request including f32 temporaries."""
    pads = (H + 2) * (W + 2) * (Cip + Cmp) * 4                 # f32 halo buffers
    act_blocks = 2 * (H * W * (Cip + Cop)) * 2                 # x/out, double-buffered bf16
    w_blocks = 2 * 9 * (Cip * Cmp + Cmp * Cop) * 2             # weights (assume 2 bufs)
    bn_blocks = 2 * 2 * (Cmp + Cop) * 4
    strip = TH * W * (max(Cmp, Cop) * 4 * 2 + max(Cip, Cmp) * 2)
    need = pads + act_blocks + w_blocks + bn_blocks + strip

    try:
        cap = int(getattr(pltpu.get_tpu_info(), "vmem_capacity_bytes", 64 * 2**20))
    except Exception:  # pragma: no cover - defensive: interpret mode / old jax
        cap = 64 * 2**20

    limit = max(int(need * 1.5), 32 * 2**20)
    return int(min(limit, int(cap * 0.8)))


def _make_bottleneck_kernel(H, W, TH, Cip, Cmp, Cop, use_residual):
    """Fused kernel: conv3x3+BN+SiLU -> conv3x3+BN+SiLU (+ residual), one image."""
    n_strips = H // TH
    assert n_strips * TH == H
    f32 = jnp.float32

    def silu(y):
        # exp + reciprocal both run on the EUP slot (keeps the VPU free).
        return y * pl.reciprocal(1.0 + jnp.exp(-y), approx=True)

    def kernel(x_ref, w1_ref, s1_ref, b1_ref, w2_ref, s2_ref, b2_ref, out_ref,
               xpad_ref, y1pad_ref):

        # ---- zero only the 1-pixel halo border (interior is overwritten) ----
        def zero_border(ref, C):
            zrow = jnp.zeros((1, W + 2, C), f32)
            zcol = jnp.zeros((H + 2, 1, C), f32)
            ref[0:1, :, :] = zrow
            ref[H + 1:H + 2, :, :] = zrow
            ref[:, 0:1, :] = zcol
            ref[:, W + 1:W + 2, :] = zcol

        zero_border(xpad_ref, Cip)
        zero_border(y1pad_ref, Cmp)

        # Interior of the conv1 halo buffer (padded channel lanes of x are 0).
        xpad_ref[1:H + 1, 1:W + 1, :] = x_ref[0].astype(f32)

        # ---- conv1 + BN + SiLU: 9 tap-matmuls per row strip, f32 accumulate --
        for s in range(n_strips):
            r0 = s * TH
            acc = jnp.zeros((TH * W, Cmp), f32)
            for dy in range(3):
                for dx in range(3):
                    k = dy * 3 + dx
                    lhs = (xpad_ref[r0 + dy:r0 + dy + TH, dx:dx + W, :]
                           .reshape(TH * W, Cip).astype(jnp.bfloat16))
                    acc += jnp.dot(lhs, w1_ref[k * Cip:(k + 1) * Cip, :],
                                   preferred_element_type=f32)
            y1 = silu(acc * s1_ref[...] + b1_ref[...])
            # Intermediate stays in VMEM (never round-trips HBM).
            y1pad_ref[1 + r0:1 + r0 + TH, 1:W + 1, :] = y1.reshape(TH, W, Cmp)

        # ---- conv2 + BN + SiLU (+ residual), same structure ------------------
        for s in range(n_strips):
            r0 = s * TH
            acc = jnp.zeros((TH * W, Cop), f32)
            for dy in range(3):
                for dx in range(3):
                    k = dy * 3 + dx
                    lhs = (y1pad_ref[r0 + dy:r0 + dy + TH, dx:dx + W, :]
                           .reshape(TH * W, Cmp).astype(jnp.bfloat16))
                    acc += jnp.dot(lhs, w2_ref[k * Cmp:(k + 1) * Cmp, :],
                                   preferred_element_type=f32)
            y2 = silu(acc * s2_ref[...] + b2_ref[...])
            if use_residual:  # Cip == Cop; padded channels of x are zero.
                y2 = y2 + xpad_ref[1 + r0:1 + r0 + TH, 1:W + 1, :].reshape(TH * W, Cip)
            out_ref[:, r0:r0 + TH, :, :] = (
                y2.reshape(1, TH, W, Cop).astype(out_ref.dtype))

    return kernel


def _bottleneck_fused(x_pad_nhwc, w1, s1, b1, w2, s2, b2, use_residual):
    """One fused pallas_call for the whole Bottleneck on channel-padded NHWC bf16."""
    N, H, W, Cip = x_pad_nhwc.shape
    Cmp = w1.shape[1]
    Cop = w2.shape[1]

    TH = _pick_row_strip(H, W, Cip, Cmp, Cop)
    kernel = _make_bottleneck_kernel(H, W, TH, Cip, Cmp, Cop, use_residual)
    vmem_limit = _vmem_limit_bytes(H, W, TH, Cip, Cmp, Cop)

    return pl.pallas_call(
        kernel,
        out_shape=jax.ShapeDtypeStruct((N, H, W, Cop), jnp.bfloat16),
        grid_spec=pltpu.PrefetchScalarGridSpec(
            num_scalar_prefetch=0,
            grid=(N,),
            in_specs=[
                pl.BlockSpec((1, H, W, Cip), lambda n: (n, 0, 0, 0)),   # x
                pl.BlockSpec((9 * Cip, Cmp), lambda n: (0, 0)),         # w1 (tap-packed)
                pl.BlockSpec((1, Cmp), lambda n: (0, 0)),               # BN1 scale
                pl.BlockSpec((1, Cmp), lambda n: (0, 0)),               # BN1 bias
                pl.BlockSpec((9 * Cmp, Cop), lambda n: (0, 0)),         # w2 (tap-packed)
                pl.BlockSpec((1, Cop), lambda n: (0, 0)),               # BN2 scale
                pl.BlockSpec((1, Cop), lambda n: (0, 0)),               # BN2 bias
            ],
            out_specs=pl.BlockSpec((1, H, W, Cop), lambda n: (n, 0, 0, 0)),
            scratch_shapes=[
                pltpu.VMEM((H + 2, W + 2, Cip), jnp.float32),   # zero-bordered x
                pltpu.VMEM((H + 2, W + 2, Cmp), jnp.float32),   # zero-bordered y1
            ],
        ),
        compiler_params=pltpu.CompilerParams(
            dimension_semantics=("parallel",),
            vmem_limit_bytes=vmem_limit,
        ),
    )(x_pad_nhwc, w1, s1, b1, w2, s2, b2)


def _pack_conv_weight(w_hwio, cin_p, cout_p):
    """(3,3,Cin,Cout) -> zero-padded, tap-ordered (9*Cin_p, Cout_p) bf16."""
    kh, kw, cin, cout = w_hwio.shape
    w = jnp.pad(w_hwio, ((0, 0), (0, 0), (0, cin_p - cin), (0, cout_p - cout)))
    return w.reshape(kh * kw * cin_p, cout_p).astype(jnp.bfloat16)


def _fold_bn(gamma, beta, mean, var, eps, c_p):
    """BatchNorm(eval) folded to per-channel scale/bias, zero-padded to c_p lanes."""
    scale = (gamma / jnp.sqrt(var + eps)).astype(jnp.float32)
    bias = (beta - mean * scale).astype(jnp.float32)
    c = scale.shape[0]
    scale = jnp.pad(scale, (0, c_p - c)).reshape(1, c_p)
    bias = jnp.pad(bias, (0, c_p - c)).reshape(1, c_p)
    return scale, bias


def bottleneck_pallas(x_nchw, params, shortcut=True, eps=1e-5):
    """Bottleneck.forward: conv2(conv1(x)) (+ x if shortcut and Cin==Cout).

    NCHW f32 in/out to match the PyTorch module; internally a single fused
    Pallas kernel on channel-padded NHWC bf16 (f32 accumulation).
    """
    N, Cin, H, W = x_nchw.shape
    Cmid = params["w1"].shape[-1]
    Cout = params["w2"].shape[-1]
    use_residual = bool(shortcut) and (Cin == Cout)

    Cip = _round_up(max(Cin, 1), LANE)
    Cmp = _round_up(max(Cmid, 1), LANE)
    Cop = _round_up(max(Cout, 1), LANE)

    # NCHW f32 -> channel-padded NHWC bf16 (boundary glue only; a full network
    # should keep activations in this layout between chained modules).
    x = jnp.transpose(x_nchw, (0, 2, 3, 1)).astype(jnp.bfloat16)
    x = jnp.pad(x, ((0, 0), (0, 0), (0, 0), (0, Cip - Cin)))

    w1 = _pack_conv_weight(params["w1"], Cip, Cmp)
    w2 = _pack_conv_weight(params["w2"], Cmp, Cop)
    s1, b1 = _fold_bn(params["g1"], params["b1"], params["m1"], params["v1"], eps, Cmp)
    s2, b2 = _fold_bn(params["g2"], params["b2"], params["m2"], params["v2"], eps, Cop)

    y = _bottleneck_fused(x, w1, s1, b1, w2, s2, b2, use_residual)

    # Back to NCHW f32, dropping the channel padding (boundary glue).
    return jnp.transpose(y[..., :Cout].astype(jnp.float32), (0, 3, 1, 2))


def _reference_bottleneck(x_nchw, params, shortcut=True, eps=1e-5):
    """Pure-JAX reference mirroring the kernel's bf16-in / f32-accumulate math."""
    def q(a):  # bf16 quantization
        return a.astype(jnp.bfloat16).astype(jnp.float32)

    def conv_block(x, w_hwio, g, b, m, v):
        w_oihw = jnp.transpose(q(w_hwio), (3, 2, 0, 1))
        y = lax.conv_general_dilated(
            x, w_oihw, window_strides=(1, 1), padding=((1, 1), (1, 1)),
            dimension_numbers=("NCHW", "OIHW", "NCHW"))
        scale = g / jnp.sqrt(v + eps)
        bias = b - m * scale
        y = y * scale[None, :, None, None] + bias[None, :, None, None]
        return y * jax.nn.sigmoid(y)

    xq = q(x_nchw)
    y1 = q(conv_block(xq, params["w1"], params["g1"], params["b1"],
                      params["m1"], params["v1"]))
    y2 = conv_block(y1, params["w2"], params["g2"], params["b2"],
                    params["m2"], params["v2"])
    if shortcut and x_nchw.shape[1] == params["w2"].shape[-1]:
        y2 = y2 + xq
    return q(y2)


def init_params(key, in_channels, out_channels):
    mid = max(1, out_channels // 2)
    ks = jax.random.split(key, 10)

    def conv_w(k, cin, cout):
        fan_in = cin * 9
        return (jax.random.normal(k, (3, 3, cin, cout), jnp.float32)
                * (2.0 / fan_in) ** 0.5)

    return {
        # ConvBlock 1: conv(in -> mid), BN(mid)
        "w1": conv_w(ks[0], in_channels, mid),
        "g1": 1.0 + 0.1 * jax.random.normal(ks[1], (mid,), jnp.float32),
        "b1": 0.1 * jax.random.normal(ks[2], (mid,), jnp.float32),
        "m1": 0.05 * jax.random.normal(ks[3], (mid,), jnp.float32),
        "v1": 1.0 + 0.1 * jax.nn.softplus(jax.random.normal(ks[4], (mid,), jnp.float32)),
        # ConvBlock 2: conv(mid -> out), BN(out)
        "w2": conv_w(ks[5], mid, out_channels),
        "g2": 1.0 + 0.1 * jax.random.normal(ks[6], (out_channels,), jnp.float32),
        "b2": 0.1 * jax.random.normal(ks[7], (out_channels,), jnp.float32),
        "m2": 0.05 * jax.random.normal(ks[8], (out_channels,), jnp.float32),
        "v2": 1.0 + 0.1 * jax.nn.softplus(jax.random.normal(ks[9], (out_channels,), jnp.float32)),
    }


if __name__ == "__main__":
    key = jax.random.PRNGKey(0)
    k_x, k_p = jax.random.split(key)

    N, C, H, W = 2, 4, 16, 16          # in_channels == out_channels -> shortcut active
    x = jax.random.normal(k_x, (N, C, H, W), jnp.float32)
    params = init_params(k_p, in_channels=C, out_channels=C)

    fn = jax.jit(functools.partial(bottleneck_pallas, shortcut=True))
    out = jax.block_until_ready(fn(x, params))

    ref = _reference_bottleneck(x, params, shortcut=True)
    assert out.shape == (N, C, H, W)
    max_err = jnp.max(jnp.abs(out - ref))
    assert jnp.allclose(out, ref, atol=2e-2, rtol=2e-2), f"max abs err {max_err}"

    print("KERNEL_OK")
</pallas_src>

<mosaic_0001>
module attributes {stable_mosaic.version = 11 : i64} {
  func.func @kernel(%arg0: i32, %arg1: memref<1x16x16x128xbf16, #tpu.memory_space<vmem>>, %arg2: memref<1152x128xbf16, #tpu.memory_space<vmem>>, %arg3: memref<1x128xf32, #tpu.memory_space<vmem>>, %arg4: memref<1x128xf32, #tpu.memory_space<vmem>>, %arg5: memref<1152x128xbf16, #tpu.memory_space<vmem>>, %arg6: memref<1x128xf32, #tpu.memory_space<vmem>>, %arg7: memref<1x128xf32, #tpu.memory_space<vmem>>, %arg8: memref<1x16x16x128xbf16, #tpu.memory_space<vmem>>, %arg9: memref<18x18x128xf32, #tpu.memory_space<vmem>>, %arg10: memref<18x18x128xf32, #tpu.memory_space<vmem>>) attributes {dimension_semantics = [#tpu.dimension_semantics<parallel>], iteration_bounds = array<i64: 2>, scalar_prefetch = 0 : i64, scratch_operands = 2 : i64, tpu.core_type = #tpu.core_type<tc>, window_params = [{transform_indices = @transform_0, window_bounds = array<i64: 1, 16, 16, 128>}, {pipeline_mode = #tpu.pipeline_mode<synchronous>, transform_indices = @transform_1, window_bounds = array<i64: 1152, 128>}, {pipeline_mode = #tpu.pipeline_mode<synchronous>, transform_indices = @transform_2, window_bounds = array<i64: 1, 128>}, {pipeline_mode = #tpu.pipeline_mode<synchronous>, transform_indices = @transform_3, window_bounds = array<i64: 1, 128>}, {pipeline_mode = #tpu.pipeline_mode<synchronous>, transform_indices = @transform_4, window_bounds = array<i64: 1152, 128>}, {pipeline_mode = #tpu.pipeline_mode<synchronous>, transform_indices = @transform_5, window_bounds = array<i64: 1, 128>}, {pipeline_mode = #tpu.pipeline_mode<synchronous>, transform_indices = @transform_6, window_bounds = array<i64: 1, 128>}, {transform_indices = @transform_7, window_bounds = array<i64: 1, 16, 16, 128>}]} {
    %cst = arith.constant 0.000000e+00 : f32
    %0 = vector.broadcast %cst : f32 to vector<1x18x128xf32>
    %cst_0 = arith.constant 0.000000e+00 : f32
    %1 = vector.broadcast %cst_0 : f32 to vector<18x1x128xf32>
    %c0 = arith.constant 0 : index
    %c0_1 = arith.constant 0 : index
    %c0_2 = arith.constant 0 : index
    %2 = vector.load %arg9[%c0, %c0_1, %c0_2] : memref<18x18x128xf32, #tpu.memory_space<vmem>>, vector<1x18x128xf32>
    tpu.vector_store %arg9[%c0, %c0_1, %c0_2], %0 {strides = array<i32>} : memref<18x18x128xf32, #tpu.memory_space<vmem>>, vector<1x18x128xf32>,
    %c17 = arith.constant 17 : index
    %c0_3 = arith.constant 0 : index
    %c0_4 = arith.constant 0 : index
    %3 = vector.load %arg9[%c17, %c0_3, %c0_4] : memref<18x18x128xf32, #tpu.memory_space<vmem>>, vector<1x18x128xf32>
    tpu.vector_store %arg9[%c17, %c0_3, %c0_4], %0 {strides = array<i32>} : memref<18x18x128xf32, #tpu.memory_space<vmem>>, vector<1x18x128xf32>,
    %c0_5 = arith.constant 0 : index
    %c0_6 = arith.constant 0 : index
    %c0_7 = arith.constant 0 : index
    %4 = vector.load %arg9[%c0_5, %c0_6, %c0_7] : memref<18x18x128xf32, #tpu.memory_space<vmem>>, vector<18x1x128xf32>
    tpu.vector_store %arg9[%c0_5, %c0_6, %c0_7], %1 {strides = array<i32>} : memref<18x18x128xf32, #tpu.memory_space<vmem>>, vector<18x1x128xf32>,
    %c0_8 = arith.constant 0 : index
    %c17_9 = arith.constant 17 : index
    %c0_10 = arith.constant 0 : index
    %5 = vector.load %arg9[%c0_8, %c17_9, %c0_10] : memref<18x18x128xf32, #tpu.memory_space<vmem>>, vector<18x1x128xf32>
    tpu.vector_store %arg9[%c0_8, %c17_9, %c0_10], %1 {strides = array<i32>} : memref<18x18x128xf32, #tpu.memory_space<vmem>>, vector<18x1x128xf32>,
    %cst_11 = arith.constant 0.000000e+00 : f32
    %6 = vector.broadcast %cst_11 : f32 to vector<1x18x128xf32>
    %cst_12 = arith.constant 0.000000e+00 : f32
    %7 = vector.broadcast %cst_12 : f32 to vector<18x1x128xf32>
    %c0_13 = arith.constant 0 : index
    %c0_14 = arith.constant 0 : index
    %c0_15 = arith.constant 0 : index
    %8 = vector.load %arg10[%c0_13, %c0_14, %c0_15] : memref<18x18x128xf32, #tpu.memory_space<vmem>>, vector<1x18x128xf32>
    tpu.vector_store %arg10[%c0_13, %c0_14, %c0_15], %6 {strides = array<i32>} : memref<18x18x128xf32, #tpu.memory_space<vmem>>, vector<1x18x128xf32>,
    %c17_16 = arith.constant 17 : index
    %c0_17 = arith.constant 0 : index
    %c0_18 = arith.constant 0 : index
    %9 = vector.load %arg10[%c17_16, %c0_17, %c0_18] : memref<18x18x128xf32, #tpu.memory_space<vmem>>, vector<1x18x128xf32>
    tpu.vector_store %arg10[%c17_16, %c0_17, %c0_18], %6 {strides = array<i32>} : memref<18x18x128xf32, #tpu.memory_space<vmem>>, vector<1x18x128xf32>,
    %c0_19 = arith.constant 0 : index
    %c0_20 = arith.constant 0 : index
    %c0_21 = arith.constant 0 : index
    %10 = vector.load %arg10[%c0_19, %c0_20, %c0_21] : memref<18x18x128xf32, #tpu.memory_space<vmem>>, vector<18x1x128xf32>
    tpu.vector_store %arg10[%c0_19, %c0_20, %c0_21], %7 {strides = array<i32>} : memref<18x18x128xf32, #tpu.memory_space<vmem>>, vector<18x1x128xf32>,
    %c0_22 = arith.constant 0 : index
    %c17_23 = arith.constant 17 : index
    %c0_24 = arith.constant 0 : index
    %11 = vector.load %arg10[%c0_22, %c17_23, %c0_24] : memref<18x18x128xf32, #tpu.memory_space<vmem>>, vector<18x1x128xf32>
    tpu.vector_store %arg10[%c0_22, %c17_23, %c0_24], %7 {strides = array<i32>} : memref<18x18x128xf32, #tpu.memory_space<vmem>>, vector<18x1x128xf32>,
    %c0_25 = arith.constant 0 : index
    %c0_26 = arith.constant 0 : index
    %c0_27 = arith.constant 0 : index
    %c0_28 = arith.constant 0 : index
    %12 = vector.load %arg1[%c0_25, %c0_26, %c0_27, %c0_28] : memref<1x16x16x128xbf16, #tpu.memory_space<vmem>>, vector<1x16x16x128xbf16>
    %13 = vector.shape_cast %12 : vector<1x16x16x128xbf16> to vector<16x16x128xbf16>
    %14 = arith.extf %13 : vector<16x16x128xbf16> to vector<16x16x128xf32>
    %c1 = arith.constant 1 : index
    %c1_29 = arith.constant 1 : index
    %c0_30 = arith.constant 0 : index
    %15 = vector.load %arg9[%c1, %c1_29, %c0_30] : memref<18x18x128xf32, #tpu.memory_space<vmem>>, vector<16x16x128xf32>
    tpu.vector_store %arg9[%c1, %c1_29, %c0_30], %14 {strides = array<i32>} : memref<18x18x128xf32, #tpu.memory_space<vmem>>, vector<16x16x128xf32>,
    %cst_31 = arith.constant 0.000000e+00 : f32
    %16 = vector.broadcast %cst_31 : f32 to vector<256x128xf32>
    %c0_32 = arith.constant 0 : index
    %c0_33 = arith.constant 0 : index
    %c0_34 = arith.constant 0 : index
    %17 = vector.load %arg9[%c0_32, %c0_33, %c0_34] : memref<18x18x128xf32, #tpu.memory_space<vmem>>, vector<16x16x128xf32>
    %18 = vector.shape_cast %17 : vector<16x16x128xf32> to vector<256x128xf32>
    %19 = arith.truncf %18 : vector<256x128xf32> to vector<256x128xbf16>
    %c0_35 = arith.constant 0 : index
    %c0_36 = arith.constant 0 : index
    %20 = vector.load %arg2[%c0_35, %c0_36] : memref<1152x128xbf16, #tpu.memory_space<vmem>>, vector<128x128xbf16>
    %cst_37 = arith.constant dense<0.000000e+00> : vector<256x128xf32>
    %21 = tpu.matmul %19, %20, %cst_37 {dimension_numbers = #tpu.dot_dimension_numbers<[1], [0], [0], [1], [0, 0, 1, 1], [], []>} : vector<256x128xbf16>, vector<128x128xbf16>, vector<256x128xf32> -> vector<256x128xf32>
    %22 = arith.addf %16, %21 : vector<256x128xf32>
    %c0_38 = arith.constant 0 : index
    %c1_39 = arith.constant 1 : index
    %c0_40 = arith.constant 0 : index
    %23 = vector.load %arg9[%c0_38, %c1_39, %c0_40] : memref<18x18x128xf32, #tpu.memory_space<vmem>>, vector<16x16x128xf32>
    %24 = vector.shape_cast %23 : vector<16x16x128xf32> to vector<256x128xf32>
    %25 = arith.truncf %24 : vector<256x128xf32> to vector<256x128xbf16>
    %c128 = arith.constant 128 : index
    %c0_41 = arith.constant 0 : index
    %26 = vector.load %arg2[%c128, %c0_41] : memref<1152x128xbf16, #tpu.memory_space<vmem>>, vector<128x128xbf16>
    %cst_42 = arith.constant dense<0.000000e+00> : vector<256x128xf32>
    %27 = tpu.matmul %25, %26, %cst_42 {dimension_numbers = #tpu.dot_dimension_numbers<[1], [0], [0], [1], [0, 0, 1, 1], [], []>} : vector<256x128xbf16>, vector<128x128xbf16>, vector<256x128xf32> -> vector<256x128xf32>
    %28 = arith.addf %22, %27 : vector<256x128xf32>
    %c0_43 = arith.constant 0 : index
    %c2 = arith.constant 2 : index
    %c0_44 = arith.constant 0 : index
    %29 = vector.load %arg9[%c0_43, %c2, %c0_44] : memref<18x18x128xf32, #tpu.memory_space<vmem>>, vector<16x16x128xf32>
    %30 = vector.shape_cast %29 : vector<16x16x128xf32> to vector<256x128xf32>
    %31 = arith.truncf %30 : vector<256x128xf32> to vector<256x128xbf16>
    %c256 = arith.constant 256 : index
    %c0_45 = arith.constant 0 : index
    %32 = vector.load %arg2[%c256, %c0_45] : memref<1152x128xbf16, #tpu.memory_space<vmem>>, vector<128x128xbf16>
    %cst_46 = arith.constant dense<0.000000e+00> : vector<256x128xf32>
    %33 = tpu.matmul %31, %32, %cst_46 {dimension_numbers = #tpu.dot_dimension_numbers<[1], [0], [0], [1], [0, 0, 1, 1], [], []>} : vector<256x128xbf16>, vector<128x128xbf16>, vector<256x128xf32> -> vector<256x128xf32>
    %34 = arith.addf %28, %33 : vector<256x128xf32>
    %c1_47 = arith.constant 1 : index
    %c0_48 = arith.constant 0 : index
    %c0_49 = arith.constant 0 : index
    %35 = vector.load %arg9[%c1_47, %c0_48, %c0_49] : memref<18x18x128xf32, #tpu.memory_space<vmem>>, vector<16x16x128xf32>
    %36 = vector.shape_cast %35 : vector<16x16x128xf32> to vector<256x128xf32>
    %37 = arith.truncf %36 : vector<256x128xf32> to vector<256x128xbf16>
    %c384 = arith.constant 384 : index
    %c0_50 = arith.constant 0 : index
    %38 = vector.load %arg2[%c384, %c0_50] : memref<1152x128xbf16, #tpu.memory_space<vmem>>, vector<128x128xbf16>
    %cst_51 = arith.constant dense<0.000000e+00> : vector<256x128xf32>
    %39 = tpu.matmul %37, %38, %cst_51 {dimension_numbers = #tpu.dot_dimension_numbers<[1], [0], [0], [1], [0, 0, 1, 1], [], []>} : vector<256x128xbf16>, vector<128x128xbf16>, vector<256x128xf32> -> vector<256x128xf32>
    %40 = arith.addf %34, %39 : vector<256x128xf32>
    %c1_52 = arith.constant 1 : index
    %c1_53 = arith.constant 1 : index
    %c0_54 = arith.constant 0 : index
    %41 = vector.load %arg9[%c1_52, %c1_53, %c0_54] : memref<18x18x128xf32, #tpu.memory_space<vmem>>, vector<16x16x128xf32>
    %42 = vector.shape_cast %41 : vector<16x16x128xf32> to vector<256x128xf32>
    %43 = arith.truncf %42 : vector<256x128xf32> to vector<256x128xbf16>
    %c512 = arith.constant 512 : index
    %c0_55 = arith.constant 0 : index
    %44 = vector.load %arg2[%c512, %c0_55] : memref<1152x128xbf16, #tpu.memory_space<vmem>>, vector<128x128xbf16>
    %cst_56 = arith.constant dense<0.000000e+00> : vector<256x128xf32>
    %45 = tpu.matmul %43, %44, %cst_56 {dimension_numbers = #tpu.dot_dimension_numbers<[1], [0], [0], [1], [0, 0, 1, 1], [], []>} : vector<256x128xbf16>, vector<128x128xbf16>, vector<256x128xf32> -> vector<256x128xf32>
    %46 = arith.addf %40, %45 : vector<256x128xf32>
    %c1_57 = arith.constant 1 : index
    %c2_58 = arith.constant 2 : index
    %c0_59 = arith.constant 0 : index
    %47 = vector.load %arg9[%c1_57, %c2_58, %c0_59] : memref<18x18x128xf32, #tpu.memory_space<vmem>>, vector<16x16x128xf32>
    %48 = vector.shape_cast %47 : vector<16x16x128xf32> to vector<256x128xf32>
    %49 = arith.truncf %48 : vector<256x128xf32> to vector<256x128xbf16>
    %c640 = arith.constant 640 : index
    %c0_60 = arith.constant 0 : index
    %50 = vector.load %arg2[%c640, %c0_60] : memref<1152x128xbf16, #tpu.memory_space<vmem>>, vector<128x128xbf16>
    %cst_61 = arith.constant dense<0.000000e+00> : vector<256x128xf32>
    %51 = tpu.matmul %49, %50, %cst_61 {dimension_numbers = #tpu.dot_dimension_numbers<[1], [0], [0], [1], [0, 0, 1, 1], [], []>} : vector<256x128xbf16>, vector<128x128xbf16>, vector<256x128xf32> -> vector<256x128xf32>
    %52 = arith.addf %46, %51 : vector<256x128xf32>
    %c2_62 = arith.constant 2 : index
    %c0_63 = arith.constant 0 : index
    %c0_64 = arith.constant 0 : index
    %53 = vector.load %arg9[%c2_62, %c0_63, %c0_64] : memref<18x18x128xf32, #tpu.memory_space<vmem>>, vector<16x16x128xf32>
    %54 = vector.shape_cast %53 : vector<16x16x128xf32> to vector<256x128xf32>
    %55 = arith.truncf %54 : vector<256x128xf32> to vector<256x128xbf16>
    %c768 = arith.constant 768 : index
    %c0_65 = arith.constant 0 : index
    %56 = vector.load %arg2[%c768, %c0_65] : memref<1152x128xbf16, #tpu.memory_space<vmem>>, vector<128x128xbf16>
    %cst_66 = arith.constant dense<0.000000e+00> : vector<256x128xf32>
    %57 = tpu.matmul %55, %56, %cst_66 {dimension_numbers = #tpu.dot_dimension_numbers<[1], [0], [0], [1], [0, 0, 1, 1], [], []>} : vector<256x128xbf16>, vector<128x128xbf16>, vector<256x128xf32> -> vector<256x128xf32>
    %58 = arith.addf %52, %57 : vector<256x128xf32>
    %c2_67 = arith.constant 2 : index
    %c1_68 = arith.constant 1 : index
    %c0_69 = arith.constant 0 : index
    %59 = vector.load %arg9[%c2_67, %c1_68, %c0_69] : memref<18x18x128xf32, #tpu.memory_space<vmem>>, vector<16x16x128xf32>
    %60 = vector.shape_cast %59 : vector<16x16x128xf32> to vector<256x128xf32>
    %61 = arith.truncf %60 : vector<256x128xf32> to vector<256x128xbf16>
    %c896 = arith.constant 896 : index
    %c0_70 = arith.constant 0 : index
    %62 = vector.load %arg2[%c896, %c0_70] : memref<1152x128xbf16, #tpu.memory_space<vmem>>, vector<128x128xbf16>
    %cst_71 = arith.constant dense<0.000000e+00> : vector<256x128xf32>
    %63 = tpu.matmul %61, %62, %cst_71 {dimension_numbers = #tpu.dot_dimension_numbers<[1], [0], [0], [1], [0, 0, 1, 1], [], []>} : vector<256x128xbf16>, vector<128x128xbf16>, vector<256x128xf32> -> vector<256x128xf32>
    %64 = arith.addf %58, %63 : vector<256x128xf32>
    %c2_72 = arith.constant 2 : index
    %c2_73 = arith.constant 2 : index
    %c0_74 = arith.constant 0 : index
    %65 = vector.load %arg9[%c2_72, %c2_73, %c0_74] : memref<18x18x128xf32, #tpu.memory_space<vmem>>, vector<16x16x128xf32>
    %66 = vector.shape_cast %65 : vector<16x16x128xf32> to vector<256x128xf32>
    %67 = arith.truncf %66 : vector<256x128xf32> to vector<256x128xbf16>
    %c1024 = arith.constant 1024 : index
    %c0_75 = arith.constant 0 : index
    %68 = vector.load %arg2[%c1024, %c0_75] : memref<1152x128xbf16, #tpu.memory_space<vmem>>, vector<128x128xbf16>
    %cst_76 = arith.constant dense<0.000000e+00> : vector<256x128xf32>
    %69 = tpu.matmul %67, %68, %cst_76 {dimension_numbers = #tpu.dot_dimension_numbers<[1], [0], [0], [1], [0, 0, 1, 1], [], []>} : vector<256x128xbf16>, vector<128x128xbf16>, vector<256x128xf32> -> vector<256x128xf32>
    %70 = arith.addf %64, %69 : vector<256x128xf32>
    %c0_77 = arith.constant 0 : index
    %c0_78 = arith.constant 0 : index
    %71 = vector.load %arg3[%c0_77, %c0_78] : memref<1x128xf32, #tpu.memory_space<vmem>>, vector<1x128xf32>
    %72 = vector.broadcast %71 : vector<1x128xf32> to vector<256x128xf32>
    %73 = arith.mulf %70, %72 : vector<256x128xf32>
    %c0_79 = arith.constant 0 : index
    %c0_80 = arith.constant 0 : index
    %74 = vector.load %arg4[%c0_79, %c0_80] : memref<1x128xf32, #tpu.memory_space<vmem>>, vector<1x128xf32>
    %75 = vector.broadcast %74 : vector<1x128xf32> to vector<256x128xf32>
    %76 = arith.addf %73, %75 : vector<256x128xf32>
    %cst_81 = arith.constant 0.000000e+00 : f32
    %77 = vector.broadcast %cst_81 : f32 to vector<256x128xf32>
    %78 = arith.subf %77, %76 : vector<256x128xf32>
    %79 = math.exp %78 : vector<256x128xf32>
    %cst_82 = arith.constant 1.000000e+00 : f32
    %80 = vector.broadcast %cst_82 : f32 to vector<256x128xf32>
    %81 = arith.addf %80, %79 : vector<256x128xf32>
    %82 = tpu.reciprocal %81 {approx = true} : vector<256x128xf32> -> vector<256x128xf32>
    %83 = arith.mulf %76, %82 : vector<256x128xf32>
    %84 = vector.shape_cast %83 : vector<256x128xf32> to vector<16x16x128xf32>
    %c1_83 = arith.constant 1 : index
    %c1_84 = arith.constant 1 : index
    %c0_85 = arith.constant 0 : index
    %85 = vector.load %arg10[%c1_83, %c1_84, %c0_85] : memref<18x18x128xf32, #tpu.memory_space<vmem>>, vector<16x16x128xf32>
    tpu.vector_store %arg10[%c1_83, %c1_84, %c0_85], %84 {strides = array<i32>} : memref<18x18x128xf32, #tpu.memory_space<vmem>>, vector<16x16x128xf32>,
    %cst_86 = arith.constant 0.000000e+00 : f32
    %86 = vector.broadcast %cst_86 : f32 to vector<256x128xf32>
    %c0_87 = arith.constant 0 : index
    %c0_88 = arith.constant 0 : index
    %c0_89 = arith.constant 0 : index
    %87 = vector.load %arg10[%c0_87, %c0_88, %c0_89] : memref<18x18x128xf32, #tpu.memory_space<vmem>>, vector<16x16x128xf32>
    %88 = vector.shape_cast %87 : vector<16x16x128xf32> to vector<256x128xf32>
    %89 = arith.truncf %88 : vector<256x128xf32> to vector<256x128xbf16>
    %c0_90 = arith.constant 0 : index
    %c0_91 = arith.constant 0 : index
    %90 = vector.load %arg5[%c0_90, %c0_91] : memref<1152x128xbf16, #tpu.memory_space<vmem>>, vector<128x128xbf16>
    %cst_92 = arith.constant dense<0.000000e+00> : vector<256x128xf32>
    %91 = tpu.matmul %89, %90, %cst_92 {dimension_numbers = #tpu.dot_dimension_numbers<[1], [0], [0], [1], [0, 0, 1, 1], [], []>} : vector<256x128xbf16>, vector<128x128xbf16>, vector<256x128xf32> -> vector<256x128xf32>
    %92 = arith.addf %86, %91 : vector<256x128xf32>
    %c0_93 = arith.constant 0 : index
    %c1_94 = arith.constant 1 : index
    %c0_95 = arith.constant 0 : index
    %93 = vector.load %arg10[%c0_93, %c1_94, %c0_95] : memref<18x18x128xf32, #tpu.memory_space<vmem>>, vector<16x16x128xf32>
    %94 = vector.shape_cast %93 : vector<16x16x128xf32> to vector<256x128xf32>
    %95 = arith.truncf %94 : vector<256x128xf32> to vector<256x128xbf16>
    %c128_96 = arith.constant 128 : index
    %c0_97 = arith.constant 0 : index
    %96 = vector.load %arg5[%c128_96, %c0_97] : memref<1152x128xbf16, #tpu.memory_space<vmem>>, vector<128x128xbf16>
    %cst_98 = arith.constant dense<0.000000e+00> : vector<256x128xf32>
    %97 = tpu.matmul %95, %96, %cst_98 {dimension_numbers = #tpu.dot_dimension_numbers<[1], [0], [0], [1], [0, 0, 1, 1], [], []>} : vector<256x128xbf16>, vector<128x128xbf16>, vector<256x128xf32> -> vector<256x128xf32>
    %98 = arith.addf %92, %97 : vector<256x128xf32>
    %c0_99 = arith.constant 0 : index
    %c2_100 = arith.constant 2 : index
    %c0_101 = arith.constant 0 : index
    %99 = vector.load %arg10[%c0_99, %c2_100, %c0_101] : memref<18x18x128xf32, #tpu.memory_space<vmem>>, vector<16x16x128xf32>
    %100 = vector.shape_cast %99 : vector<16x16x128xf32> to vector<256x128xf32>
    %101 = arith.truncf %100 : vector<256x128xf32> to vector<256x128xbf16>
    %c256_102 = arith.constant 256 : index
    %c0_103 = arith.constant 0 : index
    %102 = vector.load %arg5[%c256_102, %c0_103] : memref<1152x128xbf16, #tpu.memory_space<vmem>>, vector<128x128xbf16>
    %cst_104 = arith.constant dense<0.000000e+00> : vector<256x128xf32>
    %103 = tpu.matmul %101, %102, %cst_104 {dimension_numbers = #tpu.dot_dimension_numbers<[1], [0], [0], [1], [0, 0, 1, 1], [], []>} : vector<256x128xbf16>, vector<128x128xbf16>, vector<256x128xf32> -> vector<256x128xf32>
    %104 = arith.addf %98, %103 : vector<256x128xf32>
    %c1_105 = arith.constant 1 : index
    %c0_106 = arith.constant 0 : index
    %c0_107 = arith.constant 0 : index
    %105 = vector.load %arg10[%c1_105, %c0_106, %c0_107] : memref<18x18x128xf32, #tpu.memory_space<vmem>>, vector<16x16x128xf32>
    %106 = vector.shape_cast %105 : vector<16x16x128xf32> to vector<256x128xf32>
    %107 = arith.truncf %106 : vector<256x128xf32> to vector<256x128xbf16>
    %c384_108 = arith.constant 384 : index
    %c0_109 = arith.constant 0 : index
    %108 = vector.load %arg5[%c384_108, %c0_109] : memref<1152x128xbf16, #tpu.memory_space<vmem>>, vector<128x128xbf16>
    %cst_110 = arith.constant dense<0.000000e+00> : vector<256x128xf32>
    %109 = tpu.matmul %107, %108, %cst_110 {dimension_numbers = #tpu.dot_dimension_numbers<[1], [0], [0], [1], [0, 0, 1, 1], [], []>} : vector<256x128xbf16>, vector<128x128xbf16>, vector<256x128xf32> -> vector<256x128xf32>
    %110 = arith.addf %104, %109 : vector<256x128xf32>
    %c1_111 = arith.constant 1 : index
    %c1_112 = arith.constant 1 : index
    %c0_113 = arith.constant 0 : index
    %111 = vector.load %arg10[%c1_111, %c1_112, %c0_113] : memref<18x18x128xf32, #tpu.memory_space<vmem>>, vector<16x16x128xf32>
    %112 = vector.shape_cast %111 : vector<16x16x128xf32> to vector<256x128xf32>
    %113 = arith.truncf %112 : vector<256x128xf32> to vector<256x128xbf16>
    %c512_114 = arith.constant 512 : index
    %c0_115 = arith.constant 0 : index
    %114 = vector.load %arg5[%c512_114, %c0_115] : memref<1152x128xbf16, #tpu.memory_space<vmem>>, vector<128x128xbf16>
    %cst_116 = arith.constant dense<0.000000e+00> : vector<256x128xf32>
    %115 = tpu.matmul %113, %114, %cst_116 {dimension_numbers = #tpu.dot_dimension_numbers<[1], [0], [0], [1], [0, 0, 1, 1], [], []>} : vector<256x128xbf16>, vector<128x128xbf16>, vector<256x128xf32> -> vector<256x128xf32>
    %116 = arith.addf %110, %115 : vector<256x128xf32>
    %c1_117 = arith.constant 1 : index
    %c2_118 = arith.constant 2 : index
    %c0_119 = arith.constant 0 : index
    %117 = vector.load %arg10[%c1_117, %c2_118, %c0_119] : memref<18x18x128xf32, #tpu.memory_space<vmem>>, vector<16x16x128xf32>
    %118 = vector.shape_cast %117 : vector<16x16x128xf32> to vector<256x128xf32>
    %119 = arith.truncf %118 : vector<256x128xf32> to vector<256x128xbf16>
    %c640_120 = arith.constant 640 : index
    %c0_121 = arith.constant 0 : index
    %120 = vector.load %arg5[%c640_120, %c0_121] : memref<1152x128xbf16, #tpu.memory_space<vmem>>, vector<128x128xbf16>
    %cst_122 = arith.constant dense<0.000000e+00> : vector<256x128xf32>
    %121 = tpu.matmul %119, %120, %cst_122 {dimension_numbers = #tpu.dot_dimension_numbers<[1], [0], [0], [1], [0, 0, 1, 1], [], []>} : vector<256x128xbf16>, vector<128x128xbf16>, vector<256x128xf32> -> vector<256x128xf32>
    %122 = arith.addf %116, %121 : vector<256x128xf32>
    %c2_123 = arith.constant 2 : index
    %c0_124 = arith.constant 0 : index
    %c0_125 = arith.constant 0 : index
    %123 = vector.load %arg10[%c2_123, %c0_124, %c0_125] : memref<18x18x128xf32, #tpu.memory_space<vmem>>, vector<16x16x128xf32>
    %124 = vector.shape_cast %123 : vector<16x16x128xf32> to vector<256x128xf32>
    %125 = arith.truncf %124 : vector<256x128xf32> to vector<256x128xbf16>
    %c768_126 = arith.constant 768 : index
    %c0_127 = arith.constant 0 : index
    %126 = vector.load %arg5[%c768_126, %c0_127] : memref<1152x128xbf16, #tpu.memory_space<vmem>>, vector<128x128xbf16>
    %cst_128 = arith.constant dense<0.000000e+00> : vector<256x128xf32>
    %127 = tpu.matmul %125, %126, %cst_128 {dimension_numbers = #tpu.dot_dimension_numbers<[1], [0], [0], [1], [0, 0, 1, 1], [], []>} : vector<256x128xbf16>, vector<128x128xbf16>, vector<256x128xf32> -> vector<256x128xf32>
    %128 = arith.addf %122, %127 : vector<256x128xf32>
    %c2_129 = arith.constant 2 : index
    %c1_130 = arith.constant 1 : index
    %c0_131 = arith.constant 0 : index
    %129 = vector.load %arg10[%c2_129, %c1_130, %c0_131] : memref<18x18x128xf32, #tpu.memory_space<vmem>>, vector<16x16x128xf32>
    %130 = vector.shape_cast %129 : vector<16x16x128xf32> to vector<256x128xf32>
    %131 = arith.truncf %130 : vector<256x128xf32> to vector<256x128xbf16>
    %c896_132 = arith.constant 896 : index
    %c0_133 = arith.constant 0 : index
    %132 = vector.load %arg5[%c896_132, %c0_133] : memref<1152x128xbf16, #tpu.memory_space<vmem>>, vector<128x128xbf16>
    %cst_134 = arith.constant dense<0.000000e+00> : vector<256x128xf32>
    %133 = tpu.matmul %131, %132, %cst_134 {dimension_numbers = #tpu.dot_dimension_numbers<[1], [0], [0], [1], [0, 0, 1, 1], [], []>} : vector<256x128xbf16>, vector<128x128xbf16>, vector<256x128xf32> -> vector<256x128xf32>
    %134 = arith.addf %128, %133 : vector<256x128xf32>
    %c2_135 = arith.constant 2 : index
    %c2_136 = arith.constant 2 : index
    %c0_137 = arith.constant 0 : index
    %135 = vector.load %arg10[%c2_135, %c2_136, %c0_137] : memref<18x18x128xf32, #tpu.memory_space<vmem>>, vector<16x16x128xf32>
    %136 = vector.shape_cast %135 : vector<16x16x128xf32> to vector<256x128xf32>
    %137 = arith.truncf %136 : vector<256x128xf32> to vector<256x128xbf16>
    %c1024_138 = arith.constant 1024 : index
    %c0_139 = arith.constant 0 : index
    %138 = vector.load %arg5[%c1024_138, %c0_139] : memref<1152x128xbf16, #tpu.memory_space<vmem>>, vector<128x128xbf16>
    %cst_140 = arith.constant dense<0.000000e+00> : vector<256x128xf32>
    %139 = tpu.matmul %137, %138, %cst_140 {dimension_numbers = #tpu.dot_dimension_numbers<[1], [0], [0], [1], [0, 0, 1, 1], [], []>} : vector<256x128xbf16>, vector<128x128xbf16>, vector<256x128xf32> -> vector<256x128xf32>
    %140 = arith.addf %134, %139 : vector<256x128xf32>
    %c0_141 = arith.constant 0 : index
    %c0_142 = arith.constant 0 : index
    %141 = vector.load %arg6[%c0_141, %c0_142] : memref<1x128xf32, #tpu.memory_space<vmem>>, vector<1x128xf32>
    %142 = vector.broadcast %141 : vector<1x128xf32> to vector<256x128xf32>
    %143 = arith.mulf %140, %142 : vector<256x128xf32>
    %c0_143 = arith.constant 0 : index
    %c0_144 = arith.constant 0 : index
    %144 = vector.load %arg7[%c0_143, %c0_144] : memref<1x128xf32, #tpu.memory_space<vmem>>, vector<1x128xf32>
    %145 = vector.broadcast %144 : vector<1x128xf32> to vector<256x128xf32>
    %146 = arith.addf %143, %145 : vector<256x128xf32>
    %cst_145 = arith.constant 0.000000e+00 : f32
    %147 = vector.broadcast %cst_145 : f32 to vector<256x128xf32>
    %148 = arith.subf %147, %146 : vector<256x128xf32>
    %149 = math.exp %148 : vector<256x128xf32>
    %cst_146 = arith.constant 1.000000e+00 : f32
    %150 = vector.broadcast %cst_146 : f32 to vector<256x128xf32>
    %151 = arith.addf %150, %149 : vector<256x128xf32>
    %152 = tpu.reciprocal %151 {approx = true} : vector<256x128xf32> -> vector<256x128xf32>
    %153 = arith.mulf %146, %152 : vector<256x128xf32>
    %c1_147 = arith.constant 1 : index
    %c1_148 = arith.constant 1 : index
    %c0_149 = arith.constant 0 : index
    %154 = vector.load %arg9[%c1_147, %c1_148, %c0_149] : memref<18x18x128xf32, #tpu.memory_space<vmem>>, vector<16x16x128xf32>
    %155 = vector.shape_cast %154 : vector<16x16x128xf32> to vector<256x128xf32>
    %156 = arith.addf %153, %155 : vector<256x128xf32>
    %157 = vector.shape_cast %156 : vector<256x128xf32> to vector<1x16x16x128xf32>
    %158 = arith.truncf %157 : vector<1x16x16x128xf32> to vector<1x16x16x128xbf16>
    %c0_150 = arith.constant 0 : index
    %c0_151 = arith.constant 0 : index
    %c0_152 = arith.constant 0 : index
    %c0_153 = arith.constant 0 : index
    %159 = vector.load %arg8[%c0_150, %c0_151, %c0_152, %c0_153] : memref<1x16x16x128xbf16, #tpu.memory_space<vmem>>, vector<1x16x16x128xbf16>
    tpu.vector_store %arg8[%c0_150, %c0_151, %c0_152, %c0_153], %158 {strides = array<i32>} : memref<1x16x16x128xbf16, #tpu.memory_space<vmem>>, vector<1x16x16x128xbf16>,
    return
  }
  func.func @transform_0(%arg0: i32) -> (i32, i32, i32, i32) {
    %c0_i32 = arith.constant 0 : i32
    %c0_i32_0 = arith.constant 0 : i32
    %c0_i32_1 = arith.constant 0 : i32
    %c0_i32_2 = arith.constant 0 : i32
    return %arg0, %c0_i32, %c0_i32_0, %c0_i32_1 : i32, i32, i32, i32
  }
  func.func @transform_1(%arg0: i32) -> (i32, i32) {
    %c0_i32 = arith.constant 0 : i32
    %c0_i32_0 = arith.constant 0 : i32
    %c0_i32_1 = arith.constant 0 : i32
    return %c0_i32, %c0_i32_0 : i32, i32
  }
  func.func @transform_2(%arg0: i32) -> (i32, i32) {
    %c0_i32 = arith.constant 0 : i32
    %c0_i32_0 = arith.constant 0 : i32
    %c0_i32_1 = arith.constant 0 : i32
    return %c0_i32, %c0_i32_0 : i32, i32
  }
  func.func @transform_3(%arg0: i32) -> (i32, i32) {
    %c0_i32 = arith.constant 0 : i32
    %c0_i32_0 = arith.constant 0 : i32
    %c0_i32_1 = arith.constant 0 : i32
    return %c0_i32, %c0_i32_0 : i32, i32
  }
  func.func @transform_4(%arg0: i32) -> (i32, i32) {
    %c0_i32 = arith.constant 0 : i32
    %c0_i32_0 = arith.constant 0 : i32
    %c0_i32_1 = arith.constant 0 : i32
    return %c0_i32, %c0_i32_0 : i32, i32
  }
  func.func @transform_5(%arg0: i32) -> (i32, i32) {
    %c0_i32 = arith.constant 0 : i32
    %c0_i32_0 = arith.constant 0 : i32
    %c0_i32_1 = arith.constant 0 : i32
    return %c0_i32, %c0_i32_0 : i32, i32
  }
  func.func @transform_6(%arg0: i32) -> (i32, i32) {
    %c0_i32 = arith.constant 0 : i32
    %c0_i32_0 = arith.constant 0 : i32
    %c0_i32_1 = arith.constant 0 : i32
    return %c0_i32, %c0_i32_0 : i32, i32
  }
  func.func @transform_7(%arg0: i32) -> (i32, i32, i32, i32) {
    %c0_i32 = arith.constant 0 : i32
    %c0_i32_0 = arith.constant 0 : i32
    %c0_i32_1 = arith.constant 0 : i32
    %c0_i32_2 = arith.constant 0 : i32
    return %arg0, %c0_i32, %c0_i32_0, %c0_i32_1 : i32, i32, i32, i32
  }
}

</mosaic_0001>

<llo_original>
// kernel: bottleneck_pallas.1
$region0: #{bottleneck_pallas.1}
  #allocation0 [shape = 'u32[]', space=smem, size = 0x4, offset = 0x4, fixed_abs, tag = 'smem constant byte address 0x4 - core index']
  #allocation1 [shape = 'u32[144,128]{1,0:T(1,128)}', space=vmem, size = 0x12000, scoped, tag = 'internal scratch']
  #allocation2 [shape = 'f32[18,18,128]{2,1,0:T(8,128)}', space=vmem, size = 0x36000, scoped, tag = 'scratch operand']
  #allocation3 [shape = 'f32[18,18,128]{2,1,0:T(8,128)}', space=vmem, size = 0x36000, scoped, tag = 'scratch operand']
  %s0 = inlined_call_operand.vmem [shape: bf16[2,16,16,128], index: 0, kind: input, shape index: {}]
  %s1 = inlined_call_operand.vmem [shape: bf16[1152,128], index: 1, kind: input, shape index: {}]
  %s2 = inlined_call_operand.vmem [shape: f32[1,128], index: 2, kind: input, shape index: {}]
  %s3 = inlined_call_operand.vmem [shape: f32[1,128], index: 3, kind: input, shape index: {}]
  %s4 = inlined_call_operand.vmem [shape: bf16[1152,128], index: 4, kind: input, shape index: {}]
  %s5 = inlined_call_operand.vmem [shape: f32[1,128], index: 5, kind: input, shape index: {}]
  %s6 = inlined_call_operand.vmem [shape: f32[1,128], index: 6, kind: input, shape index: {}]
  %s7 = inlined_call_operand.vmem [shape: bf16[2,16,16,128], index: 7, kind: output, shape index: {}]
  %s8 = sld [smem:[#allocation0]]
  $region61: #{bottleneck_pallas.1} parent=0
    _
  %s10 = ssub.s32 1, %s8
  %s11 = scalar_select 0, %s10, %s8
  loop: start=0, step=1, limit=4
  $region2: #{bottleneck_pallas.1} parent=0 // loop_pre_header
    _
  $region3: #{bottleneck_pallas.1} parent=0 // loop_header
    %s13 = sphi 0, %s17
    %p14 = scmp.ge.s32.totalorder %s13, 4
    %s23 = sphi 0, %s25
    %s26 = sphi 0, %s23
    %s27 = sphi 0, %s26
    %s43 = sphi 0, %s27
    %s47 = sphi 0, %s47
    %s49 = sphi 0, %s47
    %s50 = sphi 0, %s49
    %s64 = sphi 0, %s50
    %s68 = sphi 0, %s68
    %s70 = sphi 0, %s68
    %s71 = sphi 0, %s70
    %s85 = sphi 0, %s71
    %s89 = sphi 0, %s89
    %s91 = sphi 0, %s89
    %s92 = sphi 0, %s91
    %s106 = sphi 0, %s92
    %s110 = sphi 0, %s110
    %s112 = sphi 0, %s110
    %s113 = sphi 0, %s112
    %s127 = sphi 0, %s113
    %s131 = sphi 0, %s131
    %s133 = sphi 0, %s131
    %s134 = sphi 0, %s133
    %s148 = sphi 0, %s134
    %s152 = sphi 0, %s152
    %s154 = sphi 0, %s152
    %s155 = sphi 0, %s154
    %s169 = sphi 0, %s155
    %s175 = sphi 0, %s177
    %s178 = sphi 0, %s175
    %s179 = sphi 0, %s178
    %s195 = sphi 0, %s179
  $region4: #{bottleneck_pallas.1} parent=0 // loop_header_branch
    %16 = sbr.rel (%p14) target = $region8
  $region5: #{bottleneck_pallas.1} parent=0 // loop_body
    %s18 = ssub.s32 %s13, 1
    %s19 = ssub.s32 %s13, 2
    %s20 = sadd.s32 %s13, 1
    %s21 = ssub.s32 %s13, %s20
    %p22 = scmp.eq.s32.totalorder %s21, 0
    %s24 = sadd.s32 %s23, 1
    %s25 = scalar_select %p22, %s23, %s24
    %p28 = pneg %p22
    %p29 = scmp.eq.s32.totalorder %s13, 1
    %p30 = por %p28, %p29
    %p31 = scmp.ne.s32.totalorder %s23, %s26
    %p32 = scmp.eq.s32.totalorder %s13, 0
    %p33 = por %p31, %p32
    %p34 = scmp.ne.s32.totalorder %s23, %s26
    %p35 = scmp.eq.s32.totalorder %s18, 1
    %p36 = por %p34, %p35
    %p37 = scmp.ne.s32.totalorder %s26, %s27
    %p38 = scmp.eq.s32.totalorder %s18, 0
    %p39 = por %p37, %p38
    %p40 = scmp.ne.s32.totalorder %s26, %s27
    %p41 = scmp.eq.s32.totalorder %s19, 1
    %p42 = por %p40, %p41
    %p44 = scmp.ne.s32.totalorder %s27, %s43
    %p45 = scmp.eq.s32.totalorder %s19, 0
    %p46 = por %p44, %p45
    %s48 = sadd.s32 %s47, 1
    %p51 = scmp.eq.s32.totalorder %s13, 1
    %p52 = scmp.ne.s32.totalorder %s47, %s49
    %p53 = scmp.eq.s32.totalorder %s13, 0
    %p54 = por %p52, %p53
    %p55 = scmp.ne.s32.totalorder %s47, %s49
    %p56 = scmp.eq.s32.totalorder %s18, 1
    %p57 = por %p55, %p56
    %p58 = scmp.ne.s32.totalorder %s49, %s50
    %p59 = scmp.eq.s32.totalorder %s18, 0
    %p60 = por %p58, %p59
    %p61 = scmp.ne.s32.totalorder %s49, %s50
    %p62 = scmp.eq.s32.totalorder %s19, 1
    %p63 = por %p61, %p62
    %p65 = scmp.ne.s32.totalorder %s50, %s64
    %p66 = scmp.eq.s32.totalorder %s19, 0
    %p67 = por %p65, %p66
    %s69 = sadd.s32 %s68, 1
    %p72 = scmp.eq.s32.totalorder %s13, 1
    %p73 = scmp.ne.s32.totalorder %s68, %s70
    %p74 = scmp.eq.s32.totalorder %s13, 0
    %p75 = por %p73, %p74
    %p76 = scmp.ne.s32.totalorder %s68, %s70
    %p77 = scmp.eq.s32.totalorder %s18, 1
    %p78 = por %p76, %p77
    %p79 = scmp.ne.s32.totalorder %s70, %s71
    %p80 = scmp.eq.s32.totalorder %s18, 0
    %p81 = por %p79, %p80
    %p82 = scmp.ne.s32.totalorder %s70, %s71
    %p83 = scmp.eq.s32.totalorder %s19, 1
    %p84 = por %p82, %p83
    %p86 = scmp.ne.s32.totalorder %s71, %s85
    %p87 = scmp.eq.s32.totalorder %s19, 0
    %p88 = por %p86, %p87
    %s90 = sadd.s32 %s89, 1
    %p93 = scmp.eq.s32.totalorder %s13, 1
    %p94 = scmp.ne.s32.totalorder %s89, %s91
    %p95 = scmp.eq.s32.totalorder %s13, 0
    %p96 = por %p94, %p95
    %p97 = scmp.ne.s32.totalorder %s89, %s91
    %p98 = scmp.eq.s32.totalorder %s18, 1
    %p99 = por %p97, %p98
    %p100 = scmp.ne.s32.totalorder %s91, %s92
    %p101 = scmp.eq.s32.totalorder %s18, 0
    %p102 = por %p100, %p101
    %p103 = scmp.ne.s32.totalorder %s91, %s92
    %p104 = scmp.eq.s32.totalorder %s19, 1
    %p105 = por %p103, %p104
    %p107 = scmp.ne.s32.totalorder %s92, %s106
    %p108 = scmp.eq.s32.totalorder %s19, 0
    %p109 = por %p107, %p108
    %s111 = sadd.s32 %s110, 1
    %p114 = scmp.eq.s32.totalorder %s13, 1
    %p115 = scmp.ne.s32.totalorder %s110, %s112
    %p116 = scmp.eq.s32.totalorder %s13, 0
    %p117 = por %p115, %p116
    %p118 = scmp.ne.s32.totalorder %s110, %s112
    %p119 = scmp.eq.s32.totalorder %s18, 1
    %p120 = por %p118, %p119
    %p121 = scmp.ne.s32.totalorder %s112, %s113
    %p122 = scmp.eq.s32.totalorder %s18, 0
    %p123 = por %p121, %p122
    %p124 = scmp.ne.s32.totalorder %s112, %s113
    %p125 = scmp.eq.s32.totalorder %s19, 1
    %p126 = por %p124, %p125
    %p128 = scmp.ne.s32.totalorder %s113, %s127
    %p129 = scmp.eq.s32.totalorder %s19, 0
    %p130 = por %p128, %p129
    %s132 = sadd.s32 %s131, 1
    %p135 = scmp.eq.s32.totalorder %s13, 1
    %p136 = scmp.ne.s32.totalorder %s131, %s133
    %p137 = scmp.eq.s32.totalorder %s13, 0
    %p138 = por %p136, %p137
    %p139 = scmp.ne.s32.totalorder %s131, %s133
    %p140 = scmp.eq.s32.totalorder %s18, 1
    %p141 = por %p139, %p140
    %p142 = scmp.ne.s32.totalorder %s133, %s134
    %p143 = scmp.eq.s32.totalorder %s18, 0
    %p144 = por %p142, %p143
    %p145 = scmp.ne.s32.totalorder %s133, %s134
    %p146 = scmp.eq.s32.totalorder %s19, 1
    %p147 = por %p145, %p146
    %p149 = scmp.ne.s32.totalorder %s134, %s148
    %p150 = scmp.eq.s32.totalorder %s19, 0
    %p151 = por %p149, %p150
    %s153 = sadd.s32 %s152, 1
    %p156 = scmp.eq.s32.totalorder %s13, 1
    %p157 = scmp.ne.s32.totalorder %s152, %s154
    %p158 = scmp.eq.s32.totalorder %s13, 0
    %p159 = por %p157, %p158
    %p160 = scmp.ne.s32.totalorder %s152, %s154
    %p161 = scmp.eq.s32.totalorder %s18, 1
    %p162 = por %p160, %p161
    %p163 = scmp.ne.s32.totalorder %s154, %s155
    %p164 = scmp.eq.s32.totalorder %s18, 0
    %p165 = por %p163, %p164
    %p166 = scmp.ne.s32.totalorder %s154, %s155
    %p167 = scmp.eq.s32.totalorder %s19, 1
    %p168 = por %p166, %p167
    %p170 = scmp.ne.s32.totalorder %s155, %s169
    %p171 = scmp.eq.s32.totalorder %s19, 0
    %p172 = por %p170, %p171
    %s173 = ssub.s32 %s13, %s20
    %p174 = scmp.eq.s32.totalorder %s173, 0
    %s176 = sadd.s32 %s175, 1
    %s177 = scalar_select %p174, %s175, %s176
    %p180 = pneg %p174
    %p181 = scmp.eq.s32.totalorder %s13, 1
    %p182 = por %p180, %p181
    %p183 = scmp.ne.s32.totalorder %s175, %s178
    %p184 = scmp.eq.s32.totalorder %s13, 0
    %p185 = por %p183, %p184
    %p186 = scmp.ne.s32.totalorder %s175, %s178
    %p187 = scmp.eq.s32.totalorder %s18, 1
    %p188 = por %p186, %p187
    %p189 = scmp.ne.s32.totalorder %s178, %s179
    %p190 = scmp.eq.s32.totalorder %s18, 0
    %p191 = por %p189, %p190
    %p192 = scmp.ne.s32.totalorder %s178, %s179
    %p193 = scmp.eq.s32.totalorder %s19, 1
    %p194 = por %p192, %p193
    %p196 = scmp.ne.s32.totalorder %s179, %s195
    %p197 = scmp.eq.s32.totalorder %s19, 0
    %p198 = por %p196, %p197
    %p199 = scmp.le.s32.totalorder 1, %s13
    %p200 = scmp.lt.s32.totalorder %s13, 3
    %p201 = pnand %p199, %p200
    %p202 = pneg %p201
    // Predicated region
    $region9: #{bottleneck_pallas.1} parent=5 // pred_check
      _
    $region10: #{bottleneck_pallas.1} parent=5 // pred_check_branch
      %204 = sbr.rel (%p201) target = $region12
    $region11: #{bottleneck_pallas.1} parent=5 // pred_region
      %s205 = ssub.s32 %s13, 1
      // Predicated region
      $region13: #{bottleneck_pallas.1} parent=11 // pred_check
        %p206 = pneg %p60
      $region14: #{bottleneck_pallas.1} parent=11 // pred_check_branch
        %208 = sbr.rel (%p206) target = $region16
      $region15: #{bottleneck_pallas.1} parent=11 // pred_region
        _
      $region16: #{bottleneck_pallas.1} parent=11 // pred_fallthru
        _
      // Predicated region
      $region17: #{bottleneck_pallas.1} parent=11 // pred_check
        %p209 = pneg %p81
      $region18: #{bottleneck_pallas.1} parent=11 // pred_check_branch
        %211 = sbr.rel (%p209) target = $region20
      $region19: #{bottleneck_pallas.1} parent=11 // pred_region
        _
      $region20: #{bottleneck_pallas.1} parent=11 // pred_fallthru
        _
      // Predicated region
      $region21: #{bottleneck_pallas.1} parent=11 // pred_check
        %p212 = pneg %p102
      $region22: #{bottleneck_pallas.1} parent=11 // pred_check_branch
        %214 = sbr.rel (%p212) target = $region24
      $region23: #{bottleneck_pallas.1} parent=11 // pred_region
        _
      $region24: #{bottleneck_pallas.1} parent=11 // pred_fallthru
        _
      // Predicated region
      $region25: #{bottleneck_pallas.1} parent=11 // pred_check
        %p215 = pneg %p123
      $region26: #{bottleneck_pallas.1} parent=11 // pred_check_branch
        %217 = sbr.rel (%p215) target = $region28
      $region27: #{bottleneck_pallas.1} parent=11 // pred_region
        _
      $region28: #{bottleneck_pallas.1} parent=11 // pred_fallthru
        _
      // Predicated region
      $region29: #{bottleneck_pallas.1} parent=11 // pred_check
        %p218 = pneg %p144
      $region30: #{bottleneck_pallas.1} parent=11 // pred_check_branch
        %220 = sbr.rel (%p218) target = $region32
      $region31: #{bottleneck_pallas.1} parent=11 // pred_region
        _
      $region32: #{bottleneck_pallas.1} parent=11 // pred_fallthru
        _
      // Predicated region
      $region33: #{bottleneck_pallas.1} parent=11 // pred_check
        %p221 = pneg %p165
      $region34: #{bottleneck_pallas.1} parent=11 // pred_check_branch
        %223 = sbr.rel (%p221) target = $region36
      $region35: #{bottleneck_pallas.1} parent=11 // pred_region
        _
      $region36: #{bottleneck_pallas.1} parent=11 // pred_fallthru
        _
    $region12: #{bottleneck_pallas.1} parent=5 // pred_fallthru
      _
    %p224 = scmp.lt.s32.totalorder %s13, 2
    // Predicated region
    $region37: #{bottleneck_pallas.1} parent=5 // pred_check
      %p225 = pneg %p224
    $region38: #{bottleneck_pallas.1} parent=5 // pred_check_branch
      %227 = sbr.rel (%p225) target = $region40
    $region39: #{bottleneck_pallas.1} parent=5 // pred_region
      // Predicated region
      $region41: #{bottleneck_pallas.1} parent=39 // pred_check
        %p228 = pneg %p33
      $region42: #{bottleneck_pallas.1} parent=39 // pred_check_branch
        %230 = sbr.rel (%p228) target = $region44
      $region43: #{bottleneck_pallas.1} parent=39 // pred_region
        %p231 = scmp.lt.s32.totalorder %s13, 1
        %s232 = scalar_select %p231, %s13, 1
        %s233 = smul.addr %s232, 32
        %s234 = smul.addr %s233, 4
        %s235 = scalar_lea.vmem %s0, %s234
      $region44: #{bottleneck_pallas.1} parent=39 // pred_fallthru
        _
    $region40: #{bottleneck_pallas.1} parent=5 // pred_fallthru
      _
    %p236 = scmp.le.s32.totalorder 1, %s13
    %p237 = scmp.lt.s32.totalorder %s13, 3
    %p238 = pnand %p236, %p237
    %p239 = pneg %p238
    // Predicated region
    $region45: #{bottleneck_pallas.1} parent=5 // pred_check
      _
    $region46: #{bottleneck_pallas.1} parent=5 // pred_check_branch
      %241 = sbr.rel (%p238) target = $region48
    $region47: #{bottleneck_pallas.1} parent=5 // pred_region
      %s242 = ssub.s32 %s13, 1
      %p243 = scmp.lt.s32.totalorder %s18, 1
      %s244 = scalar_select %p243, %s18, 1
      %s245 = smul.addr %s244, 32
      %s246 = smul.addr %s245, 4
      %s247 = scalar_lea.vmem %s0, %s246
      %p248 = pneg %p39
      %p249 = pneg %p36
      %p250 = pneg %p60
      %p251 = pneg %p57
      %p252 = pneg %p81
      %p253 = pneg %p78
      %p254 = pneg %p102
      %p255 = pneg %p99
      %p256 = pneg %p123
      %p257 = pneg %p120
      %p258 = pneg %p144
      %p259 = pneg %p141
      %p260 = pneg %p165
      %p261 = pneg %p162
      %p262 = pneg %p191
      %p263 = pneg %p188
      %p264 = scmp.lt.s32.totalorder %s18, 1
      %s265 = scalar_select %p264, %s18, 1
      %s266 = smul.addr %s265, 32
      %s267 = smul.addr %s266, 4
      %s268 = scalar_lea.vmem %s7, %s267
      %p269 = scmp.lt.s32.totalorder %s18, 1
      %s270 = scalar_select %p269, %s18, 1
      %s271 = smul.addr %s270, 32
      %s272 = smul.addr %s271, 4
      %s273 = scalar_lea.vmem %s0, %s272
      %p274 = scmp.lt.s32.totalorder %s18, 1
      %s275 = scalar_select %p274, %s18, 1
      %s276 = smul.addr %s275, 32
      %s277 = smul.addr %s276, 4
      %s278 = scalar_lea.vmem %s7, %s277
      %280 = vst [vmem:[#allocation2] sm:$0xff] 0.0
      %281 = vst [vmem:[#allocation2 + $0x8] sm:$0xff] 0.0
      %282 = vst [vmem:[#allocation2 + $0x10] sm:$0x3] 0.0
      %s283 = scalar_lea.vmem [#allocation2], 408
      %284 = vst [vmem:[%s283] sm:$0xff] 0.0
      %285 = vst [vmem:[%s283 + $0x8] sm:$0xff] 0.0
      %286 = vst [vmem:[%s283 + $0x10] sm:$0x3] 0.0
      %287 = vst [vmem:[#allocation2] sm:$0x1] 0.0
      %288 = vst [vmem:[#allocation2 + $0x18] sm:$0x1] 0.0
      %289 = vst [vmem:[#allocation2 + $0x30] sm:$0x1] 0.0
      %290 = vst [vmem:[#allocation2 + $0x48] sm:$0x1] 0.0
      %291 = vst [vmem:[#allocation2 + $0x60] sm:$0x1] 0.0
      %292 = vst [vmem:[#allocation2 + $0x78] sm:$0x1] 0.0
      %293 = vst [vmem:[#allocation2 + $0x90] sm:$0x1] 0.0
      %294 = vst [vmem:[#allocation2 + $0xa8] sm:$0x1] 0.0
      %295 = vst [vmem:[#allocation2 + $0xc0] sm:$0x1] 0.0
      %296 = vst [vmem:[#allocation2 + $0xd8] sm:$0x1] 0.0
      %297 = vst [vmem:[#allocation2 + $0xf0] sm:$0x1] 0.0
      %298 = vst [vmem:[#allocation2 + $0x108] sm:$0x1] 0.0
      %299 = vst [vmem:[#allocation2 + $0x120] sm:$0x1] 0.0
      %300 = vst [vmem:[#allocation2 + $0x138] sm:$0x1] 0.0
      %301 = vst [vmem:[#allocation2 + $0x150] sm:$0x1] 0.0
      %302 = vst [vmem:[#allocation2 + $0x168] sm:$0x1] 0.0
      %303 = vst [vmem:[#allocation2 + $0x180] sm:$0x1] 0.0
      %304 = vst [vmem:[#allocation2 + $0x198] sm:$0x1] 0.0
      %305 = vst [vmem:[#allocation2 + $0x11] sm:$0x1] 0.0
      %306 = vst [vmem:[#allocation2 + $0x29] sm:$0x1] 0.0
      %307 = vst [vmem:[#allocation2 + $0x41] sm:$0x1] 0.0
      %308 = vst [vmem:[#allocation2 + $0x59] sm:$0x1] 0.0
      %309 = vst [vmem:[#allocation2 + $0x71] sm:$0x1] 0.0
      %310 = vst [vmem:[#allocation2 + $0x89] sm:$0x1] 0.0
      %311 = vst [vmem:[#allocation2 + $0xa1] sm:$0x1] 0.0
      %312 = vst [vmem:[#allocation2 + $0xb9] sm:$0x1] 0.0
      %313 = vst [vmem:[#allocation2 + $0xd1] sm:$0x1] 0.0
      %314 = vst [vmem:[#allocation2 + $0xe9] sm:$0x1] 0.0
      %315 = vst [vmem:[#allocation2 + $0x101] sm:$0x1] 0.0
      %316 = vst [vmem:[#allocation2 + $0x119] sm:$0x1] 0.0
      %317 = vst [vmem:[#allocation2 + $0x131] sm:$0x1] 0.0
      %318 = vst [vmem:[#allocation2 + $0x149] sm:$0x1] 0.0
      %319 = vst [vmem:[#allocation2 + $0x161] sm:$0x1] 0.0
      %320 = vst [vmem:[#allocation2 + $0x179] sm:$0x1] 0.0
      %321 = vst [vmem:[#allocation2 + $0x191] sm:$0x1] 0.0
      %322 = vst [vmem:[#allocation2 + $0x1a9] sm:$0x1] 0.0
      %323 = vst [vmem:[#allocation3] sm:$0xff] 0.0
      %324 = vst [vmem:[#allocation3 + $0x8] sm:$0xff] 0.0
      %325 = vst [vmem:[#allocation3 + $0x10] sm:$0x3] 0.0
      %s326 = scalar_lea.vmem [#allocation3], 408
      %327 = vst [vmem:[%s326] sm:$0xff] 0.0
      %328 = vst [vmem:[%s326 + $0x8] sm:$0xff] 0.0
      %329 = vst [vmem:[%s326 + $0x10] sm:$0x3] 0.0
      %330 = vst [vmem:[#allocation3] sm:$0x1] 0.0
      %331 = vst [vmem:[#allocation3 + $0x18] sm:$0x1] 0.0
      %332 = vst [vmem:[#allocation3 + $0x30] sm:$0x1] 0.0
      %333 = vst [vmem:[#allocation3 + $0x48] sm:$0x1] 0.0
      %334 = vst [vmem:[#allocation3 + $0x60] sm:$0x1] 0.0
      %335 = vst [vmem:[#allocation3 + $0x78] sm:$0x1] 0.0
      %336 = vst [vmem:[#allocation3 + $0x90] sm:$0x1] 0.0
      %337 = vst [vmem:[#allocation3 + $0xa8] sm:$0x1] 0.0
      %338 = vst [vmem:[#allocation3 + $0xc0] sm:$0x1] 0.0
      %339 = vst [vmem:[#allocation3 + $0xd8] sm:$0x1] 0.0
      %340 = vst [vmem:[#allocation3 + $0xf0] sm:$0x1] 0.0
      %341 = vst [vmem:[#allocation3 + $0x108] sm:$0x1] 0.0
      %342 = vst [vmem:[#allocation3 + $0x120] sm:$0x1] 0.0
      %343 = vst [vmem:[#allocation3 + $0x138] sm:$0x1] 0.0
      %344 = vst [vmem:[#allocation3 + $0x150] sm:$0x1] 0.0
      %345 = vst [vmem:[#allocation3 + $0x168] sm:$0x1] 0.0
      %346 = vst [vmem:[#allocation3 + $0x180] sm:$0x1] 0.0
      %347 = vst [vmem:[#allocation3 + $0x198] sm:$0x1] 0.0
      %348 = vst [vmem:[#allocation3 + $0x11] sm:$0x1] 0.0
      %349 = vst [vmem:[#allocation3 + $0x29] sm:$0x1] 0.0
      %350 = vst [vmem:[#allocation3 + $0x41] sm:$0x1] 0.0
      %351 = vst [vmem:[#allocation3 + $0x59] sm:$0x1] 0.0
      %352 = vst [vmem:[#allocation3 + $0x71] sm:$0x1] 0.0
      %353 = vst [vmem:[#allocation3 + $0x89] sm:$0x1] 0.0
      %354 = vst [vmem:[#allocation3 + $0xa1] sm:$0x1] 0.0
      %355 = vst [vmem:[#allocation3 + $0xb9] sm:$0x1] 0.0
      %356 = vst [vmem:[#allocation3 + $0xd1] sm:$0x1] 0.0
      %357 = vst [vmem:[#allocation3 + $0xe9] sm:$0x1] 0.0
      %358 = vst [vmem:[#allocation3 + $0x101] sm:$0x1] 0.0
      %359 = vst [vmem:[#allocation3 + $0x119] sm:$0x1] 0.0
      %360 = vst [vmem:[#allocation3 + $0x131] sm:$0x1] 0.0
      %361 = vst [vmem:[#allocation3 + $0x149] sm:$0x1] 0.0
      %362 = vst [vmem:[#allocation3 + $0x161] sm:$0x1] 0.0
      %363 = vst [vmem:[#allocation3 + $0x179] sm:$0x1] 0.0
      %364 = vst [vmem:[#allocation3 + $0x191] sm:$0x1] 0.0
      %365 = vst [vmem:[#allocation3 + $0x1a9] sm:$0x1] 0.0
      %v366 = vld [vmem:[%s273] sm:$0xf]
      %v367 = vld [vmem:[%s273 + $0x4] sm:$0xf]
      %v368 = vld [vmem:[%s273 + $0x8] sm:$0xf]
      %v369 = vld [vmem:[%s273 + $0xc] sm:$0xf]
      %v370 = vld [vmem:[%s273 + $0x10] sm:$0xf]
      %v371 = vld [vmem:[%s273 + $0x14] sm:$0xf]
      %v372 = vld [vmem:[%s273 + $0x18] sm:$0xf]
      %v373 = vld [vmem:[%s273 + $0x1c] sm:$0xf]
      %v374 = vld [vmem:[%s273 + $0x20] sm:$0xf]
      %v375 = vld [vmem:[%s273 + $0x24] sm:$0xf]
      %v376 = vld [vmem:[%s273 + $0x28] sm:$0xf]
      %v377 = vld [vmem:[%s273 + $0x2c] sm:$0xf]
      %v378 = vld [vmem:[%s273 + $0x30] sm:$0xf]
      %v379 = vld [vmem:[%s273 + $0x34] sm:$0xf]
      %v380 = vld [vmem:[%s273 + $0x38] sm:$0xf]
      %v381 = vld [vmem:[%s273 + $0x3c] sm:$0xf]
      %v382 = vld [vmem:[%s273 + $0x40] sm:$0xf]
      %v383 = vld [vmem:[%s273 + $0x44] sm:$0xf]
      %v384 = vld [vmem:[%s273 + $0x48] sm:$0xf]
      %v385 = vld [vmem:[%s273 + $0x4c] sm:$0xf]
      %v386 = vld [vmem:[%s273 + $0x50] sm:$0xf]
      %v387 = vld [vmem:[%s273 + $0x54] sm:$0xf]
      %v388 = vld [vmem:[%s273 + $0x58] sm:$0xf]
      %v389 = vld [vmem:[%s273 + $0x5c] sm:$0xf]
      %v390 = vld [vmem:[%s273 + $0x60] sm:$0xf]
      %v391 = vld [vmem:[%s273 + $0x64] sm:$0xf]
      %v392 = vld [vmem:[%s273 + $0x68] sm:$0xf]
      %v393 = vld [vmem:[%s273 + $0x6c] sm:$0xf]
      %v394 = vld [vmem:[%s273 + $0x70] sm:$0xf]
      %v395 = vld [vmem:[%s273 + $0x74] sm:$0xf]
      %v396 = vld [vmem:[%s273 + $0x78] sm:$0xf]
      %v397 = vld [vmem:[%s273 + $0x7c] sm:$0xf]
      %v398 = vunpack.c.l.bf16 %v366
      %v399 = vunpack.c.l.bf16 %v367
      %v400 = vunpack.c.l.bf16 %v368
      %v401 = vunpack.c.l.bf16 %v369
      %v402 = vunpack.c.l.bf16 %v370
      %v403 = vunpack.c.l.bf16 %v371
      %v404 = vunpack.c.l.bf16 %v372
      %v405 = vunpack.c.l.bf16 %v373
      %v406 = vunpack.c.l.bf16 %v374
      %v407 = vunpack.c.l.bf16 %v375
      %v408 = vunpack.c.l.bf16 %v376
      %v409 = vunpack.c.l.bf16 %v377
      %v410 = vunpack.c.l.bf16 %v378
      %v411 = vunpack.c.l.bf16 %v379
      %v412 = vunpack.c.l.bf16 %v380
      %v413 = vunpack.c.l.bf16 %v381
      %v414 = vunpack.c.l.bf16 %v382
      %v415 = vunpack.c.l.bf16 %v383
      %v416 = vunpack.c.l.bf16 %v384
      %v417 = vunpack.c.l.bf16 %v385
      %v418 = vunpack.c.l.bf16 %v386
      %v419 = vunpack.c.l.bf16 %v387
      %v420 = vunpack.c.l.bf16 %v388
      %v421 = vunpack.c.l.bf16 %v389
      %v422 = vunpack.c.l.bf16 %v390
      %v423 = vunpack.c.l.bf16 %v391
      %v424 = vunpack.c.l.bf16 %v392
      %v425 = vunpack.c.l.bf16 %v393
      %v426 = vunpack.c.l.bf16 %v394
      %v427 = vunpack.c.l.bf16 %v395
      %v428 = vunpack.c.l.bf16 %v396
      %v429 = vunpack.c.l.bf16 %v397
      %s430 = scalar_lea.vmem [#allocation2], 24
      %431 = vst [vmem:[%s430 + $0x1] sm:$0xff] %v398
      %432 = vst [vmem:[%s430 + $0x9] sm:$0xff] %v399
      %433 = vst [vmem:[%s430 + $0x19] sm:$0xff] %v400
      %434 = vst [vmem:[%s430 + $0x21] sm:$0xff] %v401
      %435 = vst [vmem:[%s430 + $0x31] sm:$0xff] %v402
      %436 = vst [vmem:[%s430 + $0x39] sm:$0xff] %v403
      %437 = vst [vmem:[%s430 + $0x49] sm:$0xff] %v404
      %438 = vst [vmem:[%s430 + $0x51] sm:$0xff] %v405
      %439 = vst [vmem:[%s430 + $0x61] sm:$0xff] %v406
      %440 = vst [vmem:[%s430 + $0x69] sm:$0xff] %v407
      %441 = vst [vmem:[%s430 + $0x79] sm:$0xff] %v408
      %442 = vst [vmem:[%s430 + $0x81] sm:$0xff] %v409
      %443 = vst [vmem:[%s430 + $0x91] sm:$0xff] %v410
      %444 = vst [vmem:[%s430 + $0x99] sm:$0xff] %v411
      %445 = vst [vmem:[%s430 + $0xa9] sm:$0xff] %v412
      %446 = vst [vmem:[%s430 + $0xb1] sm:$0xff] %v413
      %447 = vst [vmem:[%s430 + $0xc1] sm:$0xff] %v414
      %448 = vst [vmem:[%s430 + $0xc9] sm:$0xff] %v415
      %449 = vst [vmem:[%s430 + $0xd9] sm:$0xff] %v416
      %450 = vst [vmem:[%s430 + $0xe1] sm:$0xff] %v417
      %451 = vst [vmem:[%s430 + $0xf1] sm:$0xff] %v418
      %452 = vst [vmem:[%s430 + $0xf9] sm:$0xff] %v419
      %453 = vst [vmem:[%s430 + $0x109] sm:$0xff] %v420
      %454 = vst [vmem:[%s430 + $0x111] sm:$0xff] %v421
      %455 = vst [vmem:[%s430 + $0x121] sm:$0xff] %v422
      %456 = vst [vmem:[%s430 + $0x129] sm:$0xff] %v423
      %457 = vst [vmem:[%s430 + $0x139] sm:$0xff] %v424
      %458 = vst [vmem:[%s430 + $0x141] sm:$0xff] %v425
      %459 = vst [vmem:[%s430 + $0x151] sm:$0xff] %v426
      %460 = vst [vmem:[%s430 + $0x159] sm:$0xff] %v427
      %461 = vst [vmem:[%s430 + $0x169] sm:$0xff] %v428
      %462 = vst [vmem:[%s430 + $0x171] sm:$0xff] %v429
      %v463 = vld [vmem:[#allocation2] sm:$0xff]
      %v464 = vld [vmem:[#allocation2 + $0x8] sm:$0xff]
      %v465 = vld [vmem:[#allocation2 + $0x18] sm:$0xff]
      %v466 = vld [vmem:[#allocation2 + $0x20] sm:$0xff]
      %v467 = vld [vmem:[#allocation2 + $0x30] sm:$0xff]
      %v468 = vld [vmem:[#allocation2 + $0x38] sm:$0xff]
      %v469 = vld [vmem:[#allocation2 + $0x48] sm:$0xff]
      %v470 = vld [vmem:[#allocation2 + $0x50] sm:$0xff]
      %v471 = vld [vmem:[#allocation2 + $0x60] sm:$0xff]
      %v472 = vld [vmem:[#allocation2 + $0x68] sm:$0xff]
      %v473 = vld [vmem:[#allocation2 + $0x78] sm:$0xff]
      %v474 = vld [vmem:[#allocation2 + $0x80] sm:$0xff]
      %v475 = vld [vmem:[#allocation2 + $0x90] sm:$0xff]
      %v476 = vld [vmem:[#allocation2 + $0x98] sm:$0xff]
      %v477 = vld [vmem:[#allocation2 + $0xa8] sm:$0xff]
      %v478 = vld [vmem:[#allocation2 + $0xb0] sm:$0xff]
      %v479 = vld [vmem:[#allocation2 + $0xc0] sm:$0xff]
      %v480 = vld [vmem:[#allocation2 + $0xc8] sm:$0xff]
      %v481 = vld [vmem:[#allocation2 + $0xd8] sm:$0xff]
      %v482 = vld [vmem:[#allocation2 + $0xe0] sm:$0xff]
      %v483 = vld [vmem:[#allocation2 + $0xf0] sm:$0xff]
      %v484 = vld [vmem:[#allocation2 + $0xf8] sm:$0xff]
      %v485 = vld [vmem:[#allocation2 + $0x108] sm:$0xff]
      %v486 = vld [vmem:[#allocation2 + $0x110] sm:$0xff]
      %v487 = vld [vmem:[#allocation2 + $0x120] sm:$0xff]
      %v488 = vld [vmem:[#allocation2 + $0x128] sm:$0xff]
      %v489 = vld [vmem:[#allocation2 + $0x138] sm:$0xff]
      %v490 = vld [vmem:[#allocation2 + $0x140] sm:$0xff]
      %v491 = vld [vmem:[#allocation2 + $0x150] sm:$0xff]
      %v492 = vld [vmem:[#allocation2 + $0x158] sm:$0xff]
      %v493 = vld [vmem:[#allocation2 + $0x168] sm:$0xff]
      %v494 = vld [vmem:[#allocation2 + $0x170] sm:$0xff]
      %v495 = vpack.c.bf16 %v464, %v463
      %v496 = vpack.c.bf16 %v466, %v465
      %v497 = vpack.c.bf16 %v468, %v467
      %v498 = vpack.c.bf16 %v470, %v469
      %v499 = vpack.c.bf16 %v472, %v471
      %v500 = vpack.c.bf16 %v474, %v473
      %v501 = vpack.c.bf16 %v476, %v475
      %v502 = vpack.c.bf16 %v478, %v477
      %v503 = vpack.c.bf16 %v480, %v479
      %v504 = vpack.c.bf16 %v482, %v481
      %v505 = vpack.c.bf16 %v484, %v483
      %v506 = vpack.c.bf16 %v486, %v485
      %v507 = vpack.c.bf16 %v488, %v487
      %v508 = vpack.c.bf16 %v490, %v489
      %v509 = vpack.c.bf16 %v492, %v491
      %v510 = vpack.c.bf16 %v494, %v493
      %v511 = vld [vmem:[%s1] sm:$0xf]
      %v512 = vld [vmem:[%s1 + $0x4] sm:$0xf]
      %v513 = vld [vmem:[%s1 + $0x8] sm:$0xf]
      %v514 = vld [vmem:[%s1 + $0xc] sm:$0xf]
      %v515 = vld [vmem:[%s1 + $0x10] sm:$0xf]
      %v516 = vld [vmem:[%s1 + $0x14] sm:$0xf]
      %v517 = vld [vmem:[%s1 + $0x18] sm:$0xf]
      %v518 = vld [vmem:[%s1 + $0x1c] sm:$0xf]
      %v519 = vld [vmem:[%s1 + $0x20] sm:$0xf]
      %v520 = vld [vmem:[%s1 + $0x24] sm:$0xf]
      %v521 = vld [vmem:[%s1 + $0x28] sm:$0xf]
      %v522 = vld [vmem:[%s1 + $0x2c] sm:$0xf]
      %v523 = vld [vmem:[%s1 + $0x30] sm:$0xf]
      %v524 = vld [vmem:[%s1 + $0x34] sm:$0xf]
      %v525 = vld [vmem:[%s1 + $0x38] sm:$0xf]
      %v526 = vld [vmem:[%s1 + $0x3c] sm:$0xf]
      %v527 = vld [vmem:[#allocation2 + $0x1] sm:$0xff]
      %v528 = vld [vmem:[#allocation2 + $0x9] sm:$0xff]
      %v529 = vld [vmem:[#allocation2 + $0x19] sm:$0xff]
      %v530 = vld [vmem:[#allocation2 + $0x21] sm:$0xff]
      %v531 = vld [vmem:[#allocation2 + $0x31] sm:$0xff]
      %v532 = vld [vmem:[#allocation2 + $0x39] sm:$0xff]
      %v533 = vld [vmem:[#allocation2 + $0x49] sm:$0xff]
      %v534 = vld [vmem:[#allocation2 + $0x51] sm:$0xff]
      %v535 = vld [vmem:[#allocation2 + $0x61] sm:$0xff]
      %v536 = vld [vmem:[#allocation2 + $0x69] sm:$0xff]
      %v537 = vld [vmem:[#allocation2 + $0x79] sm:$0xff]
      %v538 = vld [vmem:[#allocation2 + $0x81] sm:$0xff]
      %v539 = vld [vmem:[#allocation2 + $0x91] sm:$0xff]
      %v540 = vld [vmem:[#allocation2 + $0x99] sm:$0xff]
      %v541 = vld [vmem:[#allocation2 + $0xa9] sm:$0xff]
      %v542 = vld [vmem:[#allocation2 + $0xb1] sm:$0xff]
      %v543 = vld [vmem:[#allocation2 + $0xc1] sm:$0xff]
      %v544 = vld [vmem:[#allocation2 + $0xc9] sm:$0xff]
      %v545 = vld [vmem:[#allocation2 + $0xd9] sm:$0xff]
      %v546 = vld [vmem:[#allocation2 + $0xe1] sm:$0xff]
      %v547 = vld [vmem:[#allocation2 + $0xf1] sm:$0xff]
      %v548 = vld [vmem:[#allocation2 + $0xf9] sm:$0xff]
      %v549 = vld [vmem:[#allocation2 + $0x109] sm:$0xff]
      %v550 = vld [vmem:[#allocation2 + $0x111] sm:$0xff]
      %v551 = vld [vmem:[#allocation2 + $0x121] sm:$0xff]
      %v552 = vld [vmem:[#allocation2 + $0x129] sm:$0xff]
      %v553 = vld [vmem:[#allocation2 + $0x139] sm:$0xff]
      %v554 = vld [vmem:[#allocation2 + $0x141] sm:$0xff]
      %v555 = vld [vmem:[#allocation2 + $0x151] sm:$0xff]
      %v556 = vld [vmem:[#allocation2 + $0x159] sm:$0xff]
      %v557 = vld [vmem:[#allocation2 + $0x169] sm:$0xff]
      %v558 = vld [vmem:[#allocation2 + $0x171] sm:$0xff]
      %v559 = vpack.c.bf16 %v528, %v527
      %v560 = vpack.c.bf16 %v530, %v529
      %v561 = vpack.c.bf16 %v532, %v531
      %v562 = vpack.c.bf16 %v534, %v533
      %v563 = vpack.c.bf16 %v536, %v535
      %v564 = vpack.c.bf16 %v538, %v537
      %v565 = vpack.c.bf16 %v540, %v539
      %v566 = vpack.c.bf16 %v542, %v541
      %v567 = vpack.c.bf16 %v544, %v543
      %v568 = vpack.c.bf16 %v546, %v545
      %v569 = vpack.c.bf16 %v548, %v547
      %v570 = vpack.c.bf16 %v550, %v549
      %v571 = vpack.c.bf16 %v552, %v551
      %v572 = vpack.c.bf16 %v554, %v553
      %v573 = vpack.c.bf16 %v556, %v555
      %v574 = vpack.c.bf16 %v558, %v557
      %v575 = vld [vmem:[%s1 + $0x40] sm:$0xf]
      %v576 = vld [vmem:[%s1 + $0x44] sm:$0xf]
      %v577 = vld [vmem:[%s1 + $0x48] sm:$0xf]
      %v578 = vld [vmem:[%s1 + $0x4c] sm:$0xf]
      %v579 = vld [vmem:[%s1 + $0x50] sm:$0xf]
      %v580 = vld [vmem:[%s1 + $0x54] sm:$0xf]
      %v581 = vld [vmem:[%s1 + $0x58] sm:$0xf]
      %v582 = vld [vmem:[%s1 + $0x5c] sm:$0xf]
      %v583 = vld [vmem:[%s1 + $0x60] sm:$0xf]
      %v584 = vld [vmem:[%s1 + $0x64] sm:$0xf]
      %v585 = vld [vmem:[%s1 + $0x68] sm:$0xf]
      %v586 = vld [vmem:[%s1 + $0x6c] sm:$0xf]
      %v587 = vld [vmem:[%s1 + $0x70] sm:$0xf]
      %v588 = vld [vmem:[%s1 + $0x74] sm:$0xf]
      %v589 = vld [vmem:[%s1 + $0x78] sm:$0xf]
      %v590 = vld [vmem:[%s1 + $0x7c] sm:$0xf]
      %v607 = vunpack.c.l.b16 %v575
      %v608 = vunpack.c.l.b16 %v576
      %v609 = vunpack.c.l.b16 %v577
      %v610 = vunpack.c.l.b16 %v578
      %v611 = vunpack.c.l.b16 %v579
      %v612 = vunpack.c.l.b16 %v580
      %v613 = vunpack.c.l.b16 %v581
      %v614 = vunpack.c.l.b16 %v582
      %v615 = vunpack.c.l.b16 %v583
      %v616 = vunpack.c.l.b16 %v584
      %v617 = vunpack.c.l.b16 %v585
      %v618 = vunpack.c.l.b16 %v586
      %v619 = vunpack.c.l.b16 %v587
      %v620 = vunpack.c.l.b16 %v588
      %v621 = vunpack.c.l.b16 %v589
      %v622 = vunpack.c.l.b16 %v590
      %v623 = vpack.c.b16 %v608, %v607
      %v624 = vpack.c.b16 %v610, %v609
      %v625 = vpack.c.b16 %v612, %v611
      %v626 = vpack.c.b16 %v614, %v613
      %v627 = vpack.c.b16 %v616, %v615
      %v628 = vpack.c.b16 %v618, %v617
      %v629 = vpack.c.b16 %v620, %v619
      %v630 = vpack.c.b16 %v622, %v621
      %639 = vmatprep.subr.bf16.mxu0 0
      %640 = vmatpush1.bf16.msra.mxu0 %v630
      %641 = vmatprep.subr.bf16.mxu0 0
      %642 = vmatpush1.bf16.msra.mxu0 %v629
      %643 = vmatprep.subr.bf16.mxu0 0
      %644 = vmatpush1.bf16.msra.mxu0 %v628
      %645 = vmatprep.subr.bf16.mxu0 0
      %646 = vmatpush1.bf16.msra.mxu0 %v627
      %647 = vmatprep.subr.bf16.mxu0 0
      %648 = vmatpush1.bf16.msra.mxu0 %v626
      %649 = vmatprep.subr.bf16.mxu0 0
      %650 = vmatpush1.bf16.msra.mxu0 %v625
      %651 = vmatprep.subr.bf16.mxu0 0
      %652 = vmatpush1.bf16.msra.mxu0 %v624
      %653 = vmatprep.subr.bf16.mxu0 0
      %654 = vmatpush1.bf16.msra.mxu0 %v623
      %655 = vmatprep.subr.bf16.mxu0 0
      %656 = vmatpush2.bf16.msra.mxu0 0
      %657 = vmatprep.subr.bf16.mxu0 0
      %658 = vmatpush2.bf16.msra.mxu0 0
      %659 = vmatprep.subr.bf16.mxu0 0
      %660 = vmatpush2.bf16.msra.mxu0 0
      %661 = vmatprep.subr.bf16.mxu0 0
      %662 = vmatpush2.bf16.msra.mxu0 0
      %663 = vmatprep.subr.bf16.mxu0 0
      %664 = vmatpush2.bf16.msra.mxu0 0
      %665 = vmatprep.subr.bf16.mxu0 0
      %666 = vmatpush2.bf16.msra.mxu0 0
      %667 = vmatprep.subr.bf16.mxu0 0
      %668 = vmatpush2.bf16.msra.mxu0 0
      %669 = vmatprep.subr.bf16.mxu0 0
      %670 = vmatpush2.bf16.msra.mxu0 0
      %671 = vmatprep.mubr.bf16.mxu0 0
      %672 = vmatmul.mubr.bf16.gmra.mxu0 %v559
      %v673 = vpop.f32.mrf.mxu0
      %v674 = vadd.f32 0.0, %v673
      %v675 = vpop.f32.mrf.mxu0
      %v676 = vpop.f32.mrf.mxu0
      %v677 = vadd.f32 0.0, %v676
      %v678 = vpop.f32.mrf.mxu0
      %679 = vmatprep.mubr.bf16.mxu0 0
      %680 = vmatmul.mubr.bf16.gmra.mxu0 %v560
      %v681 = vpop.f32.mrf.mxu0
      %v682 = vadd.f32 0.0, %v681
      %v683 = vpop.f32.mrf.mxu0
      %v684 = vpop.f32.mrf.mxu0
      %v685 = vadd.f32 0.0, %v684
      %v686 = vpop.f32.mrf.mxu0
      %687 = vmatprep.mubr.bf16.mxu0 0
      %688 = vmatmul.mubr.bf16.gmra.mxu0 %v561
      %v689 = vpop.f32.mrf.mxu0
      %v690 = vadd.f32 0.0, %v689
      %v691 = vpop.f32.mrf.mxu0
      %v692 = vpop.f32.mrf.mxu0
      %v693 = vadd.f32 0.0, %v692
      %v694 = vpop.f32.mrf.mxu0
      %695 = vmatprep.mubr.bf16.mxu0 0
      %696 = vmatmul.mubr.bf16.gmra.mxu0 %v562
      %v697 = vpop.f32.mrf.mxu0
      %v698 = vadd.f32 0.0, %v697
      %v699 = vpop.f32.mrf.mxu0
      %v700 = vpop.f32.mrf.mxu0
      %v701 = vadd.f32 0.0, %v700
      %v702 = vpop.f32.mrf.mxu0
      %703 = vmatprep.mubr.bf16.mxu0 0
      %704 = vmatmul.mubr.bf16.gmra.mxu0 %v563
      %v705 = vpop.f32.mrf.mxu0
      %v706 = vadd.f32 0.0, %v705
      %v707 = vpop.f32.mrf.mxu0
      %v708 = vpop.f32.mrf.mxu0
      %v709 = vadd.f32 0.0, %v708
      %v710 = vpop.f32.mrf.mxu0
      %711 = vmatprep.mubr.bf16.mxu0 0
      %712 = vmatmul.mubr.bf16.gmra.mxu0 %v564
      %v713 = vpop.f32.mrf.mxu0
      %v714 = vadd.f32 0.0, %v713
      %v715 = vpop.f32.mrf.mxu0
      %v716 = vpop.f32.mrf.mxu0
      %v717 = vadd.f32 0.0, %v716
      %v718 = vpop.f32.mrf.mxu0
      %719 = vmatprep.mubr.bf16.mxu0 0
      %720 = vmatmul.mubr.bf16.gmra.mxu0 %v565
      %v721 = vpop.f32.mrf.mxu0
      %v722 = vadd.f32 0.0, %v721
      %v723 = vpop.f32.mrf.mxu0
      %v724 = vpop.f32.mrf.mxu0
      %v725 = vadd.f32 0.0, %v724
      %v726 = vpop.f32.mrf.mxu0
      %727 = vmatprep.mubr.bf16.mxu0 0
      %728 = vmatmul.mubr.bf16.gmra.mxu0 %v566
      %v729 = vpop.f32.mrf.mxu0
      %v730 = vadd.f32 0.0, %v729
      %v731 = vpop.f32.mrf.mxu0
      %v732 = vpop.f32.mrf.mxu0
      %v733 = vadd.f32 0.0, %v732
      %v734 = vpop.f32.mrf.mxu0
      %735 = vmatprep.mubr.bf16.mxu0 0
      %736 = vmatmul.mubr.bf16.gmra.mxu0 %v567
      %v737 = vpop.f32.mrf.mxu0
      %v738 = vadd.f32 0.0, %v737
      %v739 = vpop.f32.mrf.mxu0
      %v740 = vpop.f32.mrf.mxu0
      %v741 = vadd.f32 0.0, %v740
      %v742 = vpop.f32.mrf.mxu0
      %743 = vmatprep.mubr.bf16.mxu0 0
      %744 = vmatmul.mubr.bf16.gmra.mxu0 %v568
      %v745 = vpop.f32.mrf.mxu0
      %v746 = vadd.f32 0.0, %v745
      %v747 = vpop.f32.mrf.mxu0
      %v748 = vpop.f32.mrf.mxu0
      %v749 = vadd.f32 0.0, %v748
      %v750 = vpop.f32.mrf.mxu0
      %751 = vmatprep.mubr.bf16.mxu0 0
      %752 = vmatmul.mubr.bf16.gmra.mxu0 %v569
      %v753 = vpop.f32.mrf.mxu0
      %v754 = vadd.f32 0.0, %v753
      %v755 = vpop.f32.mrf.mxu0
      %v756 = vpop.f32.mrf.mxu0
      %v757 = vadd.f32 0.0, %v756
      %v758 = vpop.f32.mrf.mxu0
      %759 = vmatprep.mubr.bf16.mxu0 0
      %760 = vmatmul.mubr.bf16.gmra.mxu0 %v570
      %v761 = vpop.f32.mrf.mxu0
      %v762 = vadd.f32 0.0, %v761
      %v763 = vpop.f32.mrf.mxu0
      %v764 = vpop.f32.mrf.mxu0
      %v765 = vadd.f32 0.0, %v764
      %v766 = vpop.f32.mrf.mxu0
      %767 = vmatprep.mubr.bf16.mxu0 0
      %768 = vmatmul.mubr.bf16.gmra.mxu0 %v571
      %v769 = vpop.f32.mrf.mxu0
      %v770 = vadd.f32 0.0, %v769
      %v771 = vpop.f32.mrf.mxu0
      %v772 = vpop.f32.mrf.mxu0
      %v773 = vadd.f32 0.0, %v772
      %v774 = vpop.f32.mrf.mxu0
      %775 = vmatprep.mubr.bf16.mxu0 0
      %776 = vmatmul.mubr.bf16.gmra.mxu0 %v572
      %v777 = vpop.f32.mrf.mxu0
      %v778 = vadd.f32 0.0, %v777
      %v779 = vpop.f32.mrf.mxu0
      %v780 = vpop.f32.mrf.mxu0
      %v781 = vadd.f32 0.0, %v780
      %v782 = vpop.f32.mrf.mxu0
      %783 = vmatprep.mubr.bf16.mxu0 0
      %784 = vmatmul.mubr.bf16.gmra.mxu0 %v573
      %v785 = vpop.f32.mrf.mxu0
      %v786 = vadd.f32 0.0, %v785
      %v787 = vpop.f32.mrf.mxu0
      %v788 = vpop.f32.mrf.mxu0
      %v789 = vadd.f32 0.0, %v788
      %v790 = vpop.f32.mrf.mxu0
      %791 = vmatprep.mubr.bf16.mxu0 0
      %792 = vmatmul.mubr.bf16.gmra.mxu0 %v574
      %v793 = vpop.f32.mrf.mxu0
      %v794 = vadd.f32 0.0, %v793
      %v795 = vpop.f32.mrf.mxu0
      %v796 = vpop.f32.mrf.mxu0
      %v797 = vadd.f32 0.0, %v796
      %v798 = vpop.f32.mrf.mxu0
      %799 = vdwg.mxu0
      %v816 = vunpack.c.l.b16 %v511
      %v817 = vunpack.c.l.b16 %v512
      %v818 = vunpack.c.l.b16 %v513
      %v819 = vunpack.c.l.b16 %v514
      %v820 = vunpack.c.l.b16 %v515
      %v821 = vunpack.c.l.b16 %v516
      %v822 = vunpack.c.l.b16 %v517
      %v823 = vunpack.c.l.b16 %v518
      %v824 = vunpack.c.l.b16 %v519
      %v825 = vunpack.c.l.b16 %v520
      %v826 = vunpack.c.l.b16 %v521
      %v827 = vunpack.c.l.b16 %v522
      %v828 = vunpack.c.l.b16 %v523
      %v829 = vunpack.c.l.b16 %v524
      %v830 = vunpack.c.l.b16 %v525
      %v831 = vunpack.c.l.b16 %v526
      %v832 = vpack.c.b16 %v817, %v816
      %v833 = vpack.c.b16 %v819, %v818
      %v834 = vpack.c.b16 %v821, %v820
      %v835 = vpack.c.b16 %v823, %v822
      %v836 = vpack.c.b16 %v825, %v824
      %v837 = vpack.c.b16 %v827, %v826
      %v838 = vpack.c.b16 %v829, %v828
      %v839 = vpack.c.b16 %v831, %v830
      %848 = vmatprep.subr.bf16.mxu0 0
      %849 = vmatpush1.bf16.msra.mxu0 %v839
      %850 = vmatprep.subr.bf16.mxu0 0
      %851 = vmatpush1.bf16.msra.mxu0 %v838
      %852 = vmatprep.subr.bf16.mxu0 0
      %853 = vmatpush1.bf16.msra.mxu0 %v837
      %854 = vmatprep.subr.bf16.mxu0 0
      %855 = vmatpush1.bf16.msra.mxu0 %v836
      %856 = vmatprep.subr.bf16.mxu0 0
      %857 = vmatpush1.bf16.msra.mxu0 %v835
      %858 = vmatprep.subr.bf16.mxu0 0
      %859 = vmatpush1.bf16.msra.mxu0 %v834
      %860 = vmatprep.subr.bf16.mxu0 0
      %861 = vmatpush1.bf16.msra.mxu0 %v833
      %862 = vmatprep.subr.bf16.mxu0 0
      %863 = vmatpush1.bf16.msra.mxu0 %v832
      %864 = vmatprep.subr.bf16.mxu0 0
      %865 = vmatpush2.bf16.msra.mxu0 0
      %866 = vmatprep.subr.bf16.mxu0 0
      %867 = vmatpush2.bf16.msra.mxu0 0
      %868 = vmatprep.subr.bf16.mxu0 0
      %869 = vmatpush2.bf16.msra.mxu0 0
      %870 = vmatprep.subr.bf16.mxu0 0
      %871 = vmatpush2.bf16.msra.mxu0 0
      %872 = vmatprep.subr.bf16.mxu0 0
      %873 = vmatpush2.bf16.msra.mxu0 0
      %874 = vmatprep.subr.bf16.mxu0 0
      %875 = vmatpush2.bf16.msra.mxu0 0
      %876 = vmatprep.subr.bf16.mxu0 0
      %877 = vmatpush2.bf16.msra.mxu0 0
      %878 = vmatprep.subr.bf16.mxu0 0
      %879 = vmatpush2.bf16.msra.mxu0 0
      %880 = vmatprep.mubr.bf16.mxu0 0
      %881 = vmatmul.mubr.bf16.gmra.mxu0 %v495
      %v882 = vpop.f32.mrf.mxu0
      %v883 = vadd.f32 %v674, %v882
      %v884 = vpop.f32.mrf.mxu0
      %v885 = vpop.f32.mrf.mxu0
      %v886 = vadd.f32 %v677, %v885
      %v887 = vpop.f32.mrf.mxu0
      %888 = vmatprep.mubr.bf16.mxu0 0
      %889 = vmatmul.mubr.bf16.gmra.mxu0 %v496
      %v890 = vpop.f32.mrf.mxu0
      %v891 = vadd.f32 %v682, %v890
      %v892 = vpop.f32.mrf.mxu0
      %v893 = vpop.f32.mrf.mxu0
      %v894 = vadd.f32 %v685, %v893
      %v895 = vpop.f32.mrf.mxu0
      %896 = vmatprep.mubr.bf16.mxu0 0
      %897 = vmatmul.mubr.bf16.gmra.mxu0 %v497
      %v898 = vpop.f32.mrf.mxu0
      %v899 = vadd.f32 %v690, %v898
      %v900 = vpop.f32.mrf.mxu0
      %v901 = vpop.f32.mrf.mxu0
      %v902 = vadd.f32 %v693, %v901
      %v903 = vpop.f32.mrf.mxu0
      %904 = vmatprep.mubr.bf16.mxu0 0
      %905 = vmatmul.mubr.bf16.gmra.mxu0 %v498
      %v906 = vpop.f32.mrf.mxu0
      %v907 = vadd.f32 %v698, %v906
      %v908 = vpop.f32.mrf.mxu0
      %v909 = vpop.f32.mrf.mxu0
      %v910 = vadd.f32 %v701, %v909
      %v911 = vpop.f32.mrf.mxu0
      %912 = vmatprep.mubr.bf16.mxu0 0
      %913 = vmatmul.mubr.bf16.gmra.mxu0 %v499
      %v914 = vpop.f32.mrf.mxu0
      %v915 = vadd.f32 %v706, %v914
      %v916 = vpop.f32.mrf.mxu0
      %v917 = vpop.f32.mrf.mxu0
      %v918 = vadd.f32 %v709, %v917
      %v919 = vpop.f32.mrf.mxu0
      %920 = vmatprep.mubr.bf16.mxu0 0
      %921 = vmatmul.mubr.bf16.gmra.mxu0 %v500
      %v922 = vpop.f32.mrf.mxu0
      %v923 = vadd.f32 %v714, %v922
      %v924 = vpop.f32.mrf.mxu0
      %v925 = vpop.f32.mrf.mxu0
      %v926 = vadd.f32 %v717, %v925
      %v927 = vpop.f32.mrf.mxu0
      %928 = vmatprep.mubr.bf16.mxu0 0
      %929 = vmatmul.mubr.bf16.gmra.mxu0 %v501
      %v930 = vpop.f32.mrf.mxu0
      %v931 = vadd.f32 %v722, %v930
      %v932 = vpop.f32.mrf.mxu0
      %v933 = vpop.f32.mrf.mxu0
      %v934 = vadd.f32 %v725, %v933
      %v935 = vpop.f32.mrf.mxu0
      %936 = vmatprep.mubr.bf16.mxu0 0
      %937 = vmatmul.mubr.bf16.gmra.mxu0 %v502
      %v938 = vpop.f32.mrf.mxu0
      %v939 = vadd.f32 %v730, %v938
      %v940 = vpop.f32.mrf.mxu0
      %v941 = vpop.f32.mrf.mxu0
      %v942 = vadd.f32 %v733, %v941
      %v943 = vpop.f32.mrf.mxu0
      %944 = vmatprep.mubr.bf16.mxu0 0
      %945 = vmatmul.mubr.bf16.gmra.mxu0 %v503
      %v946 = vpop.f32.mrf.mxu0
      %v947 = vadd.f32 %v738, %v946
      %v948 = vpop.f32.mrf.mxu0
      %v949 = vpop.f32.mrf.mxu0
      %v950 = vadd.f32 %v741, %v949
      %v951 = vpop.f32.mrf.mxu0
      %952 = vmatprep.mubr.bf16.mxu0 0
      %953 = vmatmul.mubr.bf16.gmra.mxu0 %v504
      %v954 = vpop.f32.mrf.mxu0
      %v955 = vadd.f32 %v746, %v954
      %v956 = vpop.f32.mrf.mxu0
      %v957 = vpop.f32.mrf.mxu0
      %v958 = vadd.f32 %v749, %v957
      %v959 = vpop.f32.mrf.mxu0
      %960 = vmatprep.mubr.bf16.mxu0 0
      %961 = vmatmul.mubr.bf16.gmra.mxu0 %v505
      %v962 = vpop.f32.mrf.mxu0
      %v963 = vadd.f32 %v754, %v962
      %v964 = vpop.f32.mrf.mxu0
      %v965 = vpop.f32.mrf.mxu0
      %v966 = vadd.f32 %v757, %v965
      %v967 = vpop.f32.mrf.mxu0
      %968 = vmatprep.mubr.bf16.mxu0 0
      %969 = vmatmul.mubr.bf16.gmra.mxu0 %v506
      %v970 = vpop.f32.mrf.mxu0
      %v971 = vadd.f32 %v762, %v970
      %v972 = vpop.f32.mrf.mxu0
      %v973 = vpop.f32.mrf.mxu0
      %v974 = vadd.f32 %v765, %v973
      %v975 = vpop.f32.mrf.mxu0
      %976 = vmatprep.mubr.bf16.mxu0 0
      %977 = vmatmul.mubr.bf16.gmra.mxu0 %v507
      %v978 = vpop.f32.mrf.mxu0
      %v979 = vadd.f32 %v770, %v978
      %v980 = vpop.f32.mrf.mxu0
      %v981 = vpop.f32.mrf.mxu0
      %v982 = vadd.f32 %v773, %v981
      %v983 = vpop.f32.mrf.mxu0
      %984 = vmatprep.mubr.bf16.mxu0 0
      %985 = vmatmul.mubr.bf16.gmra.mxu0 %v508
      %v986 = vpop.f32.mrf.mxu0
      %v987 = vadd.f32 %v778, %v986
      %v988 = vpop.f32.mrf.mxu0
      %v989 = vpop.f32.mrf.mxu0
      %v990 = vadd.f32 %v781, %v989
      %v991 = vpop.f32.mrf.mxu0
      %992 = vmatprep.mubr.bf16.mxu0 0
      %993 = vmatmul.mubr.bf16.gmra.mxu0 %v509
      %v994 = vpop.f32.mrf.mxu0
      %v995 = vadd.f32 %v786, %v994
      %v996 = vpop.f32.mrf.mxu0
      %v997 = vpop.f32.mrf.mxu0
      %v998 = vadd.f32 %v789, %v997
      %v999 = vpop.f32.mrf.mxu0
      %1000 = vmatprep.mubr.bf16.mxu0 0
      %1001 = vmatmul.mubr.bf16.gmra.mxu0 %v510
      %v1002 = vpop.f32.mrf.mxu0
      %v1003 = vadd.f32 %v794, %v1002
      %v1004 = vpop.f32.mrf.mxu0
      %v1005 = vpop.f32.mrf.mxu0
      %v1006 = vadd.f32 %v797, %v1005
      %v1007 = vpop.f32.mrf.mxu0
      %1008 = vdwg.mxu0
      %v1009 = vld [vmem:[#allocation2 + $0x2] sm:$0xff]
      %v1010 = vld [vmem:[#allocation2 + $0xa] sm:$0xff]
      %v1011 = vld [vmem:[#allocation2 + $0x1a] sm:$0xff]
      %v1012 = vld [vmem:[#allocation2 + $0x22] sm:$0xff]
      %v1013 = vld [vmem:[#allocation2 + $0x32] sm:$0xff]
      %v1014 = vld [vmem:[#allocation2 + $0x3a] sm:$0xff]
      %v1015 = vld [vmem:[#allocation2 + $0x4a] sm:$0xff]
      %v1016 = vld [vmem:[#allocation2 + $0x52] sm:$0xff]
      %v1017 = vld [vmem:[#allocation2 + $0x62] sm:$0xff]
      %v1018 = vld [vmem:[#allocation2 + $0x6a] sm:$0xff]
      %v1019 = vld [vmem:[#allocation2 + $0x7a] sm:$0xff]
      %v1020 = vld [vmem:[#allocation2 + $0x82] sm:$0xff]
      %v1021 = vld [vmem:[#allocation2 + $0x92] sm:$0xff]
      %v1022 = vld [vmem:[#allocation2 + $0x9a] sm:$0xff]
      %v1023 = vld [vmem:[#allocation2 + $0xaa] sm:$0xff]
      %v1024 = vld [vmem:[#allocation2 + $0xb2] sm:$0xff]
      %v1025 = vld [vmem:[#allocation2 + $0xc2] sm:$0xff]
      %v1026 = vld [vmem:[#allocation2 + $0xca] sm:$0xff]
      %v1027 = vld [vmem:[#allocation2 + $0xda] sm:$0xff]
      %v1028 = vld [vmem:[#allocation2 + $0xe2] sm:$0xff]
      %v1029 = vld [vmem:[#allocation2 + $0xf2] sm:$0xff]
      %v1030 = vld [vmem:[#allocation2 + $0xfa] sm:$0xff]
      %v1031 = vld [vmem:[#allocation2 + $0x10a] sm:$0xff]
      %v1032 = vld [vmem:[#allocation2 + $0x112] sm:$0xff]
      %v1033 = vld [vmem:[#allocation2 + $0x122] sm:$0xff]
      %v1034 = vld [vmem:[#allocation2 + $0x12a] sm:$0xff]
      %v1035 = vld [vmem:[#allocation2 + $0x13a] sm:$0xff]
      %v1036 = vld [vmem:[#allocation2 + $0x142] sm:$0xff]
      %v1037 = vld [vmem:[#allocation2 + $0x152] sm:$0xff]
      %v1038 = vld [vmem:[#allocation2 + $0x15a] sm:$0xff]
      %v1039 = vld [vmem:[#allocation2 + $0x16a] sm:$0xff]
      %v1040 = vld [vmem:[#allocation2 + $0x172] sm:$0xff]
      %v1041 = vpack.c.bf16 %v1010, %v1009
      %v1042 = vpack.c.bf16 %v1012, %v1011
      %v1043 = vpack.c.bf16 %v1014, %v1013
      %v1044 = vpack.c.bf16 %v1016, %v1015
      %v1045 = vpack.c.bf16 %v1018, %v1017
      %v1046 = vpack.c.bf16 %v1020, %v1019
      %v1047 = vpack.c.bf16 %v1022, %v1021
      %v1048 = vpack.c.bf16 %v1024, %v1023
      %v1049 = vpack.c.bf16 %v1026, %v1025
      %v1050 = vpack.c.bf16 %v1028, %v1027
      %v1051 = vpack.c.bf16 %v1030, %v1029
      %v1052 = vpack.c.bf16 %v1032, %v1031
      %v1053 = vpack.c.bf16 %v1034, %v1033
      %v1054 = vpack.c.bf16 %v1036, %v1035
      %v1055 = vpack.c.bf16 %v1038, %v1037
      %v1056 = vpack.c.bf16 %v1040, %v1039
      %v1057 = vld [vmem:[%s1 + $0x80] sm:$0xf]
      %v1058 = vld [vmem:[%s1 + $0x84] sm:$0xf]
      %v1059 = vld [vmem:[%s1 + $0x88] sm:$0xf]
      %v1060 = vld [vmem:[%s1 + $0x8c] sm:$0xf]
      %v1061 = vld [vmem:[%s1 + $0x90] sm:$0xf]
      %v1062 = vld [vmem:[%s1 + $0x94] sm:$0xf]
      %v1063 = vld [vmem:[%s1 + $0x98] sm:$0xf]
      %v1064 = vld [vmem:[%s1 + $0x9c] sm:$0xf]
      %v1065 = vld [vmem:[%s1 + $0xa0] sm:$0xf]
      %v1066 = vld [vmem:[%s1 + $0xa4] sm:$0xf]
      %v1067 = vld [vmem:[%s1 + $0xa8] sm:$0xf]
      %v1068 = vld [vmem:[%s1 + $0xac] sm:$0xf]
      %v1069 = vld [vmem:[%s1 + $0xb0] sm:$0xf]
      %v1070 = vld [vmem:[%s1 + $0xb4] sm:$0xf]
      %v1071 = vld [vmem:[%s1 + $0xb8] sm:$0xf]
      %v1072 = vld [vmem:[%s1 + $0xbc] sm:$0xf]
      %v1089 = vunpack.c.l.b16 %v1057
      %v1090 = vunpack.c.l.b16 %v1058
      %v1091 = vunpack.c.l.b16 %v1059
      %v1092 = vunpack.c.l.b16 %v1060
      %v1093 = vunpack.c.l.b16 %v1061
      %v1094 = vunpack.c.l.b16 %v1062
      %v1095 = vunpack.c.l.b16 %v1063
      %v1096 = vunpack.c.l.b16 %v1064
      %v1097 = vunpack.c.l.b16 %v1065
      %v1098 = vunpack.c.l.b16 %v1066
      %v1099 = vunpack.c.l.b16 %v1067
      %v1100 = vunpack.c.l.b16 %v1068
      %v1101 = vunpack.c.l.b16 %v1069
      %v1102 = vunpack.c.l.b16 %v1070
      %v1103 = vunpack.c.l.b16 %v1071
      %v1104 = vunpack.c.l.b16 %v1072
      %v1105 = vpack.c.b16 %v1090, %v1089
      %v1106 = vpack.c.b16 %v1092, %v1091
      %v1107 = vpack.c.b16 %v1094, %v1093
      %v1108 = vpack.c.b16 %v1096, %v1095
      %v1109 = vpack.c.b16 %v1098, %v1097
      %v1110 = vpack.c.b16 %v1100, %v1099
      %v1111 = vpack.c.b16 %v1102, %v1101
      %v1112 = vpack.c.b16 %v1104, %v1103
      %1121 = vmatprep.subr.bf16.mxu0 0
      %1122 = vmatpush1.bf16.msra.mxu0 %v1112
      %1123 = vmatprep.subr.bf16.mxu0 0
      %1124 = vmatpush1.bf16.msra.mxu0 %v1111
      %1125 = vmatprep.subr.bf16.mxu0 0
      %1126 = vmatpush1.bf16.msra.mxu0 %v1110
      %1127 = vmatprep.subr.bf16.mxu0 0
      %1128 = vmatpush1.bf16.msra.mxu0 %v1109
      %1129 = vmatprep.subr.bf16.mxu0 0
      %1130 = vmatpush1.bf16.msra.mxu0 %v1108
      %1131 = vmatprep.subr.bf16.mxu0 0
      %1132 = vmatpush1.bf16.msra.mxu0 %v1107
      %1133 = vmatprep.subr.bf16.mxu0 0
      %1134 = vmatpush1.bf16.msra.mxu0 %v1106
      %1135 = vmatprep.subr.bf16.mxu0 0
      %1136 = vmatpush1.bf16.msra.mxu0 %v1105
      %1137 = vmatprep.subr.bf16.mxu0 0
      %1138 = vmatpush2.bf16.msra.mxu0 0
      %1139 = vmatprep.subr.bf16.mxu0 0
      %1140 = vmatpush2.bf16.msra.mxu0 0
      %1141 = vmatprep.subr.bf16.mxu0 0
      %1142 = vmatpush2.bf16.msra.mxu0 0
      %1143 = vmatprep.subr.bf16.mxu0 0
      %1144 = vmatpush2.bf16.msra.mxu0 0
      %1145 = vmatprep.subr.bf16.mxu0 0
      %1146 = vmatpush2.bf16.msra.mxu0 0
      %1147 = vmatprep.subr.bf16.mxu0 0
      %1148 = vmatpush2.bf16.msra.mxu0 0
      %1149 = vmatprep.subr.bf16.mxu0 0
      %1150 = vmatpush2.bf16.msra.mxu0 0
      %1151 = vmatprep.subr.bf16.mxu0 0
      %1152 = vmatpush2.bf16.msra.mxu0 0
      %1153 = vmatprep.mubr.bf16.mxu0 0
      %1154 = vmatmul.mubr.bf16.gmra.mxu0 %v1041
      %v1155 = vpop.f32.mrf.mxu0
      %v1156 = vadd.f32 0.0, %v1155
      %v1157 = vpop.f32.mrf.mxu0
      %v1158 = vpop.f32.mrf.mxu0
      %v1159 = vadd.f32 0.0, %v1158
      %v1160 = vpop.f32.mrf.mxu0
      %1161 = vmatprep.mubr.bf16.mxu0 0
      %1162 = vmatmul.mubr.bf16.gmra.mxu0 %v1042
      %v1163 = vpop.f32.mrf.mxu0
      %v1164 = vadd.f32 0.0, %v1163
      %v1165 = vpop.f32.mrf.mxu0
      %v1166 = vpop.f32.mrf.mxu0
      %v1167 = vadd.f32 0.0, %v1166
      %v1168 = vpop.f32.mrf.mxu0
      %1169 = vmatprep.mubr.bf16.mxu0 0
      %1170 = vmatmul.mubr.bf16.gmra.mxu0 %v1043
      %v1171 = vpop.f32.mrf.mxu0
      %v1172 = vadd.f32 0.0, %v1171
      %v1173 = vpop.f32.mrf.mxu0
      %v1174 = vpop.f32.mrf.mxu0
      %v1175 = vadd.f32 0.0, %v1174
      %v1176 = vpop.f32.mrf.mxu0
      %1177 = vmatprep.mubr.bf16.mxu0 0
      %1178 = vmatmul.mubr.bf16.gmra.mxu0 %v1044
      %v1179 = vpop.f32.mrf.mxu0
      %v1180 = vadd.f32 0.0, %v1179
      %v1181 = vpop.f32.mrf.mxu0
      %v1182 = vpop.f32.mrf.mxu0
      %v1183 = vadd.f32 0.0, %v1182
      %v1184 = vpop.f32.mrf.mxu0
      %1185 = vmatprep.mubr.bf16.mxu0 0
      %1186 = vmatmul.mubr.bf16.gmra.mxu0 %v1045
      %v1187 = vpop.f32.mrf.mxu0
      %v1188 = vadd.f32 0.0, %v1187
      %v1189 = vpop.f32.mrf.mxu0
      %v1190 = vpop.f32.mrf.mxu0
      %v1191 = vadd.f32 0.0, %v1190
      %v1192 = vpop.f32.mrf.mxu0
      %1193 = vmatprep.mubr.bf16.mxu0 0
      %1194 = vmatmul.mubr.bf16.gmra.mxu0 %v1046
      %v1195 = vpop.f32.mrf.mxu0
      %v1196 = vadd.f32 0.0, %v1195
      %v1197 = vpop.f32.mrf.mxu0
      %v1198 = vpop.f32.mrf.mxu0
      %v1199 = vadd.f32 0.0, %v1198
      %v1200 = vpop.f32.mrf.mxu0
      %1201 = vmatprep.mubr.bf16.mxu0 0
      %1202 = vmatmul.mubr.bf16.gmra.mxu0 %v1047
      %v1203 = vpop.f32.mrf.mxu0
      %v1204 = vadd.f32 0.0, %v1203
      %v1205 = vpop.f32.mrf.mxu0
      %v1206 = vpop.f32.mrf.mxu0
      %v1207 = vadd.f32 0.0, %v1206
      %v1208 = vpop.f32.mrf.mxu0
      %1209 = vmatprep.mubr.bf16.mxu0 0
      %1210 = vmatmul.mubr.bf16.gmra.mxu0 %v1048
      %v1211 = vpop.f32.mrf.mxu0
      %v1212 = vadd.f32 0.0, %v1211
      %v1213 = vpop.f32.mrf.mxu0
      %v1214 = vpop.f32.mrf.mxu0
      %v1215 = vadd.f32 0.0, %v1214
      %v1216 = vpop.f32.mrf.mxu0
      %1217 = vmatprep.mubr.bf16.mxu0 0
      %1218 = vmatmul.mubr.bf16.gmra.mxu0 %v1049
      %v1219 = vpop.f32.mrf.mxu0
      %v1220 = vadd.f32 0.0, %v1219
      %v1221 = vpop.f32.mrf.mxu0
      %v1222 = vpop.f32.mrf.mxu0
      %v1223 = vadd.f32 0.0, %v1222
      %v1224 = vpop.f32.mrf.mxu0
      %1225 = vmatprep.mubr.bf16.mxu0 0
      %1226 = vmatmul.mubr.bf16.gmra.mxu0 %v1050
      %v1227 = vpop.f32.mrf.mxu0
      %v1228 = vadd.f32 0.0, %v1227
      %v1229 = vpop.f32.mrf.mxu0
      %v1230 = vpop.f32.mrf.mxu0
      %v1231 = vadd.f32 0.0, %v1230
      %v1232 = vpop.f32.mrf.mxu0
      %1233 = vmatprep.mubr.bf16.mxu0 0
      %1234 = vmatmul.mubr.bf16.gmra.mxu0 %v1051
      %v1235 = vpop.f32.mrf.mxu0
      %v1236 = vadd.f32 0.0, %v1235
      %v1237 = vpop.f32.mrf.mxu0
      %v1238 = vpop.f32.mrf.mxu0
      %v1239 = vadd.f32 0.0, %v1238
      %v1240 = vpop.f32.mrf.mxu0
      %1241 = vmatprep.mubr.bf16.mxu0 0
      %1242 = vmatmul.mubr.bf16.gmra.mxu0 %v1052
      %v1243 = vpop.f32.mrf.mxu0
      %v1244 = vadd.f32 0.0, %v1243
      %v1245 = vpop.f32.mrf.mxu0
      %v1246 = vpop.f32.mrf.mxu0
      %v1247 = vadd.f32 0.0, %v1246
      %v1248 = vpop.f32.mrf.mxu0
      %1249 = vmatprep.mubr.bf16.mxu0 0
      %1250 = vmatmul.mubr.bf16.gmra.mxu0 %v1053
      %v1251 = vpop.f32.mrf.mxu0
      %v1252 = vadd.f32 0.0, %v1251
      %v1253 = vpop.f32.mrf.mxu0
      %v1254 = vpop.f32.mrf.mxu0
      %v1255 = vadd.f32 0.0, %v1254
      %v1256 = vpop.f32.mrf.mxu0
      %1257 = vmatprep.mubr.bf16.mxu0 0
      %1258 = vmatmul.mubr.bf16.gmra.mxu0 %v1054
      %v1259 = vpop.f32.mrf.mxu0
      %v1260 = vadd.f32 0.0, %v1259
      %v1261 = vpop.f32.mrf.mxu0
      %v1262 = vpop.f32.mrf.mxu0
      %v1263 = vadd.f32 0.0, %v1262
      %v1264 = vpop.f32.mrf.mxu0
      %1265 = vmatprep.mubr.bf16.mxu0 0
      %1266 = vmatmul.mubr.bf16.gmra.mxu0 %v1055
      %v1267 = vpop.f32.mrf.mxu0
      %v1268 = vadd.f32 0.0, %v1267
      %v1269 = vpop.f32.mrf.mxu0
      %v1270 = vpop.f32.mrf.mxu0
      %v1271 = vadd.f32 0.0, %v1270
      %v1272 = vpop.f32.mrf.mxu0
      %1273 = vmatprep.mubr.bf16.mxu0 0
      %1274 = vmatmul.mubr.bf16.gmra.mxu0 %v1056
      %v1275 = vpop.f32.mrf.mxu0
      %v1276 = vadd.f32 0.0, %v1275
      %v1277 = vpop.f32.mrf.mxu0
      %v1278 = vpop.f32.mrf.mxu0
      %v1279 = vadd.f32 0.0, %v1278
      %v1280 = vpop.f32.mrf.mxu0
      %1281 = vdwg.mxu0
      %v1282 = vadd.f32 %v883, %v1156
      %v1283 = vadd.f32 %v886, %v1159
      %v1284 = vadd.f32 %v891, %v1164
      %v1285 = vadd.f32 %v894, %v1167
      %v1286 = vadd.f32 %v899, %v1172
      %v1287 = vadd.f32 %v902, %v1175
      %v1288 = vadd.f32 %v907, %v1180
      %v1289 = vadd.f32 %v910, %v1183
      %v1290 = vadd.f32 %v915, %v1188
      %v1291 = vadd.f32 %v918, %v1191
      %v1292 = vadd.f32 %v923, %v1196
      %v1293 = vadd.f32 %v926, %v1199
      %v1294 = vadd.f32 %v931, %v1204
      %v1295 = vadd.f32 %v934, %v1207
      %v1296 = vadd.f32 %v939, %v1212
      %v1297 = vadd.f32 %v942, %v1215
      %v1298 = vadd.f32 %v947, %v1220
      %v1299 = vadd.f32 %v950, %v1223
      %v1300 = vadd.f32 %v955, %v1228
      %v1301 = vadd.f32 %v958, %v1231
      %v1302 = vadd.f32 %v963, %v1236
      %v1303 = vadd.f32 %v966, %v1239
      %v1304 = vadd.f32 %v971, %v1244
      %v1305 = vadd.f32 %v974, %v1247
      %v1306 = vadd.f32 %v979, %v1252
      %v1307 = vadd.f32 %v982, %v1255
      %v1308 = vadd.f32 %v987, %v1260
      %v1309 = vadd.f32 %v990, %v1263
      %v1310 = vadd.f32 %v995, %v1268
      %v1311 = vadd.f32 %v998, %v1271
      %v1312 = vadd.f32 %v1003, %v1276
      %v1313 = vadd.f32 %v1006, %v1279
      %v1314 = vld [vmem:[%s430] sm:$0xff]
      %v1315 = vld [vmem:[%s430 + $0x8] sm:$0xff]
      %v1316 = vld [vmem:[%s430 + $0x18] sm:$0xff]
      %v1317 = vld [vmem:[%s430 + $0x20] sm:$0xff]
      %v1318 = vld [vmem:[%s430 + $0x30] sm:$0xff]
      %v1319 = vld [vmem:[%s430 + $0x38] sm:$0xff]
      %v1320 = vld [vmem:[%s430 + $0x48] sm:$0xff]
      %v1321 = vld [vmem:[%s430 + $0x50] sm:$0xff]
      %v1322 = vld [vmem:[%s430 + $0x60] sm:$0xff]
      %v1323 = vld [vmem:[%s430 + $0x68] sm:$0xff]
      %v1324 = vld [vmem:[%s430 + $0x78] sm:$0xff]
      %v1325 = vld [vmem:[%s430 + $0x80] sm:$0xff]
      %v1326 = vld [vmem:[%s430 + $0x90] sm:$0xff]
      %v1327 = vld [vmem:[%s430 + $0x98] sm:$0xff]
      %v1328 = vld [vmem:[%s430 + $0xa8] sm:$0xff]
      %v1329 = vld [vmem:[%s430 + $0xb0] sm:$0xff]
      %v1330 = vld [vmem:[%s430 + $0xc0] sm:$0xff]
      %v1331 = vld [vmem:[%s430 + $0xc8] sm:$0xff]
      %v1332 = vld [vmem:[%s430 + $0xd8] sm:$0xff]
      %v1333 = vld [vmem:[%s430 + $0xe0] sm:$0xff]
      %v1334 = vld [vmem:[%s430 + $0xf0] sm:$0xff]
      %v1335 = vld [vmem:[%s430 + $0xf8] sm:$0xff]
      %v1336 = vld [vmem:[%s430 + $0x108] sm:$0xff]
      %v1337 = vld [vmem:[%s430 + $0x110] sm:$0xff]
      %v1338 = vld [vmem:[%s430 + $0x120] sm:$0xff]
      %v1339 = vld [vmem:[%s430 + $0x128] sm:$0xff]
      %v1340 = vld [vmem:[%s430 + $0x138] sm:$0xff]
      %v1341 = vld [vmem:[%s430 + $0x140] sm:$0xff]
      %v1342 = vld [vmem:[%s430 + $0x150] sm:$0xff]
      %v1343 = vld [vmem:[%s430 + $0x158] sm:$0xff]
      %v1344 = vld [vmem:[%s430 + $0x168] sm:$0xff]
      %v1345 = vld [vmem:[%s430 + $0x170] sm:$0xff]
      %v1346 = vpack.c.bf16 %v1315, %v1314
      %v1347 = vpack.c.bf16 %v1317, %v1316
      %v1348 = vpack.c.bf16 %v1319, %v1318
      %v1349 = vpack.c.bf16 %v1321, %v1320
      %v1350 = vpack.c.bf16 %v1323, %v1322
      %v1351 = vpack.c.bf16 %v1325, %v1324
      %v1352 = vpack.c.bf16 %v1327, %v1326
      %v1353 = vpack.c.bf16 %v1329, %v1328
      %v1354 = vpack.c.bf16 %v1331, %v1330
      %v1355 = vpack.c.bf16 %v1333, %v1332
      %v1356 = vpack.c.bf16 %v1335, %v1334
      %v1357 = vpack.c.bf16 %v1337, %v1336
      %v1358 = vpack.c.bf16 %v1339, %v1338
      %v1359 = vpack.c.bf16 %v1341, %v1340
      %v1360 = vpack.c.bf16 %v1343, %v1342
      %v1361 = vpack.c.bf16 %v1345, %v1344
      %v1362 = vld [vmem:[%s1 + $0xc0] sm:$0xf]
      %v1363 = vld [vmem:[%s1 + $0xc4] sm:$0xf]
      %v1364 = vld [vmem:[%s1 + $0xc8] sm:$0xf]
      %v1365 = vld [vmem:[%s1 + $0xcc] sm:$0xf]
      %v1366 = vld [vmem:[%s1 + $0xd0] sm:$0xf]
      %v1367 = vld [vmem:[%s1 + $0xd4] sm:$0xf]
      %v1368 = vld [vmem:[%s1 + $0xd8] sm:$0xf]
      %v1369 = vld [vmem:[%s1 + $0xdc] sm:$0xf]
      %v1370 = vld [vmem:[%s1 + $0xe0] sm:$0xf]
      %v1371 = vld [vmem:[%s1 + $0xe4] sm:$0xf]
      %v1372 = vld [vmem:[%s1 + $0xe8] sm:$0xf]
      %v1373 = vld [vmem:[%s1 + $0xec] sm:$0xf]
      %v1374 = vld [vmem:[%s1 + $0xf0] sm:$0xf]
      %v1375 = vld [vmem:[%s1 + $0xf4] sm:$0xf]
      %v1376 = vld [vmem:[%s1 + $0xf8] sm:$0xf]
      %v1377 = vld [vmem:[%s1 + $0xfc] sm:$0xf]
      %v1394 = vunpack.c.l.b16 %v1362
      %v1395 = vunpack.c.l.b16 %v1363
      %v1396 = vunpack.c.l.b16 %v1364
      %v1397 = vunpack.c.l.b16 %v1365
      %v1398 = vunpack.c.l.b16 %v1366
      %v1399 = vunpack.c.l.b16 %v1367
      %v1400 = vunpack.c.l.b16 %v1368
      %v1401 = vunpack.c.l.b16 %v1369
      %v1402 = vunpack.c.l.b16 %v1370
      %v1403 = vunpack.c.l.b16 %v1371
      %v1404 = vunpack.c.l.b16 %v1372
      %v1405 = vunpack.c.l.b16 %v1373
      %v1406 = vunpack.c.l.b16 %v1374
      %v1407 = vunpack.c.l.b16 %v1375
      %v1408 = vunpack.c.l.b16 %v1376
      %v1409 = vunpack.c.l.b16 %v1377
      %v1410 = vpack.c.b16 %v1395, %v1394
      %v1411 = vpack.c.b16 %v1397, %v1396
      %v1412 = vpack.c.b16 %v1399, %v1398
      %v1413 = vpack.c.b16 %v1401, %v1400
      %v1414 = vpack.c.b16 %v1403, %v1402
      %v1415 = vpack.c.b16 %v1405, %v1404
      %v1416 = vpack.c.b16 %v1407, %v1406
      %v1417 = vpack.c.b16 %v1409, %v1408
      %1426 = vmatprep.subr.bf16.mxu0 0
      %1427 = vmatpush1.bf16.msra.mxu0 %v1417
      %1428 = vmatprep.subr.bf16.mxu0 0
      %1429 = vmatpush1.bf16.msra.mxu0 %v1416
      %1430 = vmatprep.subr.bf16.mxu0 0
      %1431 = vmatpush1.bf16.msra.mxu0 %v1415
      %1432 = vmatprep.subr.bf16.mxu0 0
      %1433 = vmatpush1.bf16.msra.mxu0 %v1414
      %1434 = vmatprep.subr.bf16.mxu0 0
      %1435 = vmatpush1.bf16.msra.mxu0 %v1413
      %1436 = vmatprep.subr.bf16.mxu0 0
      %1437 = vmatpush1.bf16.msra.mxu0 %v1412
      %1438 = vmatprep.subr.bf16.mxu0 0
      %1439 = vmatpush1.bf16.msra.mxu0 %v1411
      %1440 = vmatprep.subr.bf16.mxu0 0
      %1441 = vmatpush1.bf16.msra.mxu0 %v1410
      %1442 = vmatprep.subr.bf16.mxu0 0
      %1443 = vmatpush2.bf16.msra.mxu0 0
      %1444 = vmatprep.subr.bf16.mxu0 0
      %1445 = vmatpush2.bf16.msra.mxu0 0
      %1446 = vmatprep.subr.bf16.mxu0 0
      %1447 = vmatpush2.bf16.msra.mxu0 0
      %1448 = vmatprep.subr.bf16.mxu0 0
      %1449 = vmatpush2.bf16.msra.mxu0 0
      %1450 = vmatprep.subr.bf16.mxu0 0
      %1451 = vmatpush2.bf16.msra.mxu0 0
      %1452 = vmatprep.subr.bf16.mxu0 0
      %1453 = vmatpush2.bf16.msra.mxu0 0
      %1454 = vmatprep.subr.bf16.mxu0 0
      %1455 = vmatpush2.bf16.msra.mxu0 0
      %1456 = vmatprep.subr.bf16.mxu0 0
      %1457 = vmatpush2.bf16.msra.mxu0 0
      %1458 = vmatprep.mubr.bf16.mxu0 0
      %1459 = vmatmul.mubr.bf16.gmra.mxu0 %v1346
      %v1460 = vpop.f32.mrf.mxu0
      %v1461 = vadd.f32 0.0, %v1460
      %v1462 = vpop.f32.mrf.mxu0
      %v1463 = vpop.f32.mrf.mxu0
      %v1464 = vadd.f32 0.0, %v1463
      %v1465 = vpop.f32.mrf.mxu0
      %1466 = vmatprep.mubr.bf16.mxu0 0
      %1467 = vmatmul.mubr.bf16.gmra.mxu0 %v1347
      %v1468 = vpop.f32.mrf.mxu0
      %v1469 = vadd.f32 0.0, %v1468
      %v1470 = vpop.f32.mrf.mxu0
      %v1471 = vpop.f32.mrf.mxu0
      %v1472 = vadd.f32 0.0, %v1471
      %v1473 = vpop.f32.mrf.mxu0
      %1474 = vmatprep.mubr.bf16.mxu0 0
      %1475 = vmatmul.mubr.bf16.gmra.mxu0 %v1348
      %v1476 = vpop.f32.mrf.mxu0
      %v1477 = vadd.f32 0.0, %v1476
      %v1478 = vpop.f32.mrf.mxu0
      %v1479 = vpop.f32.mrf.mxu0
      %v1480 = vadd.f32 0.0, %v1479
      %v1481 = vpop.f32.mrf.mxu0
      %1482 = vmatprep.mubr.bf16.mxu0 0
      %1483 = vmatmul.mubr.bf16.gmra.mxu0 %v1349
      %v1484 = vpop.f32.mrf.mxu0
      %v1485 = vadd.f32 0.0, %v1484
      %v1486 = vpop.f32.mrf.mxu0
      %v1487 = vpop.f32.mrf.mxu0
      %v1488 = vadd.f32 0.0, %v1487
      %v1489 = vpop.f32.mrf.mxu0
      %1490 = vmatprep.mubr.bf16.mxu0 0
      %1491 = vmatmul.mubr.bf16.gmra.mxu0 %v1350
      %v1492 = vpop.f32.mrf.mxu0
      %v1493 = vadd.f32 0.0, %v1492
      %v1494 = vpop.f32.mrf.mxu0
      %v1495 = vpop.f32.mrf.mxu0
      %v1496 = vadd.f32 0.0, %v1495
      %v1497 = vpop.f32.mrf.mxu0
      %1498 = vmatprep.mubr.bf16.mxu0 0
      %1499 = vmatmul.mubr.bf16.gmra.mxu0 %v1351
      %v1500 = vpop.f32.mrf.mxu0
      %v1501 = vadd.f32 0.0, %v1500
      %v1502 = vpop.f32.mrf.mxu0
      %v1503 = vpop.f32.mrf.mxu0
      %v1504 = vadd.f32 0.0, %v1503
      %v1505 = vpop.f32.mrf.mxu0
      %1506 = vmatprep.mubr.bf16.mxu0 0
      %1507 = vmatmul.mubr.bf16.gmra.mxu0 %v1352
      %v1508 = vpop.f32.mrf.mxu0
      %v1509 = vadd.f32 0.0, %v1508
      %v1510 = vpop.f32.mrf.mxu0
      %v1511 = vpop.f32.mrf.mxu0
      %v1512 = vadd.f32 0.0, %v1511
      %v1513 = vpop.f32.mrf.mxu0
      %1514 = vmatprep.mubr.bf16.mxu0 0
      %1515 = vmatmul.mubr.bf16.gmra.mxu0 %v1353
      %v1516 = vpop.f32.mrf.mxu0
      %v1517 = vadd.f32 0.0, %v1516
      %v1518 = vpop.f32.mrf.mxu0
      %v1519 = vpop.f32.mrf.mxu0
      %v1520 = vadd.f32 0.0, %v1519
      %v1521 = vpop.f32.mrf.mxu0
      %1522 = vmatprep.mubr.bf16.mxu0 0
      %1523 = vmatmul.mubr.bf16.gmra.mxu0 %v1354
      %v1524 = vpop.f32.mrf.mxu0
      %v1525 = vadd.f32 0.0, %v1524
      %v1526 = vpop.f32.mrf.mxu0
      %v1527 = vpop.f32.mrf.mxu0
      %v1528 = vadd.f32 0.0, %v1527
      %v1529 = vpop.f32.mrf.mxu0
      %1530 = vmatprep.mubr.bf16.mxu0 0
      %1531 = vmatmul.mubr.bf16.gmra.mxu0 %v1355
      %v1532 = vpop.f32.mrf.mxu0
      %v1533 = vadd.f32 0.0, %v1532
      %v1534 = vpop.f32.mrf.mxu0
      %v1535 = vpop.f32.mrf.mxu0
      %v1536 = vadd.f32 0.0, %v1535
      %v1537 = vpop.f32.mrf.mxu0
      %1538 = vmatprep.mubr.bf16.mxu0 0
      %1539 = vmatmul.mubr.bf16.gmra.mxu0 %v1356
      %v1540 = vpop.f32.mrf.mxu0
      %v1541 = vadd.f32 0.0, %v1540
      %v1542 = vpop.f32.mrf.mxu0
      %v1543 = vpop.f32.mrf.mxu0
      %v1544 = vadd.f32 0.0, %v1543
      %v1545 = vpop.f32.mrf.mxu0
      %1546 = vmatprep.mubr.bf16.mxu0 0
      %1547 = vmatmul.mubr.bf16.gmra.mxu0 %v1357
      %v1548 = vpop.f32.mrf.mxu0
      %v1549 = vadd.f32 0.0, %v1548
      %v1550 = vpop.f32.mrf.mxu0
      %v1551 = vpop.f32.mrf.mxu0
      %v1552 = vadd.f32 0.0, %v1551
      %v1553 = vpop.f32.mrf.mxu0
      %1554 = vmatprep.mubr.bf16.mxu0 0
      %1555 = vmatmul.mubr.bf16.gmra.mxu0 %v1358
      %v1556 = vpop.f32.mrf.mxu0
      %v1557 = vadd.f32 0.0, %v1556
      %v1558 = vpop.f32.mrf.mxu0
      %v1559 = vpop.f32.mrf.mxu0
      %v1560 = vadd.f32 0.0, %v1559
      %v1561 = vpop.f32.mrf.mxu0
      %1562 = vmatprep.mubr.bf16.mxu0 0
      %1563 = vmatmul.mubr.bf16.gmra.mxu0 %v1359
      %v1564 = vpop.f32.mrf.mxu0
      %v1565 = vadd.f32 0.0, %v1564
      %v1566 = vpop.f32.mrf.mxu0
      %v1567 = vpop.f32.mrf.mxu0
      %v1568 = vadd.f32 0.0, %v1567
      %v1569 = vpop.f32.mrf.mxu0
      %1570 = vmatprep.mubr.bf16.mxu0 0
      %1571 = vmatmul.mubr.bf16.gmra.mxu0 %v1360
      %v1572 = vpop.f32.mrf.mxu0
      %v1573 = vadd.f32 0.0, %v1572
      %v1574 = vpop.f32.mrf.mxu0
      %v1575 = vpop.f32.mrf.mxu0
      %v1576 = vadd.f32 0.0, %v1575
      %v1577 = vpop.f32.mrf.mxu0
      %1578 = vmatprep.mubr.bf16.mxu0 0
      %1579 = vmatmul.mubr.bf16.gmra.mxu0 %v1361
      %v1580 = vpop.f32.mrf.mxu0
      %v1581 = vadd.f32 0.0, %v1580
      %v1582 = vpop.f32.mrf.mxu0
      %v1583 = vpop.f32.mrf.mxu0
      %v1584 = vadd.f32 0.0, %v1583
      %v1585 = vpop.f32.mrf.mxu0
      %1586 = vdwg.mxu0
      %v1587 = vadd.f32 %v1282, %v1461
      %v1588 = vadd.f32 %v1283, %v1464
      %v1589 = vadd.f32 %v1284, %v1469
      %v1590 = vadd.f32 %v1285, %v1472
      %v1591 = vadd.f32 %v1286, %v1477
      %v1592 = vadd.f32 %v1287, %v1480
      %v1593 = vadd.f32 %v1288, %v1485
      %v1594 = vadd.f32 %v1289, %v1488
      %v1595 = vadd.f32 %v1290, %v1493
      %v1596 = vadd.f32 %v1291, %v1496
      %v1597 = vadd.f32 %v1292, %v1501
      %v1598 = vadd.f32 %v1293, %v1504
      %v1599 = vadd.f32 %v1294, %v1509
      %v1600 = vadd.f32 %v1295, %v1512
      %v1601 = vadd.f32 %v1296, %v1517
      %v1602 = vadd.f32 %v1297, %v1520
      %v1603 = vadd.f32 %v1298, %v1525
      %v1604 = vadd.f32 %v1299, %v1528
      %v1605 = vadd.f32 %v1300, %v1533
      %v1606 = vadd.f32 %v1301, %v1536
      %v1607 = vadd.f32 %v1302, %v1541
      %v1608 = vadd.f32 %v1303, %v1544
      %v1609 = vadd.f32 %v1304, %v1549
      %v1610 = vadd.f32 %v1305, %v1552
      %v1611 = vadd.f32 %v1306, %v1557
      %v1612 = vadd.f32 %v1307, %v1560
      %v1613 = vadd.f32 %v1308, %v1565
      %v1614 = vadd.f32 %v1309, %v1568
      %v1615 = vadd.f32 %v1310, %v1573
      %v1616 = vadd.f32 %v1311, %v1576
      %v1617 = vadd.f32 %v1312, %v1581
      %v1618 = vadd.f32 %v1313, %v1584
      %v1619 = vld [vmem:[%s430 + $0x1] sm:$0xff]
      %v1620 = vld [vmem:[%s430 + $0x9] sm:$0xff]
      %v1621 = vld [vmem:[%s430 + $0x19] sm:$0xff]
      %v1622 = vld [vmem:[%s430 + $0x21] sm:$0xff]
      %v1623 = vld [vmem:[%s430 + $0x31] sm:$0xff]
      %v1624 = vld [vmem:[%s430 + $0x39] sm:$0xff]
      %v1625 = vld [vmem:[%s430 + $0x49] sm:$0xff]
      %v1626 = vld [vmem:[%s430 + $0x51] sm:$0xff]
      %v1627 = vld [vmem:[%s430 + $0x61] sm:$0xff]
      %v1628 = vld [vmem:[%s430 + $0x69] sm:$0xff]
      %v1629 = vld [vmem:[%s430 + $0x79] sm:$0xff]
      %v1630 = vld [vmem:[%s430 + $0x81] sm:$0xff]
      %v1631 = vld [vmem:[%s430 + $0x91] sm:$0xff]
      %v1632 = vld [vmem:[%s430 + $0x99] sm:$0xff]
      %v1633 = vld [vmem:[%s430 + $0xa9] sm:$0xff]
      %v1634 = vld [vmem:[%s430 + $0xb1] sm:$0xff]
      %v1635 = vld [vmem:[%s430 + $0xc1] sm:$0xff]
      %v1636 = vld [vmem:[%s430 + $0xc9] sm:$0xff]
      %v1637 = vld [vmem:[%s430 + $0xd9] sm:$0xff]
      %v1638 = vld [vmem:[%s430 + $0xe1] sm:$0xff]
      %v1639 = vld [vmem:[%s430 + $0xf1] sm:$0xff]
      %v1640 = vld [vmem:[%s430 + $0xf9] sm:$0xff]
      %v1641 = vld [vmem:[%s430 + $0x109] sm:$0xff]
      %v1642 = vld [vmem:[%s430 + $0x111] sm:$0xff]
      %v1643 = vld [vmem:[%s430 + $0x121] sm:$0xff]
      %v1644 = vld [vmem:[%s430 + $0x129] sm:$0xff]
      %v1645 = vld [vmem:[%s430 + $0x139] sm:$0xff]
      %v1646 = vld [vmem:[%s430 + $0x141] sm:$0xff]
      %v1647 = vld [vmem:[%s430 + $0x151] sm:$0xff]
      %v1648 = vld [vmem:[%s430 + $0x159] sm:$0xff]
      %v1649 = vld [vmem:[%s430 + $0x169] sm:$0xff]
      %v1650 = vld [vmem:[%s430 + $0x171] sm:$0xff]
      %v1651 = vpack.c.bf16 %v1620, %v1619
      %v1652 = vpack.c.bf16 %v1622, %v1621
      %v1653 = vpack.c.bf16 %v1624, %v1623
      %v1654 = vpack.c.bf16 %v1626, %v1625
      %v1655 = vpack.c.bf16 %v1628, %v1627
      %v1656 = vpack.c.bf16 %v1630, %v1629
      %v1657 = vpack.c.bf16 %v1632, %v1631
      %v1658 = vpack.c.bf16 %v1634, %v1633
      %v1659 = vpack.c.bf16 %v1636, %v1635
      %v1660 = vpack.c.bf16 %v1638, %v1637
      %v1661 = vpack.c.bf16 %v1640, %v1639
      %v1662 = vpack.c.bf16 %v1642, %v1641
      %v1663 = vpack.c.bf16 %v1644, %v1643
      %v1664 = vpack.c.bf16 %v1646, %v1645
      %v1665 = vpack.c.bf16 %v1648, %v1647
      %v1666 = vpack.c.bf16 %v1650, %v1649
      %v1667 = vld [vmem:[%s1 + $0x100] sm:$0xf]
      %v1668 = vld [vmem:[%s1 + $0x104] sm:$0xf]
      %v1669 = vld [vmem:[%s1 + $0x108] sm:$0xf]
      %v1670 = vld [vmem:[%s1 + $0x10c] sm:$0xf]
      %v1671 = vld [vmem:[%s1 + $0x110] sm:$0xf]
      %v1672 = vld [vmem:[%s1 + $0x114] sm:$0xf]
      %v1673 = vld [vmem:[%s1 + $0x118] sm:$0xf]
      %v1674 = vld [vmem:[%s1 + $0x11c] sm:$0xf]
      %v1675 = vld [vmem:[%s1 + $0x120] sm:$0xf]
      %v1676 = vld [vmem:[%s1 + $0x124] sm:$0xf]
      %v1677 = vld [vmem:[%s1 + $0x128] sm:$0xf]
      %v1678 = vld [vmem:[%s1 + $0x12c] sm:$0xf]
      %v1679 = vld [vmem:[%s1 + $0x130] sm:$0xf]
      %v1680 = vld [vmem:[%s1 + $0x134] sm:$0xf]
      %v1681 = vld [vmem:[%s1 + $0x138] sm:$0xf]
      %v1682 = vld [vmem:[%s1 + $0x13c] sm:$0xf]
      %v1699 = vunpack.c.l.b16 %v1667
      %v1700 = vunpack.c.l.b16 %v1668
      %v1701 = vunpack.c.l.b16 %v1669
      %v1702 = vunpack.c.l.b16 %v1670
      %v1703 = vunpack.c.l.b16 %v1671
      %v1704 = vunpack.c.l.b16 %v1672
      %v1705 = vunpack.c.l.b16 %v1673
      %v1706 = vunpack.c.l.b16 %v1674
      %v1707 = vunpack.c.l.b16 %v1675
      %v1708 = vunpack.c.l.b16 %v1676
      %v1709 = vunpack.c.l.b16 %v1677
      %v1710 = vunpack.c.l.b16 %v1678
      %v1711 = vunpack.c.l.b16 %v1679
      %v1712 = vunpack.c.l.b16 %v1680
      %v1713 = vunpack.c.l.b16 %v1681
      %v1714 = vunpack.c.l.b16 %v1682
      %v1715 = vpack.c.b16 %v1700, %v1699
      %v1716 = vpack.c.b16 %v1702, %v1701
      %v1717 = vpack.c.b16 %v1704, %v1703
      %v1718 = vpack.c.b16 %v1706, %v1705
      %v1719 = vpack.c.b16 %v1708, %v1707
      %v1720 = vpack.c.b16 %v1710, %v1709
      %v1721 = vpack.c.b16 %v1712, %v1711
      %v1722 = vpack.c.b16 %v1714, %v1713
      %1731 = vmatprep.subr.bf16.mxu0 0
      %1732 = vmatpush1.bf16.msra.mxu0 %v1722
      %1733 = vmatprep.subr.bf16.mxu0 0
      %1734 = vmatpush1.bf16.msra.mxu0 %v1721
      %1735 = vmatprep.subr.bf16.mxu0 0
      %1736 = vmatpush1.bf16.msra.mxu0 %v1720
      %1737 = vmatprep.subr.bf16.mxu0 0
      %1738 = vmatpush1.bf16.msra.mxu0 %v1719
      %1739 = vmatprep.subr.bf16.mxu0 0
      %1740 = vmatpush1.bf16.msra.mxu0 %v1718
      %1741 = vmatprep.subr.bf16.mxu0 0
      %1742 = vmatpush1.bf16.msra.mxu0 %v1717
      %1743 = vmatprep.subr.bf16.mxu0 0
      %1744 = vmatpush1.bf16.msra.mxu0 %v1716
      %1745 = vmatprep.subr.bf16.mxu0 0
      %1746 = vmatpush1.bf16.msra.mxu0 %v1715
      %1747 = vmatprep.subr.bf16.mxu0 0
      %1748 = vmatpush2.bf16.msra.mxu0 0
      %1749 = vmatprep.subr.bf16.mxu0 0
      %1750 = vmatpush2.bf16.msra.mxu0 0
      %1751 = vmatprep.subr.bf16.mxu0 0
      %1752 = vmatpush2.bf16.msra.mxu0 0
      %1753 = vmatprep.subr.bf16.mxu0 0
      %1754 = vmatpush2.bf16.msra.mxu0 0
      %1755 = vmatprep.subr.bf16.mxu0 0
      %1756 = vmatpush2.bf16.msra.mxu0 0
      %1757 = vmatprep.subr.bf16.mxu0 0
      %1758 = vmatpush2.bf16.msra.mxu0 0
      %1759 = vmatprep.subr.bf16.mxu0 0
      %1760 = vmatpush2.bf16.msra.mxu0 0
      %1761 = vmatprep.subr.bf16.mxu0 0
      %1762 = vmatpush2.bf16.msra.mxu0 0
      %1763 = vmatprep.mubr.bf16.mxu0 0
      %1764 = vmatmul.mubr.bf16.gmra.mxu0 %v1651
      %v1765 = vpop.f32.mrf.mxu0
      %v1766 = vadd.f32 0.0, %v1765
      %v1767 = vpop.f32.mrf.mxu0
      %v1768 = vpop.f32.mrf.mxu0
      %v1769 = vadd.f32 0.0, %v1768
      %v1770 = vpop.f32.mrf.mxu0
      %1771 = vmatprep.mubr.bf16.mxu0 0
      %1772 = vmatmul.mubr.bf16.gmra.mxu0 %v1652
      %v1773 = vpop.f32.mrf.mxu0
      %v1774 = vadd.f32 0.0, %v1773
      %v1775 = vpop.f32.mrf.mxu0
      %v1776 = vpop.f32.mrf.mxu0
      %v1777 = vadd.f32 0.0, %v1776
      %v1778 = vpop.f32.mrf.mxu0
      %1779 = vmatprep.mubr.bf16.mxu0 0
      %1780 = vmatmul.mubr.bf16.gmra.mxu0 %v1653
      %v1781 = vpop.f32.mrf.mxu0
      %v1782 = vadd.f32 0.0, %v1781
      %v1783 = vpop.f32.mrf.mxu0
      %v1784 = vpop.f32.mrf.mxu0
      %v1785 = vadd.f32 0.0, %v1784
      %v1786 = vpop.f32.mrf.mxu0
      %1787 = vmatprep.mubr.bf16.mxu0 0
      %1788 = vmatmul.mubr.bf16.gmra.mxu0 %v1654
      %v1789 = vpop.f32.mrf.mxu0
      %v1790 = vadd.f32 0.0, %v1789
      %v1791 = vpop.f32.mrf.mxu0
      %v1792 = vpop.f32.mrf.mxu0
      %v1793 = vadd.f32 0.0, %v1792
      %v1794 = vpop.f32.mrf.mxu0
      %1795 = vmatprep.mubr.bf16.mxu0 0
      %1796 = vmatmul.mubr.bf16.gmra.mxu0 %v1655
      %v1797 = vpop.f32.mrf.mxu0
      %v1798 = vadd.f32 0.0, %v1797
      %v1799 = vpop.f32.mrf.mxu0
      %v1800 = vpop.f32.mrf.mxu0
      %v1801 = vadd.f32 0.0, %v1800
      %v1802 = vpop.f32.mrf.mxu0
      %1803 = vmatprep.mubr.bf16.mxu0 0
      %1804 = vmatmul.mubr.bf16.gmra.mxu0 %v1656
      %v1805 = vpop.f32.mrf.mxu0
      %v1806 = vadd.f32 0.0, %v1805
      %v1807 = vpop.f32.mrf.mxu0
      %v1808 = vpop.f32.mrf.mxu0
      %v1809 = vadd.f32 0.0, %v1808
      %v1810 = vpop.f32.mrf.mxu0
      %1811 = vmatprep.mubr.bf16.mxu0 0
      %1812 = vmatmul.mubr.bf16.gmra.mxu0 %v1657
      %v1813 = vpop.f32.mrf.mxu0
      %v1814 = vadd.f32 0.0, %v1813
      %v1815 = vpop.f32.mrf.mxu0
      %v1816 = vpop.f32.mrf.mxu0
      %v1817 = vadd.f32 0.0, %v1816
      %v1818 = vpop.f32.mrf.mxu0
      %1819 = vmatprep.mubr.bf16.mxu0 0
      %1820 = vmatmul.mubr.bf16.gmra.mxu0 %v1658
      %v1821 = vpop.f32.mrf.mxu0
      %v1822 = vadd.f32 0.0, %v1821
      %v1823 = vpop.f32.mrf.mxu0
      %v1824 = vpop.f32.mrf.mxu0
      %v1825 = vadd.f32 0.0, %v1824
      %v1826 = vpop.f32.mrf.mxu0
      %1827 = vmatprep.mubr.bf16.mxu0 0
      %1828 = vmatmul.mubr.bf16.gmra.mxu0 %v1659
      %v1829 = vpop.f32.mrf.mxu0
      %v1830 = vadd.f32 0.0, %v1829
      %v1831 = vpop.f32.mrf.mxu0
      %v1832 = vpop.f32.mrf.mxu0
      %v1833 = vadd.f32 0.0, %v1832
      %v1834 = vpop.f32.mrf.mxu0
      %1835 = vmatprep.mubr.bf16.mxu0 0
      %1836 = vmatmul.mubr.bf16.gmra.mxu0 %v1660
      %v1837 = vpop.f32.mrf.mxu0
      %v1838 = vadd.f32 0.0, %v1837
      %v1839 = vpop.f32.mrf.mxu0
      %v1840 = vpop.f32.mrf.mxu0
      %v1841 = vadd.f32 0.0, %v1840
      %v1842 = vpop.f32.mrf.mxu0
      %1843 = vmatprep.mubr.bf16.mxu0 0
      %1844 = vmatmul.mubr.bf16.gmra.mxu0 %v1661
      %v1845 = vpop.f32.mrf.mxu0
      %v1846 = vadd.f32 0.0, %v1845
      %v1847 = vpop.f32.mrf.mxu0
      %v1848 = vpop.f32.mrf.mxu0
      %v1849 = vadd.f32 0.0, %v1848
      %v1850 = vpop.f32.mrf.mxu0
      %1851 = vmatprep.mubr.bf16.mxu0 0
      %1852 = vmatmul.mubr.bf16.gmra.mxu0 %v1662
      %v1853 = vpop.f32.mrf.mxu0
      %v1854 = vadd.f32 0.0, %v1853
      %v1855 = vpop.f32.mrf.mxu0
      %v1856 = vpop.f32.mrf.mxu0
      %v1857 = vadd.f32 0.0, %v1856
      %v1858 = vpop.f32.mrf.mxu0
      %1859 = vmatprep.mubr.bf16.mxu0 0
      %1860 = vmatmul.mubr.bf16.gmra.mxu0 %v1663
      %v1861 = vpop.f32.mrf.mxu0
      %v1862 = vadd.f32 0.0, %v1861
      %v1863 = vpop.f32.mrf.mxu0
      %v1864 = vpop.f32.mrf.mxu0
      %v1865 = vadd.f32 0.0, %v1864
      %v1866 = vpop.f32.mrf.mxu0
      %1867 = vmatprep.mubr.bf16.mxu0 0
      %1868 = vmatmul.mubr.bf16.gmra.mxu0 %v1664
      %v1869 = vpop.f32.mrf.mxu0
      %v1870 = vadd.f32 0.0, %v1869
      %v1871 = vpop.f32.mrf.mxu0
      %v1872 = vpop.f32.mrf.mxu0
      %v1873 = vadd.f32 0.0, %v1872
      %v1874 = vpop.f32.mrf.mxu0
      %1875 = vmatprep.mubr.bf16.mxu0 0
      %1876 = vmatmul.mubr.bf16.gmra.mxu0 %v1665
      %v1877 = vpop.f32.mrf.mxu0
      %v1878 = vadd.f32 0.0, %v1877
      %v1879 = vpop.f32.mrf.mxu0
      %v1880 = vpop.f32.mrf.mxu0
      %v1881 = vadd.f32 0.0, %v1880
      %v1882 = vpop.f32.mrf.mxu0
      %1883 = vmatprep.mubr.bf16.mxu0 0
      %1884 = vmatmul.mubr.bf16.gmra.mxu0 %v1666
      %v1885 = vpop.f32.mrf.mxu0
      %v1886 = vadd.f32 0.0, %v1885
      %v1887 = vpop.f32.mrf.mxu0
      %v1888 = vpop.f32.mrf.mxu0
      %v1889 = vadd.f32 0.0, %v1888
      %v1890 = vpop.f32.mrf.mxu0
      %1891 = vdwg.mxu0
      %v1892 = vadd.f32 %v1587, %v1766
      %v1893 = vadd.f32 %v1588, %v1769
      %v1894 = vadd.f32 %v1589, %v1774
      %v1895 = vadd.f32 %v1590, %v1777
      %v1896 = vadd.f32 %v1591, %v1782
      %v1897 = vadd.f32 %v1592, %v1785
      %v1898 = vadd.f32 %v1593, %v1790
      %v1899 = vadd.f32 %v1594, %v1793
      %v1900 = vadd.f32 %v1595, %v1798
      %v1901 = vadd.f32 %v1596, %v1801
      %v1902 = vadd.f32 %v1597, %v1806
      %v1903 = vadd.f32 %v1598, %v1809
      %v1904 = vadd.f32 %v1599, %v1814
      %v1905 = vadd.f32 %v1600, %v1817
      %v1906 = vadd.f32 %v1601, %v1822
      %v1907 = vadd.f32 %v1602, %v1825
      %v1908 = vadd.f32 %v1603, %v1830
      %v1909 = vadd.f32 %v1604, %v1833
      %v1910 = vadd.f32 %v1605, %v1838
      %v1911 = vadd.f32 %v1606, %v1841
      %v1912 = vadd.f32 %v1607, %v1846
      %v1913 = vadd.f32 %v1608, %v1849
      %v1914 = vadd.f32 %v1609, %v1854
      %v1915 = vadd.f32 %v1610, %v1857
      %v1916 = vadd.f32 %v1611, %v1862
      %v1917 = vadd.f32 %v1612, %v1865
      %v1918 = vadd.f32 %v1613, %v1870
      %v1919 = vadd.f32 %v1614, %v1873
      %v1920 = vadd.f32 %v1615, %v1878
      %v1921 = vadd.f32 %v1616, %v1881
      %v1922 = vadd.f32 %v1617, %v1886
      %v1923 = vadd.f32 %v1618, %v1889
      %v1924 = vld [vmem:[%s430 + $0x2] sm:$0xff]
      %v1925 = vld [vmem:[%s430 + $0xa] sm:$0xff]
      %v1926 = vld [vmem:[%s430 + $0x1a] sm:$0xff]
      %v1927 = vld [vmem:[%s430 + $0x22] sm:$0xff]
      %v1928 = vld [vmem:[%s430 + $0x32] sm:$0xff]
      %v1929 = vld [vmem:[%s430 + $0x3a] sm:$0xff]
      %v1930 = vld [vmem:[%s430 + $0x4a] sm:$0xff]
      %v1931 = vld [vmem:[%s430 + $0x52] sm:$0xff]
      %v1932 = vld [vmem:[%s430 + $0x62] sm:$0xff]
      %v1933 = vld [vmem:[%s430 + $0x6a] sm:$0xff]
      %v1934 = vld [vmem:[%s430 + $0x7a] sm:$0xff]
      %v1935 = vld [vmem:[%s430 + $0x82] sm:$0xff]
      %v1936 = vld [vmem:[%s430 + $0x92] sm:$0xff]
      %v1937 = vld [vmem:[%s430 + $0x9a] sm:$0xff]
      %v1938 = vld [vmem:[%s430 + $0xaa] sm:$0xff]
      %v1939 = vld [vmem:[%s430 + $0xb2] sm:$0xff]
      %v1940 = vld [vmem:[%s430 + $0xc2] sm:$0xff]
      %v1941 = vld [vmem:[%s430 + $0xca] sm:$0xff]
      %v1942 = vld [vmem:[%s430 + $0xda] sm:$0xff]
      %v1943 = vld [vmem:[%s430 + $0xe2] sm:$0xff]
      %v1944 = vld [vmem:[%s430 + $0xf2] sm:$0xff]
      %v1945 = vld [vmem:[%s430 + $0xfa] sm:$0xff]
      %v1946 = vld [vmem:[%s430 + $0x10a] sm:$0xff]
      %v1947 = vld [vmem:[%s430 + $0x112] sm:$0xff]
      %v1948 = vld [vmem:[%s430 + $0x122] sm:$0xff]
      %v1949 = vld [vmem:[%s430 + $0x12a] sm:$0xff]
      %v1950 = vld [vmem:[%s430 + $0x13a] sm:$0xff]
      %v1951 = vld [vmem:[%s430 + $0x142] sm:$0xff]
      %v1952 = vld [vmem:[%s430 + $0x152] sm:$0xff]
      %v1953 = vld [vmem:[%s430 + $0x15a] sm:$0xff]
      %v1954 = vld [vmem:[%s430 + $0x16a] sm:$0xff]
      %v1955 = vld [vmem:[%s430 + $0x172] sm:$0xff]
      %v1956 = vpack.c.bf16 %v1925, %v1924
      %v1957 = vpack.c.bf16 %v1927, %v1926
      %v1958 = vpack.c.bf16 %v1929, %v1928
      %v1959 = vpack.c.bf16 %v1931, %v1930
      %v1960 = vpack.c.bf16 %v1933, %v1932
      %v1961 = vpack.c.bf16 %v1935, %v1934
      %v1962 = vpack.c.bf16 %v1937, %v1936
      %v1963 = vpack.c.bf16 %v1939, %v1938
      %v1964 = vpack.c.bf16 %v1941, %v1940
      %v1965 = vpack.c.bf16 %v1943, %v1942
      %v1966 = vpack.c.bf16 %v1945, %v1944
      %v1967 = vpack.c.bf16 %v1947, %v1946
      %v1968 = vpack.c.bf16 %v1949, %v1948
      %v1969 = vpack.c.bf16 %v1951, %v1950
      %v1970 = vpack.c.bf16 %v1953, %v1952
      %v1971 = vpack.c.bf16 %v1955, %v1954
      %v1972 = vld [vmem:[%s1 + $0x140] sm:$0xf]
      %v1973 = vld [vmem:[%s1 + $0x144] sm:$0xf]
      %v1974 = vld [vmem:[%s1 + $0x148] sm:$0xf]
      %v1975 = vld [vmem:[%s1 + $0x14c] sm:$0xf]
      %v1976 = vld [vmem:[%s1 + $0x150] sm:$0xf]
      %v1977 = vld [vmem:[%s1 + $0x154] sm:$0xf]
      %v1978 = vld [vmem:[%s1 + $0x158] sm:$0xf]
      %v1979 = vld [vmem:[%s1 + $0x15c] sm:$0xf]
      %v1980 = vld [vmem:[%s1 + $0x160] sm:$0xf]
      %v1981 = vld [vmem:[%s1 + $0x164] sm:$0xf]
      %v1982 = vld [vmem:[%s1 + $0x168] sm:$0xf]
      %v1983 = vld [vmem:[%s1 + $0x16c] sm:$0xf]
      %v1984 = vld [vmem:[%s1 + $0x170] sm:$0xf]
      %v1985 = vld [vmem:[%s1 + $0x174] sm:$0xf]
      %v1986 = vld [vmem:[%s1 + $0x178] sm:$0xf]
      %v1987 = vld [vmem:[%s1 + $0x17c] sm:$0xf]
      %v2004 = vunpack.c.l.b16 %v1972
      %v2005 = vunpack.c.l.b16 %v1973
      %v2006 = vunpack.c.l.b16 %v1974
      %v2007 = vunpack.c.l.b16 %v1975
      %v2008 = vunpack.c.l.b16 %v1976
      %v2009 = vunpack.c.l.b16 %v1977
      %v2010 = vunpack.c.l.b16 %v1978
      %v2011 = vunpack.c.l.b16 %v1979
      %v2012 = vunpack.c.l.b16 %v1980
      %v2013 = vunpack.c.l.b16 %v1981
      %v2014 = vunpack.c.l.b16 %v1982
      %v2015 = vunpack.c.l.b16 %v1983
      %v2016 = vunpack.c.l.b16 %v1984
      %v2017 = vunpack.c.l.b16 %v1985
      %v2018 = vunpack.c.l.b16 %v1986
      %v2019 = vunpack.c.l.b16 %v1987
      %v2020 = vpack.c.b16 %v2005, %v2004
      %v2021 = vpack.c.b16 %v2007, %v2006
      %v2022 = vpack.c.b16 %v2009, %v2008
      %v2023 = vpack.c.b16 %v2011, %v2010
      %v2024 = vpack.c.b16 %v2013, %v2012
      %v2025 = vpack.c.b16 %v2015, %v2014
      %v2026 = vpack.c.b16 %v2017, %v2016
      %v2027 = vpack.c.b16 %v2019, %v2018
      %2036 = vmatprep.subr.bf16.mxu0 0
      %2037 = vmatpush1.bf16.msra.mxu0 %v2027
      %2038 = vmatprep.subr.bf16.mxu0 0
      %2039 = vmatpush1.bf16.msra.mxu0 %v2026
      %2040 = vmatprep.subr.bf16.mxu0 0
      %2041 = vmatpush1.bf16.msra.mxu0 %v2025
      %2042 = vmatprep.subr.bf16.mxu0 0
      %2043 = vmatpush1.bf16.msra.mxu0 %v2024
      %2044 = vmatprep.subr.bf16.mxu0 0
      %2045 = vmatpush1.bf16.msra.mxu0 %v2023
      %2046 = vmatprep.subr.bf16.mxu0 0
      %2047 = vmatpush1.bf16.msra.mxu0 %v2022
      %2048 = vmatprep.subr.bf16.mxu0 0
      %2049 = vmatpush1.bf16.msra.mxu0 %v2021
      %2050 = vmatprep.subr.bf16.mxu0 0
      %2051 = vmatpush1.bf16.msra.mxu0 %v2020
      %2052 = vmatprep.subr.bf16.mxu0 0
      %2053 = vmatpush2.bf16.msra.mxu0 0
      %2054 = vmatprep.subr.bf16.mxu0 0
      %2055 = vmatpush2.bf16.msra.mxu0 0
      %2056 = vmatprep.subr.bf16.mxu0 0
      %2057 = vmatpush2.bf16.msra.mxu0 0
      %2058 = vmatprep.subr.bf16.mxu0 0
      %2059 = vmatpush2.bf16.msra.mxu0 0
      %2060 = vmatprep.subr.bf16.mxu0 0
      %2061 = vmatpush2.bf16.msra.mxu0 0
      %2062 = vmatprep.subr.bf16.mxu0 0
      %2063 = vmatpush2.bf16.msra.mxu0 0
      %2064 = vmatprep.subr.bf16.mxu0 0
      %2065 = vmatpush2.bf16.msra.mxu0 0
      %2066 = vmatprep.subr.bf16.mxu0 0
      %2067 = vmatpush2.bf16.msra.mxu0 0
      %2068 = vmatprep.mubr.bf16.mxu0 0
      %2069 = vmatmul.mubr.bf16.gmra.mxu0 %v1956
      %v2070 = vpop.f32.mrf.mxu0
      %v2071 = vadd.f32 0.0, %v2070
      %v2072 = vpop.f32.mrf.mxu0
      %v2073 = vpop.f32.mrf.mxu0
      %v2074 = vadd.f32 0.0, %v2073
      %v2075 = vpop.f32.mrf.mxu0
      %2076 = vmatprep.mubr.bf16.mxu0 0
      %2077 = vmatmul.mubr.bf16.gmra.mxu0 %v1957
      %v2078 = vpop.f32.mrf.mxu0
      %v2079 = vadd.f32 0.0, %v2078
      %v2080 = vpop.f32.mrf.mxu0
      %v2081 = vpop.f32.mrf.mxu0
      %v2082 = vadd.f32 0.0, %v2081
      %v2083 = vpop.f32.mrf.mxu0
      %2084 = vmatprep.mubr.bf16.mxu0 0
      %2085 = vmatmul.mubr.bf16.gmra.mxu0 %v1958
      %v2086 = vpop.f32.mrf.mxu0
      %v2087 = vadd.f32 0.0, %v2086
      %v2088 = vpop.f32.mrf.mxu0
      %v2089 = vpop.f32.mrf.mxu0
      %v2090 = vadd.f32 0.0, %v2089
      %v2091 = vpop.f32.mrf.mxu0
      %2092 = vmatprep.mubr.bf16.mxu0 0
      %2093 = vmatmul.mubr.bf16.gmra.mxu0 %v1959
      %v2094 = vpop.f32.mrf.mxu0
      %v2095 = vadd.f32 0.0, %v2094
      %v2096 = vpop.f32.mrf.mxu0
      %v2097 = vpop.f32.mrf.mxu0
      %v2098 = vadd.f32 0.0, %v2097
      %v2099 = vpop.f32.mrf.mxu0
      %2100 = vmatprep.mubr.bf16.mxu0 0
      %2101 = vmatmul.mubr.bf16.gmra.mxu0 %v1960
      %v2102 = vpop.f32.mrf.mxu0
      %v2103 = vadd.f32 0.0, %v2102
      %v2104 = vpop.f32.mrf.mxu0
      %v2105 = vpop.f32.mrf.mxu0
      %v2106 = vadd.f32 0.0, %v2105
      %v2107 = vpop.f32.mrf.mxu0
      %2108 = vmatprep.mubr.bf16.mxu0 0
      %2109 = vmatmul.mubr.bf16.gmra.mxu0 %v1961
      %v2110 = vpop.f32.mrf.mxu0
      %v2111 = vadd.f32 0.0, %v2110
      %v2112 = vpop.f32.mrf.mxu0
      %v2113 = vpop.f32.mrf.mxu0
      %v2114 = vadd.f32 0.0, %v2113
      %v2115 = vpop.f32.mrf.mxu0
      %2116 = vmatprep.mubr.bf16.mxu0 0
      %2117 = vmatmul.mubr.bf16.gmra.mxu0 %v1962
      %v2118 = vpop.f32.mrf.mxu0
      %v2119 = vadd.f32 0.0, %v2118
      %v2120 = vpop.f32.mrf.mxu0
      %v2121 = vpop.f32.mrf.mxu0
      %v2122 = vadd.f32 0.0, %v2121
      %v2123 = vpop.f32.mrf.mxu0
      %2124 = vmatprep.mubr.bf16.mxu0 0
      %2125 = vmatmul.mubr.bf16.gmra.mxu0 %v1963
      %v2126 = vpop.f32.mrf.mxu0
      %v2127 = vadd.f32 0.0, %v2126
      %v2128 = vpop.f32.mrf.mxu0
      %v2129 = vpop.f32.mrf.mxu0
      %v2130 = vadd.f32 0.0, %v2129
      %v2131 = vpop.f32.mrf.mxu0
      %2132 = vmatprep.mubr.bf16.mxu0 0
      %2133 = vmatmul.mubr.bf16.gmra.mxu0 %v1964
      %v2134 = vpop.f32.mrf.mxu0
      %v2135 = vadd.f32 0.0, %v2134
      %v2136 = vpop.f32.mrf.mxu0
      %v2137 = vpop.f32.mrf.mxu0
      %v2138 = vadd.f32 0.0, %v2137
      %v2139 = vpop.f32.mrf.mxu0
      %2140 = vmatprep.mubr.bf16.mxu0 0
      %2141 = vmatmul.mubr.bf16.gmra.mxu0 %v1965
      %v2142 = vpop.f32.mrf.mxu0
      %v2143 = vadd.f32 0.0, %v2142
      %v2144 = vpop.f32.mrf.mxu0
      %v2145 = vpop.f32.mrf.mxu0
      %v2146 = vadd.f32 0.0, %v2145
      %v2147 = vpop.f32.mrf.mxu0
      %2148 = vmatprep.mubr.bf16.mxu0 0
      %2149 = vmatmul.mubr.bf16.gmra.mxu0 %v1966
      %v2150 = vpop.f32.mrf.mxu0
      %v2151 = vadd.f32 0.0, %v2150
      %v2152 = vpop.f32.mrf.mxu0
      %v2153 = vpop.f32.mrf.mxu0
      %v2154 = vadd.f32 0.0, %v2153
      %v2155 = vpop.f32.mrf.mxu0
      %2156 = vmatprep.mubr.bf16.mxu0 0
      %2157 = vmatmul.mubr.bf16.gmra.mxu0 %v1967
      %v2158 = vpop.f32.mrf.mxu0
      %v2159 = vadd.f32 0.0, %v2158
      %v2160 = vpop.f32.mrf.mxu0
      %v2161 = vpop.f32.mrf.mxu0
      %v2162 = vadd.f32 0.0, %v2161
      %v2163 = vpop.f32.mrf.mxu0
      %2164 = vmatprep.mubr.bf16.mxu0 0
      %2165 = vmatmul.mubr.bf16.gmra.mxu0 %v1968
      %v2166 = vpop.f32.mrf.mxu0
      %v2167 = vadd.f32 0.0, %v2166
      %v2168 = vpop.f32.mrf.mxu0
      %v2169 = vpop.f32.mrf.mxu0
      %v2170 = vadd.f32 0.0, %v2169
      %v2171 = vpop.f32.mrf.mxu0
      %2172 = vmatprep.mubr.bf16.mxu0 0
      %2173 = vmatmul.mubr.bf16.gmra.mxu0 %v1969
      %v2174 = vpop.f32.mrf.mxu0
      %v2175 = vadd.f32 0.0, %v2174
      %v2176 = vpop.f32.mrf.mxu0
      %v2177 = vpop.f32.mrf.mxu0
      %v2178 = vadd.f32 0.0, %v2177
      %v2179 = vpop.f32.mrf.mxu0
      %2180 = vmatprep.mubr.bf16.mxu0 0
      %2181 = vmatmul.mubr.bf16.gmra.mxu0 %v1970
      %v2182 = vpop.f32.mrf.mxu0
      %v2183 = vadd.f32 0.0, %v2182
      %v2184 = vpop.f32.mrf.mxu0
      %v2185 = vpop.f32.mrf.mxu0
      %v2186 = vadd.f32 0.0, %v2185
      %v2187 = vpop.f32.mrf.mxu0
      %2188 = vmatprep.mubr.bf16.mxu0 0
      %2189 = vmatmul.mubr.bf16.gmra.mxu0 %v1971
      %v2190 = vpop.f32.mrf.mxu0
      %v2191 = vadd.f32 0.0, %v2190
      %v2192 = vpop.f32.mrf.mxu0
      %v2193 = vpop.f32.mrf.mxu0
      %v2194 = vadd.f32 0.0, %v2193
      %v2195 = vpop.f32.mrf.mxu0
      %2196 = vdwg.mxu0
      %v2197 = vadd.f32 %v1892, %v2071
      %v2198 = vadd.f32 %v1893, %v2074
      %v2199 = vadd.f32 %v1894, %v2079
      %v2200 = vadd.f32 %v1895, %v2082
      %v2201 = vadd.f32 %v1896, %v2087
      %v2202 = vadd.f32 %v1897, %v2090
      %v2203 = vadd.f32 %v1898, %v2095
      %v2204 = vadd.f32 %v1899, %v2098
      %v2205 = vadd.f32 %v1900, %v2103
      %v2206 = vadd.f32 %v1901, %v2106
      %v2207 = vadd.f32 %v1902, %v2111
      %v2208 = vadd.f32 %v1903, %v2114
      %v2209 = vadd.f32 %v1904, %v2119
      %v2210 = vadd.f32 %v1905, %v2122
      %v2211 = vadd.f32 %v1906, %v2127
      %v2212 = vadd.f32 %v1907, %v2130
      %v2213 = vadd.f32 %v1908, %v2135
      %v2214 = vadd.f32 %v1909, %v2138
      %v2215 = vadd.f32 %v1910, %v2143
      %v2216 = vadd.f32 %v1911, %v2146
      %v2217 = vadd.f32 %v1912, %v2151
      %v2218 = vadd.f32 %v1913, %v2154
      %v2219 = vadd.f32 %v1914, %v2159
      %v2220 = vadd.f32 %v1915, %v2162
      %v2221 = vadd.f32 %v1916, %v2167
      %v2222 = vadd.f32 %v1917, %v2170
      %v2223 = vadd.f32 %v1918, %v2175
      %v2224 = vadd.f32 %v1919, %v2178
      %v2225 = vadd.f32 %v1920, %v2183
      %v2226 = vadd.f32 %v1921, %v2186
      %v2227 = vadd.f32 %v1922, %v2191
      %v2228 = vadd.f32 %v1923, %v2194
      %s2229 = scalar_lea.vmem [#allocation2], 48
      %v2230 = vld [vmem:[%s2229] sm:$0xff]
      %v2231 = vld [vmem:[%s2229 + $0x8] sm:$0xff]
      %v2232 = vld [vmem:[%s2229 + $0x18] sm:$0xff]
      %v2233 = vld [vmem:[%s2229 + $0x20] sm:$0xff]
      %v2234 = vld [vmem:[%s2229 + $0x30] sm:$0xff]
      %v2235 = vld [vmem:[%s2229 + $0x38] sm:$0xff]
      %v2236 = vld [vmem:[%s2229 + $0x48] sm:$0xff]
      %v2237 = vld [vmem:[%s2229 + $0x50] sm:$0xff]
      %v2238 = vld [vmem:[%s2229 + $0x60] sm:$0xff]
      %v2239 = vld [vmem:[%s2229 + $0x68] sm:$0xff]
      %v2240 = vld [vmem:[%s2229 + $0x78] sm:$0xff]
      %v2241 = vld [vmem:[%s2229 + $0x80] sm:$0xff]
      %v2242 = vld [vmem:[%s2229 + $0x90] sm:$0xff]
      %v2243 = vld [vmem:[%s2229 + $0x98] sm:$0xff]
      %v2244 = vld [vmem:[%s2229 + $0xa8] sm:$0xff]
      %v2245 = vld [vmem:[%s2229 + $0xb0] sm:$0xff]
      %v2246 = vld [vmem:[%s2229 + $0xc0] sm:$0xff]
      %v2247 = vld [vmem:[%s2229 + $0xc8] sm:$0xff]
      %v2248 = vld [vmem:[%s2229 + $0xd8] sm:$0xff]
      %v2249 = vld [vmem:[%s2229 + $0xe0] sm:$0xff]
      %v2250 = vld [vmem:[%s2229 + $0xf0] sm:$0xff]
      %v2251 = vld [vmem:[%s2229 + $0xf8] sm:$0xff]
      %v2252 = vld [vmem:[%s2229 + $0x108] sm:$0xff]
      %v2253 = vld [vmem:[%s2229 + $0x110] sm:$0xff]
      %v2254 = vld [vmem:[%s2229 + $0x120] sm:$0xff]
      %v2255 = vld [vmem:[%s2229 + $0x128] sm:$0xff]
      %v2256 = vld [vmem:[%s2229 + $0x138] sm:$0xff]
      %v2257 = vld [vmem:[%s2229 + $0x140] sm:$0xff]
      %v2258 = vld [vmem:[%s2229 + $0x150] sm:$0xff]
      %v2259 = vld [vmem:[%s2229 + $0x158] sm:$0xff]
      %v2260 = vld [vmem:[%s2229 + $0x168] sm:$0xff]
      %v2261 = vld [vmem:[%s2229 + $0x170] sm:$0xff]
      %v2262 = vpack.c.bf16 %v2231, %v2230
      %v2263 = vpack.c.bf16 %v2233, %v2232
      %v2264 = vpack.c.bf16 %v2235, %v2234
      %v2265 = vpack.c.bf16 %v2237, %v2236
      %v2266 = vpack.c.bf16 %v2239, %v2238
      %v2267 = vpack.c.bf16 %v2241, %v2240
      %v2268 = vpack.c.bf16 %v2243, %v2242
      %v2269 = vpack.c.bf16 %v2245, %v2244
      %v2270 = vpack.c.bf16 %v2247, %v2246
      %v2271 = vpack.c.bf16 %v2249, %v2248
      %v2272 = vpack.c.bf16 %v2251, %v2250
      %v2273 = vpack.c.bf16 %v2253, %v2252
      %v2274 = vpack.c.bf16 %v2255, %v2254
      %v2275 = vpack.c.bf16 %v2257, %v2256
      %v2276 = vpack.c.bf16 %v2259, %v2258
      %v2277 = vpack.c.bf16 %v2261, %v2260
      %v2278 = vld [vmem:[%s1 + $0x180] sm:$0xf]
      %v2279 = vld [vmem:[%s1 + $0x184] sm:$0xf]
      %v2280 = vld [vmem:[%s1 + $0x188] sm:$0xf]
      %v2281 = vld [vmem:[%s1 + $0x18c] sm:$0xf]
      %v2282 = vld [vmem:[%s1 + $0x190] sm:$0xf]
      %v2283 = vld [vmem:[%s1 + $0x194] sm:$0xf]
      %v2284 = vld [vmem:[%s1 + $0x198] sm:$0xf]
      %v2285 = vld [vmem:[%s1 + $0x19c] sm:$0xf]
      %v2286 = vld [vmem:[%s1 + $0x1a0] sm:$0xf]
      %v2287 = vld [vmem:[%s1 + $0x1a4] sm:$0xf]
      %v2288 = vld [vmem:[%s1 + $0x1a8] sm:$0xf]
      %v2289 = vld [vmem:[%s1 + $0x1ac] sm:$0xf]
      %v2290 = vld [vmem:[%s1 + $0x1b0] sm:$0xf]
      %v2291 = vld [vmem:[%s1 + $0x1b4] sm:$0xf]
      %v2292 = vld [vmem:[%s1 + $0x1b8] sm:$0xf]
      %v2293 = vld [vmem:[%s1 + $0x1bc] sm:$0xf]
      %v2310 = vunpack.c.l.b16 %v2278
      %v2311 = vunpack.c.l.b16 %v2279
      %v2312 = vunpack.c.l.b16 %v2280
      %v2313 = vunpack.c.l.b16 %v2281
      %v2314 = vunpack.c.l.b16 %v2282
      %v2315 = vunpack.c.l.b16 %v2283
      %v2316 = vunpack.c.l.b16 %v2284
      %v2317 = vunpack.c.l.b16 %v2285
      %v2318 = vunpack.c.l.b16 %v2286
      %v2319 = vunpack.c.l.b16 %v2287
      %v2320 = vunpack.c.l.b16 %v2288
      %v2321 = vunpack.c.l.b16 %v2289
      %v2322 = vunpack.c.l.b16 %v2290
      %v2323 = vunpack.c.l.b16 %v2291
      %v2324 = vunpack.c.l.b16 %v2292
      %v2325 = vunpack.c.l.b16 %v2293
      %v2326 = vpack.c.b16 %v2311, %v2310
      %v2327 = vpack.c.b16 %v2313, %v2312
      %v2328 = vpack.c.b16 %v2315, %v2314
      %v2329 = vpack.c.b16 %v2317, %v2316
      %v2330 = vpack.c.b16 %v2319, %v2318
      %v2331 = vpack.c.b16 %v2321, %v2320
      %v2332 = vpack.c.b16 %v2323, %v2322
      %v2333 = vpack.c.b16 %v2325, %v2324
      %2342 = vmatprep.subr.bf16.mxu0 0
      %2343 = vmatpush1.bf16.msra.mxu0 %v2333
      %2344 = vmatprep.subr.bf16.mxu0 0
      %2345 = vmatpush1.bf16.msra.mxu0 %v2332
      %2346 = vmatprep.subr.bf16.mxu0 0
      %2347 = vmatpush1.bf16.msra.mxu0 %v2331
      %2348 = vmatprep.subr.bf16.mxu0 0
      %2349 = vmatpush1.bf16.msra.mxu0 %v2330
      %2350 = vmatprep.subr.bf16.mxu0 0
      %2351 = vmatpush1.bf16.msra.mxu0 %v2329
      %2352 = vmatprep.subr.bf16.mxu0 0
      %2353 = vmatpush1.bf16.msra.mxu0 %v2328
      %2354 = vmatprep.subr.bf16.mxu0 0
      %2355 = vmatpush1.bf16.msra.mxu0 %v2327
      %2356 = vmatprep.subr.bf16.mxu0 0
      %2357 = vmatpush1.bf16.msra.mxu0 %v2326
      %2358 = vmatprep.subr.bf16.mxu0 0
      %2359 = vmatpush2.bf16.msra.mxu0 0
      %2360 = vmatprep.subr.bf16.mxu0 0
      %2361 = vmatpush2.bf16.msra.mxu0 0
      %2362 = vmatprep.subr.bf16.mxu0 0
      %2363 = vmatpush2.bf16.msra.mxu0 0
      %2364 = vmatprep.subr.bf16.mxu0 0
      %2365 = vmatpush2.bf16.msra.mxu0 0
      %2366 = vmatprep.subr.bf16.mxu0 0
      %2367 = vmatpush2.bf16.msra.mxu0 0
      %2368 = vmatprep.subr.bf16.mxu0 0
      %2369 = vmatpush2.bf16.msra.mxu0 0
      %2370 = vmatprep.subr.bf16.mxu0 0
      %2371 = vmatpush2.bf16.msra.mxu0 0
      %2372 = vmatprep.subr.bf16.mxu0 0
      %2373 = vmatpush2.bf16.msra.mxu0 0
      %2374 = vmatprep.mubr.bf16.mxu0 0
      %2375 = vmatmul.mubr.bf16.gmra.mxu0 %v2262
      %v2376 = vpop.f32.mrf.mxu0
      %v2377 = vadd.f32 0.0, %v2376
      %v2378 = vpop.f32.mrf.mxu0
      %v2379 = vpop.f32.mrf.mxu0
      %v2380 = vadd.f32 0.0, %v2379
      %v2381 = vpop.f32.mrf.mxu0
      %2382 = vmatprep.mubr.bf16.mxu0 0
      %2383 = vmatmul.mubr.bf16.gmra.mxu0 %v2263
      %v2384 = vpop.f32.mrf.mxu0
      %v2385 = vadd.f32 0.0, %v2384
      %v2386 = vpop.f32.mrf.mxu0
      %v2387 = vpop.f32.mrf.mxu0
      %v2388 = vadd.f32 0.0, %v2387
      %v2389 = vpop.f32.mrf.mxu0
      %2390 = vmatprep.mubr.bf16.mxu0 0
      %2391 = vmatmul.mubr.bf16.gmra.mxu0 %v2264
      %v2392 = vpop.f32.mrf.mxu0
      %v2393 = vadd.f32 0.0, %v2392
      %v2394 = vpop.f32.mrf.mxu0
      %v2395 = vpop.f32.mrf.mxu0
      %v2396 = vadd.f32 0.0, %v2395
      %v2397 = vpop.f32.mrf.mxu0
      %2398 = vmatprep.mubr.bf16.mxu0 0
      %2399 = vmatmul.mubr.bf16.gmra.mxu0 %v2265
      %v2400 = vpop.f32.mrf.mxu0
      %v2401 = vadd.f32 0.0, %v2400
      %v2402 = vpop.f32.mrf.mxu0
      %v2403 = vpop.f32.mrf.mxu0
      %v2404 = vadd.f32 0.0, %v2403
      %v2405 = vpop.f32.mrf.mxu0
      %2406 = vmatprep.mubr.bf16.mxu0 0
      %2407 = vmatmul.mubr.bf16.gmra.mxu0 %v2266
      %v2408 = vpop.f32.mrf.mxu0
      %v2409 = vadd.f32 0.0, %v2408
      %v2410 = vpop.f32.mrf.mxu0
      %v2411 = vpop.f32.mrf.mxu0
      %v2412 = vadd.f32 0.0, %v2411
      %v2413 = vpop.f32.mrf.mxu0
      %2414 = vmatprep.mubr.bf16.mxu0 0
      %2415 = vmatmul.mubr.bf16.gmra.mxu0 %v2267
      %v2416 = vpop.f32.mrf.mxu0
      %v2417 = vadd.f32 0.0, %v2416
      %v2418 = vpop.f32.mrf.mxu0
      %v2419 = vpop.f32.mrf.mxu0
      %v2420 = vadd.f32 0.0, %v2419
      %v2421 = vpop.f32.mrf.mxu0
      %2422 = vmatprep.mubr.bf16.mxu0 0
      %2423 = vmatmul.mubr.bf16.gmra.mxu0 %v2268
      %v2424 = vpop.f32.mrf.mxu0
      %v2425 = vadd.f32 0.0, %v2424
      %v2426 = vpop.f32.mrf.mxu0
      %v2427 = vpop.f32.mrf.mxu0
      %v2428 = vadd.f32 0.0, %v2427
      %v2429 = vpop.f32.mrf.mxu0
      %2430 = vmatprep.mubr.bf16.mxu0 0
      %2431 = vmatmul.mubr.bf16.gmra.mxu0 %v2269
      %v2432 = vpop.f32.mrf.mxu0
      %v2433 = vadd.f32 0.0, %v2432
      %v2434 = vpop.f32.mrf.mxu0
      %v2435 = vpop.f32.mrf.mxu0
      %v2436 = vadd.f32 0.0, %v2435
      %v2437 = vpop.f32.mrf.mxu0
      %2438 = vmatprep.mubr.bf16.mxu0 0
      %2439 = vmatmul.mubr.bf16.gmra.mxu0 %v2270
      %v2440 = vpop.f32.mrf.mxu0
      %v2441 = vadd.f32 0.0, %v2440
      %v2442 = vpop.f32.mrf.mxu0
      %v2443 = vpop.f32.mrf.mxu0
      %v2444 = vadd.f32 0.0, %v2443
      %v2445 = vpop.f32.mrf.mxu0
      %2446 = vmatprep.mubr.bf16.mxu0 0
      %2447 = vmatmul.mubr.bf16.gmra.mxu0 %v2271
      %v2448 = vpop.f32.mrf.mxu0
      %v2449 = vadd.f32 0.0, %v2448
      %v2450 = vpop.f32.mrf.mxu0
      %v2451 = vpop.f32.mrf.mxu0
      %v2452 = vadd.f32 0.0, %v2451
      %v2453 = vpop.f32.mrf.mxu0
      %2454 = vmatprep.mubr.bf16.mxu0 0
      %2455 = vmatmul.mubr.bf16.gmra.mxu0 %v2272
      %v2456 = vpop.f32.mrf.mxu0
      %v2457 = vadd.f32 0.0, %v2456
      %v2458 = vpop.f32.mrf.mxu0
      %v2459 = vpop.f32.mrf.mxu0
      %v2460 = vadd.f32 0.0, %v2459
      %v2461 = vpop.f32.mrf.mxu0
      %2462 = vmatprep.mubr.bf16.mxu0 0
      %2463 = vmatmul.mubr.bf16.gmra.mxu0 %v2273
      %v2464 = vpop.f32.mrf.mxu0
      %v2465 = vadd.f32 0.0, %v2464
      %v2466 = vpop.f32.mrf.mxu0
      %v2467 = vpop.f32.mrf.mxu0
      %v2468 = vadd.f32 0.0, %v2467
      %v2469 = vpop.f32.mrf.mxu0
      %2470 = vmatprep.mubr.bf16.mxu0 0
      %2471 = vmatmul.mubr.bf16.gmra.mxu0 %v2274
      %v2472 = vpop.f32.mrf.mxu0
      %v2473 = vadd.f32 0.0, %v2472
      %v2474 = vpop.f32.mrf.mxu0
      %v2475 = vpop.f32.mrf.mxu0
      %v2476 = vadd.f32 0.0, %v2475
      %v2477 = vpop.f32.mrf.mxu0
      %2478 = vmatprep.mubr.bf16.mxu0 0
      %2479 = vmatmul.mubr.bf16.gmra.mxu0 %v2275
      %v2480 = vpop.f32.mrf.mxu0
      %v2481 = vadd.f32 0.0, %v2480
      %v2482 = vpop.f32.mrf.mxu0
      %v2483 = vpop.f32.mrf.mxu0
      %v2484 = vadd.f32 0.0, %v2483
      %v2485 = vpop.f32.mrf.mxu0
      %2486 = vmatprep.mubr.bf16.mxu0 0
      %2487 = vmatmul.mubr.bf16.gmra.mxu0 %v2276
      %v2488 = vpop.f32.mrf.mxu0
      %v2489 = vadd.f32 0.0, %v2488
      %v2490 = vpop.f32.mrf.mxu0
      %v2491 = vpop.f32.mrf.mxu0
      %v2492 = vadd.f32 0.0, %v2491
      %v2493 = vpop.f32.mrf.mxu0
      %2494 = vmatprep.mubr.bf16.mxu0 0
      %2495 = vmatmul.mubr.bf16.gmra.mxu0 %v2277
      %v2496 = vpop.f32.mrf.mxu0
      %v2497 = vadd.f32 0.0, %v2496
      %v2498 = vpop.f32.mrf.mxu0
      %v2499 = vpop.f32.mrf.mxu0
      %v2500 = vadd.f32 0.0, %v2499
      %v2501 = vpop.f32.mrf.mxu0
      %2502 = vdwg.mxu0
      %v2503 = vadd.f32 %v2197, %v2377
      %v2504 = vadd.f32 %v2198, %v2380
      %v2505 = vadd.f32 %v2199, %v2385
      %v2506 = vadd.f32 %v2200, %v2388
      %v2507 = vadd.f32 %v2201, %v2393
      %v2508 = vadd.f32 %v2202, %v2396
      %v2509 = vadd.f32 %v2203, %v2401
      %v2510 = vadd.f32 %v2204, %v2404
      %v2511 = vadd.f32 %v2205, %v2409
      %v2512 = vadd.f32 %v2206, %v2412
      %v2513 = vadd.f32 %v2207, %v2417
      %v2514 = vadd.f32 %v2208, %v2420
      %v2515 = vadd.f32 %v2209, %v2425
      %v2516 = vadd.f32 %v2210, %v2428
      %v2517 = vadd.f32 %v2211, %v2433
      %v2518 = vadd.f32 %v2212, %v2436
      %v2519 = vadd.f32 %v2213, %v2441
      %v2520 = vadd.f32 %v2214, %v2444
      %v2521 = vadd.f32 %v2215, %v2449
      %v2522 = vadd.f32 %v2216, %v2452
      %v2523 = vadd.f32 %v2217, %v2457
      %v2524 = vadd.f32 %v2218, %v2460
      %v2525 = vadd.f32 %v2219, %v2465
      %v2526 = vadd.f32 %v2220, %v2468
      %v2527 = vadd.f32 %v2221, %v2473
      %v2528 = vadd.f32 %v2222, %v2476
      %v2529 = vadd.f32 %v2223, %v2481
      %v2530 = vadd.f32 %v2224, %v2484
      %v2531 = vadd.f32 %v2225, %v2489
      %v2532 = vadd.f32 %v2226, %v2492
      %v2533 = vadd.f32 %v2227, %v2497
      %v2534 = vadd.f32 %v2228, %v2500
      %v2535 = vld [vmem:[%s2229 + $0x1] sm:$0xff]
      %v2536 = vld [vmem:[%s2229 + $0x9] sm:$0xff]
      %v2537 = vld [vmem:[%s2229 + $0x19] sm:$0xff]
      %v2538 = vld [vmem:[%s2229 + $0x21] sm:$0xff]
      %v2539 = vld [vmem:[%s2229 + $0x31] sm:$0xff]
      %v2540 = vld [vmem:[%s2229 + $0x39] sm:$0xff]
      %v2541 = vld [vmem:[%s2229 + $0x49] sm:$0xff]
      %v2542 = vld [vmem:[%s2229 + $0x51] sm:$0xff]
      %v2543 = vld [vmem:[%s2229 + $0x61] sm:$0xff]
      %v2544 = vld [vmem:[%s2229 + $0x69] sm:$0xff]
      %v2545 = vld [vmem:[%s2229 + $0x79] sm:$0xff]
      %v2546 = vld [vmem:[%s2229 + $0x81] sm:$0xff]
      %v2547 = vld [vmem:[%s2229 + $0x91] sm:$0xff]
      %v2548 = vld [vmem:[%s2229 + $0x99] sm:$0xff]
      %v2549 = vld [vmem:[%s2229 + $0xa9] sm:$0xff]
      %v2550 = vld [vmem:[%s2229 + $0xb1] sm:$0xff]
      %v2551 = vld [vmem:[%s2229 + $0xc1] sm:$0xff]
      %v2552 = vld [vmem:[%s2229 + $0xc9] sm:$0xff]
      %v2553 = vld [vmem:[%s2229 + $0xd9] sm:$0xff]
      %v2554 = vld [vmem:[%s2229 + $0xe1] sm:$0xff]
      %v2555 = vld [vmem:[%s2229 + $0xf1] sm:$0xff]
      %v2556 = vld [vmem:[%s2229 + $0xf9] sm:$0xff]
      %v2557 = vld [vmem:[%s2229 + $0x109] sm:$0xff]
      %v2558 = vld [vmem:[%s2229 + $0x111] sm:$0xff]
      %v2559 = vld [vmem:[%s2229 + $0x121] sm:$0xff]
      %v2560 = vld [vmem:[%s2229 + $0x129] sm:$0xff]
      %v2561 = vld [vmem:[%s2229 + $0x139] sm:$0xff]
      %v2562 = vld [vmem:[%s2229 + $0x141] sm:$0xff]
      %v2563 = vld [vmem:[%s2229 + $0x151] sm:$0xff]
      %v2564 = vld [vmem:[%s2229 + $0x159] sm:$0xff]
      %v2565 = vld [vmem:[%s2229 + $0x169] sm:$0xff]
      %v2566 = vld [vmem:[%s2229 + $0x171] sm:$0xff]
      %v2567 = vpack.c.bf16 %v2536, %v2535
      %v2568 = vpack.c.bf16 %v2538, %v2537
      %v2569 = vpack.c.bf16 %v2540, %v2539
      %v2570 = vpack.c.bf16 %v2542, %v2541
      %v2571 = vpack.c.bf16 %v2544, %v2543
      %v2572 = vpack.c.bf16 %v2546, %v2545
      %v2573 = vpack.c.bf16 %v2548, %v2547
      %v2574 = vpack.c.bf16 %v2550, %v2549
      %v2575 = vpack.c.bf16 %v2552, %v2551
      %v2576 = vpack.c.bf16 %v2554, %v2553
      %v2577 = vpack.c.bf16 %v2556, %v2555
      %v2578 = vpack.c.bf16 %v2558, %v2557
      %v2579 = vpack.c.bf16 %v2560, %v2559
      %v2580 = vpack.c.bf16 %v2562, %v2561
      %v2581 = vpack.c.bf16 %v2564, %v2563
      %v2582 = vpack.c.bf16 %v2566, %v2565
      %v2583 = vld [vmem:[%s1 + $0x1c0] sm:$0xf]
      %v2584 = vld [vmem:[%s1 + $0x1c4] sm:$0xf]
      %v2585 = vld [vmem:[%s1 + $0x1c8] sm:$0xf]
      %v2586 = vld [vmem:[%s1 + $0x1cc] sm:$0xf]
      %v2587 = vld [vmem:[%s1 + $0x1d0] sm:$0xf]
      %v2588 = vld [vmem:[%s1 + $0x1d4] sm:$0xf]
      %v2589 = vld [vmem:[%s1 + $0x1d8] sm:$0xf]
      %v2590 = vld [vmem:[%s1 + $0x1dc] sm:$0xf]
      %v2591 = vld [vmem:[%s1 + $0x1e0] sm:$0xf]
      %v2592 = vld [vmem:[%s1 + $0x1e4] sm:$0xf]
      %v2593 = vld [vmem:[%s1 + $0x1e8] sm:$0xf]
      %v2594 = vld [vmem:[%s1 + $0x1ec] sm:$0xf]
      %v2595 = vld [vmem:[%s1 + $0x1f0] sm:$0xf]
      %v2596 = vld [vmem:[%s1 + $0x1f4] sm:$0xf]
      %v2597 = vld [vmem:[%s1 + $0x1f8] sm:$0xf]
      %v2598 = vld [vmem:[%s1 + $0x1fc] sm:$0xf]
      %v2615 = vunpack.c.l.b16 %v2583
      %v2616 = vunpack.c.l.b16 %v2584
      %v2617 = vunpack.c.l.b16 %v2585
      %v2618 = vunpack.c.l.b16 %v2586
      %v2619 = vunpack.c.l.b16 %v2587
      %v2620 = vunpack.c.l.b16 %v2588
      %v2621 = vunpack.c.l.b16 %v2589
      %v2622 = vunpack.c.l.b16 %v2590
      %v2623 = vunpack.c.l.b16 %v2591
      %v2624 = vunpack.c.l.b16 %v2592
      %v2625 = vunpack.c.l.b16 %v2593
      %v2626 = vunpack.c.l.b16 %v2594
      %v2627 = vunpack.c.l.b16 %v2595
      %v2628 = vunpack.c.l.b16 %v2596
      %v2629 = vunpack.c.l.b16 %v2597
      %v2630 = vunpack.c.l.b16 %v2598
      %v2631 = vpack.c.b16 %v2616, %v2615
      %v2632 = vpack.c.b16 %v2618, %v2617
      %v2633 = vpack.c.b16 %v2620, %v2619
      %v2634 = vpack.c.b16 %v2622, %v2621
      %v2635 = vpack.c.b16 %v2624, %v2623
      %v2636 = vpack.c.b16 %v2626, %v2625
      %v2637 = vpack.c.b16 %v2628, %v2627
      %v2638 = vpack.c.b16 %v2630, %v2629
      %2647 = vmatprep.subr.bf16.mxu0 0
      %2648 = vmatpush1.bf16.msra.mxu0 %v2638
      %2649 = vmatprep.subr.bf16.mxu0 0
      %2650 = vmatpush1.bf16.msra.mxu0 %v2637
      %2651 = vmatprep.subr.bf16.mxu0 0
      %2652 = vmatpush1.bf16.msra.mxu0 %v2636
      %2653 = vmatprep.subr.bf16.mxu0 0
      %2654 = vmatpush1.bf16.msra.mxu0 %v2635
      %2655 = vmatprep.subr.bf16.mxu0 0
      %2656 = vmatpush1.bf16.msra.mxu0 %v2634
      %2657 = vmatprep.subr.bf16.mxu0 0
      %2658 = vmatpush1.bf16.msra.mxu0 %v2633
      %2659 = vmatprep.subr.bf16.mxu0 0
      %2660 = vmatpush1.bf16.msra.mxu0 %v2632
      %2661 = vmatprep.subr.bf16.mxu0 0
      %2662 = vmatpush1.bf16.msra.mxu0 %v2631
      %2663 = vmatprep.subr.bf16.mxu0 0
      %2664 = vmatpush2.bf16.msra.mxu0 0
      %2665 = vmatprep.subr.bf16.mxu0 0
      %2666 = vmatpush2.bf16.msra.mxu0 0
      %2667 = vmatprep.subr.bf16.mxu0 0
      %2668 = vmatpush2.bf16.msra.mxu0 0
      %2669 = vmatprep.subr.bf16.mxu0 0
      %2670 = vmatpush2.bf16.msra.mxu0 0
      %2671 = vmatprep.subr.bf16.mxu0 0
      %2672 = vmatpush2.bf16.msra.mxu0 0
      %2673 = vmatprep.subr.bf16.mxu0 0
      %2674 = vmatpush2.bf16.msra.mxu0 0
      %2675 = vmatprep.subr.bf16.mxu0 0
      %2676 = vmatpush2.bf16.msra.mxu0 0
      %2677 = vmatprep.subr.bf16.mxu0 0
      %2678 = vmatpush2.bf16.msra.mxu0 0
      %2679 = vmatprep.mubr.bf16.mxu0 0
      %2680 = vmatmul.mubr.bf16.gmra.mxu0 %v2567
      %v2681 = vpop.f32.mrf.mxu0
      %v2682 = vadd.f32 0.0, %v2681
      %v2683 = vpop.f32.mrf.mxu0
      %v2684 = vpop.f32.mrf.mxu0
      %v2685 = vadd.f32 0.0, %v2684
      %v2686 = vpop.f32.mrf.mxu0
      %2687 = vmatprep.mubr.bf16.mxu0 0
      %2688 = vmatmul.mubr.bf16.gmra.mxu0 %v2568
      %v2689 = vpop.f32.mrf.mxu0
      %v2690 = vadd.f32 0.0, %v2689
      %v2691 = vpop.f32.mrf.mxu0
      %v2692 = vpop.f32.mrf.mxu0
      %v2693 = vadd.f32 0.0, %v2692
      %v2694 = vpop.f32.mrf.mxu0
      %2695 = vmatprep.mubr.bf16.mxu0 0
      %2696 = vmatmul.mubr.bf16.gmra.mxu0 %v2569
      %v2697 = vpop.f32.mrf.mxu0
      %v2698 = vadd.f32 0.0, %v2697
      %v2699 = vpop.f32.mrf.mxu0
      %v2700 = vpop.f32.mrf.mxu0
      %v2701 = vadd.f32 0.0, %v2700
      %v2702 = vpop.f32.mrf.mxu0
      %2703 = vmatprep.mubr.bf16.mxu0 0
      %2704 = vmatmul.mubr.bf16.gmra.mxu0 %v2570
      %v2705 = vpop.f32.mrf.mxu0
      %v2706 = vadd.f32 0.0, %v2705
      %v2707 = vpop.f32.mrf.mxu0
      %v2708 = vpop.f32.mrf.mxu0
      %v2709 = vadd.f32 0.0, %v2708
      %v2710 = vpop.f32.mrf.mxu0
      %2711 = vmatprep.mubr.bf16.mxu0 0
      %2712 = vmatmul.mubr.bf16.gmra.mxu0 %v2571
      %v2713 = vpop.f32.mrf.mxu0
      %v2714 = vadd.f32 0.0, %v2713
      %v2715 = vpop.f32.mrf.mxu0
      %v2716 = vpop.f32.mrf.mxu0
      %v2717 = vadd.f32 0.0, %v2716
      %v2718 = vpop.f32.mrf.mxu0
      %2719 = vmatprep.mubr.bf16.mxu0 0
      %2720 = vmatmul.mubr.bf16.gmra.mxu0 %v2572
      %v2721 = vpop.f32.mrf.mxu0
      %v2722 = vadd.f32 0.0, %v2721
      %v2723 = vpop.f32.mrf.mxu0
      %v2724 = vpop.f32.mrf.mxu0
      %v2725 = vadd.f32 0.0, %v2724
      %v2726 = vpop.f32.mrf.mxu0
      %2727 = vmatprep.mubr.bf16.mxu0 0
      %2728 = vmatmul.mubr.bf16.gmra.mxu0 %v2573
      %v2729 = vpop.f32.mrf.mxu0
      %v2730 = vadd.f32 0.0, %v2729
      %v2731 = vpop.f32.mrf.mxu0
      %v2732 = vpop.f32.mrf.mxu0
      %v2733 = vadd.f32 0.0, %v2732
      %v2734 = vpop.f32.mrf.mxu0
      %2735 = vmatprep.mubr.bf16.mxu0 0
      %2736 = vmatmul.mubr.bf16.gmra.mxu0 %v2574
      %v2737 = vpop.f32.mrf.mxu0
      %v2738 = vadd.f32 0.0, %v2737
      %v2739 = vpop.f32.mrf.mxu0
      %v2740 = vpop.f32.mrf.mxu0
      %v2741 = vadd.f32 0.0, %v2740
      %v2742 = vpop.f32.mrf.mxu0
      %2743 = vmatprep.mubr.bf16.mxu0 0
      %2744 = vmatmul.mubr.bf16.gmra.mxu0 %v2575
      %v2745 = vpop.f32.mrf.mxu0
      %v2746 = vadd.f32 0.0, %v2745
      %v2747 = vpop.f32.mrf.mxu0
      %v2748 = vpop.f32.mrf.mxu0
      %v2749 = vadd.f32 0.0, %v2748
      %v2750 = vpop.f32.mrf.mxu0
      %2751 = vmatprep.mubr.bf16.mxu0 0
      %2752 = vmatmul.mubr.bf16.gmra.mxu0 %v2576
      %v2753 = vpop.f32.mrf.mxu0
      %v2754 = vadd.f32 0.0, %v2753
      %v2755 = vpop.f32.mrf.mxu0
      %v2756 = vpop.f32.mrf.mxu0
      %v2757 = vadd.f32 0.0, %v2756
      %v2758 = vpop.f32.mrf.mxu0
      %2759 = vmatprep.mubr.bf16.mxu0 0
      %2760 = vmatmul.mubr.bf16.gmra.mxu0 %v2577
      %v2761 = vpop.f32.mrf.mxu0
      %v2762 = vadd.f32 0.0, %v2761
      %v2763 = vpop.f32.mrf.mxu0
      %v2764 = vpop.f32.mrf.mxu0
      %v2765 = vadd.f32 0.0, %v2764
      %v2766 = vpop.f32.mrf.mxu0
      %2767 = vmatprep.mubr.bf16.mxu0 0
      %2768 = vmatmul.mubr.bf16.gmra.mxu0 %v2578
      %v2769 = vpop.f32.mrf.mxu0
      %v2770 = vadd.f32 0.0, %v2769
      %v2771 = vpop.f32.mrf.mxu0
      %v2772 = vpop.f32.mrf.mxu0
      %v2773 = vadd.f32 0.0, %v2772
      %v2774 = vpop.f32.mrf.mxu0
      %2775 = vmatprep.mubr.bf16.mxu0 0
      %2776 = vmatmul.mubr.bf16.gmra.mxu0 %v2579
      %v2777 = vpop.f32.mrf.mxu0
      %v2778 = vadd.f32 0.0, %v2777
      %v2779 = vpop.f32.mrf.mxu0
      %v2780 = vpop.f32.mrf.mxu0
      %v2781 = vadd.f32 0.0, %v2780
      %v2782 = vpop.f32.mrf.mxu0
      %2783 = vmatprep.mubr.bf16.mxu0 0
      %2784 = vmatmul.mubr.bf16.gmra.mxu0 %v2580
      %v2785 = vpop.f32.mrf.mxu0
      %v2786 = vadd.f32 0.0, %v2785
      %v2787 = vpop.f32.mrf.mxu0
      %v2788 = vpop.f32.mrf.mxu0
      %v2789 = vadd.f32 0.0, %v2788
      %v2790 = vpop.f32.mrf.mxu0
      %2791 = vmatprep.mubr.bf16.mxu0 0
      %2792 = vmatmul.mubr.bf16.gmra.mxu0 %v2581
      %v2793 = vpop.f32.mrf.mxu0
      %v2794 = vadd.f32 0.0, %v2793
      %v2795 = vpop.f32.mrf.mxu0
      %v2796 = vpop.f32.mrf.mxu0
      %v2797 = vadd.f32 0.0, %v2796
      %v2798 = vpop.f32.mrf.mxu0
      %2799 = vmatprep.mubr.bf16.mxu0 0
      %2800 = vmatmul.mubr.bf16.gmra.mxu0 %v2582
      %v2801 = vpop.f32.mrf.mxu0
      %v2802 = vadd.f32 0.0, %v2801
      %v2803 = vpop.f32.mrf.mxu0
      %v2804 = vpop.f32.mrf.mxu0
      %v2805 = vadd.f32 0.0, %v2804
      %v2806 = vpop.f32.mrf.mxu0
      %2807 = vdwg.mxu0
      %v2808 = vadd.f32 %v2503, %v2682
      %v2809 = vadd.f32 %v2504, %v2685
      %v2810 = vadd.f32 %v2505, %v2690
      %v2811 = vadd.f32 %v2506, %v2693
      %v2812 = vadd.f32 %v2507, %v2698
      %v2813 = vadd.f32 %v2508, %v2701
      %v2814 = vadd.f32 %v2509, %v2706
      %v2815 = vadd.f32 %v2510, %v2709
      %v2816 = vadd.f32 %v2511, %v2714
      %v2817 = vadd.f32 %v2512, %v2717
      %v2818 = vadd.f32 %v2513, %v2722
      %v2819 = vadd.f32 %v2514, %v2725
      %v2820 = vadd.f32 %v2515, %v2730
      %v2821 = vadd.f32 %v2516, %v2733
      %v2822 = vadd.f32 %v2517, %v2738
      %v2823 = vadd.f32 %v2518, %v2741
      %v2824 = vadd.f32 %v2519, %v2746
      %v2825 = vadd.f32 %v2520, %v2749
      %v2826 = vadd.f32 %v2521, %v2754
      %v2827 = vadd.f32 %v2522, %v2757
      %v2828 = vadd.f32 %v2523, %v2762
      %v2829 = vadd.f32 %v2524, %v2765
      %v2830 = vadd.f32 %v2525, %v2770
      %v2831 = vadd.f32 %v2526, %v2773
      %v2832 = vadd.f32 %v2527, %v2778
      %v2833 = vadd.f32 %v2528, %v2781
      %v2834 = vadd.f32 %v2529, %v2786
      %v2835 = vadd.f32 %v2530, %v2789
      %v2836 = vadd.f32 %v2531, %v2794
      %v2837 = vadd.f32 %v2532, %v2797
      %v2838 = vadd.f32 %v2533, %v2802
      %v2839 = vadd.f32 %v2534, %v2805
      %v2840 = vld [vmem:[%s2229 + $0x2] sm:$0xff]
      %v2841 = vld [vmem:[%s2229 + $0xa] sm:$0xff]
      %v2842 = vld [vmem:[%s2229 + $0x1a] sm:$0xff]
      %v2843 = vld [vmem:[%s2229 + $0x22] sm:$0xff]
      %v2844 = vld [vmem:[%s2229 + $0x32] sm:$0xff]
      %v2845 = vld [vmem:[%s2229 + $0x3a] sm:$0xff]
      %v2846 = vld [vmem:[%s2229 + $0x4a] sm:$0xff]
      %v2847 = vld [vmem:[%s2229 + $0x52] sm:$0xff]
      %v2848 = vld [vmem:[%s2229 + $0x62] sm:$0xff]
      %v2849 = vld [vmem:[%s2229 + $0x6a] sm:$0xff]
      %v2850 = vld [vmem:[%s2229 + $0x7a] sm:$0xff]
      %v2851 = vld [vmem:[%s2229 + $0x82] sm:$0xff]
      %v2852 = vld [vmem:[%s2229 + $0x92] sm:$0xff]
      %v2853 = vld [vmem:[%s2229 + $0x9a] sm:$0xff]
      %v2854 = vld [vmem:[%s2229 + $0xaa] sm:$0xff]
      %v2855 = vld [vmem:[%s2229 + $0xb2] sm:$0xff]
      %v2856 = vld [vmem:[%s2229 + $0xc2] sm:$0xff]
      %v2857 = vld [vmem:[%s2229 + $0xca] sm:$0xff]
      %v2858 = vld [vmem:[%s2229 + $0xda] sm:$0xff]
      %v2859 = vld [vmem:[%s2229 + $0xe2] sm:$0xff]
      %v2860 = vld [vmem:[%s2229 + $0xf2] sm:$0xff]
      %v2861 = vld [vmem:[%s2229 + $0xfa] sm:$0xff]
      %v2862 = vld [vmem:[%s2229 + $0x10a] sm:$0xff]
      %v2863 = vld [vmem:[%s2229 + $0x112] sm:$0xff]
      %v2864 = vld [vmem:[%s2229 + $0x122] sm:$0xff]
      %v2865 = vld [vmem:[%s2229 + $0x12a] sm:$0xff]
      %v2866 = vld [vmem:[%s2229 + $0x13a] sm:$0xff]
      %v2867 = vld [vmem:[%s2229 + $0x142] sm:$0xff]
      %v2868 = vld [vmem:[%s2229 + $0x152] sm:$0xff]
      %v2869 = vld [vmem:[%s2229 + $0x15a] sm:$0xff]
      %v2870 = vld [vmem:[%s2229 + $0x16a] sm:$0xff]
      %v2871 = vld [vmem:[%s2229 + $0x172] sm:$0xff]
      %v2872 = vpack.c.bf16 %v2841, %v2840
      %v2873 = vpack.c.bf16 %v2843, %v2842
      %v2874 = vpack.c.bf16 %v2845, %v2844
      %v2875 = vpack.c.bf16 %v2847, %v2846
      %v2876 = vpack.c.bf16 %v2849, %v2848
      %v2877 = vpack.c.bf16 %v2851, %v2850
      %v2878 = vpack.c.bf16 %v2853, %v2852
      %v2879 = vpack.c.bf16 %v2855, %v2854
      %v2880 = vpack.c.bf16 %v2857, %v2856
      %v2881 = vpack.c.bf16 %v2859, %v2858
      %v2882 = vpack.c.bf16 %v2861, %v2860
      %v2883 = vpack.c.bf16 %v2863, %v2862
      %v2884 = vpack.c.bf16 %v2865, %v2864
      %v2885 = vpack.c.bf16 %v2867, %v2866
      %v2886 = vpack.c.bf16 %v2869, %v2868
      %v2887 = vpack.c.bf16 %v2871, %v2870
      %v2888 = vld [vmem:[%s1 + $0x200] sm:$0xf]
      %v2889 = vld [vmem:[%s1 + $0x204] sm:$0xf]
      %v2890 = vld [vmem:[%s1 + $0x208] sm:$0xf]
      %v2891 = vld [vmem:[%s1 + $0x20c] sm:$0xf]
      %v2892 = vld [vmem:[%s1 + $0x210] sm:$0xf]
      %v2893 = vld [vmem:[%s1 + $0x214] sm:$0xf]
      %v2894 = vld [vmem:[%s1 + $0x218] sm:$0xf]
      %v2895 = vld [vmem:[%s1 + $0x21c] sm:$0xf]
      %v2896 = vld [vmem:[%s1 + $0x220] sm:$0xf]
      %v2897 = vld [vmem:[%s1 + $0x224] sm:$0xf]
      %v2898 = vld [vmem:[%s1 + $0x228] sm:$0xf]
      %v2899 = vld [vmem:[%s1 + $0x22c] sm:$0xf]
      %v2900 = vld [vmem:[%s1 + $0x230] sm:$0xf]
      %v2901 = vld [vmem:[%s1 + $0x234] sm:$0xf]
      %v2902 = vld [vmem:[%s1 + $0x238] sm:$0xf]
      %v2903 = vld [vmem:[%s1 + $0x23c] sm:$0xf]
      %v2920 = vunpack.c.l.b16 %v2888
      %v2921 = vunpack.c.l.b16 %v2889
      %v2922 = vunpack.c.l.b16 %v2890
      %v2923 = vunpack.c.l.b16 %v2891
      %v2924 = vunpack.c.l.b16 %v2892
      %v2925 = vunpack.c.l.b16 %v2893
      %v2926 = vunpack.c.l.b16 %v2894
      %v2927 = vunpack.c.l.b16 %v2895
      %v2928 = vunpack.c.l.b16 %v2896
      %v2929 = vunpack.c.l.b16 %v2897
      %v2930 = vunpack.c.l.b16 %v2898
      %v2931 = vunpack.c.l.b16 %v2899
      %v2932 = vunpack.c.l.b16 %v2900
      %v2933 = vunpack.c.l.b16 %v2901
      %v2934 = vunpack.c.l.b16 %v2902
      %v2935 = vunpack.c.l.b16 %v2903
      %v2936 = vpack.c.b16 %v2921, %v2920
      %v2937 = vpack.c.b16 %v2923, %v2922
      %v2938 = vpack.c.b16 %v2925, %v2924
      %v2939 = vpack.c.b16 %v2927, %v2926
      %v2940 = vpack.c.b16 %v2929, %v2928
      %v2941 = vpack.c.b16 %v2931, %v2930
      %v2942 = vpack.c.b16 %v2933, %v2932
      %v2943 = vpack.c.b16 %v2935, %v2934
      %2952 = vmatprep.subr.bf16.mxu0 0
      %2953 = vmatpush1.bf16.msra.mxu0 %v2943
      %2954 = vmatprep.subr.bf16.mxu0 0
      %2955 = vmatpush1.bf16.msra.mxu0 %v2942
      %2956 = vmatprep.subr.bf16.mxu0 0
      %2957 = vmatpush1.bf16.msra.mxu0 %v2941
      %2958 = vmatprep.subr.bf16.mxu0 0
      %2959 = vmatpush1.bf16.msra.mxu0 %v2940
      %2960 = vmatprep.subr.bf16.mxu0 0
      %2961 = vmatpush1.bf16.msra.mxu0 %v2939
      %2962 = vmatprep.subr.bf16.mxu0 0
      %2963 = vmatpush1.bf16.msra.mxu0 %v2938
      %2964 = vmatprep.subr.bf16.mxu0 0
      %2965 = vmatpush1.bf16.msra.mxu0 %v2937
      %2966 = vmatprep.subr.bf16.mxu0 0
      %2967 = vmatpush1.bf16.msra.mxu0 %v2936
      %2968 = vmatprep.subr.bf16.mxu0 0
      %2969 = vmatpush2.bf16.msra.mxu0 0
      %2970 = vmatprep.subr.bf16.mxu0 0
      %2971 = vmatpush2.bf16.msra.mxu0 0
      %2972 = vmatprep.subr.bf16.mxu0 0
      %2973 = vmatpush2.bf16.msra.mxu0 0
      %2974 = vmatprep.subr.bf16.mxu0 0
      %2975 = vmatpush2.bf16.msra.mxu0 0
      %2976 = vmatprep.subr.bf16.mxu0 0
      %2977 = vmatpush2.bf16.msra.mxu0 0
      %2978 = vmatprep.subr.bf16.mxu0 0
      %2979 = vmatpush2.bf16.msra.mxu0 0
      %2980 = vmatprep.subr.bf16.mxu0 0
      %2981 = vmatpush2.bf16.msra.mxu0 0
      %2982 = vmatprep.subr.bf16.mxu0 0
      %2983 = vmatpush2.bf16.msra.mxu0 0
      %2984 = vmatprep.mubr.bf16.mxu0 0
      %2985 = vmatmul.mubr.bf16.gmra.mxu0 %v2872
      %v2986 = vpop.f32.mrf.mxu0
      %v2987 = vadd.f32 0.0, %v2986
      %v2988 = vpop.f32.mrf.mxu0
      %v2989 = vpop.f32.mrf.mxu0
      %v2990 = vadd.f32 0.0, %v2989
      %v2991 = vpop.f32.mrf.mxu0
      %2992 = vmatprep.mubr.bf16.mxu0 0
      %2993 = vmatmul.mubr.bf16.gmra.mxu0 %v2873
      %v2994 = vpop.f32.mrf.mxu0
      %v2995 = vadd.f32 0.0, %v2994
      %v2996 = vpop.f32.mrf.mxu0
      %v2997 = vpop.f32.mrf.mxu0
      %v2998 = vadd.f32 0.0, %v2997
      %v2999 = vpop.f32.mrf.mxu0
      %3000 = vmatprep.mubr.bf16.mxu0 0
      %3001 = vmatmul.mubr.bf16.gmra.mxu0 %v2874
      %v3002 = vpop.f32.mrf.mxu0
      %v3003 = vadd.f32 0.0, %v3002
      %v3004 = vpop.f32.mrf.mxu0
      %v3005 = vpop.f32.mrf.mxu0
      %v3006 = vadd.f32 0.0, %v3005
      %v3007 = vpop.f32.mrf.mxu0
      %3008 = vmatprep.mubr.bf16.mxu0 0
      %3009 = vmatmul.mubr.bf16.gmra.mxu0 %v2875
      %v3010 = vpop.f32.mrf.mxu0
      %v3011 = vadd.f32 0.0, %v3010
      %v3012 = vpop.f32.mrf.mxu0
      %v3013 = vpop.f32.mrf.mxu0
      %v3014 = vadd.f32 0.0, %v3013
      %v3015 = vpop.f32.mrf.mxu0
      %3016 = vmatprep.mubr.bf16.mxu0 0
      %3017 = vmatmul.mubr.bf16.gmra.mxu0 %v2876
      %v3018 = vpop.f32.mrf.mxu0
      %v3019 = vadd.f32 0.0, %v3018
      %v3020 = vpop.f32.mrf.mxu0
      %v3021 = vpop.f32.mrf.mxu0
      %v3022 = vadd.f32 0.0, %v3021
      %v3023 = vpop.f32.mrf.mxu0
      %3024 = vmatprep.mubr.bf16.mxu0 0
      %3025 = vmatmul.mubr.bf16.gmra.mxu0 %v2877
      %v3026 = vpop.f32.mrf.mxu0
      %v3027 = vadd.f32 0.0, %v3026
      %v3028 = vpop.f32.mrf.mxu0
      %v3029 = vpop.f32.mrf.mxu0
      %v3030 = vadd.f32 0.0, %v3029
      %v3031 = vpop.f32.mrf.mxu0
      %3032 = vmatprep.mubr.bf16.mxu0 0
      %3033 = vmatmul.mubr.bf16.gmra.mxu0 %v2878
      %v3034 = vpop.f32.mrf.mxu0
      %v3035 = vadd.f32 0.0, %v3034
      %v3036 = vpop.f32.mrf.mxu0
      %v3037 = vpop.f32.mrf.mxu0
      %v3038 = vadd.f32 0.0, %v3037
      %v3039 = vpop.f32.mrf.mxu0
      %3040 = vmatprep.mubr.bf16.mxu0 0
      %3041 = vmatmul.mubr.bf16.gmra.mxu0 %v2879
      %v3042 = vpop.f32.mrf.mxu0
      %v3043 = vadd.f32 0.0, %v3042
      %v3044 = vpop.f32.mrf.mxu0
      %v3045 = vpop.f32.mrf.mxu0
      %v3046 = vadd.f32 0.0, %v3045
      %v3047 = vpop.f32.mrf.mxu0
      %3048 = vmatprep.mubr.bf16.mxu0 0
      %3049 = vmatmul.mubr.bf16.gmra.mxu0 %v2880
      %v3050 = vpop.f32.mrf.mxu0
      %v3051 = vadd.f32 0.0, %v3050
      %v3052 = vpop.f32.mrf.mxu0
      %v3053 = vpop.f32.mrf.mxu0
      %v3054 = vadd.f32 0.0, %v3053
      %v3055 = vpop.f32.mrf.mxu0
      %3056 = vmatprep.mubr.bf16.mxu0 0
      %3057 = vmatmul.mubr.bf16.gmra.mxu0 %v2881
      %v3058 = vpop.f32.mrf.mxu0
      %v3059 = vadd.f32 0.0, %v3058
      %v3060 = vpop.f32.mrf.mxu0
      %v3061 = vpop.f32.mrf.mxu0
      %v3062 = vadd.f32 0.0, %v3061
      %v3063 = vpop.f32.mrf.mxu0
      %3064 = vmatprep.mubr.bf16.mxu0 0
      %3065 = vmatmul.mubr.bf16.gmra.mxu0 %v2882
      %v3066 = vpop.f32.mrf.mxu0
      %v3067 = vadd.f32 0.0, %v3066
      %v3068 = vpop.f32.mrf.mxu0
      %v3069 = vpop.f32.mrf.mxu0
      %v3070 = vadd.f32 0.0, %v3069
      %v3071 = vpop.f32.mrf.mxu0
      %3072 = vmatprep.mubr.bf16.mxu0 0
      %3073 = vmatmul.mubr.bf16.gmra.mxu0 %v2883
      %v3074 = vpop.f32.mrf.mxu0
      %v3075 = vadd.f32 0.0, %v3074
      %v3076 = vpop.f32.mrf.mxu0
      %v3077 = vpop.f32.mrf.mxu0
      %v3078 = vadd.f32 0.0, %v3077
      %v3079 = vpop.f32.mrf.mxu0
      %3080 = vmatprep.mubr.bf16.mxu0 0
      %3081 = vmatmul.mubr.bf16.gmra.mxu0 %v2884
      %v3082 = vpop.f32.mrf.mxu0
      %v3083 = vadd.f32 0.0, %v3082
      %v3084 = vpop.f32.mrf.mxu0
      %v3085 = vpop.f32.mrf.mxu0
      %v3086 = vadd.f32 0.0, %v3085
      %v3087 = vpop.f32.mrf.mxu0
      %3088 = vmatprep.mubr.bf16.mxu0 0
      %3089 = vmatmul.mubr.bf16.gmra.mxu0 %v2885
      %v3090 = vpop.f32.mrf.mxu0
      %v3091 = vadd.f32 0.0, %v3090
      %v3092 = vpop.f32.mrf.mxu0
      %v3093 = vpop.f32.mrf.mxu0
      %v3094 = vadd.f32 0.0, %v3093
      %v3095 = vpop.f32.mrf.mxu0
      %3096 = vmatprep.mubr.bf16.mxu0 0
      %3097 = vmatmul.mubr.bf16.gmra.mxu0 %v2886
      %v3098 = vpop.f32.mrf.mxu0
      %v3099 = vadd.f32 0.0, %v3098
      %v3100 = vpop.f32.mrf.mxu0
      %v3101 = vpop.f32.mrf.mxu0
      %v3102 = vadd.f32 0.0, %v3101
      %v3103 = vpop.f32.mrf.mxu0
      %3104 = vmatprep.mubr.bf16.mxu0 0
      %3105 = vmatmul.mubr.bf16.gmra.mxu0 %v2887
      %v3106 = vpop.f32.mrf.mxu0
      %v3107 = vadd.f32 0.0, %v3106
      %v3108 = vpop.f32.mrf.mxu0
      %v3109 = vpop.f32.mrf.mxu0
      %v3110 = vadd.f32 0.0, %v3109
      %v3111 = vpop.f32.mrf.mxu0
      %3112 = vdwg.mxu0
      %v3113 = vadd.f32 %v2808, %v2987
      %v3114 = vadd.f32 %v2809, %v2990
      %v3115 = vadd.f32 %v2810, %v2995
      %v3116 = vadd.f32 %v2811, %v2998
      %v3117 = vadd.f32 %v2812, %v3003
      %v3118 = vadd.f32 %v2813, %v3006
      %v3119 = vadd.f32 %v2814, %v3011
      %v3120 = vadd.f32 %v2815, %v3014
      %v3121 = vadd.f32 %v2816, %v3019
      %v3122 = vadd.f32 %v2817, %v3022
      %v3123 = vadd.f32 %v2818, %v3027
      %v3124 = vadd.f32 %v2819, %v3030
      %v3125 = vadd.f32 %v2820, %v3035
      %v3126 = vadd.f32 %v2821, %v3038
      %v3127 = vadd.f32 %v2822, %v3043
      %v3128 = vadd.f32 %v2823, %v3046
      %v3129 = vadd.f32 %v2824, %v3051
      %v3130 = vadd.f32 %v2825, %v3054
      %v3131 = vadd.f32 %v2826, %v3059
      %v3132 = vadd.f32 %v2827, %v3062
      %v3133 = vadd.f32 %v2828, %v3067
      %v3134 = vadd.f32 %v2829, %v3070
      %v3135 = vadd.f32 %v2830, %v3075
      %v3136 = vadd.f32 %v2831, %v3078
      %v3137 = vadd.f32 %v2832, %v3083
      %v3138 = vadd.f32 %v2833, %v3086
      %v3139 = vadd.f32 %v2834, %v3091
      %v3140 = vadd.f32 %v2835, %v3094
      %v3141 = vadd.f32 %v2836, %v3099
      %v3142 = vadd.f32 %v2837, %v3102
      %v3143 = vadd.f32 %v2838, %v3107
      %v3144 = vadd.f32 %v2839, %v3110
      %v3145 = vld [vmem:[%s2] sm:$0x1]
      %v3147 = vlaneseq
      %v3148 = vshrl.u32 %v3147, 7
      %v3149 = vsub.s32 0, %v3148
      %v3150 = vrot.slane %v3145, %v3149
      %v3152 = vmul.f32 %v3113, %v3150
      %v3153 = vmul.f32 %v3114, %v3150
      %v3154 = vmul.f32 %v3115, %v3150
      %v3155 = vmul.f32 %v3116, %v3150
      %v3156 = vmul.f32 %v3117, %v3150
      %v3157 = vmul.f32 %v3118, %v3150
      %v3158 = vmul.f32 %v3119, %v3150
      %v3159 = vmul.f32 %v3120, %v3150
      %v3160 = vmul.f32 %v3121, %v3150
      %v3161 = vmul.f32 %v3122, %v3150
      %v3162 = vmul.f32 %v3123, %v3150
      %v3163 = vmul.f32 %v3124, %v3150
      %v3164 = vmul.f32 %v3125, %v3150
      %v3165 = vmul.f32 %v3126, %v3150
      %v3166 = vmul.f32 %v3127, %v3150
      %v3167 = vmul.f32 %v3128, %v3150
      %v3168 = vmul.f32 %v3129, %v3150
      %v3169 = vmul.f32 %v3130, %v3150
      %v3170 = vmul.f32 %v3131, %v3150
      %v3171 = vmul.f32 %v3132, %v3150
      %v3172 = vmul.f32 %v3133, %v3150
      %v3173 = vmul.f32 %v3134, %v3150
      %v3174 = vmul.f32 %v3135, %v3150
      %v3175 = vmul.f32 %v3136, %v3150
      %v3176 = vmul.f32 %v3137, %v3150
      %v3177 = vmul.f32 %v3138, %v3150
      %v3178 = vmul.f32 %v3139, %v3150
      %v3179 = vmul.f32 %v3140, %v3150
      %v3180 = vmul.f32 %v3141, %v3150
      %v3181 = vmul.f32 %v3142, %v3150
      %v3182 = vmul.f32 %v3143, %v3150
      %v3183 = vmul.f32 %v3144, %v3150
      %v3184 = vld [vmem:[%s3] sm:$0x1]
      %v3186 = vlaneseq
      %v3187 = vshrl.u32 %v3186, 7
      %v3188 = vsub.s32 0, %v3187
      %v3189 = vrot.slane %v3184, %v3188
      %v3191 = vadd.f32 %v3152, %v3189
      %v3192 = vadd.f32 %v3153, %v3189
      %v3193 = vadd.f32 %v3154, %v3189
      %v3194 = vadd.f32 %v3155, %v3189
      %v3195 = vadd.f32 %v3156, %v3189
      %v3196 = vadd.f32 %v3157, %v3189
      %v3197 = vadd.f32 %v3158, %v3189
      %v3198 = vadd.f32 %v3159, %v3189
      %v3199 = vadd.f32 %v3160, %v3189
      %v3200 = vadd.f32 %v3161, %v3189
      %v3201 = vadd.f32 %v3162, %v3189
      %v3202 = vadd.f32 %v3163, %v3189
      %v3203 = vadd.f32 %v3164, %v3189
      %v3204 = vadd.f32 %v3165, %v3189
      %v3205 = vadd.f32 %v3166, %v3189
      %v3206 = vadd.f32 %v3167, %v3189
      %v3207 = vadd.f32 %v3168, %v3189
      %v3208 = vadd.f32 %v3169, %v3189
      %v3209 = vadd.f32 %v3170, %v3189
      %v3210 = vadd.f32 %v3171, %v3189
      %v3211 = vadd.f32 %v3172, %v3189
      %v3212 = vadd.f32 %v3173, %v3189
      %v3213 = vadd.f32 %v3174, %v3189
      %v3214 = vadd.f32 %v3175, %v3189
      %v3215 = vadd.f32 %v3176, %v3189
      %v3216 = vadd.f32 %v3177, %v3189
      %v3217 = vadd.f32 %v3178, %v3189
      %v3218 = vadd.f32 %v3179, %v3189
      %v3219 = vadd.f32 %v3180, %v3189
      %v3220 = vadd.f32 %v3181, %v3189
      %v3221 = vadd.f32 %v3182, %v3189
      %v3222 = vadd.f32 %v3183, %v3189
      %v3223 = vsub.f32 0.0, %v3191
      %v3224 = vsub.f32 0.0, %v3192
      %v3225 = vsub.f32 0.0, %v3193
      %v3226 = vsub.f32 0.0, %v3194
      %v3227 = vsub.f32 0.0, %v3195
      %v3228 = vsub.f32 0.0, %v3196
      %v3229 = vsub.f32 0.0, %v3197
      %v3230 = vsub.f32 0.0, %v3198
      %v3231 = vsub.f32 0.0, %v3199
      %v3232 = vsub.f32 0.0, %v3200
      %v3233 = vsub.f32 0.0, %v3201
      %v3234 = vsub.f32 0.0, %v3202
      %v3235 = vsub.f32 0.0, %v3203
      %v3236 = vsub.f32 0.0, %v3204
      %v3237 = vsub.f32 0.0, %v3205
      %v3238 = vsub.f32 0.0, %v3206
      %v3239 = vsub.f32 0.0, %v3207
      %v3240 = vsub.f32 0.0, %v3208
      %v3241 = vsub.f32 0.0, %v3209
      %v3242 = vsub.f32 0.0, %v3210
      %v3243 = vsub.f32 0.0, %v3211
      %v3244 = vsub.f32 0.0, %v3212
      %v3245 = vsub.f32 0.0, %v3213
      %v3246 = vsub.f32 0.0, %v3214
      %v3247 = vsub.f32 0.0, %v3215
      %v3248 = vsub.f32 0.0, %v3216
      %v3249 = vsub.f32 0.0, %v3217
      %v3250 = vsub.f32 0.0, %v3218
      %v3251 = vsub.f32 0.0, %v3219
      %v3252 = vsub.f32 0.0, %v3220
      %v3253 = vsub.f32 0.0, %v3221
      %v3254 = vsub.f32 0.0, %v3222
      %v3255 = vmul.f32 %v3223, 1.442695
      %v3256 = vpow.pop %v3255
      %v3257 = vmul.f32 %v3224, 1.442695
      %v3258 = vpow.pop %v3257
      %v3259 = vmul.f32 %v3225, 1.442695
      %v3260 = vpow.pop %v3259
      %v3261 = vmul.f32 %v3226, 1.442695
      %v3262 = vpow.pop %v3261
      %v3263 = vmul.f32 %v3227, 1.442695
      %v3264 = vpow.pop %v3263
      %v3265 = vmul.f32 %v3228, 1.442695
      %v3266 = vpow.pop %v3265
      %v3267 = vmul.f32 %v3229, 1.442695
      %v3268 = vpow.pop %v3267
      %v3269 = vmul.f32 %v3230, 1.442695
      %v3270 = vpow.pop %v3269
      %v3271 = vmul.f32 %v3231, 1.442695
      %v3272 = vpow.pop %v3271
      %v3273 = vmul.f32 %v3232, 1.442695
      %v3274 = vpow.pop %v3273
      %v3275 = vmul.f32 %v3233, 1.442695
      %v3276 = vpow.pop %v3275
      %v3277 = vmul.f32 %v3234, 1.442695
      %v3278 = vpow.pop %v3277
      %v3279 = vmul.f32 %v3235, 1.442695
      %v3280 = vpow.pop %v3279
      %v3281 = vmul.f32 %v3236, 1.442695
      %v3282 = vpow.pop %v3281
      %v3283 = vmul.f32 %v3237, 1.442695
      %v3284 = vpow.pop %v3283
      %v3285 = vmul.f32 %v3238, 1.442695
      %v3286 = vpow.pop %v3285
      %v3287 = vmul.f32 %v3239, 1.442695
      %v3288 = vpow.pop %v3287
      %v3289 = vmul.f32 %v3240, 1.442695
      %v3290 = vpow.pop %v3289
      %v3291 = vmul.f32 %v3241, 1.442695
      %v3292 = vpow.pop %v3291
      %v3293 = vmul.f32 %v3242, 1.442695
      %v3294 = vpow.pop %v3293
      %v3295 = vmul.f32 %v3243, 1.442695
      %v3296 = vpow.pop %v3295
      %v3297 = vmul.f32 %v3244, 1.442695
      %v3298 = vpow.pop %v3297
      %v3299 = vmul.f32 %v3245, 1.442695
      %v3300 = vpow.pop %v3299
      %v3301 = vmul.f32 %v3246, 1.442695
      %v3302 = vpow.pop %v3301
      %v3303 = vmul.f32 %v3247, 1.442695
      %v3304 = vpow.pop %v3303
      %v3305 = vmul.f32 %v3248, 1.442695
      %v3306 = vpow.pop %v3305
      %v3307 = vmul.f32 %v3249, 1.442695
      %v3308 = vpow.pop %v3307
      %v3309 = vmul.f32 %v3250, 1.442695
      %v3310 = vpow.pop %v3309
      %v3311 = vmul.f32 %v3251, 1.442695
      %v3312 = vpow.pop %v3311
      %v3313 = vmul.f32 %v3252, 1.442695
      %v3314 = vpow.pop %v3313
      %v3315 = vmul.f32 %v3253, 1.442695
      %v3316 = vpow.pop %v3315
      %v3317 = vmul.f32 %v3254, 1.442695
      %v3318 = vpow.pop %v3317
      %v3319 = vadd.f32 %v3256, 1.0
      %v3320 = vadd.f32 %v3258, 1.0
      %v3321 = vadd.f32 %v3260, 1.0
      %v3322 = vadd.f32 %v3262, 1.0
      %v3323 = vadd.f32 %v3264, 1.0
      %v3324 = vadd.f32 %v3266, 1.0
      %v3325 = vadd.f32 %v3268, 1.0
      %v3326 = vadd.f32 %v3270, 1.0
      %v3327 = vadd.f32 %v3272, 1.0
      %v3328 = vadd.f32 %v3274, 1.0
      %v3329 = vadd.f32 %v3276, 1.0
      %v3330 = vadd.f32 %v3278, 1.0
      %v3331 = vadd.f32 %v3280, 1.0
      %v3332 = vadd.f32 %v3282, 1.0
      %v3333 = vadd.f32 %v3284, 1.0
      %v3334 = vadd.f32 %v3286, 1.0
      %v3335 = vadd.f32 %v3288, 1.0
      %v3336 = vadd.f32 %v3290, 1.0
      %v3337 = vadd.f32 %v3292, 1.0
      %v3338 = vadd.f32 %v3294, 1.0
      %v3339 = vadd.f32 %v3296, 1.0
      %v3340 = vadd.f32 %v3298, 1.0
      %v3341 = vadd.f32 %v3300, 1.0
      %v3342 = vadd.f32 %v3302, 1.0
      %v3343 = vadd.f32 %v3304, 1.0
      %v3344 = vadd.f32 %v3306, 1.0
      %v3345 = vadd.f32 %v3308, 1.0
      %v3346 = vadd.f32 %v3310, 1.0
      %v3347 = vadd.f32 %v3312, 1.0
      %v3348 = vadd.f32 %v3314, 1.0
      %v3349 = vadd.f32 %v3316, 1.0
      %v3350 = vadd.f32 %v3318, 1.0
      %v3351 = vrcp.pop %v3319
      %v3352 = vrcp.pop %v3320
      %v3353 = vrcp.pop %v3321
      %v3354 = vrcp.pop %v3322
      %v3355 = vrcp.pop %v3323
      %v3356 = vrcp.pop %v3324
      %v3357 = vrcp.pop %v3325
      %v3358 = vrcp.pop %v3326
      %v3359 = vrcp.pop %v3327
      %v3360 = vrcp.pop %v3328
      %v3361 = vrcp.pop %v3329
      %v3362 = vrcp.pop %v3330
      %v3363 = vrcp.pop %v3331
      %v3364 = vrcp.pop %v3332
      %v3365 = vrcp.pop %v3333
      %v3366 = vrcp.pop %v3334
      %v3367 = vrcp.pop %v3335
      %v3368 = vrcp.pop %v3336
      %v3369 = vrcp.pop %v3337
      %v3370 = vrcp.pop %v3338
      %v3371 = vrcp.pop %v3339
      %v3372 = vrcp.pop %v3340
      %v3373 = vrcp.pop %v3341
      %v3374 = vrcp.pop %v3342
      %v3375 = vrcp.pop %v3343
      %v3376 = vrcp.pop %v3344
      %v3377 = vrcp.pop %v3345
      %v3378 = vrcp.pop %v3346
      %v3379 = vrcp.pop %v3347
      %v3380 = vrcp.pop %v3348
      %v3381 = vrcp.pop %v3349
      %v3382 = vrcp.pop %v3350
      %v3383 = vmul.f32 %v3191, %v3351
      %v3384 = vmul.f32 %v3192, %v3352
      %v3385 = vmul.f32 %v3193, %v3353
      %v3386 = vmul.f32 %v3194, %v3354
      %v3387 = vmul.f32 %v3195, %v3355
      %v3388 = vmul.f32 %v3196, %v3356
      %v3389 = vmul.f32 %v3197, %v3357
      %v3390 = vmul.f32 %v3198, %v3358
      %v3391 = vmul.f32 %v3199, %v3359
      %v3392 = vmul.f32 %v3200, %v3360
      %v3393 = vmul.f32 %v3201, %v3361
      %v3394 = vmul.f32 %v3202, %v3362
      %v3395 = vmul.f32 %v3203, %v3363
      %v3396 = vmul.f32 %v3204, %v3364
      %v3397 = vmul.f32 %v3205, %v3365
      %v3398 = vmul.f32 %v3206, %v3366
      %v3399 = vmul.f32 %v3207, %v3367
      %v3400 = vmul.f32 %v3208, %v3368
      %v3401 = vmul.f32 %v3209, %v3369
      %v3402 = vmul.f32 %v3210, %v3370
      %v3403 = vmul.f32 %v3211, %v3371
      %v3404 = vmul.f32 %v3212, %v3372
      %v3405 = vmul.f32 %v3213, %v3373
      %v3406 = vmul.f32 %v3214, %v3374
      %v3407 = vmul.f32 %v3215, %v3375
      %v3408 = vmul.f32 %v3216, %v3376
      %v3409 = vmul.f32 %v3217, %v3377
      %v3410 = vmul.f32 %v3218, %v3378
      %v3411 = vmul.f32 %v3219, %v3379
      %v3412 = vmul.f32 %v3220, %v3380
      %v3413 = vmul.f32 %v3221, %v3381
      %v3414 = vmul.f32 %v3222, %v3382
      %s3415 = scalar_lea.vmem [#allocation3], 24
      %3416 = vst [vmem:[%s3415 + $0x1] sm:$0xff] %v3383
      %3417 = vst [vmem:[%s3415 + $0x9] sm:$0xff] %v3384
      %3418 = vst [vmem:[%s3415 + $0x19] sm:$0xff] %v3385
      %3419 = vst [vmem:[%s3415 + $0x21] sm:$0xff] %v3386
      %3420 = vst [vmem:[%s3415 + $0x31] sm:$0xff] %v3387
      %3421 = vst [vmem:[%s3415 + $0x39] sm:$0xff] %v3388
      %3422 = vst [vmem:[%s3415 + $0x49] sm:$0xff] %v3389
      %3423 = vst [vmem:[%s3415 + $0x51] sm:$0xff] %v3390
      %3424 = vst [vmem:[%s3415 + $0x61] sm:$0xff] %v3391
      %3425 = vst [vmem:[%s3415 + $0x69] sm:$0xff] %v3392
      %3426 = vst [vmem:[%s3415 + $0x79] sm:$0xff] %v3393
      %3427 = vst [vmem:[%s3415 + $0x81] sm:$0xff] %v3394
      %3428 = vst [vmem:[%s3415 + $0x91] sm:$0xff] %v3395
      %3429 = vst [vmem:[%s3415 + $0x99] sm:$0xff] %v3396
      %3430 = vst [vmem:[%s3415 + $0xa9] sm:$0xff] %v3397
      %3431 = vst [vmem:[%s3415 + $0xb1] sm:$0xff] %v3398
      %3432 = vst [vmem:[%s3415 + $0xc1] sm:$0xff] %v3399
      %3433 = vst [vmem:[%s3415 + $0xc9] sm:$0xff] %v3400
      %3434 = vst [vmem:[%s3415 + $0xd9] sm:$0xff] %v3401
      %3435 = vst [vmem:[%s3415 + $0xe1] sm:$0xff] %v3402
      %3436 = vst [vmem:[%s3415 + $0xf1] sm:$0xff] %v3403
      %3437 = vst [vmem:[%s3415 + $0xf9] sm:$0xff] %v3404
      %3438 = vst [vmem:[%s3415 + $0x109] sm:$0xff] %v3405
      %3439 = vst [vmem:[%s3415 + $0x111] sm:$0xff] %v3406
      %3440 = vst [vmem:[%s3415 + $0x121] sm:$0xff] %v3407
      %3441 = vst [vmem:[%s3415 + $0x129] sm:$0xff] %v3408
      %3442 = vst [vmem:[%s3415 + $0x139] sm:$0xff] %v3409
      %3443 = vst [vmem:[%s3415 + $0x141] sm:$0xff] %v3410
      %3444 = vst [vmem:[%s3415 + $0x151] sm:$0xff] %v3411
      %3445 = vst [vmem:[%s3415 + $0x159] sm:$0xff] %v3412
      %3446 = vst [vmem:[%s3415 + $0x169] sm:$0xff] %v3413
      %3447 = vst [vmem:[%s3415 + $0x171] sm:$0xff] %v3414
      %v3448 = vld [vmem:[#allocation3] sm:$0xff]
      %v3449 = vld [vmem:[#allocation3 + $0x8] sm:$0xff]
      %v3450 = vld [vmem:[#allocation3 + $0x18] sm:$0xff]
      %v3451 = vld [vmem:[#allocation3 + $0x20] sm:$0xff]
      %v3452 = vld [vmem:[#allocation3 + $0x30] sm:$0xff]
      %v3453 = vld [vmem:[#allocation3 + $0x38] sm:$0xff]
      %v3454 = vld [vmem:[#allocation3 + $0x48] sm:$0xff]
      %v3455 = vld [vmem:[#allocation3 + $0x50] sm:$0xff]
      %v3456 = vld [vmem:[#allocation3 + $0x60] sm:$0xff]
      %v3457 = vld [vmem:[#allocation3 + $0x68] sm:$0xff]
      %v3458 = vld [vmem:[#allocation3 + $0x78] sm:$0xff]
      %v3459 = vld [vmem:[#allocation3 + $0x80] sm:$0xff]
      %v3460 = vld [vmem:[#allocation3 + $0x90] sm:$0xff]
      %v3461 = vld [vmem:[#allocation3 + $0x98] sm:$0xff]
      %v3462 = vld [vmem:[#allocation3 + $0xa8] sm:$0xff]
      %v3463 = vld [vmem:[#allocation3 + $0xb0] sm:$0xff]
      %v3464 = vld [vmem:[#allocation3 + $0xc0] sm:$0xff]
      %v3465 = vld [vmem:[#allocation3 + $0xc8] sm:$0xff]
      %v3466 = vld [vmem:[#allocation3 + $0xd8] sm:$0xff]
      %v3467 = vld [vmem:[#allocation3 + $0xe0] sm:$0xff]
      %v3468 = vld [vmem:[#allocation3 + $0xf0] sm:$0xff]
      %v3469 = vld [vmem:[#allocation3 + $0xf8] sm:$0xff]
      %v3470 = vld [vmem:[#allocation3 + $0x108] sm:$0xff]
      %v3471 = vld [vmem:[#allocation3 + $0x110] sm:$0xff]
      %v3472 = vld [vmem:[#allocation3 + $0x120] sm:$0xff]
      %v3473 = vld [vmem:[#allocation3 + $0x128] sm:$0xff]
      %v3474 = vld [vmem:[#allocation3 + $0x138] sm:$0xff]
      %v3475 = vld [vmem:[#allocation3 + $0x140] sm:$0xff]
      %v3476 = vld [vmem:[#allocation3 + $0x150] sm:$0xff]
      %v3477 = vld [vmem:[#allocation3 + $0x158] sm:$0xff]
      %v3478 = vld [vmem:[#allocation3 + $0x168] sm:$0xff]
      %v3479 = vld [vmem:[#allocation3 + $0x170] sm:$0xff]
      %v3480 = vpack.c.bf16 %v3449, %v3448
      %v3481 = vpack.c.bf16 %v3451, %v3450
      %v3482 = vpack.c.bf16 %v3453, %v3452
      %v3483 = vpack.c.bf16 %v3455, %v3454
      %v3484 = vpack.c.bf16 %v3457, %v3456
      %v3485 = vpack.c.bf16 %v3459, %v3458
      %v3486 = vpack.c.bf16 %v3461, %v3460
      %v3487 = vpack.c.bf16 %v3463, %v3462
      %v3488 = vpack.c.bf16 %v3465, %v3464
      %v3489 = vpack.c.bf16 %v3467, %v3466
      %v3490 = vpack.c.bf16 %v3469, %v3468
      %v3491 = vpack.c.bf16 %v3471, %v3470
      %v3492 = vpack.c.bf16 %v3473, %v3472
      %v3493 = vpack.c.bf16 %v3475, %v3474
      %v3494 = vpack.c.bf16 %v3477, %v3476
      %v3495 = vpack.c.bf16 %v3479, %v3478
      %v3496 = vld [vmem:[%s4] sm:$0xf]
      %v3497 = vld [vmem:[%s4 + $0x4] sm:$0xf]
      %v3498 = vld [vmem:[%s4 + $0x8] sm:$0xf]
      %v3499 = vld [vmem:[%s4 + $0xc] sm:$0xf]
      %v3500 = vld [vmem:[%s4 + $0x10] sm:$0xf]
      %v3501 = vld [vmem:[%s4 + $0x14] sm:$0xf]
      %v3502 = vld [vmem:[%s4 + $0x18] sm:$0xf]
      %v3503 = vld [vmem:[%s4 + $0x1c] sm:$0xf]
      %v3504 = vld [vmem:[%s4 + $0x20] sm:$0xf]
      %v3505 = vld [vmem:[%s4 + $0x24] sm:$0xf]
      %v3506 = vld [vmem:[%s4 + $0x28] sm:$0xf]
      %v3507 = vld [vmem:[%s4 + $0x2c] sm:$0xf]
      %v3508 = vld [vmem:[%s4 + $0x30] sm:$0xf]
      %v3509 = vld [vmem:[%s4 + $0x34] sm:$0xf]
      %v3510 = vld [vmem:[%s4 + $0x38] sm:$0xf]
      %v3511 = vld [vmem:[%s4 + $0x3c] sm:$0xf]
      %v3512 = vld [vmem:[#allocation3 + $0x1] sm:$0xff]
      %v3513 = vld [vmem:[#allocation3 + $0x9] sm:$0xff]
      %v3514 = vld [vmem:[#allocation3 + $0x19] sm:$0xff]
      %v3515 = vld [vmem:[#allocation3 + $0x21] sm:$0xff]
      %v3516 = vld [vmem:[#allocation3 + $0x31] sm:$0xff]
      %v3517 = vld [vmem:[#allocation3 + $0x39] sm:$0xff]
      %v3518 = vld [vmem:[#allocation3 + $0x49] sm:$0xff]
      %v3519 = vld [vmem:[#allocation3 + $0x51] sm:$0xff]
      %v3520 = vld [vmem:[#allocation3 + $0x61] sm:$0xff]
      %v3521 = vld [vmem:[#allocation3 + $0x69] sm:$0xff]
      %v3522 = vld [vmem:[#allocation3 + $0x79] sm:$0xff]
      %v3523 = vld [vmem:[#allocation3 + $0x81] sm:$0xff]
      %v3524 = vld [vmem:[#allocation3 + $0x91] sm:$0xff]
      %v3525 = vld [vmem:[#allocation3 + $0x99] sm:$0xff]
      %v3526 = vld [vmem:[#allocation3 + $0xa9] sm:$0xff]
      %v3527 = vld [vmem:[#allocation3 + $0xb1] sm:$0xff]
      %v3528 = vld [vmem:[#allocation3 + $0xc1] sm:$0xff]
      %v3529 = vld [vmem:[#allocation3 + $0xc9] sm:$0xff]
      %v3530 = vld [vmem:[#allocation3 + $0xd9] sm:$0xff]
      %v3531 = vld [vmem:[#allocation3 + $0xe1] sm:$0xff]
      %v3532 = vld [vmem:[#allocation3 + $0xf1] sm:$0xff]
      %v3533 = vld [vmem:[#allocation3 + $0xf9] sm:$0xff]
      %v3534 = vld [vmem:[#allocation3 + $0x109] sm:$0xff]
      %v3535 = vld [vmem:[#allocation3 + $0x111] sm:$0xff]
      %v3536 = vld [vmem:[#allocation3 + $0x121] sm:$0xff]
      %v3537 = vld [vmem:[#allocation3 + $0x129] sm:$0xff]
      %v3538 = vld [vmem:[#allocation3 + $0x139] sm:$0xff]
      %v3539 = vld [vmem:[#allocation3 + $0x141] sm:$0xff]
      %v3540 = vld [vmem:[#allocation3 + $0x151] sm:$0xff]
      %v3541 = vld [vmem:[#allocation3 + $0x159] sm:$0xff]
      %v3542 = vld [vmem:[#allocation3 + $0x169] sm:$0xff]
      %v3543 = vld [vmem:[#allocation3 + $0x171] sm:$0xff]
      %v3544 = vpack.c.bf16 %v3513, %v3512
      %v3545 = vpack.c.bf16 %v3515, %v3514
      %v3546 = vpack.c.bf16 %v3517, %v3516
      %v3547 = vpack.c.bf16 %v3519, %v3518
      %v3548 = vpack.c.bf16 %v3521, %v3520
      %v3549 = vpack.c.bf16 %v3523, %v3522
      %v3550 = vpack.c.bf16 %v3525, %v3524
      %v3551 = vpack.c.bf16 %v3527, %v3526
      %v3552 = vpack.c.bf16 %v3529, %v3528
      %v3553 = vpack.c.bf16 %v3531, %v3530
      %v3554 = vpack.c.bf16 %v3533, %v3532
      %v3555 = vpack.c.bf16 %v3535, %v3534
      %v3556 = vpack.c.bf16 %v3537, %v3536
      %v3557 = vpack.c.bf16 %v3539, %v3538
      %v3558 = vpack.c.bf16 %v3541, %v3540
      %v3559 = vpack.c.bf16 %v3543, %v3542
      %v3560 = vld [vmem:[%s4 + $0x40] sm:$0xf]
      %v3561 = vld [vmem:[%s4 + $0x44] sm:$0xf]
      %v3562 = vld [vmem:[%s4 + $0x48] sm:$0xf]
      %v3563 = vld [vmem:[%s4 + $0x4c] sm:$0xf]
      %v3564 = vld [vmem:[%s4 + $0x50] sm:$0xf]
      %v3565 = vld [vmem:[%s4 + $0x54] sm:$0xf]
      %v3566 = vld [vmem:[%s4 + $0x58] sm:$0xf]
      %v3567 = vld [vmem:[%s4 + $0x5c] sm:$0xf]
      %v3568 = vld [vmem:[%s4 + $0x60] sm:$0xf]
      %v3569 = vld [vmem:[%s4 + $0x64] sm:$0xf]
      %v3570 = vld [vmem:[%s4 + $0x68] sm:$0xf]
      %v3571 = vld [vmem:[%s4 + $0x6c] sm:$0xf]
      %v3572 = vld [vmem:[%s4 + $0x70] sm:$0xf]
      %v3573 = vld [vmem:[%s4 + $0x74] sm:$0xf]
      %v3574 = vld [vmem:[%s4 + $0x78] sm:$0xf]
      %v3575 = vld [vmem:[%s4 + $0x7c] sm:$0xf]
      %v3592 = vunpack.c.l.b16 %v3560
      %v3593 = vunpack.c.l.b16 %v3561
      %v3594 = vunpack.c.l.b16 %v3562
      %v3595 = vunpack.c.l.b16 %v3563
      %v3596 = vunpack.c.l.b16 %v3564
      %v3597 = vunpack.c.l.b16 %v3565
      %v3598 = vunpack.c.l.b16 %v3566
      %v3599 = vunpack.c.l.b16 %v3567
      %v3600 = vunpack.c.l.b16 %v3568
      %v3601 = vunpack.c.l.b16 %v3569
      %v3602 = vunpack.c.l.b16 %v3570
      %v3603 = vunpack.c.l.b16 %v3571
      %v3604 = vunpack.c.l.b16 %v3572
      %v3605 = vunpack.c.l.b16 %v3573
      %v3606 = vunpack.c.l.b16 %v3574
      %v3607 = vunpack.c.l.b16 %v3575
      %v3608 = vpack.c.b16 %v3593, %v3592
      %v3609 = vpack.c.b16 %v3595, %v3594
      %v3610 = vpack.c.b16 %v3597, %v3596
      %v3611 = vpack.c.b16 %v3599, %v3598
      %v3612 = vpack.c.b16 %v3601, %v3600
      %v3613 = vpack.c.b16 %v3603, %v3602
      %v3614 = vpack.c.b16 %v3605, %v3604
      %v3615 = vpack.c.b16 %v3607, %v3606
      %3624 = vmatprep.subr.bf16.mxu0 0
      %3625 = vmatpush1.bf16.msra.mxu0 %v3615
      %3626 = vmatprep.subr.bf16.mxu0 0
      %3627 = vmatpush1.bf16.msra.mxu0 %v3614
      %3628 = vmatprep.subr.bf16.mxu0 0
      %3629 = vmatpush1.bf16.msra.mxu0 %v3613
      %3630 = vmatprep.subr.bf16.mxu0 0
      %3631 = vmatpush1.bf16.msra.mxu0 %v3612
      %3632 = vmatprep.subr.bf16.mxu0 0
      %3633 = vmatpush1.bf16.msra.mxu0 %v3611
      %3634 = vmatprep.subr.bf16.mxu0 0
      %3635 = vmatpush1.bf16.msra.mxu0 %v3610
      %3636 = vmatprep.subr.bf16.mxu0 0
      %3637 = vmatpush1.bf16.msra.mxu0 %v3609
      %3638 = vmatprep.subr.bf16.mxu0 0
      %3639 = vmatpush1.bf16.msra.mxu0 %v3608
      %3640 = vmatprep.subr.bf16.mxu0 0
      %3641 = vmatpush2.bf16.msra.mxu0 0
      %3642 = vmatprep.subr.bf16.mxu0 0
      %3643 = vmatpush2.bf16.msra.mxu0 0
      %3644 = vmatprep.subr.bf16.mxu0 0
      %3645 = vmatpush2.bf16.msra.mxu0 0
      %3646 = vmatprep.subr.bf16.mxu0 0
      %3647 = vmatpush2.bf16.msra.mxu0 0
      %3648 = vmatprep.subr.bf16.mxu0 0
      %3649 = vmatpush2.bf16.msra.mxu0 0
      %3650 = vmatprep.subr.bf16.mxu0 0
      %3651 = vmatpush2.bf16.msra.mxu0 0
      %3652 = vmatprep.subr.bf16.mxu0 0
      %3653 = vmatpush2.bf16.msra.mxu0 0
      %3654 = vmatprep.subr.bf16.mxu0 0
      %3655 = vmatpush2.bf16.msra.mxu0 0
      %3656 = vmatprep.mubr.bf16.mxu0 0
      %3657 = vmatmul.mubr.bf16.gmra.mxu0 %v3544
      %v3658 = vpop.f32.mrf.mxu0
      %v3659 = vadd.f32 0.0, %v3658
      %v3660 = vpop.f32.mrf.mxu0
      %v3661 = vpop.f32.mrf.mxu0
      %v3662 = vadd.f32 0.0, %v3661
      %v3663 = vpop.f32.mrf.mxu0
      %3664 = vmatprep.mubr.bf16.mxu0 0
      %3665 = vmatmul.mubr.bf16.gmra.mxu0 %v3545
      %v3666 = vpop.f32.mrf.mxu0
      %v3667 = vadd.f32 0.0, %v3666
      %v3668 = vpop.f32.mrf.mxu0
      %v3669 = vpop.f32.mrf.mxu0
      %v3670 = vadd.f32 0.0, %v3669
      %v3671 = vpop.f32.mrf.mxu0
      %3672 = vmatprep.mubr.bf16.mxu0 0
      %3673 = vmatmul.mubr.bf16.gmra.mxu0 %v3546
      %v3674 = vpop.f32.mrf.mxu0
      %v3675 = vadd.f32 0.0, %v3674
      %v3676 = vpop.f32.mrf.mxu0
      %v3677 = vpop.f32.mrf.mxu0
      %v3678 = vadd.f32 0.0, %v3677
      %v3679 = vpop.f32.mrf.mxu0
      %3680 = vmatprep.mubr.bf16.mxu0 0
      %3681 = vmatmul.mubr.bf16.gmra.mxu0 %v3547
      %v3682 = vpop.f32.mrf.mxu0
      %v3683 = vadd.f32 0.0, %v3682
      %v3684 = vpop.f32.mrf.mxu0
      %v3685 = vpop.f32.mrf.mxu0
      %v3686 = vadd.f32 0.0, %v3685
      %v3687 = vpop.f32.mrf.mxu0
      %3688 = vmatprep.mubr.bf16.mxu0 0
      %3689 = vmatmul.mubr.bf16.gmra.mxu0 %v3548
      %v3690 = vpop.f32.mrf.mxu0
      %v3691 = vadd.f32 0.0, %v3690
      %v3692 = vpop.f32.mrf.mxu0
      %v3693 = vpop.f32.mrf.mxu0
      %v3694 = vadd.f32 0.0, %v3693
      %v3695 = vpop.f32.mrf.mxu0
      %3696 = vmatprep.mubr.bf16.mxu0 0
      %3697 = vmatmul.mubr.bf16.gmra.mxu0 %v3549
      %v3698 = vpop.f32.mrf.mxu0
      %v3699 = vadd.f32 0.0, %v3698
      %v3700 = vpop.f32.mrf.mxu0
      %v3701 = vpop.f32.mrf.mxu0
      %v3702 = vadd.f32 0.0, %v3701
      %v3703 = vpop.f32.mrf.mxu0
      %3704 = vmatprep.mubr.bf16.mxu0 0
      %3705 = vmatmul.mubr.bf16.gmra.mxu0 %v3550
      %v3706 = vpop.f32.mrf.mxu0
      %v3707 = vadd.f32 0.0, %v3706
      %v3708 = vpop.f32.mrf.mxu0
      %v3709 = vpop.f32.mrf.mxu0
      %v3710 = vadd.f32 0.0, %v3709
      %v3711 = vpop.f32.mrf.mxu0
      %3712 = vmatprep.mubr.bf16.mxu0 0
      %3713 = vmatmul.mubr.bf16.gmra.mxu0 %v3551
      %v3714 = vpop.f32.mrf.mxu0
      %v3715 = vadd.f32 0.0, %v3714
      %v3716 = vpop.f32.mrf.mxu0
      %v3717 = vpop.f32.mrf.mxu0
      %v3718 = vadd.f32 0.0, %v3717
      %v3719 = vpop.f32.mrf.mxu0
      %3720 = vmatprep.mubr.bf16.mxu0 0
      %3721 = vmatmul.mubr.bf16.gmra.mxu0 %v3552
      %v3722 = vpop.f32.mrf.mxu0
      %v3723 = vadd.f32 0.0, %v3722
      %v3724 = vpop.f32.mrf.mxu0
      %v3725 = vpop.f32.mrf.mxu0
      %v3726 = vadd.f32 0.0, %v3725
      %v3727 = vpop.f32.mrf.mxu0
      %3728 = vmatprep.mubr.bf16.mxu0 0
      %3729 = vmatmul.mubr.bf16.gmra.mxu0 %v3553
      %v3730 = vpop.f32.mrf.mxu0
      %v3731 = vadd.f32 0.0, %v3730
      %v3732 = vpop.f32.mrf.mxu0
      %v3733 = vpop.f32.mrf.mxu0
      %v3734 = vadd.f32 0.0, %v3733
      %v3735 = vpop.f32.mrf.mxu0
      %3736 = vmatprep.mubr.bf16.mxu0 0
      %3737 = vmatmul.mubr.bf16.gmra.mxu0 %v3554
      %v3738 = vpop.f32.mrf.mxu0
      %v3739 = vadd.f32 0.0, %v3738
      %v3740 = vpop.f32.mrf.mxu0
      %v3741 = vpop.f32.mrf.mxu0
      %v3742 = vadd.f32 0.0, %v3741
      %v3743 = vpop.f32.mrf.mxu0
      %3744 = vmatprep.mubr.bf16.mxu0 0
      %3745 = vmatmul.mubr.bf16.gmra.mxu0 %v3555
      %v3746 = vpop.f32.mrf.mxu0
      %v3747 = vadd.f32 0.0, %v3746
      %v3748 = vpop.f32.mrf.mxu0
      %v3749 = vpop.f32.mrf.mxu0
      %v3750 = vadd.f32 0.0, %v3749
      %v3751 = vpop.f32.mrf.mxu0
      %3752 = vmatprep.mubr.bf16.mxu0 0
      %3753 = vmatmul.mubr.bf16.gmra.mxu0 %v3556
      %v3754 = vpop.f32.mrf.mxu0
      %v3755 = vadd.f32 0.0, %v3754
      %v3756 = vpop.f32.mrf.mxu0
      %v3757 = vpop.f32.mrf.mxu0
      %v3758 = vadd.f32 0.0, %v3757
      %v3759 = vpop.f32.mrf.mxu0
      %3760 = vmatprep.mubr.bf16.mxu0 0
      %3761 = vmatmul.mubr.bf16.gmra.mxu0 %v3557
      %v3762 = vpop.f32.mrf.mxu0
      %v3763 = vadd.f32 0.0, %v3762
      %v3764 = vpop.f32.mrf.mxu0
      %v3765 = vpop.f32.mrf.mxu0
      %v3766 = vadd.f32 0.0, %v3765
      %v3767 = vpop.f32.mrf.mxu0
      %3768 = vmatprep.mubr.bf16.mxu0 0
      %3769 = vmatmul.mubr.bf16.gmra.mxu0 %v3558
      %v3770 = vpop.f32.mrf.mxu0
      %v3771 = vadd.f32 0.0, %v3770
      %v3772 = vpop.f32.mrf.mxu0
      %v3773 = vpop.f32.mrf.mxu0
      %v3774 = vadd.f32 0.0, %v3773
      %v3775 = vpop.f32.mrf.mxu0
      %3776 = vmatprep.mubr.bf16.mxu0 0
      %3777 = vmatmul.mubr.bf16.gmra.mxu0 %v3559
      %v3778 = vpop.f32.mrf.mxu0
      %v3779 = vadd.f32 0.0, %v3778
      %v3780 = vpop.f32.mrf.mxu0
      %v3781 = vpop.f32.mrf.mxu0
      %v3782 = vadd.f32 0.0, %v3781
      %v3783 = vpop.f32.mrf.mxu0
      %3784 = vdwg.mxu0
      %v3801 = vunpack.c.l.b16 %v3496
      %v3802 = vunpack.c.l.b16 %v3497
      %v3803 = vunpack.c.l.b16 %v3498
      %v3804 = vunpack.c.l.b16 %v3499
      %v3805 = vunpack.c.l.b16 %v3500
      %v3806 = vunpack.c.l.b16 %v3501
      %v3807 = vunpack.c.l.b16 %v3502
      %v3808 = vunpack.c.l.b16 %v3503
      %v3809 = vunpack.c.l.b16 %v3504
      %v3810 = vunpack.c.l.b16 %v3505
      %v3811 = vunpack.c.l.b16 %v3506
      %v3812 = vunpack.c.l.b16 %v3507
      %v3813 = vunpack.c.l.b16 %v3508
      %v3814 = vunpack.c.l.b16 %v3509
      %v3815 = vunpack.c.l.b16 %v3510
      %v3816 = vunpack.c.l.b16 %v3511
      %v3817 = vpack.c.b16 %v3802, %v3801
      %v3818 = vpack.c.b16 %v3804, %v3803
      %v3819 = vpack.c.b16 %v3806, %v3805
      %v3820 = vpack.c.b16 %v3808, %v3807
      %v3821 = vpack.c.b16 %v3810, %v3809
      %v3822 = vpack.c.b16 %v3812, %v3811
      %v3823 = vpack.c.b16 %v3814, %v3813
      %v3824 = vpack.c.b16 %v3816, %v3815
      %3833 = vmatprep.subr.bf16.mxu0 0
      %3834 = vmatpush1.bf16.msra.mxu0 %v3824
      %3835 = vmatprep.subr.bf16.mxu0 0
      %3836 = vmatpush1.bf16.msra.mxu0 %v3823
      %3837 = vmatprep.subr.bf16.mxu0 0
      %3838 = vmatpush1.bf16.msra.mxu0 %v3822
      %3839 = vmatprep.subr.bf16.mxu0 0
      %3840 = vmatpush1.bf16.msra.mxu0 %v3821
      %3841 = vmatprep.subr.bf16.mxu0 0
      %3842 = vmatpush1.bf16.msra.mxu0 %v3820
      %3843 = vmatprep.subr.bf16.mxu0 0
      %3844 = vmatpush1.bf16.msra.mxu0 %v3819
      %3845 = vmatprep.subr.bf16.mxu0 0
      %3846 = vmatpush1.bf16.msra.mxu0 %v3818
      %3847 = vmatprep.subr.bf16.mxu0 0
      %3848 = vmatpush1.bf16.msra.mxu0 %v3817
      %3849 = vmatprep.subr.bf16.mxu0 0
      %3850 = vmatpush2.bf16.msra.mxu0 0
      %3851 = vmatprep.subr.bf16.mxu0 0
      %3852 = vmatpush2.bf16.msra.mxu0 0
      %3853 = vmatprep.subr.bf16.mxu0 0
      %3854 = vmatpush2.bf16.msra.mxu0 0
      %3855 = vmatprep.subr.bf16.mxu0 0
      %3856 = vmatpush2.bf16.msra.mxu0 0
      %3857 = vmatprep.subr.bf16.mxu0 0
      %3858 = vmatpush2.bf16.msra.mxu0 0
      %3859 = vmatprep.subr.bf16.mxu0 0
      %3860 = vmatpush2.bf16.msra.mxu0 0
      %3861 = vmatprep.subr.bf16.mxu0 0
      %3862 = vmatpush2.bf16.msra.mxu0 0
      %3863 = vmatprep.subr.bf16.mxu0 0
      %3864 = vmatpush2.bf16.msra.mxu0 0
      %3865 = vmatprep.mubr.bf16.mxu0 0
      %3866 = vmatmul.mubr.bf16.gmra.mxu0 %v3480
      %v3867 = vpop.f32.mrf.mxu0
      %v3868 = vadd.f32 %v3659, %v3867
      %v3869 = vpop.f32.mrf.mxu0
      %v3870 = vpop.f32.mrf.mxu0
      %v3871 = vadd.f32 %v3662, %v3870
      %v3872 = vpop.f32.mrf.mxu0
      %3873 = vmatprep.mubr.bf16.mxu0 0
      %3874 = vmatmul.mubr.bf16.gmra.mxu0 %v3481
      %v3875 = vpop.f32.mrf.mxu0
      %v3876 = vadd.f32 %v3667, %v3875
      %v3877 = vpop.f32.mrf.mxu0
      %v3878 = vpop.f32.mrf.mxu0
      %v3879 = vadd.f32 %v3670, %v3878
      %v3880 = vpop.f32.mrf.mxu0
      %3881 = vmatprep.mubr.bf16.mxu0 0
      %3882 = vmatmul.mubr.bf16.gmra.mxu0 %v3482
      %v3883 = vpop.f32.mrf.mxu0
      %v3884 = vadd.f32 %v3675, %v3883
      %v3885 = vpop.f32.mrf.mxu0
      %v3886 = vpop.f32.mrf.mxu0
      %v3887 = vadd.f32 %v3678, %v3886
      %v3888 = vpop.f32.mrf.mxu0
      %3889 = vmatprep.mubr.bf16.mxu0 0
      %3890 = vmatmul.mubr.bf16.gmra.mxu0 %v3483
      %v3891 = vpop.f32.mrf.mxu0
      %v3892 = vadd.f32 %v3683, %v3891
      %v3893 = vpop.f32.mrf.mxu0
      %v3894 = vpop.f32.mrf.mxu0
      %v3895 = vadd.f32 %v3686, %v3894
      %v3896 = vpop.f32.mrf.mxu0
      %3897 = vmatprep.mubr.bf16.mxu0 0
      %3898 = vmatmul.mubr.bf16.gmra.mxu0 %v3484
      %v3899 = vpop.f32.mrf.mxu0
      %v3900 = vadd.f32 %v3691, %v3899
      %v3901 = vpop.f32.mrf.mxu0
      %v3902 = vpop.f32.mrf.mxu0
      %v3903 = vadd.f32 %v3694, %v3902
      %v3904 = vpop.f32.mrf.mxu0
      %3905 = vmatprep.mubr.bf16.mxu0 0
      %3906 = vmatmul.mubr.bf16.gmra.mxu0 %v3485
      %v3907 = vpop.f32.mrf.mxu0
      %v3908 = vadd.f32 %v3699, %v3907
      %v3909 = vpop.f32.mrf.mxu0
      %v3910 = vpop.f32.mrf.mxu0
      %v3911 = vadd.f32 %v3702, %v3910
      %v3912 = vpop.f32.mrf.mxu0
      %3913 = vmatprep.mubr.bf16.mxu0 0
      %3914 = vmatmul.mubr.bf16.gmra.mxu0 %v3486
      %v3915 = vpop.f32.mrf.mxu0
      %v3916 = vadd.f32 %v3707, %v3915
      %v3917 = vpop.f32.mrf.mxu0
      %v3918 = vpop.f32.mrf.mxu0
      %v3919 = vadd.f32 %v3710, %v3918
      %v3920 = vpop.f32.mrf.mxu0
      %3921 = vmatprep.mubr.bf16.mxu0 0
      %3922 = vmatmul.mubr.bf16.gmra.mxu0 %v3487
      %v3923 = vpop.f32.mrf.mxu0
      %v3924 = vadd.f32 %v3715, %v3923
      %v3925 = vpop.f32.mrf.mxu0
      %v3926 = vpop.f32.mrf.mxu0
      %v3927 = vadd.f32 %v3718, %v3926
      %v3928 = vpop.f32.mrf.mxu0
      %3929 = vmatprep.mubr.bf16.mxu0 0
      %3930 = vmatmul.mubr.bf16.gmra.mxu0 %v3488
      %v3931 = vpop.f32.mrf.mxu0
      %v3932 = vadd.f32 %v3723, %v3931
      %v3933 = vpop.f32.mrf.mxu0
      %v3934 = vpop.f32.mrf.mxu0
      %v3935 = vadd.f32 %v3726, %v3934
      %v3936 = vpop.f32.mrf.mxu0
      %3937 = vmatprep.mubr.bf16.mxu0 0
      %3938 = vmatmul.mubr.bf16.gmra.mxu0 %v3489
      %v3939 = vpop.f32.mrf.mxu0
      %v3940 = vadd.f32 %v3731, %v3939
      %v3941 = vpop.f32.mrf.mxu0
      %v3942 = vpop.f32.mrf.mxu0
      %v3943 = vadd.f32 %v3734, %v3942
      %v3944 = vpop.f32.mrf.mxu0
      %3945 = vmatprep.mubr.bf16.mxu0 0
      %3946 = vmatmul.mubr.bf16.gmra.mxu0 %v3490
      %v3947 = vpop.f32.mrf.mxu0
      %v3948 = vadd.f32 %v3739, %v3947
      %v3949 = vpop.f32.mrf.mxu0
      %v3950 = vpop.f32.mrf.mxu0
      %v3951 = vadd.f32 %v3742, %v3950
      %v3952 = vpop.f32.mrf.mxu0
      %3953 = vmatprep.mubr.bf16.mxu0 0
      %3954 = vmatmul.mubr.bf16.gmra.mxu0 %v3491
      %v3955 = vpop.f32.mrf.mxu0
      %v3956 = vadd.f32 %v3747, %v3955
      %v3957 = vpop.f32.mrf.mxu0
      %v3958 = vpop.f32.mrf.mxu0
      %v3959 = vadd.f32 %v3750, %v3958
      %v3960 = vpop.f32.mrf.mxu0
      %3961 = vmatprep.mubr.bf16.mxu0 0
      %3962 = vmatmul.mubr.bf16.gmra.mxu0 %v3492
      %v3963 = vpop.f32.mrf.mxu0
      %v3964 = vadd.f32 %v3755, %v3963
      %v3965 = vpop.f32.mrf.mxu0
      %v3966 = vpop.f32.mrf.mxu0
      %v3967 = vadd.f32 %v3758, %v3966
      %v3968 = vpop.f32.mrf.mxu0
      %3969 = vmatprep.mubr.bf16.mxu0 0
      %3970 = vmatmul.mubr.bf16.gmra.mxu0 %v3493
      %v3971 = vpop.f32.mrf.mxu0
      %v3972 = vadd.f32 %v3763, %v3971
      %v3973 = vpop.f32.mrf.mxu0
      %v3974 = vpop.f32.mrf.mxu0
      %v3975 = vadd.f32 %v3766, %v3974
      %v3976 = vpop.f32.mrf.mxu0
      %3977 = vmatprep.mubr.bf16.mxu0 0
      %3978 = vmatmul.mubr.bf16.gmra.mxu0 %v3494
      %v3979 = vpop.f32.mrf.mxu0
      %v3980 = vadd.f32 %v3771, %v3979
      %v3981 = vpop.f32.mrf.mxu0
      %v3982 = vpop.f32.mrf.mxu0
      %v3983 = vadd.f32 %v3774, %v3982
      %v3984 = vpop.f32.mrf.mxu0
      %3985 = vmatprep.mubr.bf16.mxu0 0
      %3986 = vmatmul.mubr.bf16.gmra.mxu0 %v3495
      %v3987 = vpop.f32.mrf.mxu0
      %v3988 = vadd.f32 %v3779, %v3987
      %v3989 = vpop.f32.mrf.mxu0
      %v3990 = vpop.f32.mrf.mxu0
      %v3991 = vadd.f32 %v3782, %v3990
      %v3992 = vpop.f32.mrf.mxu0
      %3993 = vdwg.mxu0
      %v3994 = vld [vmem:[#allocation3 + $0x2] sm:$0xff]
      %v3995 = vld [vmem:[#allocation3 + $0xa] sm:$0xff]
      %v3996 = vld [vmem:[#allocation3 + $0x1a] sm:$0xff]
      %v3997 = vld [vmem:[#allocation3 + $0x22] sm:$0xff]
      %v3998 = vld [vmem:[#allocation3 + $0x32] sm:$0xff]
      %v3999 = vld [vmem:[#allocation3 + $0x3a] sm:$0xff]
      %v4000 = vld [vmem:[#allocation3 + $0x4a] sm:$0xff]
      %v4001 = vld [vmem:[#allocation3 + $0x52] sm:$0xff]
      %v4002 = vld [vmem:[#allocation3 + $0x62] sm:$0xff]
      %v4003 = vld [vmem:[#allocation3 + $0x6a] sm:$0xff]
      %v4004 = vld [vmem:[#allocation3 + $0x7a] sm:$0xff]
      %v4005 = vld [vmem:[#allocation3 + $0x82] sm:$0xff]
      %v4006 = vld [vmem:[#allocation3 + $0x92] sm:$0xff]
      %v4007 = vld [vmem:[#allocation3 + $0x9a] sm:$0xff]
      %v4008 = vld [vmem:[#allocation3 + $0xaa] sm:$0xff]
      %v4009 = vld [vmem:[#allocation3 + $0xb2] sm:$0xff]
      %v4010 = vld [vmem:[#allocation3 + $0xc2] sm:$0xff]
      %v4011 = vld [vmem:[#allocation3 + $0xca] sm:$0xff]
      %v4012 = vld [vmem:[#allocation3 + $0xda] sm:$0xff]
      %v4013 = vld [vmem:[#allocation3 + $0xe2] sm:$0xff]
      %v4014 = vld [vmem:[#allocation3 + $0xf2] sm:$0xff]
      %v4015 = vld [vmem:[#allocation3 + $0xfa] sm:$0xff]
      %v4016 = vld [vmem:[#allocation3 + $0x10a] sm:$0xff]
      %v4017 = vld [vmem:[#allocation3 + $0x112] sm:$0xff]
      %v4018 = vld [vmem:[#allocation3 + $0x122] sm:$0xff]
      %v4019 = vld [vmem:[#allocation3 + $0x12a] sm:$0xff]
      %v4020 = vld [vmem:[#allocation3 + $0x13a] sm:$0xff]
      %v4021 = vld [vmem:[#allocation3 + $0x142] sm:$0xff]
      %v4022 = vld [vmem:[#allocation3 + $0x152] sm:$0xff]
      %v4023 = vld [vmem:[#allocation3 + $0x15a] sm:$0xff]
      %v4024 = vld [vmem:[#allocation3 + $0x16a] sm:$0xff]
      %v4025 = vld [vmem:[#allocation3 + $0x172] sm:$0xff]
      %v4026 = vpack.c.bf16 %v3995, %v3994
      %v4027 = vpack.c.bf16 %v3997, %v3996
      %v4028 = vpack.c.bf16 %v3999, %v3998
      %v4029 = vpack.c.bf16 %v4001, %v4000
      %v4030 = vpack.c.bf16 %v4003, %v4002
      %v4031 = vpack.c.bf16 %v4005, %v4004
      %v4032 = vpack.c.bf16 %v4007, %v4006
      %v4033 = vpack.c.bf16 %v4009, %v4008
      %v4034 = vpack.c.bf16 %v4011, %v4010
      %v4035 = vpack.c.bf16 %v4013, %v4012
      %v4036 = vpack.c.bf16 %v4015, %v4014
      %v4037 = vpack.c.bf16 %v4017, %v4016
      %v4038 = vpack.c.bf16 %v4019, %v4018
      %v4039 = vpack.c.bf16 %v4021, %v4020
      %v4040 = vpack.c.bf16 %v4023, %v4022
      %v4041 = vpack.c.bf16 %v4025, %v4024
      %v4042 = vld [vmem:[%s4 + $0x80] sm:$0xf]
      %v4043 = vld [vmem:[%s4 + $0x84] sm:$0xf]
      %v4044 = vld [vmem:[%s4 + $0x88] sm:$0xf]
      %v4045 = vld [vmem:[%s4 + $0x8c] sm:$0xf]
      %v4046 = vld [vmem:[%s4 + $0x90] sm:$0xf]
      %v4047 = vld [vmem:[%s4 + $0x94] sm:$0xf]
      %v4048 = vld [vmem:[%s4 + $0x98] sm:$0xf]
      %v4049 = vld [vmem:[%s4 + $0x9c] sm:$0xf]
      %v4050 = vld [vmem:[%s4 + $0xa0] sm:$0xf]
      %v4051 = vld [vmem:[%s4 + $0xa4] sm:$0xf]
      %v4052 = vld [vmem:[%s4 + $0xa8] sm:$0xf]
      %v4053 = vld [vmem:[%s4 + $0xac] sm:$0xf]
      %v4054 = vld [vmem:[%s4 + $0xb0] sm:$0xf]
      %v4055 = vld [vmem:[%s4 + $0xb4] sm:$0xf]
      %v4056 = vld [vmem:[%s4 + $0xb8] sm:$0xf]
      %v4057 = vld [vmem:[%s4 + $0xbc] sm:$0xf]
      %v4074 = vunpack.c.l.b16 %v4042
      %v4075 = vunpack.c.l.b16 %v4043
      %v4076 = vunpack.c.l.b16 %v4044
      %v4077 = vunpack.c.l.b16 %v4045
      %v4078 = vunpack.c.l.b16 %v4046
      %v4079 = vunpack.c.l.b16 %v4047
      %v4080 = vunpack.c.l.b16 %v4048
      %v4081 = vunpack.c.l.b16 %v4049
      %v4082 = vunpack.c.l.b16 %v4050
      %v4083 = vunpack.c.l.b16 %v4051
      %v4084 = vunpack.c.l.b16 %v4052
      %v4085 = vunpack.c.l.b16 %v4053
      %v4086 = vunpack.c.l.b16 %v4054
      %v4087 = vunpack.c.l.b16 %v4055
      %v4088 = vunpack.c.l.b16 %v4056
      %v4089 = vunpack.c.l.b16 %v4057
      %v4090 = vpack.c.b16 %v4075, %v4074
      %v4091 = vpack.c.b16 %v4077, %v4076
      %v4092 = vpack.c.b16 %v4079, %v4078
      %v4093 = vpack.c.b16 %v4081, %v4080
      %v4094 = vpack.c.b16 %v4083, %v4082
      %v4095 = vpack.c.b16 %v4085, %v4084
      %v4096 = vpack.c.b16 %v4087, %v4086
      %v4097 = vpack.c.b16 %v4089, %v4088
      %4106 = vmatprep.subr.bf16.mxu0 0
      %4107 = vmatpush1.bf16.msra.mxu0 %v4097
      %4108 = vmatprep.subr.bf16.mxu0 0
      %4109 = vmatpush1.bf16.msra.mxu0 %v4096
      %4110 = vmatprep.subr.bf16.mxu0 0
      %4111 = vmatpush1.bf16.msra.mxu0 %v4095
      %4112 = vmatprep.subr.bf16.mxu0 0
      %4113 = vmatpush1.bf16.msra.mxu0 %v4094
      %4114 = vmatprep.subr.bf16.mxu0 0
      %4115 = vmatpush1.bf16.msra.mxu0 %v4093
      %4116 = vmatprep.subr.bf16.mxu0 0
      %4117 = vmatpush1.bf16.msra.mxu0 %v4092
      %4118 = vmatprep.subr.bf16.mxu0 0
      %4119 = vmatpush1.bf16.msra.mxu0 %v4091
      %4120 = vmatprep.subr.bf16.mxu0 0
      %4121 = vmatpush1.bf16.msra.mxu0 %v4090
      %4122 = vmatprep.subr.bf16.mxu0 0
      %4123 = vmatpush2.bf16.msra.mxu0 0
      %4124 = vmatprep.subr.bf16.mxu0 0
      %4125 = vmatpush2.bf16.msra.mxu0 0
      %4126 = vmatprep.subr.bf16.mxu0 0
      %4127 = vmatpush2.bf16.msra.mxu0 0
      %4128 = vmatprep.subr.bf16.mxu0 0
      %4129 = vmatpush2.bf16.msra.mxu0 0
      %4130 = vmatprep.subr.bf16.mxu0 0
      %4131 = vmatpush2.bf16.msra.mxu0 0
      %4132 = vmatprep.subr.bf16.mxu0 0
      %4133 = vmatpush2.bf16.msra.mxu0 0
      %4134 = vmatprep.subr.bf16.mxu0 0
      %4135 = vmatpush2.bf16.msra.mxu0 0
      %4136 = vmatprep.subr.bf16.mxu0 0
      %4137 = vmatpush2.bf16.msra.mxu0 0
      %4138 = vmatprep.mubr.bf16.mxu0 0
      %4139 = vmatmul.mubr.bf16.gmra.mxu0 %v4026
      %v4140 = vpop.f32.mrf.mxu0
      %v4141 = vadd.f32 0.0, %v4140
      %v4142 = vpop.f32.mrf.mxu0
      %v4143 = vpop.f32.mrf.mxu0
      %v4144 = vadd.f32 0.0, %v4143
      %v4145 = vpop.f32.mrf.mxu0
      %4146 = vmatprep.mubr.bf16.mxu0 0
      %4147 = vmatmul.mubr.bf16.gmra.mxu0 %v4027
      %v4148 = vpop.f32.mrf.mxu0
      %v4149 = vadd.f32 0.0, %v4148
      %v4150 = vpop.f32.mrf.mxu0
      %v4151 = vpop.f32.mrf.mxu0
      %v4152 = vadd.f32 0.0, %v4151
      %v4153 = vpop.f32.mrf.mxu0
      %4154 = vmatprep.mubr.bf16.mxu0 0
      %4155 = vmatmul.mubr.bf16.gmra.mxu0 %v4028
      %v4156 = vpop.f32.mrf.mxu0
      %v4157 = vadd.f32 0.0, %v4156
      %v4158 = vpop.f32.mrf.mxu0
      %v4159 = vpop.f32.mrf.mxu0
      %v4160 = vadd.f32 0.0, %v4159
      %v4161 = vpop.f32.mrf.mxu0
      %4162 = vmatprep.mubr.bf16.mxu0 0
      %4163 = vmatmul.mubr.bf16.gmra.mxu0 %v4029
      %v4164 = vpop.f32.mrf.mxu0
      %v4165 = vadd.f32 0.0, %v4164
      %v4166 = vpop.f32.mrf.mxu0
      %v4167 = vpop.f32.mrf.mxu0
      %v4168 = vadd.f32 0.0, %v4167
      %v4169 = vpop.f32.mrf.mxu0
      %4170 = vmatprep.mubr.bf16.mxu0 0
      %4171 = vmatmul.mubr.bf16.gmra.mxu0 %v4030
      %v4172 = vpop.f32.mrf.mxu0
      %v4173 = vadd.f32 0.0, %v4172
      %v4174 = vpop.f32.mrf.mxu0
      %v4175 = vpop.f32.mrf.mxu0
      %v4176 = vadd.f32 0.0, %v4175
      %v4177 = vpop.f32.mrf.mxu0
      %4178 = vmatprep.mubr.bf16.mxu0 0
      %4179 = vmatmul.mubr.bf16.gmra.mxu0 %v4031
      %v4180 = vpop.f32.mrf.mxu0
      %v4181 = vadd.f32 0.0, %v4180
      %v4182 = vpop.f32.mrf.mxu0
      %v4183 = vpop.f32.mrf.mxu0
      %v4184 = vadd.f32 0.0, %v4183
      %v4185 = vpop.f32.mrf.mxu0
      %4186 = vmatprep.mubr.bf16.mxu0 0
      %4187 = vmatmul.mubr.bf16.gmra.mxu0 %v4032
      %v4188 = vpop.f32.mrf.mxu0
      %v4189 = vadd.f32 0.0, %v4188
      %v4190 = vpop.f32.mrf.mxu0
      %v4191 = vpop.f32.mrf.mxu0
      %v4192 = vadd.f32 0.0, %v4191
      %v4193 = vpop.f32.mrf.mxu0
      %4194 = vmatprep.mubr.bf16.mxu0 0
      %4195 = vmatmul.mubr.bf16.gmra.mxu0 %v4033
      %v4196 = vpop.f32.mrf.mxu0
      %v4197 = vadd.f32 0.0, %v4196
      %v4198 = vpop.f32.mrf.mxu0
      %v4199 = vpop.f32.mrf.mxu0
      %v4200 = vadd.f32 0.0, %v4199
      %v4201 = vpop.f32.mrf.mxu0
      %4202 = vmatprep.mubr.bf16.mxu0 0
      %4203 = vmatmul.mubr.bf16.gmra.mxu0 %v4034
      %v4204 = vpop.f32.mrf.mxu0
      %v4205 = vadd.f32 0.0, %v4204
      %v4206 = vpop.f32.mrf.mxu0
      %v4207 = vpop.f32.mrf.mxu0
      %v4208 = vadd.f32 0.0, %v4207
      %v4209 = vpop.f32.mrf.mxu0
      %4210 = vmatprep.mubr.bf16.mxu0 0
      %4211 = vmatmul.mubr.bf16.gmra.mxu0 %v4035
      %v4212 = vpop.f32.mrf.mxu0
      %v4213 = vadd.f32 0.0, %v4212
      %v4214 = vpop.f32.mrf.mxu0
      %v4215 = vpop.f32.mrf.mxu0
      %v4216 = vadd.f32 0.0, %v4215
      %v4217 = vpop.f32.mrf.mxu0
      %4218 = vmatprep.mubr.bf16.mxu0 0
      %4219 = vmatmul.mubr.bf16.gmra.mxu0 %v4036
      %v4220 = vpop.f32.mrf.mxu0
      %v4221 = vadd.f32 0.0, %v4220
      %v4222 = vpop.f32.mrf.mxu0
      %v4223 = vpop.f32.mrf.mxu0
      %v4224 = vadd.f32 0.0, %v4223
      %v4225 = vpop.f32.mrf.mxu0
      %4226 = vmatprep.mubr.bf16.mxu0 0
      %4227 = vmatmul.mubr.bf16.gmra.mxu0 %v4037
      %v4228 = vpop.f32.mrf.mxu0
      %v4229 = vadd.f32 0.0, %v4228
      %v4230 = vpop.f32.mrf.mxu0
      %v4231 = vpop.f32.mrf.mxu0
      %v4232 = vadd.f32 0.0, %v4231
      %v4233 = vpop.f32.mrf.mxu0
      %4234 = vmatprep.mubr.bf16.mxu0 0
      %4235 = vmatmul.mubr.bf16.gmra.mxu0 %v4038
      %v4236 = vpop.f32.mrf.mxu0
      %v4237 = vadd.f32 0.0, %v4236
      %v4238 = vpop.f32.mrf.mxu0
      %v4239 = vpop.f32.mrf.mxu0
      %v4240 = vadd.f32 0.0, %v4239
      %v4241 = vpop.f32.mrf.mxu0
      %4242 = vmatprep.mubr.bf16.mxu0 0
      %4243 = vmatmul.mubr.bf16.gmra.mxu0 %v4039
      %v4244 = vpop.f32.mrf.mxu0
      %v4245 = vadd.f32 0.0, %v4244
      %v4246 = vpop.f32.mrf.mxu0
      %v4247 = vpop.f32.mrf.mxu0
      %v4248 = vadd.f32 0.0, %v4247
      %v4249 = vpop.f32.mrf.mxu0
      %4250 = vmatprep.mubr.bf16.mxu0 0
      %4251 = vmatmul.mubr.bf16.gmra.mxu0 %v4040
      %v4252 = vpop.f32.mrf.mxu0
      %v4253 = vadd.f32 0.0, %v4252
      %v4254 = vpop.f32.mrf.mxu0
      %v4255 = vpop.f32.mrf.mxu0
      %v4256 = vadd.f32 0.0, %v4255
      %v4257 = vpop.f32.mrf.mxu0
      %4258 = vmatprep.mubr.bf16.mxu0 0
      %4259 = vmatmul.mubr.bf16.gmra.mxu0 %v4041
      %v4260 = vpop.f32.mrf.mxu0
      %v4261 = vadd.f32 0.0, %v4260
      %v4262 = vpop.f32.mrf.mxu0
      %v4263 = vpop.f32.mrf.mxu0
      %v4264 = vadd.f32 0.0, %v4263
      %v4265 = vpop.f32.mrf.mxu0
      %4266 = vdwg.mxu0
      %v4267 = vadd.f32 %v3868, %v4141
      %v4268 = vadd.f32 %v3871, %v4144
      %v4269 = vadd.f32 %v3876, %v4149
      %v4270 = vadd.f32 %v3879, %v4152
      %v4271 = vadd.f32 %v3884, %v4157
      %v4272 = vadd.f32 %v3887, %v4160
      %v4273 = vadd.f32 %v3892, %v4165
      %v4274 = vadd.f32 %v3895, %v4168
      %v4275 = vadd.f32 %v3900, %v4173
      %v4276 = vadd.f32 %v3903, %v4176
      %v4277 = vadd.f32 %v3908, %v4181
      %v4278 = vadd.f32 %v3911, %v4184
      %v4279 = vadd.f32 %v3916, %v4189
      %v4280 = vadd.f32 %v3919, %v4192
      %v4281 = vadd.f32 %v3924, %v4197
      %v4282 = vadd.f32 %v3927, %v4200
      %v4283 = vadd.f32 %v3932, %v4205
      %v4284 = vadd.f32 %v3935, %v4208
      %v4285 = vadd.f32 %v3940, %v4213
      %v4286 = vadd.f32 %v3943, %v4216
      %v4287 = vadd.f32 %v3948, %v4221
      %v4288 = vadd.f32 %v3951, %v4224
      %v4289 = vadd.f32 %v3956, %v4229
      %v4290 = vadd.f32 %v3959, %v4232
      %v4291 = vadd.f32 %v3964, %v4237
      %v4292 = vadd.f32 %v3967, %v4240
      %v4293 = vadd.f32 %v3972, %v4245
      %v4294 = vadd.f32 %v3975, %v4248
      %v4295 = vadd.f32 %v3980, %v4253
      %v4296 = vadd.f32 %v3983, %v4256
      %v4297 = vadd.f32 %v3988, %v4261
      %v4298 = vadd.f32 %v3991, %v4264
      %v4299 = vld [vmem:[%s3415] sm:$0xff]
      %v4300 = vld [vmem:[%s3415 + $0x8] sm:$0xff]
      %v4301 = vld [vmem:[%s3415 + $0x18] sm:$0xff]
      %v4302 = vld [vmem:[%s3415 + $0x20] sm:$0xff]
      %v4303 = vld [vmem:[%s3415 + $0x30] sm:$0xff]
      %v4304 = vld [vmem:[%s3415 + $0x38] sm:$0xff]
      %v4305 = vld [vmem:[%s3415 + $0x48] sm:$0xff]
      %v4306 = vld [vmem:[%s3415 + $0x50] sm:$0xff]
      %v4307 = vld [vmem:[%s3415 + $0x60] sm:$0xff]
      %v4308 = vld [vmem:[%s3415 + $0x68] sm:$0xff]
      %v4309 = vld [vmem:[%s3415 + $0x78] sm:$0xff]
      %v4310 = vld [vmem:[%s3415 + $0x80] sm:$0xff]
      %v4311 = vld [vmem:[%s3415 + $0x90] sm:$0xff]
      %v4312 = vld [vmem:[%s3415 + $0x98] sm:$0xff]
      %v4313 = vld [vmem:[%s3415 + $0xa8] sm:$0xff]
      %v4314 = vld [vmem:[%s3415 + $0xb0] sm:$0xff]
      %v4315 = vld [vmem:[%s3415 + $0xc0] sm:$0xff]
      %v4316 = vld [vmem:[%s3415 + $0xc8] sm:$0xff]
      %v4317 = vld [vmem:[%s3415 + $0xd8] sm:$0xff]
      %v4318 = vld [vmem:[%s3415 + $0xe0] sm:$0xff]
      %v4319 = vld [vmem:[%s3415 + $0xf0] sm:$0xff]
      %v4320 = vld [vmem:[%s3415 + $0xf8] sm:$0xff]
      %v4321 = vld [vmem:[%s3415 + $0x108] sm:$0xff]
      %v4322 = vld [vmem:[%s3415 + $0x110] sm:$0xff]
      %v4323 = vld [vmem:[%s3415 + $0x120] sm:$0xff]
      %v4324 = vld [vmem:[%s3415 + $0x128] sm:$0xff]
      %v4325 = vld [vmem:[%s3415 + $0x138] sm:$0xff]
      %v4326 = vld [vmem:[%s3415 + $0x140] sm:$0xff]
      %v4327 = vld [vmem:[%s3415 + $0x150] sm:$0xff]
      %v4328 = vld [vmem:[%s3415 + $0x158] sm:$0xff]
      %v4329 = vld [vmem:[%s3415 + $0x168] sm:$0xff]
      %v4330 = vld [vmem:[%s3415 + $0x170] sm:$0xff]
      %v4331 = vpack.c.bf16 %v4300, %v4299
      %v4332 = vpack.c.bf16 %v4302, %v4301
      %v4333 = vpack.c.bf16 %v4304, %v4303
      %v4334 = vpack.c.bf16 %v4306, %v4305
      %v4335 = vpack.c.bf16 %v4308, %v4307
      %v4336 = vpack.c.bf16 %v4310, %v4309
      %v4337 = vpack.c.bf16 %v4312, %v4311
      %v4338 = vpack.c.bf16 %v4314, %v4313
      %v4339 = vpack.c.bf16 %v4316, %v4315
      %v4340 = vpack.c.bf16 %v4318, %v4317
      %v4341 = vpack.c.bf16 %v4320, %v4319
      %v4342 = vpack.c.bf16 %v4322, %v4321
      %v4343 = vpack.c.bf16 %v4324, %v4323
      %v4344 = vpack.c.bf16 %v4326, %v4325
      %v4345 = vpack.c.bf16 %v4328, %v4327
      %v4346 = vpack.c.bf16 %v4330, %v4329
      %v4347 = vld [vmem:[%s4 + $0xc0] sm:$0xf]
      %v4348 = vld [vmem:[%s4 + $0xc4] sm:$0xf]
      %v4349 = vld [vmem:[%s4 + $0xc8] sm:$0xf]
      %v4350 = vld [vmem:[%s4 + $0xcc] sm:$0xf]
      %v4351 = vld [vmem:[%s4 + $0xd0] sm:$0xf]
      %v4352 = vld [vmem:[%s4 + $0xd4] sm:$0xf]
      %v4353 = vld [vmem:[%s4 + $0xd8] sm:$0xf]
      %v4354 = vld [vmem:[%s4 + $0xdc] sm:$0xf]
      %v4355 = vld [vmem:[%s4 + $0xe0] sm:$0xf]
      %v4356 = vld [vmem:[%s4 + $0xe4] sm:$0xf]
      %v4357 = vld [vmem:[%s4 + $0xe8] sm:$0xf]
      %v4358 = vld [vmem:[%s4 + $0xec] sm:$0xf]
      %v4359 = vld [vmem:[%s4 + $0xf0] sm:$0xf]
      %v4360 = vld [vmem:[%s4 + $0xf4] sm:$0xf]
      %v4361 = vld [vmem:[%s4 + $0xf8] sm:$0xf]
      %v4362 = vld [vmem:[%s4 + $0xfc] sm:$0xf]
      %v4379 = vunpack.c.l.b16 %v4347
      %v4380 = vunpack.c.l.b16 %v4348
      %v4381 = vunpack.c.l.b16 %v4349
      %v4382 = vunpack.c.l.b16 %v4350
      %v4383 = vunpack.c.l.b16 %v4351
      %v4384 = vunpack.c.l.b16 %v4352
      %v4385 = vunpack.c.l.b16 %v4353
      %v4386 = vunpack.c.l.b16 %v4354
      %v4387 = vunpack.c.l.b16 %v4355
      %v4388 = vunpack.c.l.b16 %v4356
      %v4389 = vunpack.c.l.b16 %v4357
      %v4390 = vunpack.c.l.b16 %v4358
      %v4391 = vunpack.c.l.b16 %v4359
      %v4392 = vunpack.c.l.b16 %v4360
      %v4393 = vunpack.c.l.b16 %v4361
      %v4394 = vunpack.c.l.b16 %v4362
      %v4395 = vpack.c.b16 %v4380, %v4379
      %v4396 = vpack.c.b16 %v4382, %v4381
      %v4397 = vpack.c.b16 %v4384, %v4383
      %v4398 = vpack.c.b16 %v4386, %v4385
      %v4399 = vpack.c.b16 %v4388, %v4387
      %v4400 = vpack.c.b16 %v4390, %v4389
      %v4401 = vpack.c.b16 %v4392, %v4391
      %v4402 = vpack.c.b16 %v4394, %v4393
      %4411 = vmatprep.subr.bf16.mxu0 0
      %4412 = vmatpush1.bf16.msra.mxu0 %v4402
      %4413 = vmatprep.subr.bf16.mxu0 0
      %4414 = vmatpush1.bf16.msra.mxu0 %v4401
      %4415 = vmatprep.subr.bf16.mxu0 0
      %4416 = vmatpush1.bf16.msra.mxu0 %v4400
      %4417 = vmatprep.subr.bf16.mxu0 0
      %4418 = vmatpush1.bf16.msra.mxu0 %v4399
      %4419 = vmatprep.subr.bf16.mxu0 0
      %4420 = vmatpush1.bf16.msra.mxu0 %v4398
      %4421 = vmatprep.subr.bf16.mxu0 0
      %4422 = vmatpush1.bf16.msra.mxu0 %v4397
      %4423 = vmatprep.subr.bf16.mxu0 0
      %4424 = vmatpush1.bf16.msra.mxu0 %v4396
      %4425 = vmatprep.subr.bf16.mxu0 0
      %4426 = vmatpush1.bf16.msra.mxu0 %v4395
      %4427 = vmatprep.subr.bf16.mxu0 0
      %4428 = vmatpush2.bf16.msra.mxu0 0
      %4429 = vmatprep.subr.bf16.mxu0 0
      %4430 = vmatpush2.bf16.msra.mxu0 0
      %4431 = vmatprep.subr.bf16.mxu0 0
      %4432 = vmatpush2.bf16.msra.mxu0 0
      %4433 = vmatprep.subr.bf16.mxu0 0
      %4434 = vmatpush2.bf16.msra.mxu0 0
      %4435 = vmatprep.subr.bf16.mxu0 0
      %4436 = vmatpush2.bf16.msra.mxu0 0
      %4437 = vmatprep.subr.bf16.mxu0 0
      %4438 = vmatpush2.bf16.msra.mxu0 0
      %4439 = vmatprep.subr.bf16.mxu0 0
      %4440 = vmatpush2.bf16.msra.mxu0 0
      %4441 = vmatprep.subr.bf16.mxu0 0
      %4442 = vmatpush2.bf16.msra.mxu0 0
      %4443 = vmatprep.mubr.bf16.mxu0 0
      %4444 = vmatmul.mubr.bf16.gmra.mxu0 %v4331
      %v4445 = vpop.f32.mrf.mxu0
      %v4446 = vadd.f32 0.0, %v4445
      %v4447 = vpop.f32.mrf.mxu0
      %v4448 = vpop.f32.mrf.mxu0
      %v4449 = vadd.f32 0.0, %v4448
      %v4450 = vpop.f32.mrf.mxu0
      %4451 = vmatprep.mubr.bf16.mxu0 0
      %4452 = vmatmul.mubr.bf16.gmra.mxu0 %v4332
      %v4453 = vpop.f32.mrf.mxu0
      %v4454 = vadd.f32 0.0, %v4453
      %v4455 = vpop.f32.mrf.mxu0
      %v4456 = vpop.f32.mrf.mxu0
      %v4457 = vadd.f32 0.0, %v4456
      %v4458 = vpop.f32.mrf.mxu0
      %4459 = vmatprep.mubr.bf16.mxu0 0
      %4460 = vmatmul.mubr.bf16.gmra.mxu0 %v4333
      %v4461 = vpop.f32.mrf.mxu0
      %v4462 = vadd.f32 0.0, %v4461
      %v4463 = vpop.f32.mrf.mxu0
      %v4464 = vpop.f32.mrf.mxu0
      %v4465 = vadd.f32 0.0, %v4464
      %v4466 = vpop.f32.mrf.mxu0
      %4467 = vmatprep.mubr.bf16.mxu0 0
      %4468 = vmatmul.mubr.bf16.gmra.mxu0 %v4334
      %v4469 = vpop.f32.mrf.mxu0
      %v4470 = vadd.f32 0.0, %v4469
      %v4471 = vpop.f32.mrf.mxu0
      %v4472 = vpop.f32.mrf.mxu0
      %v4473 = vadd.f32 0.0, %v4472
      %v4474 = vpop.f32.mrf.mxu0
      %4475 = vmatprep.mubr.bf16.mxu0 0
      %4476 = vmatmul.mubr.bf16.gmra.mxu0 %v4335
      %v4477 = vpop.f32.mrf.mxu0
      %v4478 = vadd.f32 0.0, %v4477
      %v4479 = vpop.f32.mrf.mxu0
      %v4480 = vpop.f32.mrf.mxu0
      %v4481 = vadd.f32 0.0, %v4480
      %v4482 = vpop.f32.mrf.mxu0
      %4483 = vmatprep.mubr.bf16.mxu0 0
      %4484 = vmatmul.mubr.bf16.gmra.mxu0 %v4336
      %v4485 = vpop.f32.mrf.mxu0
      %v4486 = vadd.f32 0.0, %v4485
      %v4487 = vpop.f32.mrf.mxu0
      %v4488 = vpop.f32.mrf.mxu0
      %v4489 = vadd.f32 0.0, %v4488
      %v4490 = vpop.f32.mrf.mxu0
      %4491 = vmatprep.mubr.bf16.mxu0 0
      %4492 = vmatmul.mubr.bf16.gmra.mxu0 %v4337
      %v4493 = vpop.f32.mrf.mxu0
      %v4494 = vadd.f32 0.0, %v4493
      %v4495 = vpop.f32.mrf.mxu0
      %v4496 = vpop.f32.mrf.mxu0
      %v4497 = vadd.f32 0.0, %v4496
      %v4498 = vpop.f32.mrf.mxu0
      %4499 = vmatprep.mubr.bf16.mxu0 0
      %4500 = vmatmul.mubr.bf16.gmra.mxu0 %v4338
      %v4501 = vpop.f32.mrf.mxu0
      %v4502 = vadd.f32 0.0, %v4501
      %v4503 = vpop.f32.mrf.mxu0
      %v4504 = vpop.f32.mrf.mxu0
      %v4505 = vadd.f32 0.0, %v4504
      %v4506 = vpop.f32.mrf.mxu0
      %4507 = vmatprep.mubr.bf16.mxu0 0
      %4508 = vmatmul.mubr.bf16.gmra.mxu0 %v4339
      %v4509 = vpop.f32.mrf.mxu0
      %v4510 = vadd.f32 0.0, %v4509
      %v4511 = vpop.f32.mrf.mxu0
      %v4512 = vpop.f32.mrf.mxu0
      %v4513 = vadd.f32 0.0, %v4512
      %v4514 = vpop.f32.mrf.mxu0
      %4515 = vmatprep.mubr.bf16.mxu0 0
      %4516 = vmatmul.mubr.bf16.gmra.mxu0 %v4340
      %v4517 = vpop.f32.mrf.mxu0
      %v4518 = vadd.f32 0.0, %v4517
      %v4519 = vpop.f32.mrf.mxu0
      %v4520 = vpop.f32.mrf.mxu0
      %v4521 = vadd.f32 0.0, %v4520
      %v4522 = vpop.f32.mrf.mxu0
      %4523 = vmatprep.mubr.bf16.mxu0 0
      %4524 = vmatmul.mubr.bf16.gmra.mxu0 %v4341
      %v4525 = vpop.f32.mrf.mxu0
      %v4526 = vadd.f32 0.0, %v4525
      %v4527 = vpop.f32.mrf.mxu0
      %v4528 = vpop.f32.mrf.mxu0
      %v4529 = vadd.f32 0.0, %v4528
      %v4530 = vpop.f32.mrf.mxu0
      %4531 = vmatprep.mubr.bf16.mxu0 0
      %4532 = vmatmul.mubr.bf16.gmra.mxu0 %v4342
      %v4533 = vpop.f32.mrf.mxu0
      %v4534 = vadd.f32 0.0, %v4533
      %v4535 = vpop.f32.mrf.mxu0
      %v4536 = vpop.f32.mrf.mxu0
      %v4537 = vadd.f32 0.0, %v4536
      %v4538 = vpop.f32.mrf.mxu0
      %4539 = vmatprep.mubr.bf16.mxu0 0
      %4540 = vmatmul.mubr.bf16.gmra.mxu0 %v4343
      %v4541 = vpop.f32.mrf.mxu0
      %v4542 = vadd.f32 0.0, %v4541
      %v4543 = vpop.f32.mrf.mxu0
      %v4544 = vpop.f32.mrf.mxu0
      %v4545 = vadd.f32 0.0, %v4544
      %v4546 = vpop.f32.mrf.mxu0
      %4547 = vmatprep.mubr.bf16.mxu0 0
      %4548 = vmatmul.mubr.bf16.gmra.mxu0 %v4344
      %v4549 = vpop.f32.mrf.mxu0
      %v4550 = vadd.f32 0.0, %v4549
      %v4551 = vpop.f32.mrf.mxu0
      %v4552 = vpop.f32.mrf.mxu0
      %v4553 = vadd.f32 0.0, %v4552
      %v4554 = vpop.f32.mrf.mxu0
      %4555 = vmatprep.mubr.bf16.mxu0 0
      %4556 = vmatmul.mubr.bf16.gmra.mxu0 %v4345
      %v4557 = vpop.f32.mrf.mxu0
      %v4558 = vadd.f32 0.0, %v4557
      %v4559 = vpop.f32.mrf.mxu0
      %v4560 = vpop.f32.mrf.mxu0
      %v4561 = vadd.f32 0.0, %v4560
      %v4562 = vpop.f32.mrf.mxu0
      %4563 = vmatprep.mubr.bf16.mxu0 0
      %4564 = vmatmul.mubr.bf16.gmra.mxu0 %v4346
      %v4565 = vpop.f32.mrf.mxu0
      %v4566 = vadd.f32 0.0, %v4565
      %v4567 = vpop.f32.mrf.mxu0
      %v4568 = vpop.f32.mrf.mxu0
      %v4569 = vadd.f32 0.0, %v4568
      %v4570 = vpop.f32.mrf.mxu0
      %4571 = vdwg.mxu0
      %v4572 = vadd.f32 %v4267, %v4446
      %v4573 = vadd.f32 %v4268, %v4449
      %v4574 = vadd.f32 %v4269, %v4454
      %v4575 = vadd.f32 %v4270, %v4457
      %v4576 = vadd.f32 %v4271, %v4462
      %v4577 = vadd.f32 %v4272, %v4465
      %v4578 = vadd.f32 %v4273, %v4470
      %v4579 = vadd.f32 %v4274, %v4473
      %v4580 = vadd.f32 %v4275, %v4478
      %v4581 = vadd.f32 %v4276, %v4481
      %v4582 = vadd.f32 %v4277, %v4486
      %v4583 = vadd.f32 %v4278, %v4489
      %v4584 = vadd.f32 %v4279, %v4494
      %v4585 = vadd.f32 %v4280, %v4497
      %v4586 = vadd.f32 %v4281, %v4502
      %v4587 = vadd.f32 %v4282, %v4505
      %v4588 = vadd.f32 %v4283, %v4510
      %v4589 = vadd.f32 %v4284, %v4513
      %v4590 = vadd.f32 %v4285, %v4518
      %v4591 = vadd.f32 %v4286, %v4521
      %v4592 = vadd.f32 %v4287, %v4526
      %v4593 = vadd.f32 %v4288, %v4529
      %v4594 = vadd.f32 %v4289, %v4534
      %v4595 = vadd.f32 %v4290, %v4537
      %v4596 = vadd.f32 %v4291, %v4542
      %v4597 = vadd.f32 %v4292, %v4545
      %v4598 = vadd.f32 %v4293, %v4550
      %v4599 = vadd.f32 %v4294, %v4553
      %v4600 = vadd.f32 %v4295, %v4558
      %v4601 = vadd.f32 %v4296, %v4561
      %v4602 = vadd.f32 %v4297, %v4566
      %v4603 = vadd.f32 %v4298, %v4569
      %v4604 = vld [vmem:[%s3415 + $0x1] sm:$0xff]
      %v4605 = vld [vmem:[%s3415 + $0x9] sm:$0xff]
      %v4606 = vld [vmem:[%s3415 + $0x19] sm:$0xff]
      %v4607 = vld [vmem:[%s3415 + $0x21] sm:$0xff]
      %v4608 = vld [vmem:[%s3415 + $0x31] sm:$0xff]
      %v4609 = vld [vmem:[%s3415 + $0x39] sm:$0xff]
      %v4610 = vld [vmem:[%s3415 + $0x49] sm:$0xff]
      %v4611 = vld [vmem:[%s3415 + $0x51] sm:$0xff]
      %v4612 = vld [vmem:[%s3415 + $0x61] sm:$0xff]
      %v4613 = vld [vmem:[%s3415 + $0x69] sm:$0xff]
      %v4614 = vld [vmem:[%s3415 + $0x79] sm:$0xff]
      %v4615 = vld [vmem:[%s3415 + $0x81] sm:$0xff]
      %v4616 = vld [vmem:[%s3415 + $0x91] sm:$0xff]
      %v4617 = vld [vmem:[%s3415 + $0x99] sm:$0xff]
      %v4618 = vld [vmem:[%s3415 + $0xa9] sm:$0xff]
      %v4619 = vld [vmem:[%s3415 + $0xb1] sm:$0xff]
      %v4620 = vld [vmem:[%s3415 + $0xc1] sm:$0xff]
      %v4621 = vld [vmem:[%s3415 + $0xc9] sm:$0xff]
      %v4622 = vld [vmem:[%s3415 + $0xd9] sm:$0xff]
      %v4623 = vld [vmem:[%s3415 + $0xe1] sm:$0xff]
      %v4624 = vld [vmem:[%s3415 + $0xf1] sm:$0xff]
      %v4625 = vld [vmem:[%s3415 + $0xf9] sm:$0xff]
      %v4626 = vld [vmem:[%s3415 + $0x109] sm:$0xff]
      %v4627 = vld [vmem:[%s3415 + $0x111] sm:$0xff]
      %v4628 = vld [vmem:[%s3415 + $0x121] sm:$0xff]
      %v4629 = vld [vmem:[%s3415 + $0x129] sm:$0xff]
      %v4630 = vld [vmem:[%s3415 + $0x139] sm:$0xff]
      %v4631 = vld [vmem:[%s3415 + $0x141] sm:$0xff]
      %v4632 = vld [vmem:[%s3415 + $0x151] sm:$0xff]
      %v4633 = vld [vmem:[%s3415 + $0x159] sm:$0xff]
      %v4634 = vld [vmem:[%s3415 + $0x169] sm:$0xff]
      %v4635 = vld [vmem:[%s3415 + $0x171] sm:$0xff]
      %v4636 = vpack.c.bf16 %v4605, %v4604
      %v4637 = vpack.c.bf16 %v4607, %v4606
      %v4638 = vpack.c.bf16 %v4609, %v4608
      %v4639 = vpack.c.bf16 %v4611, %v4610
      %v4640 = vpack.c.bf16 %v4613, %v4612
      %v4641 = vpack.c.bf16 %v4615, %v4614
      %v4642 = vpack.c.bf16 %v4617, %v4616
      %v4643 = vpack.c.bf16 %v4619, %v4618
      %v4644 = vpack.c.bf16 %v4621, %v4620
      %v4645 = vpack.c.bf16 %v4623, %v4622
      %v4646 = vpack.c.bf16 %v4625, %v4624
      %v4647 = vpack.c.bf16 %v4627, %v4626
      %v4648 = vpack.c.bf16 %v4629, %v4628
      %v4649 = vpack.c.bf16 %v4631, %v4630
      %v4650 = vpack.c.bf16 %v4633, %v4632
      %v4651 = vpack.c.bf16 %v4635, %v4634
      %v4652 = vld [vmem:[%s4 + $0x100] sm:$0xf]
      %v4653 = vld [vmem:[%s4 + $0x104] sm:$0xf]
      %v4654 = vld [vmem:[%s4 + $0x108] sm:$0xf]
      %v4655 = vld [vmem:[%s4 + $0x10c] sm:$0xf]
      %v4656 = vld [vmem:[%s4 + $0x110] sm:$0xf]
      %v4657 = vld [vmem:[%s4 + $0x114] sm:$0xf]
      %v4658 = vld [vmem:[%s4 + $0x118] sm:$0xf]
      %v4659 = vld [vmem:[%s4 + $0x11c] sm:$0xf]
      %v4660 = vld [vmem:[%s4 + $0x120] sm:$0xf]
      %v4661 = vld [vmem:[%s4 + $0x124] sm:$0xf]
      %v4662 = vld [vmem:[%s4 + $0x128] sm:$0xf]
      %v4663 = vld [vmem:[%s4 + $0x12c] sm:$0xf]
      %v4664 = vld [vmem:[%s4 + $0x130] sm:$0xf]
      %v4665 = vld [vmem:[%s4 + $0x134] sm:$0xf]
      %v4666 = vld [vmem:[%s4 + $0x138] sm:$0xf]
      %v4667 = vld [vmem:[%s4 + $0x13c] sm:$0xf]
      %v4684 = vunpack.c.l.b16 %v4652
      %v4685 = vunpack.c.l.b16 %v4653
      %v4686 = vunpack.c.l.b16 %v4654
      %v4687 = vunpack.c.l.b16 %v4655
      %v4688 = vunpack.c.l.b16 %v4656
      %v4689 = vunpack.c.l.b16 %v4657
      %v4690 = vunpack.c.l.b16 %v4658
      %v4691 = vunpack.c.l.b16 %v4659
      %v4692 = vunpack.c.l.b16 %v4660
      %v4693 = vunpack.c.l.b16 %v4661
      %v4694 = vunpack.c.l.b16 %v4662
      %v4695 = vunpack.c.l.b16 %v4663
      %v4696 = vunpack.c.l.b16 %v4664
      %v4697 = vunpack.c.l.b16 %v4665
      %v4698 = vunpack.c.l.b16 %v4666
      %v4699 = vunpack.c.l.b16 %v4667
      %v4700 = vpack.c.b16 %v4685, %v4684
      %v4701 = vpack.c.b16 %v4687, %v4686
      %v4702 = vpack.c.b16 %v4689, %v4688
      %v4703 = vpack.c.b16 %v4691, %v4690
      %v4704 = vpack.c.b16 %v4693, %v4692
      %v4705 = vpack.c.b16 %v4695, %v4694
      %v4706 = vpack.c.b16 %v4697, %v4696
      %v4707 = vpack.c.b16 %v4699, %v4698
      %4716 = vmatprep.subr.bf16.mxu0 0
      %4717 = vmatpush1.bf16.msra.mxu0 %v4707
      %4718 = vmatprep.subr.bf16.mxu0 0
      %4719 = vmatpush1.bf16.msra.mxu0 %v4706
      %4720 = vmatprep.subr.bf16.mxu0 0
      %4721 = vmatpush1.bf16.msra.mxu0 %v4705
      %4722 = vmatprep.subr.bf16.mxu0 0
      %4723 = vmatpush1.bf16.msra.mxu0 %v4704
      %4724 = vmatprep.subr.bf16.mxu0 0
      %4725 = vmatpush1.bf16.msra.mxu0 %v4703
      %4726 = vmatprep.subr.bf16.mxu0 0
      %4727 = vmatpush1.bf16.msra.mxu0 %v4702
      %4728 = vmatprep.subr.bf16.mxu0 0
      %4729 = vmatpush1.bf16.msra.mxu0 %v4701
      %4730 = vmatprep.subr.bf16.mxu0 0
      %4731 = vmatpush1.bf16.msra.mxu0 %v4700
      %4732 = vmatprep.subr.bf16.mxu0 0
      %4733 = vmatpush2.bf16.msra.mxu0 0
      %4734 = vmatprep.subr.bf16.mxu0 0
      %4735 = vmatpush2.bf16.msra.mxu0 0
      %4736 = vmatprep.subr.bf16.mxu0 0
      %4737 = vmatpush2.bf16.msra.mxu0 0
      %4738 = vmatprep.subr.bf16.mxu0 0
      %4739 = vmatpush2.bf16.msra.mxu0 0
      %4740 = vmatprep.subr.bf16.mxu0 0
      %4741 = vmatpush2.bf16.msra.mxu0 0
      %4742 = vmatprep.subr.bf16.mxu0 0
      %4743 = vmatpush2.bf16.msra.mxu0 0
      %4744 = vmatprep.subr.bf16.mxu0 0
      %4745 = vmatpush2.bf16.msra.mxu0 0
      %4746 = vmatprep.subr.bf16.mxu0 0
      %4747 = vmatpush2.bf16.msra.mxu0 0
      %4748 = vmatprep.mubr.bf16.mxu0 0
      %4749 = vmatmul.mubr.bf16.gmra.mxu0 %v4636
      %v4750 = vpop.f32.mrf.mxu0
      %v4751 = vadd.f32 0.0, %v4750
      %v4752 = vpop.f32.mrf.mxu0
      %v4753 = vpop.f32.mrf.mxu0
      %v4754 = vadd.f32 0.0, %v4753
      %v4755 = vpop.f32.mrf.mxu0
      %4756 = vmatprep.mubr.bf16.mxu0 0
      %4757 = vmatmul.mubr.bf16.gmra.mxu0 %v4637
      %v4758 = vpop.f32.mrf.mxu0
      %v4759 = vadd.f32 0.0, %v4758
      %v4760 = vpop.f32.mrf.mxu0
      %v4761 = vpop.f32.mrf.mxu0
      %v4762 = vadd.f32 0.0, %v4761
      %v4763 = vpop.f32.mrf.mxu0
      %4764 = vmatprep.mubr.bf16.mxu0 0
      %4765 = vmatmul.mubr.bf16.gmra.mxu0 %v4638
      %v4766 = vpop.f32.mrf.mxu0
      %v4767 = vadd.f32 0.0, %v4766
      %v4768 = vpop.f32.mrf.mxu0
      %v4769 = vpop.f32.mrf.mxu0
      %v4770 = vadd.f32 0.0, %v4769
      %v4771 = vpop.f32.mrf.mxu0
      %4772 = vmatprep.mubr.bf16.mxu0 0
      %4773 = vmatmul.mubr.bf16.gmra.mxu0 %v4639
      %v4774 = vpop.f32.mrf.mxu0
      %v4775 = vadd.f32 0.0, %v4774
      %v4776 = vpop.f32.mrf.mxu0
      %v4777 = vpop.f32.mrf.mxu0
      %v4778 = vadd.f32 0.0, %v4777
      %v4779 = vpop.f32.mrf.mxu0
      %4780 = vmatprep.mubr.bf16.mxu0 0
      %4781 = vmatmul.mubr.bf16.gmra.mxu0 %v4640
      %v4782 = vpop.f32.mrf.mxu0
      %v4783 = vadd.f32 0.0, %v4782
      %v4784 = vpop.f32.mrf.mxu0
      %v4785 = vpop.f32.mrf.mxu0
      %v4786 = vadd.f32 0.0, %v4785
      %v4787 = vpop.f32.mrf.mxu0
      %4788 = vmatprep.mubr.bf16.mxu0 0
      %4789 = vmatmul.mubr.bf16.gmra.mxu0 %v4641
      %v4790 = vpop.f32.mrf.mxu0
      %v4791 = vadd.f32 0.0, %v4790
      %v4792 = vpop.f32.mrf.mxu0
      %v4793 = vpop.f32.mrf.mxu0
      %v4794 = vadd.f32 0.0, %v4793
      %v4795 = vpop.f32.mrf.mxu0
      %4796 = vmatprep.mubr.bf16.mxu0 0
      %4797 = vmatmul.mubr.bf16.gmra.mxu0 %v4642
      %v4798 = vpop.f32.mrf.mxu0
      %v4799 = vadd.f32 0.0, %v4798
      %v4800 = vpop.f32.mrf.mxu0
      %v4801 = vpop.f32.mrf.mxu0
      %v4802 = vadd.f32 0.0, %v4801
      %v4803 = vpop.f32.mrf.mxu0
      %4804 = vmatprep.mubr.bf16.mxu0 0
      %4805 = vmatmul.mubr.bf16.gmra.mxu0 %v4643
      %v4806 = vpop.f32.mrf.mxu0
      %v4807 = vadd.f32 0.0, %v4806
      %v4808 = vpop.f32.mrf.mxu0
      %v4809 = vpop.f32.mrf.mxu0
      %v4810 = vadd.f32 0.0, %v4809
      %v4811 = vpop.f32.mrf.mxu0
      %4812 = vmatprep.mubr.bf16.mxu0 0
      %4813 = vmatmul.mubr.bf16.gmra.mxu0 %v4644
      %v4814 = vpop.f32.mrf.mxu0
      %v4815 = vadd.f32 0.0, %v4814
      %v4816 = vpop.f32.mrf.mxu0
      %v4817 = vpop.f32.mrf.mxu0
      %v4818 = vadd.f32 0.0, %v4817
      %v4819 = vpop.f32.mrf.mxu0
      %4820 = vmatprep.mubr.bf16.mxu0 0
      %4821 = vmatmul.mubr.bf16.gmra.mxu0 %v4645
      %v4822 = vpop.f32.mrf.mxu0
      %v4823 = vadd.f32 0.0, %v4822
      %v4824 = vpop.f32.mrf.mxu0
      %v4825 = vpop.f32.mrf.mxu0
      %v4826 = vadd.f32 0.0, %v4825
      %v4827 = vpop.f32.mrf.mxu0
      %4828 = vmatprep.mubr.bf16.mxu0 0
      %4829 = vmatmul.mubr.bf16.gmra.mxu0 %v4646
      %v4830 = vpop.f32.mrf.mxu0
      %v4831 = vadd.f32 0.0, %v4830
      %v4832 = vpop.f32.mrf.mxu0
      %v4833 = vpop.f32.mrf.mxu0
      %v4834 = vadd.f32 0.0, %v4833
      %v4835 = vpop.f32.mrf.mxu0
      %4836 = vmatprep.mubr.bf16.mxu0 0
      %4837 = vmatmul.mubr.bf16.gmra.mxu0 %v4647
      %v4838 = vpop.f32.mrf.mxu0
      %v4839 = vadd.f32 0.0, %v4838
      %v4840 = vpop.f32.mrf.mxu0
      %v4841 = vpop.f32.mrf.mxu0
      %v4842 = vadd.f32 0.0, %v4841
      %v4843 = vpop.f32.mrf.mxu0
      %4844 = vmatprep.mubr.bf16.mxu0 0
      %4845 = vmatmul.mubr.bf16.gmra.mxu0 %v4648
      %v4846 = vpop.f32.mrf.mxu0
      %v4847 = vadd.f32 0.0, %v4846
      %v4848 = vpop.f32.mrf.mxu0
      %v4849 = vpop.f32.mrf.mxu0
      %v4850 = vadd.f32 0.0, %v4849
      %v4851 = vpop.f32.mrf.mxu0
      %4852 = vmatprep.mubr.bf16.mxu0 0
      %4853 = vmatmul.mubr.bf16.gmra.mxu0 %v4649
      %v4854 = vpop.f32.mrf.mxu0
      %v4855 = vadd.f32 0.0, %v4854
      %v4856 = vpop.f32.mrf.mxu0
      %v4857 = vpop.f32.mrf.mxu0
      %v4858 = vadd.f32 0.0, %v4857
      %v4859 = vpop.f32.mrf.mxu0
      %4860 = vmatprep.mubr.bf16.mxu0 0
      %4861 = vmatmul.mubr.bf16.gmra.mxu0 %v4650
      %v4862 = vpop.f32.mrf.mxu0
      %v4863 = vadd.f32 0.0, %v4862
      %v4864 = vpop.f32.mrf.mxu0
      %v4865 = vpop.f32.mrf.mxu0
      %v4866 = vadd.f32 0.0, %v4865
      %v4867 = vpop.f32.mrf.mxu0
      %4868 = vmatprep.mubr.bf16.mxu0 0
      %4869 = vmatmul.mubr.bf16.gmra.mxu0 %v4651
      %v4870 = vpop.f32.mrf.mxu0
      %v4871 = vadd.f32 0.0, %v4870
      %v4872 = vpop.f32.mrf.mxu0
      %v4873 = vpop.f32.mrf.mxu0
      %v4874 = vadd.f32 0.0, %v4873
      %v4875 = vpop.f32.mrf.mxu0
      %4876 = vdwg.mxu0
      %v4877 = vadd.f32 %v4572, %v4751
      %v4878 = vadd.f32 %v4573, %v4754
      %v4879 = vadd.f32 %v4574, %v4759
      %v4880 = vadd.f32 %v4575, %v4762
      %v4881 = vadd.f32 %v4576, %v4767
      %v4882 = vadd.f32 %v4577, %v4770
      %v4883 = vadd.f32 %v4578, %v4775
      %v4884 = vadd.f32 %v4579, %v4778
      %v4885 = vadd.f32 %v4580, %v4783
      %v4886 = vadd.f32 %v4581, %v4786
      %v4887 = vadd.f32 %v4582, %v4791
      %v4888 = vadd.f32 %v4583, %v4794
      %v4889 = vadd.f32 %v4584, %v4799
      %v4890 = vadd.f32 %v4585, %v4802
      %v4891 = vadd.f32 %v4586, %v4807
      %v4892 = vadd.f32 %v4587, %v4810
      %v4893 = vadd.f32 %v4588, %v4815
      %v4894 = vadd.f32 %v4589, %v4818
      %v4895 = vadd.f32 %v4590, %v4823
      %v4896 = vadd.f32 %v4591, %v4826
      %v4897 = vadd.f32 %v4592, %v4831
      %v4898 = vadd.f32 %v4593, %v4834
      %v4899 = vadd.f32 %v4594, %v4839
      %v4900 = vadd.f32 %v4595, %v4842
      %v4901 = vadd.f32 %v4596, %v4847
      %v4902 = vadd.f32 %v4597, %v4850
      %v4903 = vadd.f32 %v4598, %v4855
      %v4904 = vadd.f32 %v4599, %v4858
      %v4905 = vadd.f32 %v4600, %v4863
      %v4906 = vadd.f32 %v4601, %v4866
      %v4907 = vadd.f32 %v4602, %v4871
      %v4908 = vadd.f32 %v4603, %v4874
      %v4909 = vld [vmem:[%s3415 + $0x2] sm:$0xff]
      %v4910 = vld [vmem:[%s3415 + $0xa] sm:$0xff]
      %v4911 = vld [vmem:[%s3415 + $0x1a] sm:$0xff]
      %v4912 = vld [vmem:[%s3415 + $0x22] sm:$0xff]
      %v4913 = vld [vmem:[%s3415 + $0x32] sm:$0xff]
      %v4914 = vld [vmem:[%s3415 + $0x3a] sm:$0xff]
      %v4915 = vld [vmem:[%s3415 + $0x4a] sm:$0xff]
      %v4916 = vld [vmem:[%s3415 + $0x52] sm:$0xff]
      %v4917 = vld [vmem:[%s3415 + $0x62] sm:$0xff]
      %v4918 = vld [vmem:[%s3415 + $0x6a] sm:$0xff]
      %v4919 = vld [vmem:[%s3415 + $0x7a] sm:$0xff]
      %v4920 = vld [vmem:[%s3415 + $0x82] sm:$0xff]
      %v4921 = vld [vmem:[%s3415 + $0x92] sm:$0xff]
      %v4922 = vld [vmem:[%s3415 + $0x9a] sm:$0xff]
      %v4923 = vld [vmem:[%s3415 + $0xaa] sm:$0xff]
      %v4924 = vld [vmem:[%s3415 + $0xb2] sm:$0xff]
      %v4925 = vld [vmem:[%s3415 + $0xc2] sm:$0xff]
      %v4926 = vld [vmem:[%s3415 + $0xca] sm:$0xff]
      %v4927 = vld [vmem:[%s3415 + $0xda] sm:$0xff]
      %v4928 = vld [vmem:[%s3415 + $0xe2] sm:$0xff]
      %v4929 = vld [vmem:[%s3415 + $0xf2] sm:$0xff]
      %v4930 = vld [vmem:[%s3415 + $0xfa] sm:$0xff]
      %v4931 = vld [vmem:[%s3415 + $0x10a] sm:$0xff]
      %v4932 = vld [vmem:[%s3415 + $0x112] sm:$0xff]
      %v4933 = vld [vmem:[%s3415 + $0x122] sm:$0xff]
      %v4934 = vld [vmem:[%s3415 + $0x12a] sm:$0xff]
      %v4935 = vld [vmem:[%s3415 + $0x13a] sm:$0xff]
      %v4936 = vld [vmem:[%s3415 + $0x142] sm:$0xff]
      %v4937 = vld [vmem:[%s3415 + $0x152] sm:$0xff]
      %v4938 = vld [vmem:[%s3415 + $0x15a] sm:$0xff]
      %v4939 = vld [vmem:[%s3415 + $0x16a] sm:$0xff]
      %v4940 = vld [vmem:[%s3415 + $0x172] sm:$0xff]
      %v4941 = vpack.c.bf16 %v4910, %v4909
      %v4942 = vpack.c.bf16 %v4912, %v4911
      %v4943 = vpack.c.bf16 %v4914, %v4913
      %v4944 = vpack.c.bf16 %v4916, %v4915
      %v4945 = vpack.c.bf16 %v4918, %v4917
      %v4946 = vpack.c.bf16 %v4920, %v4919
      %v4947 = vpack.c.bf16 %v4922, %v4921
      %v4948 = vpack.c.bf16 %v4924, %v4923
      %v4949 = vpack.c.bf16 %v4926, %v4925
      %v4950 = vpack.c.bf16 %v4928, %v4927
      %v4951 = vpack.c.bf16 %v4930, %v4929
      %v4952 = vpack.c.bf16 %v4932, %v4931
      %v4953 = vpack.c.bf16 %v4934, %v4933
      %v4954 = vpack.c.bf16 %v4936, %v4935
      %v4955 = vpack.c.bf16 %v4938, %v4937
      %v4956 = vpack.c.bf16 %v4940, %v4939
      %v4957 = vld [vmem:[%s4 + $0x140] sm:$0xf]
      %v4958 = vld [vmem:[%s4 + $0x144] sm:$0xf]
      %v4959 = vld [vmem:[%s4 + $0x148] sm:$0xf]
      %v4960 = vld [vmem:[%s4 + $0x14c] sm:$0xf]
      %v4961 = vld [vmem:[%s4 + $0x150] sm:$0xf]
      %v4962 = vld [vmem:[%s4 + $0x154] sm:$0xf]
      %v4963 = vld [vmem:[%s4 + $0x158] sm:$0xf]
      %v4964 = vld [vmem:[%s4 + $0x15c] sm:$0xf]
      %v4965 = vld [vmem:[%s4 + $0x160] sm:$0xf]
      %v4966 = vld [vmem:[%s4 + $0x164] sm:$0xf]
      %v4967 = vld [vmem:[%s4 + $0x168] sm:$0xf]
      %v4968 = vld [vmem:[%s4 + $0x16c] sm:$0xf]
      %v4969 = vld [vmem:[%s4 + $0x170] sm:$0xf]
      %v4970 = vld [vmem:[%s4 + $0x174] sm:$0xf]
      %v4971 = vld [vmem:[%s4 + $0x178] sm:$0xf]
      %v4972 = vld [vmem:[%s4 + $0x17c] sm:$0xf]
      %v4989 = vunpack.c.l.b16 %v4957
      %v4990 = vunpack.c.l.b16 %v4958
      %v4991 = vunpack.c.l.b16 %v4959
      %v4992 = vunpack.c.l.b16 %v4960
      %v4993 = vunpack.c.l.b16 %v4961
      %v4994 = vunpack.c.l.b16 %v4962
      %v4995 = vunpack.c.l.b16 %v4963
      %v4996 = vunpack.c.l.b16 %v4964
      %v4997 = vunpack.c.l.b16 %v4965
      %v4998 = vunpack.c.l.b16 %v4966
      %v4999 = vunpack.c.l.b16 %v4967
      %v5000 = vunpack.c.l.b16 %v4968
      %v5001 = vunpack.c.l.b16 %v4969
      %v5002 = vunpack.c.l.b16 %v4970
      %v5003 = vunpack.c.l.b16 %v4971
      %v5004 = vunpack.c.l.b16 %v4972
      %v5005 = vpack.c.b16 %v4990, %v4989
      %v5006 = vpack.c.b16 %v4992, %v4991
      %v5007 = vpack.c.b16 %v4994, %v4993
      %v5008 = vpack.c.b16 %v4996, %v4995
      %v5009 = vpack.c.b16 %v4998, %v4997
      %v5010 = vpack.c.b16 %v5000, %v4999
      %v5011 = vpack.c.b16 %v5002, %v5001
      %v5012 = vpack.c.b16 %v5004, %v5003
      %5021 = vmatprep.subr.bf16.mxu0 0
      %5022 = vmatpush1.bf16.msra.mxu0 %v5012
      %5023 = vmatprep.subr.bf16.mxu0 0
      %5024 = vmatpush1.bf16.msra.mxu0 %v5011
      %5025 = vmatprep.subr.bf16.mxu0 0
      %5026 = vmatpush1.bf16.msra.mxu0 %v5010
      %5027 = vmatprep.subr.bf16.mxu0 0
      %5028 = vmatpush1.bf16.msra.mxu0 %v5009
      %5029 = vmatprep.subr.bf16.mxu0 0
      %5030 = vmatpush1.bf16.msra.mxu0 %v5008
      %5031 = vmatprep.subr.bf16.mxu0 0
      %5032 = vmatpush1.bf16.msra.mxu0 %v5007
      %5033 = vmatprep.subr.bf16.mxu0 0
      %5034 = vmatpush1.bf16.msra.mxu0 %v5006
      %5035 = vmatprep.subr.bf16.mxu0 0
      %5036 = vmatpush1.bf16.msra.mxu0 %v5005
      %5037 = vmatprep.subr.bf16.mxu0 0
      %5038 = vmatpush2.bf16.msra.mxu0 0
      %5039 = vmatprep.subr.bf16.mxu0 0
      %5040 = vmatpush2.bf16.msra.mxu0 0
      %5041 = vmatprep.subr.bf16.mxu0 0
      %5042 = vmatpush2.bf16.msra.mxu0 0
      %5043 = vmatprep.subr.bf16.mxu0 0
      %5044 = vmatpush2.bf16.msra.mxu0 0
      %5045 = vmatprep.subr.bf16.mxu0 0
      %5046 = vmatpush2.bf16.msra.mxu0 0
      %5047 = vmatprep.subr.bf16.mxu0 0
      %5048 = vmatpush2.bf16.msra.mxu0 0
      %5049 = vmatprep.subr.bf16.mxu0 0
      %5050 = vmatpush2.bf16.msra.mxu0 0
      %5051 = vmatprep.subr.bf16.mxu0 0
      %5052 = vmatpush2.bf16.msra.mxu0 0
      %5053 = vmatprep.mubr.bf16.mxu0 0
      %5054 = vmatmul.mubr.bf16.gmra.mxu0 %v4941
      %v5055 = vpop.f32.mrf.mxu0
      %v5056 = vadd.f32 0.0, %v5055
      %v5057 = vpop.f32.mrf.mxu0
      %v5058 = vpop.f32.mrf.mxu0
      %v5059 = vadd.f32 0.0, %v5058
      %v5060 = vpop.f32.mrf.mxu0
      %5061 = vmatprep.mubr.bf16.mxu0 0
      %5062 = vmatmul.mubr.bf16.gmra.mxu0 %v4942
      %v5063 = vpop.f32.mrf.mxu0
      %v5064 = vadd.f32 0.0, %v5063
      %v5065 = vpop.f32.mrf.mxu0
      %v5066 = vpop.f32.mrf.mxu0
      %v5067 = vadd.f32 0.0, %v5066
      %v5068 = vpop.f32.mrf.mxu0
      %5069 = vmatprep.mubr.bf16.mxu0 0
      %5070 = vmatmul.mubr.bf16.gmra.mxu0 %v4943
      %v5071 = vpop.f32.mrf.mxu0
      %v5072 = vadd.f32 0.0, %v5071
      %v5073 = vpop.f32.mrf.mxu0
      %v5074 = vpop.f32.mrf.mxu0
      %v5075 = vadd.f32 0.0, %v5074
      %v5076 = vpop.f32.mrf.mxu0
      %5077 = vmatprep.mubr.bf16.mxu0 0
      %5078 = vmatmul.mubr.bf16.gmra.mxu0 %v4944
      %v5079 = vpop.f32.mrf.mxu0
      %v5080 = vadd.f32 0.0, %v5079
      %v5081 = vpop.f32.mrf.mxu0
      %v5082 = vpop.f32.mrf.mxu0
      %v5083 = vadd.f32 0.0, %v5082
      %v5084 = vpop.f32.mrf.mxu0
      %5085 = vmatprep.mubr.bf16.mxu0 0
      %5086 = vmatmul.mubr.bf16.gmra.mxu0 %v4945
      %v5087 = vpop.f32.mrf.mxu0
      %v5088 = vadd.f32 0.0, %v5087
      %v5089 = vpop.f32.mrf.mxu0
      %v5090 = vpop.f32.mrf.mxu0
      %v5091 = vadd.f32 0.0, %v5090
      %v5092 = vpop.f32.mrf.mxu0
      %5093 = vmatprep.mubr.bf16.mxu0 0
      %5094 = vmatmul.mubr.bf16.gmra.mxu0 %v4946
      %v5095 = vpop.f32.mrf.mxu0
      %v5096 = vadd.f32 0.0, %v5095
      %v5097 = vpop.f32.mrf.mxu0
      %v5098 = vpop.f32.mrf.mxu0
      %v5099 = vadd.f32 0.0, %v5098
      %v5100 = vpop.f32.mrf.mxu0
      %5101 = vmatprep.mubr.bf16.mxu0 0
      %5102 = vmatmul.mubr.bf16.gmra.mxu0 %v4947
      %v5103 = vpop.f32.mrf.mxu0
      %v5104 = vadd.f32 0.0, %v5103
      %v5105 = vpop.f32.mrf.mxu0
      %v5106 = vpop.f32.mrf.mxu0
      %v5107 = vadd.f32 0.0, %v5106
      %v5108 = vpop.f32.mrf.mxu0
      %5109 = vmatprep.mubr.bf16.mxu0 0
      %5110 = vmatmul.mubr.bf16.gmra.mxu0 %v4948
      %v5111 = vpop.f32.mrf.mxu0
      %v5112 = vadd.f32 0.0, %v5111
      %v5113 = vpop.f32.mrf.mxu0
      %v5114 = vpop.f32.mrf.mxu0
      %v5115 = vadd.f32 0.0, %v5114
      %v5116 = vpop.f32.mrf.mxu0
      %5117 = vmatprep.mubr.bf16.mxu0 0
      %5118 = vmatmul.mubr.bf16.gmra.mxu0 %v4949
      %v5119 = vpop.f32.mrf.mxu0
      %v5120 = vadd.f32 0.0, %v5119
      %v5121 = vpop.f32.mrf.mxu0
      %v5122 = vpop.f32.mrf.mxu0
      %v5123 = vadd.f32 0.0, %v5122
      %v5124 = vpop.f32.mrf.mxu0
      %5125 = vmatprep.mubr.bf16.mxu0 0
      %5126 = vmatmul.mubr.bf16.gmra.mxu0 %v4950
      %v5127 = vpop.f32.mrf.mxu0
      %v5128 = vadd.f32 0.0, %v5127
      %v5129 = vpop.f32.mrf.mxu0
      %v5130 = vpop.f32.mrf.mxu0
      %v5131 = vadd.f32 0.0, %v5130
      %v5132 = vpop.f32.mrf.mxu0
      %5133 = vmatprep.mubr.bf16.mxu0 0
      %5134 = vmatmul.mubr.bf16.gmra.mxu0 %v4951
      %v5135 = vpop.f32.mrf.mxu0
      %v5136 = vadd.f32 0.0, %v5135
      %v5137 = vpop.f32.mrf.mxu0
      %v5138 = vpop.f32.mrf.mxu0
      %v5139 = vadd.f32 0.0, %v5138
      %v5140 = vpop.f32.mrf.mxu0
      %5141 = vmatprep.mubr.bf16.mxu0 0
      %5142 = vmatmul.mubr.bf16.gmra.mxu0 %v4952
      %v5143 = vpop.f32.mrf.mxu0
      %v5144 = vadd.f32 0.0, %v5143
      %v5145 = vpop.f32.mrf.mxu0
      %v5146 = vpop.f32.mrf.mxu0
      %v5147 = vadd.f32 0.0, %v5146
      %v5148 = vpop.f32.mrf.mxu0
      %5149 = vmatprep.mubr.bf16.mxu0 0
      %5150 = vmatmul.mubr.bf16.gmra.mxu0 %v4953
      %v5151 = vpop.f32.mrf.mxu0
      %v5152 = vadd.f32 0.0, %v5151
      %v5153 = vpop.f32.mrf.mxu0
      %v5154 = vpop.f32.mrf.mxu0
      %v5155 = vadd.f32 0.0, %v5154
      %v5156 = vpop.f32.mrf.mxu0
      %5157 = vmatprep.mubr.bf16.mxu0 0
      %5158 = vmatmul.mubr.bf16.gmra.mxu0 %v4954
      %v5159 = vpop.f32.mrf.mxu0
      %v5160 = vadd.f32 0.0, %v5159
      %v5161 = vpop.f32.mrf.mxu0
      %v5162 = vpop.f32.mrf.mxu0
      %v5163 = vadd.f32 0.0, %v5162
      %v5164 = vpop.f32.mrf.mxu0
      %5165 = vmatprep.mubr.bf16.mxu0 0
      %5166 = vmatmul.mubr.bf16.gmra.mxu0 %v4955
      %v5167 = vpop.f32.mrf.mxu0
      %v5168 = vadd.f32 0.0, %v5167
      %v5169 = vpop.f32.mrf.mxu0
      %v5170 = vpop.f32.mrf.mxu0
      %v5171 = vadd.f32 0.0, %v5170
      %v5172 = vpop.f32.mrf.mxu0
      %5173 = vmatprep.mubr.bf16.mxu0 0
      %5174 = vmatmul.mubr.bf16.gmra.mxu0 %v4956
      %v5175 = vpop.f32.mrf.mxu0
      %v5176 = vadd.f32 0.0, %v5175
      %v5177 = vpop.f32.mrf.mxu0
      %v5178 = vpop.f32.mrf.mxu0
      %v5179 = vadd.f32 0.0, %v5178
      %v5180 = vpop.f32.mrf.mxu0
      %5181 = vdwg.mxu0
      %v5182 = vadd.f32 %v4877, %v5056
      %v5183 = vadd.f32 %v4878, %v5059
      %v5184 = vadd.f32 %v4879, %v5064
      %v5185 = vadd.f32 %v4880, %v5067
      %v5186 = vadd.f32 %v4881, %v5072
      %v5187 = vadd.f32 %v4882, %v5075
      %v5188 = vadd.f32 %v4883, %v5080
      %v5189 = vadd.f32 %v4884, %v5083
      %v5190 = vadd.f32 %v4885, %v5088
      %v5191 = vadd.f32 %v4886, %v5091
      %v5192 = vadd.f32 %v4887, %v5096
      %v5193 = vadd.f32 %v4888, %v5099
      %v5194 = vadd.f32 %v4889, %v5104
      %v5195 = vadd.f32 %v4890, %v5107
      %v5196 = vadd.f32 %v4891, %v5112
      %v5197 = vadd.f32 %v4892, %v5115
      %v5198 = vadd.f32 %v4893, %v5120
      %v5199 = vadd.f32 %v4894, %v5123
      %v5200 = vadd.f32 %v4895, %v5128
      %v5201 = vadd.f32 %v4896, %v5131
      %v5202 = vadd.f32 %v4897, %v5136
      %v5203 = vadd.f32 %v4898, %v5139
      %v5204 = vadd.f32 %v4899, %v5144
      %v5205 = vadd.f32 %v4900, %v5147
      %v5206 = vadd.f32 %v4901, %v5152
      %v5207 = vadd.f32 %v4902, %v5155
      %v5208 = vadd.f32 %v4903, %v5160
      %v5209 = vadd.f32 %v4904, %v5163
      %v5210 = vadd.f32 %v4905, %v5168
      %v5211 = vadd.f32 %v4906, %v5171
      %v5212 = vadd.f32 %v4907, %v5176
      %v5213 = vadd.f32 %v4908, %v5179
      %s5214 = scalar_lea.vmem [#allocation3], 48
      %v5215 = vld [vmem:[%s5214] sm:$0xff]
      %v5216 = vld [vmem:[%s5214 + $0x8] sm:$0xff]
      %v5217 = vld [vmem:[%s5214 + $0x18] sm:$0xff]
      %v5218 = vld [vmem:[%s5214 + $0x20] sm:$0xff]
      %v5219 = vld [vmem:[%s5214 + $0x30] sm:$0xff]
      %v5220 = vld [vmem:[%s5214 + $0x38] sm:$0xff]
      %v5221 = vld [vmem:[%s5214 + $0x48] sm:$0xff]
      %v5222 = vld [vmem:[%s5214 + $0x50] sm:$0xff]
      %v5223 = vld [vmem:[%s5214 + $0x60] sm:$0xff]
      %v5224 = vld [vmem:[%s5214 + $0x68] sm:$0xff]
      %v5225 = vld [vmem:[%s5214 + $0x78] sm:$0xff]
      %v5226 = vld [vmem:[%s5214 + $0x80] sm:$0xff]
      %v5227 = vld [vmem:[%s5214 + $0x90] sm:$0xff]
      %v5228 = vld [vmem:[%s5214 + $0x98] sm:$0xff]
      %v5229 = vld [vmem:[%s5214 + $0xa8] sm:$0xff]
      %v5230 = vld [vmem:[%s5214 + $0xb0] sm:$0xff]
      %v5231 = vld [vmem:[%s5214 + $0xc0] sm:$0xff]
      %v5232 = vld [vmem:[%s5214 + $0xc8] sm:$0xff]
      %v5233 = vld [vmem:[%s5214 + $0xd8] sm:$0xff]
      %v5234 = vld [vmem:[%s5214 + $0xe0] sm:$0xff]
      %v5235 = vld [vmem:[%s5214 + $0xf0] sm:$0xff]
      %v5236 = vld [vmem:[%s5214 + $0xf8] sm:$0xff]
      %v5237 = vld [vmem:[%s5214 + $0x108] sm:$0xff]
      %v5238 = vld [vmem:[%s5214 + $0x110] sm:$0xff]
      %v5239 = vld [vmem:[%s5214 + $0x120] sm:$0xff]
      %v5240 = vld [vmem:[%s5214 + $0x128] sm:$0xff]
      %v5241 = vld [vmem:[%s5214 + $0x138] sm:$0xff]
      %v5242 = vld [vmem:[%s5214 + $0x140] sm:$0xff]
      %v5243 = vld [vmem:[%s5214 + $0x150] sm:$0xff]
      %v5244 = vld [vmem:[%s5214 + $0x158] sm:$0xff]
      %v5245 = vld [vmem:[%s5214 + $0x168] sm:$0xff]
      %v5246 = vld [vmem:[%s5214 + $0x170] sm:$0xff]
      %v5247 = vpack.c.bf16 %v5216, %v5215
      %v5248 = vpack.c.bf16 %v5218, %v5217
      %v5249 = vpack.c.bf16 %v5220, %v5219
      %v5250 = vpack.c.bf16 %v5222, %v5221
      %v5251 = vpack.c.bf16 %v5224, %v5223
      %v5252 = vpack.c.bf16 %v5226, %v5225
      %v5253 = vpack.c.bf16 %v5228, %v5227
      %v5254 = vpack.c.bf16 %v5230, %v5229
      %v5255 = vpack.c.bf16 %v5232, %v5231
      %v5256 = vpack.c.bf16 %v5234, %v5233
      %v5257 = vpack.c.bf16 %v5236, %v5235
      %v5258 = vpack.c.bf16 %v5238, %v5237
      %v5259 = vpack.c.bf16 %v5240, %v5239
      %v5260 = vpack.c.bf16 %v5242, %v5241
      %v5261 = vpack.c.bf16 %v5244, %v5243
      %v5262 = vpack.c.bf16 %v5246, %v5245
      %v5263 = vld [vmem:[%s4 + $0x180] sm:$0xf]
      %v5264 = vld [vmem:[%s4 + $0x184] sm:$0xf]
      %v5265 = vld [vmem:[%s4 + $0x188] sm:$0xf]
      %v5266 = vld [vmem:[%s4 + $0x18c] sm:$0xf]
      %v5267 = vld [vmem:[%s4 + $0x190] sm:$0xf]
      %v5268 = vld [vmem:[%s4 + $0x194] sm:$0xf]
      %v5269 = vld [vmem:[%s4 + $0x198] sm:$0xf]
      %v5270 = vld [vmem:[%s4 + $0x19c] sm:$0xf]
      %v5271 = vld [vmem:[%s4 + $0x1a0] sm:$0xf]
      %v5272 = vld [vmem:[%s4 + $0x1a4] sm:$0xf]
      %v5273 = vld [vmem:[%s4 + $0x1a8] sm:$0xf]
      %v5274 = vld [vmem:[%s4 + $0x1ac] sm:$0xf]
      %v5275 = vld [vmem:[%s4 + $0x1b0] sm:$0xf]
      %v5276 = vld [vmem:[%s4 + $0x1b4] sm:$0xf]
      %v5277 = vld [vmem:[%s4 + $0x1b8] sm:$0xf]
      %v5278 = vld [vmem:[%s4 + $0x1bc] sm:$0xf]
      %v5295 = vunpack.c.l.b16 %v5263
      %v5296 = vunpack.c.l.b16 %v5264
      %v5297 = vunpack.c.l.b16 %v5265
      %v5298 = vunpack.c.l.b16 %v5266
      %v5299 = vunpack.c.l.b16 %v5267
      %v5300 = vunpack.c.l.b16 %v5268
      %v5301 = vunpack.c.l.b16 %v5269
      %v5302 = vunpack.c.l.b16 %v5270
      %v5303 = vunpack.c.l.b16 %v5271
      %v5304 = vunpack.c.l.b16 %v5272
      %v5305 = vunpack.c.l.b16 %v5273
      %v5306 = vunpack.c.l.b16 %v5274
      %v5307 = vunpack.c.l.b16 %v5275
      %v5308 = vunpack.c.l.b16 %v5276
      %v5309 = vunpack.c.l.b16 %v5277
      %v5310 = vunpack.c.l.b16 %v5278
      %v5311 = vpack.c.b16 %v5296, %v5295
      %v5312 = vpack.c.b16 %v5298, %v5297
      %v5313 = vpack.c.b16 %v5300, %v5299
      %v5314 = vpack.c.b16 %v5302, %v5301
      %v5315 = vpack.c.b16 %v5304, %v5303
      %v5316 = vpack.c.b16 %v5306, %v5305
      %v5317 = vpack.c.b16 %v5308, %v5307
      %v5318 = vpack.c.b16 %v5310, %v5309
      %5327 = vmatprep.subr.bf16.mxu0 0
      %5328 = vmatpush1.bf16.msra.mxu0 %v5318
      %5329 = vmatprep.subr.bf16.mxu0 0
      %5330 = vmatpush1.bf16.msra.mxu0 %v5317
      %5331 = vmatprep.subr.bf16.mxu0 0
      %5332 = vmatpush1.bf16.msra.mxu0 %v5316
      %5333 = vmatprep.subr.bf16.mxu0 0
      %5334 = vmatpush1.bf16.msra.mxu0 %v5315
      %5335 = vmatprep.subr.bf16.mxu0 0
      %5336 = vmatpush1.bf16.msra.mxu0 %v5314
      %5337 = vmatprep.subr.bf16.mxu0 0
      %5338 = vmatpush1.bf16.msra.mxu0 %v5313
      %5339 = vmatprep.subr.bf16.mxu0 0
      %5340 = vmatpush1.bf16.msra.mxu0 %v5312
      %5341 = vmatprep.subr.bf16.mxu0 0
      %5342 = vmatpush1.bf16.msra.mxu0 %v5311
      %5343 = vmatprep.subr.bf16.mxu0 0
      %5344 = vmatpush2.bf16.msra.mxu0 0
      %5345 = vmatprep.subr.bf16.mxu0 0
      %5346 = vmatpush2.bf16.msra.mxu0 0
      %5347 = vmatprep.subr.bf16.mxu0 0
      %5348 = vmatpush2.bf16.msra.mxu0 0
      %5349 = vmatprep.subr.bf16.mxu0 0
      %5350 = vmatpush2.bf16.msra.mxu0 0
      %5351 = vmatprep.subr.bf16.mxu0 0
      %5352 = vmatpush2.bf16.msra.mxu0 0
      %5353 = vmatprep.subr.bf16.mxu0 0
      %5354 = vmatpush2.bf16.msra.mxu0 0
      %5355 = vmatprep.subr.bf16.mxu0 0
      %5356 = vmatpush2.bf16.msra.mxu0 0
      %5357 = vmatprep.subr.bf16.mxu0 0
      %5358 = vmatpush2.bf16.msra.mxu0 0
      %5359 = vmatprep.mubr.bf16.mxu0 0
      %5360 = vmatmul.mubr.bf16.gmra.mxu0 %v5247
      %v5361 = vpop.f32.mrf.mxu0
      %v5362 = vadd.f32 0.0, %v5361
      %v5363 = vpop.f32.mrf.mxu0
      %v5364 = vpop.f32.mrf.mxu0
      %v5365 = vadd.f32 0.0, %v5364
      %v5366 = vpop.f32.mrf.mxu0
      %5367 = vmatprep.mubr.bf16.mxu0 0
      %5368 = vmatmul.mubr.bf16.gmra.mxu0 %v5248
      %v5369 = vpop.f32.mrf.mxu0
      %v5370 = vadd.f32 0.0, %v5369
      %v5371 = vpop.f32.mrf.mxu0
      %v5372 = vpop.f32.mrf.mxu0
      %v5373 = vadd.f32 0.0, %v5372
      %v5374 = vpop.f32.mrf.mxu0
      %5375 = vmatprep.mubr.bf16.mxu0 0
      %5376 = vmatmul.mubr.bf16.gmra.mxu0 %v5249
      %v5377 = vpop.f32.mrf.mxu0
      %v5378 = vadd.f32 0.0, %v5377
      %v5379 = vpop.f32.mrf.mxu0
      %v5380 = vpop.f32.mrf.mxu0
      %v5381 = vadd.f32 0.0, %v5380
      %v5382 = vpop.f32.mrf.mxu0
      %5383 = vmatprep.mubr.bf16.mxu0 0
      %5384 = vmatmul.mubr.bf16.gmra.mxu0 %v5250
      %v5385 = vpop.f32.mrf.mxu0
      %v5386 = vadd.f32 0.0, %v5385
      %v5387 = vpop.f32.mrf.mxu0
      %v5388 = vpop.f32.mrf.mxu0
      %v5389 = vadd.f32 0.0, %v5388
      %v5390 = vpop.f32.mrf.mxu0
      %5391 = vmatprep.mubr.bf16.mxu0 0
      %5392 = vmatmul.mubr.bf16.gmra.mxu0 %v5251
      %v5393 = vpop.f32.mrf.mxu0
      %v5394 = vadd.f32 0.0, %v5393
      %v5395 = vpop.f32.mrf.mxu0
      %v5396 = vpop.f32.mrf.mxu0
      %v5397 = vadd.f32 0.0, %v5396
      %v5398 = vpop.f32.mrf.mxu0
      %5399 = vmatprep.mubr.bf16.mxu0 0
      %5400 = vmatmul.mubr.bf16.gmra.mxu0 %v5252
      %v5401 = vpop.f32.mrf.mxu0
      %v5402 = vadd.f32 0.0, %v5401
      %v5403 = vpop.f32.mrf.mxu0
      %v5404 = vpop.f32.mrf.mxu0
      %v5405 = vadd.f32 0.0, %v5404
      %v5406 = vpop.f32.mrf.mxu0
      %5407 = vmatprep.mubr.bf16.mxu0 0
      %5408 = vmatmul.mubr.bf16.gmra.mxu0 %v5253
      %v5409 = vpop.f32.mrf.mxu0
      %v5410 = vadd.f32 0.0, %v5409
      %v5411 = vpop.f32.mrf.mxu0
      %v5412 = vpop.f32.mrf.mxu0
      %v5413 = vadd.f32 0.0, %v5412
      %v5414 = vpop.f32.mrf.mxu0
      %5415 = vmatprep.mubr.bf16.mxu0 0
      %5416 = vmatmul.mubr.bf16.gmra.mxu0 %v5254
      %v5417 = vpop.f32.mrf.mxu0
      %v5418 = vadd.f32 0.0, %v5417
      %v5419 = vpop.f32.mrf.mxu0
      %v5420 = vpop.f32.mrf.mxu0
      %v5421 = vadd.f32 0.0, %v5420
      %v5422 = vpop.f32.mrf.mxu0
      %5423 = vmatprep.mubr.bf16.mxu0 0
      %5424 = vmatmul.mubr.bf16.gmra.mxu0 %v5255
      %v5425 = vpop.f32.mrf.mxu0
      %v5426 = vadd.f32 0.0, %v5425
      %v5427 = vpop.f32.mrf.mxu0
      %v5428 = vpop.f32.mrf.mxu0
      %v5429 = vadd.f32 0.0, %v5428
      %v5430 = vpop.f32.mrf.mxu0
      %5431 = vmatprep.mubr.bf16.mxu0 0
      %5432 = vmatmul.mubr.bf16.gmra.mxu0 %v5256
      %v5433 = vpop.f32.mrf.mxu0
      %v5434 = vadd.f32 0.0, %v5433
      %v5435 = vpop.f32.mrf.mxu0
      %v5436 = vpop.f32.mrf.mxu0
      %v5437 = vadd.f32 0.0, %v5436
      %v5438 = vpop.f32.mrf.mxu0
      %5439 = vmatprep.mubr.bf16.mxu0 0
      %5440 = vmatmul.mubr.bf16.gmra.mxu0 %v5257
      %v5441 = vpop.f32.mrf.mxu0
      %v5442 = vadd.f32 0.0, %v5441
      %v5443 = vpop.f32.mrf.mxu0
      %v5444 = vpop.f32.mrf.mxu0
      %v5445 = vadd.f32 0.0, %v5444
      %v5446 = vpop.f32.mrf.mxu0
      %5447 = vmatprep.mubr.bf16.mxu0 0
      %5448 = vmatmul.mubr.bf16.gmra.mxu0 %v5258
      %v5449 = vpop.f32.mrf.mxu0
      %v5450 = vadd.f32 0.0, %v5449
      %v5451 = vpop.f32.mrf.mxu0
      %v5452 = vpop.f32.mrf.mxu0
      %v5453 = vadd.f32 0.0, %v5452
      %v5454 = vpop.f32.mrf.mxu0
      %5455 = vmatprep.mubr.bf16.mxu0 0
      %5456 = vmatmul.mubr.bf16.gmra.mxu0 %v5259
      %v5457 = vpop.f32.mrf.mxu0
      %v5458 = vadd.f32 0.0, %v5457
      %v5459 = vpop.f32.mrf.mxu0
      %v5460 = vpop.f32.mrf.mxu0
      %v5461 = vadd.f32 0.0, %v5460
      %v5462 = vpop.f32.mrf.mxu0
      %5463 = vmatprep.mubr.bf16.mxu0 0
      %5464 = vmatmul.mubr.bf16.gmra.mxu0 %v5260
      %v5465 = vpop.f32.mrf.mxu0
      %v5466 = vadd.f32 0.0, %v5465
      %v5467 = vpop.f32.mrf.mxu0
      %v5468 = vpop.f32.mrf.mxu0
      %v5469 = vadd.f32 0.0, %v5468
      %v5470 = vpop.f32.mrf.mxu0
      %5471 = vmatprep.mubr.bf16.mxu0 0
      %5472 = vmatmul.mubr.bf16.gmra.mxu0 %v5261
      %v5473 = vpop.f32.mrf.mxu0
      %v5474 = vadd.f32 0.0, %v5473
      %v5475 = vpop.f32.mrf.mxu0
      %v5476 = vpop.f32.mrf.mxu0
      %v5477 = vadd.f32 0.0, %v5476
      %v5478 = vpop.f32.mrf.mxu0
      %5479 = vmatprep.mubr.bf16.mxu0 0
      %5480 = vmatmul.mubr.bf16.gmra.mxu0 %v5262
      %v5481 = vpop.f32.mrf.mxu0
      %v5482 = vadd.f32 0.0, %v5481
      %v5483 = vpop.f32.mrf.mxu0
      %v5484 = vpop.f32.mrf.mxu0
      %v5485 = vadd.f32 0.0, %v5484
      %v5486 = vpop.f32.mrf.mxu0
      %5487 = vdwg.mxu0
      %v5488 = vadd.f32 %v5182, %v5362
      %v5489 = vadd.f32 %v5183, %v5365
      %v5490 = vadd.f32 %v5184, %v5370
      %v5491 = vadd.f32 %v5185, %v5373
      %v5492 = vadd.f32 %v5186, %v5378
      %v5493 = vadd.f32 %v5187, %v5381
      %v5494 = vadd.f32 %v5188, %v5386
      %v5495 = vadd.f32 %v5189, %v5389
      %v5496 = vadd.f32 %v5190, %v5394
      %v5497 = vadd.f32 %v5191, %v5397
      %v5498 = vadd.f32 %v5192, %v5402
      %v5499 = vadd.f32 %v5193, %v5405
      %v5500 = vadd.f32 %v5194, %v5410
      %v5501 = vadd.f32 %v5195, %v5413
      %v5502 = vadd.f32 %v5196, %v5418
      %v5503 = vadd.f32 %v5197, %v5421
      %v5504 = vadd.f32 %v5198, %v5426
      %v5505 = vadd.f32 %v5199, %v5429
      %v5506 = vadd.f32 %v5200, %v5434
      %v5507 = vadd.f32 %v5201, %v5437
      %v5508 = vadd.f32 %v5202, %v5442
      %v5509 = vadd.f32 %v5203, %v5445
      %v5510 = vadd.f32 %v5204, %v5450
      %v5511 = vadd.f32 %v5205, %v5453
      %v5512 = vadd.f32 %v5206, %v5458
      %v5513 = vadd.f32 %v5207, %v5461
      %v5514 = vadd.f32 %v5208, %v5466
      %v5515 = vadd.f32 %v5209, %v5469
      %v5516 = vadd.f32 %v5210, %v5474
      %v5517 = vadd.f32 %v5211, %v5477
      %v5518 = vadd.f32 %v5212, %v5482
      %v5519 = vadd.f32 %v5213, %v5485
      %v5520 = vld [vmem:[%s5214 + $0x1] sm:$0xff]
      %v5521 = vld [vmem:[%s5214 + $0x9] sm:$0xff]
      %v5522 = vld [vmem:[%s5214 + $0x19] sm:$0xff]
      %v5523 = vld [vmem:[%s5214 + $0x21] sm:$0xff]
      %v5524 = vld [vmem:[%s5214 + $0x31] sm:$0xff]
      %v5525 = vld [vmem:[%s5214 + $0x39] sm:$0xff]
      %v5526 = vld [vmem:[%s5214 + $0x49] sm:$0xff]
      %v5527 = vld [vmem:[%s5214 + $0x51] sm:$0xff]
      %v5528 = vld [vmem:[%s5214 + $0x61] sm:$0xff]
      %v5529 = vld [vmem:[%s5214 + $0x69] sm:$0xff]
      %v5530 = vld [vmem:[%s5214 + $0x79] sm:$0xff]
      %v5531 = vld [vmem:[%s5214 + $0x81] sm:$0xff]
      %v5532 = vld [vmem:[%s5214 + $0x91] sm:$0xff]
      %v5533 = vld [vmem:[%s5214 + $0x99] sm:$0xff]
      %v5534 = vld [vmem:[%s5214 + $0xa9] sm:$0xff]
      %v5535 = vld [vmem:[%s5214 + $0xb1] sm:$0xff]
      %v5536 = vld [vmem:[%s5214 + $0xc1] sm:$0xff]
      %v5537 = vld [vmem:[%s5214 + $0xc9] sm:$0xff]
      %v5538 = vld [vmem:[%s5214 + $0xd9] sm:$0xff]
      %v5539 = vld [vmem:[%s5214 + $0xe1] sm:$0xff]
      %v5540 = vld [vmem:[%s5214 + $0xf1] sm:$0xff]
      %v5541 = vld [vmem:[%s5214 + $0xf9] sm:$0xff]
      %v5542 = vld [vmem:[%s5214 + $0x109] sm:$0xff]
      %v5543 = vld [vmem:[%s5214 + $0x111] sm:$0xff]
      %v5544 = vld [vmem:[%s5214 + $0x121] sm:$0xff]
      %v5545 = vld [vmem:[%s5214 + $0x129] sm:$0xff]
      %v5546 = vld [vmem:[%s5214 + $0x139] sm:$0xff]
      %v5547 = vld [vmem:[%s5214 + $0x141] sm:$0xff]
      %v5548 = vld [vmem:[%s5214 + $0x151] sm:$0xff]
      %v5549 = vld [vmem:[%s5214 + $0x159] sm:$0xff]
      %v5550 = vld [vmem:[%s5214 + $0x169] sm:$0xff]
      %v5551 = vld [vmem:[%s5214 + $0x171] sm:$0xff]
      %v5552 = vpack.c.bf16 %v5521, %v5520
      %v5553 = vpack.c.bf16 %v5523, %v5522
      %v5554 = vpack.c.bf16 %v5525, %v5524
      %v5555 = vpack.c.bf16 %v5527, %v5526
      %v5556 = vpack.c.bf16 %v5529, %v5528
      %v5557 = vpack.c.bf16 %v5531, %v5530
      %v5558 = vpack.c.bf16 %v5533, %v5532
      %v5559 = vpack.c.bf16 %v5535, %v5534
      %v5560 = vpack.c.bf16 %v5537, %v5536
      %v5561 = vpack.c.bf16 %v5539, %v5538
      %v5562 = vpack.c.bf16 %v5541, %v5540
      %v5563 = vpack.c.bf16 %v5543, %v5542
      %v5564 = vpack.c.bf16 %v5545, %v5544
      %v5565 = vpack.c.bf16 %v5547, %v5546
      %v5566 = vpack.c.bf16 %v5549, %v5548
      %v5567 = vpack.c.bf16 %v5551, %v5550
      %v5568 = vld [vmem:[%s4 + $0x1c0] sm:$0xf]
      %v5569 = vld [vmem:[%s4 + $0x1c4] sm:$0xf]
      %v5570 = vld [vmem:[%s4 + $0x1c8] sm:$0xf]
      %v5571 = vld [vmem:[%s4 + $0x1cc] sm:$0xf]
      %v5572 = vld [vmem:[%s4 + $0x1d0] sm:$0xf]
      %v5573 = vld [vmem:[%s4 + $0x1d4] sm:$0xf]
      %v5574 = vld [vmem:[%s4 + $0x1d8] sm:$0xf]
      %v5575 = vld [vmem:[%s4 + $0x1dc] sm:$0xf]
      %v5576 = vld [vmem:[%s4 + $0x1e0] sm:$0xf]
      %v5577 = vld [vmem:[%s4 + $0x1e4] sm:$0xf]
      %v5578 = vld [vmem:[%s4 + $0x1e8] sm:$0xf]
      %v5579 = vld [vmem:[%s4 + $0x1ec] sm:$0xf]
      %v5580 = vld [vmem:[%s4 + $0x1f0] sm:$0xf]
      %v5581 = vld [vmem:[%s4 + $0x1f4] sm:$0xf]
      %v5582 = vld [vmem:[%s4 + $0x1f8] sm:$0xf]
      %v5583 = vld [vmem:[%s4 + $0x1fc] sm:$0xf]
      %v5600 = vunpack.c.l.b16 %v5568
      %v5601 = vunpack.c.l.b16 %v5569
      %v5602 = vunpack.c.l.b16 %v5570
      %v5603 = vunpack.c.l.b16 %v5571
      %v5604 = vunpack.c.l.b16 %v5572
      %v5605 = vunpack.c.l.b16 %v5573
      %v5606 = vunpack.c.l.b16 %v5574
      %v5607 = vunpack.c.l.b16 %v5575
      %v5608 = vunpack.c.l.b16 %v5576
      %v5609 = vunpack.c.l.b16 %v5577
      %v5610 = vunpack.c.l.b16 %v5578
      %v5611 = vunpack.c.l.b16 %v5579
      %v5612 = vunpack.c.l.b16 %v5580
      %v5613 = vunpack.c.l.b16 %v5581
      %v5614 = vunpack.c.l.b16 %v5582
      %v5615 = vunpack.c.l.b16 %v5583
      %v5616 = vpack.c.b16 %v5601, %v5600
      %v5617 = vpack.c.b16 %v5603, %v5602
      %v5618 = vpack.c.b16 %v5605, %v5604
      %v5619 = vpack.c.b16 %v5607, %v5606
      %v5620 = vpack.c.b16 %v5609, %v5608
      %v5621 = vpack.c.b16 %v5611, %v5610
      %v5622 = vpack.c.b16 %v5613, %v5612
      %v5623 = vpack.c.b16 %v5615, %v5614
      %5632 = vmatprep.subr.bf16.mxu0 0
      %5633 = vmatpush1.bf16.msra.mxu0 %v5623
      %5634 = vmatprep.subr.bf16.mxu0 0
      %5635 = vmatpush1.bf16.msra.mxu0 %v5622
      %5636 = vmatprep.subr.bf16.mxu0 0
      %5637 = vmatpush1.bf16.msra.mxu0 %v5621
      %5638 = vmatprep.subr.bf16.mxu0 0
      %5639 = vmatpush1.bf16.msra.mxu0 %v5620
      %5640 = vmatprep.subr.bf16.mxu0 0
      %5641 = vmatpush1.bf16.msra.mxu0 %v5619
      %5642 = vmatprep.subr.bf16.mxu0 0
      %5643 = vmatpush1.bf16.msra.mxu0 %v5618
      %5644 = vmatprep.subr.bf16.mxu0 0
      %5645 = vmatpush1.bf16.msra.mxu0 %v5617
      %5646 = vmatprep.subr.bf16.mxu0 0
      %5647 = vmatpush1.bf16.msra.mxu0 %v5616
      %5648 = vmatprep.subr.bf16.mxu0 0
      %5649 = vmatpush2.bf16.msra.mxu0 0
      %5650 = vmatprep.subr.bf16.mxu0 0
      %5651 = vmatpush2.bf16.msra.mxu0 0
      %5652 = vmatprep.subr.bf16.mxu0 0
      %5653 = vmatpush2.bf16.msra.mxu0 0
      %5654 = vmatprep.subr.bf16.mxu0 0
      %5655 = vmatpush2.bf16.msra.mxu0 0
      %5656 = vmatprep.subr.bf16.mxu0 0
      %5657 = vmatpush2.bf16.msra.mxu0 0
      %5658 = vmatprep.subr.bf16.mxu0 0
      %5659 = vmatpush2.bf16.msra.mxu0 0
      %5660 = vmatprep.subr.bf16.mxu0 0
      %5661 = vmatpush2.bf16.msra.mxu0 0
      %5662 = vmatprep.subr.bf16.mxu0 0
      %5663 = vmatpush2.bf16.msra.mxu0 0
      %5664 = vmatprep.mubr.bf16.mxu0 0
      %5665 = vmatmul.mubr.bf16.gmra.mxu0 %v5552
      %v5666 = vpop.f32.mrf.mxu0
      %v5667 = vadd.f32 0.0, %v5666
      %v5668 = vpop.f32.mrf.mxu0
      %v5669 = vpop.f32.mrf.mxu0
      %v5670 = vadd.f32 0.0, %v5669
      %v5671 = vpop.f32.mrf.mxu0
      %5672 = vmatprep.mubr.bf16.mxu0 0
      %5673 = vmatmul.mubr.bf16.gmra.mxu0 %v5553
      %v5674 = vpop.f32.mrf.mxu0
      %v5675 = vadd.f32 0.0, %v5674
      %v5676 = vpop.f32.mrf.mxu0
      %v5677 = vpop.f32.mrf.mxu0
      %v5678 = vadd.f32 0.0, %v5677
      %v5679 = vpop.f32.mrf.mxu0
      %5680 = vmatprep.mubr.bf16.mxu0 0
      %5681 = vmatmul.mubr.bf16.gmra.mxu0 %v5554
      %v5682 = vpop.f32.mrf.mxu0
      %v5683 = vadd.f32 0.0, %v5682
      %v5684 = vpop.f32.mrf.mxu0
      %v5685 = vpop.f32.mrf.mxu0
      %v5686 = vadd.f32 0.0, %v5685
      %v5687 = vpop.f32.mrf.mxu0
      %5688 = vmatprep.mubr.bf16.mxu0 0
      %5689 = vmatmul.mubr.bf16.gmra.mxu0 %v5555
      %v5690 = vpop.f32.mrf.mxu0
      %v5691 = vadd.f32 0.0, %v5690
      %v5692 = vpop.f32.mrf.mxu0
      %v5693 = vpop.f32.mrf.mxu0
      %v5694 = vadd.f32 0.0, %v5693
      %v5695 = vpop.f32.mrf.mxu0
      %5696 = vmatprep.mubr.bf16.mxu0 0
      %5697 = vmatmul.mubr.bf16.gmra.mxu0 %v5556
      %v5698 = vpop.f32.mrf.mxu0
      %v5699 = vadd.f32 0.0, %v5698
      %v5700 = vpop.f32.mrf.mxu0
      %v5701 = vpop.f32.mrf.mxu0
      %v5702 = vadd.f32 0.0, %v5701
      %v5703 = vpop.f32.mrf.mxu0
      %5704 = vmatprep.mubr.bf16.mxu0 0
      %5705 = vmatmul.mubr.bf16.gmra.mxu0 %v5557
      %v5706 = vpop.f32.mrf.mxu0
      %v5707 = vadd.f32 0.0, %v5706
      %v5708 = vpop.f32.mrf.mxu0
      %v5709 = vpop.f32.mrf.mxu0
      %v5710 = vadd.f32 0.0, %v5709
      %v5711 = vpop.f32.mrf.mxu0
      %5712 = vmatprep.mubr.bf16.mxu0 0
      %5713 = vmatmul.mubr.bf16.gmra.mxu0 %v5558
      %v5714 = vpop.f32.mrf.mxu0
      %v5715 = vadd.f32 0.0, %v5714
      %v5716 = vpop.f32.mrf.mxu0
      %v5717 = vpop.f32.mrf.mxu0
      %v5718 = vadd.f32 0.0, %v5717
      %v5719 = vpop.f32.mrf.mxu0
      %5720 = vmatprep.mubr.bf16.mxu0 0
      %5721 = vmatmul.mubr.bf16.gmra.mxu0 %v5559
      %v5722 = vpop.f32.mrf.mxu0
      %v5723 = vadd.f32 0.0, %v5722
      %v5724 = vpop.f32.mrf.mxu0
      %v5725 = vpop.f32.mrf.mxu0
      %v5726 = vadd.f32 0.0, %v5725
      %v5727 = vpop.f32.mrf.mxu0
      %5728 = vmatprep.mubr.bf16.mxu0 0
      %5729 = vmatmul.mubr.bf16.gmra.mxu0 %v5560
      %v5730 = vpop.f32.mrf.mxu0
      %v5731 = vadd.f32 0.0, %v5730
      %v5732 = vpop.f32.mrf.mxu0
      %v5733 = vpop.f32.mrf.mxu0
      %v5734 = vadd.f32 0.0, %v5733
      %v5735 = vpop.f32.mrf.mxu0
      %5736 = vmatprep.mubr.bf16.mxu0 0
      %5737 = vmatmul.mubr.bf16.gmra.mxu0 %v5561
      %v5738 = vpop.f32.mrf.mxu0
      %v5739 = vadd.f32 0.0, %v5738
      %v5740 = vpop.f32.mrf.mxu0
      %v5741 = vpop.f32.mrf.mxu0
      %v5742 = vadd.f32 0.0, %v5741
      %v5743 = vpop.f32.mrf.mxu0
      %5744 = vmatprep.mubr.bf16.mxu0 0
      %5745 = vmatmul.mubr.bf16.gmra.mxu0 %v5562
      %v5746 = vpop.f32.mrf.mxu0
      %v5747 = vadd.f32 0.0, %v5746
      %v5748 = vpop.f32.mrf.mxu0
      %v5749 = vpop.f32.mrf.mxu0
      %v5750 = vadd.f32 0.0, %v5749
      %v5751 = vpop.f32.mrf.mxu0
      %5752 = vmatprep.mubr.bf16.mxu0 0
      %5753 = vmatmul.mubr.bf16.gmra.mxu0 %v5563
      %v5754 = vpop.f32.mrf.mxu0
      %v5755 = vadd.f32 0.0, %v5754
      %v5756 = vpop.f32.mrf.mxu0
      %v5757 = vpop.f32.mrf.mxu0
      %v5758 = vadd.f32 0.0, %v5757
      %v5759 = vpop.f32.mrf.mxu0
      %5760 = vmatprep.mubr.bf16.mxu0 0
      %5761 = vmatmul.mubr.bf16.gmra.mxu0 %v5564
      %v5762 = vpop.f32.mrf.mxu0
      %v5763 = vadd.f32 0.0, %v5762
      %v5764 = vpop.f32.mrf.mxu0
      %v5765 = vpop.f32.mrf.mxu0
      %v5766 = vadd.f32 0.0, %v5765
      %v5767 = vpop.f32.mrf.mxu0
      %5768 = vmatprep.mubr.bf16.mxu0 0
      %5769 = vmatmul.mubr.bf16.gmra.mxu0 %v5565
      %v5770 = vpop.f32.mrf.mxu0
      %v5771 = vadd.f32 0.0, %v5770
      %v5772 = vpop.f32.mrf.mxu0
      %v5773 = vpop.f32.mrf.mxu0
      %v5774 = vadd.f32 0.0, %v5773
      %v5775 = vpop.f32.mrf.mxu0
      %5776 = vmatprep.mubr.bf16.mxu0 0
      %5777 = vmatmul.mubr.bf16.gmra.mxu0 %v5566
      %v5778 = vpop.f32.mrf.mxu0
      %v5779 = vadd.f32 0.0, %v5778
      %v5780 = vpop.f32.mrf.mxu0
      %v5781 = vpop.f32.mrf.mxu0
      %v5782 = vadd.f32 0.0, %v5781
      %v5783 = vpop.f32.mrf.mxu0
      %5784 = vmatprep.mubr.bf16.mxu0 0
      %5785 = vmatmul.mubr.bf16.gmra.mxu0 %v5567
      %v5786 = vpop.f32.mrf.mxu0
      %v5787 = vadd.f32 0.0, %v5786
      %v5788 = vpop.f32.mrf.mxu0
      %v5789 = vpop.f32.mrf.mxu0
      %v5790 = vadd.f32 0.0, %v5789
      %v5791 = vpop.f32.mrf.mxu0
      %5792 = vdwg.mxu0
      %v5793 = vadd.f32 %v5488, %v5667
      %v5794 = vadd.f32 %v5489, %v5670
      %v5795 = vadd.f32 %v5490, %v5675
      %v5796 = vadd.f32 %v5491, %v5678
      %v5797 = vadd.f32 %v5492, %v5683
      %v5798 = vadd.f32 %v5493, %v5686
      %v5799 = vadd.f32 %v5494, %v5691
      %v5800 = vadd.f32 %v5495, %v5694
      %v5801 = vadd.f32 %v5496, %v5699
      %v5802 = vadd.f32 %v5497, %v5702
      %v5803 = vadd.f32 %v5498, %v5707
      %v5804 = vadd.f32 %v5499, %v5710
      %v5805 = vadd.f32 %v5500, %v5715
      %v5806 = vadd.f32 %v5501, %v5718
      %v5807 = vadd.f32 %v5502, %v5723
      %v5808 = vadd.f32 %v5503, %v5726
      %v5809 = vadd.f32 %v5504, %v5731
      %v5810 = vadd.f32 %v5505, %v5734
      %v5811 = vadd.f32 %v5506, %v5739
      %v5812 = vadd.f32 %v5507, %v5742
      %v5813 = vadd.f32 %v5508, %v5747
      %v5814 = vadd.f32 %v5509, %v5750
      %v5815 = vadd.f32 %v5510, %v5755
      %v5816 = vadd.f32 %v5511, %v5758
      %v5817 = vadd.f32 %v5512, %v5763
      %v5818 = vadd.f32 %v5513, %v5766
      %v5819 = vadd.f32 %v5514, %v5771
      %v5820 = vadd.f32 %v5515, %v5774
      %v5821 = vadd.f32 %v5516, %v5779
      %v5822 = vadd.f32 %v5517, %v5782
      %v5823 = vadd.f32 %v5518, %v5787
      %v5824 = vadd.f32 %v5519, %v5790
      %v5825 = vld [vmem:[%s5214 + $0x2] sm:$0xff]
      %v5826 = vld [vmem:[%s5214 + $0xa] sm:$0xff]
      %v5827 = vld [vmem:[%s5214 + $0x1a] sm:$0xff]
      %v5828 = vld [vmem:[%s5214 + $0x22] sm:$0xff]
      %v5829 = vld [vmem:[%s5214 + $0x32] sm:$0xff]
      %v5830 = vld [vmem:[%s5214 + $0x3a] sm:$0xff]
      %v5831 = vld [vmem:[%s5214 + $0x4a] sm:$0xff]
      %v5832 = vld [vmem:[%s5214 + $0x52] sm:$0xff]
      %v5833 = vld [vmem:[%s5214 + $0x62] sm:$0xff]
      %v5834 = vld [vmem:[%s5214 + $0x6a] sm:$0xff]
      %v5835 = vld [vmem:[%s5214 + $0x7a] sm:$0xff]
      %v5836 = vld [vmem:[%s5214 + $0x82] sm:$0xff]
      %v5837 = vld [vmem:[%s5214 + $0x92] sm:$0xff]
      %v5838 = vld [vmem:[%s5214 + $0x9a] sm:$0xff]
      %v5839 = vld [vmem:[%s5214 + $0xaa] sm:$0xff]
      %v5840 = vld [vmem:[%s5214 + $0xb2] sm:$0xff]
      %v5841 = vld [vmem:[%s5214 + $0xc2] sm:$0xff]
      %v5842 = vld [vmem:[%s5214 + $0xca] sm:$0xff]
      %v5843 = vld [vmem:[%s5214 + $0xda] sm:$0xff]
      %v5844 = vld [vmem:[%s5214 + $0xe2] sm:$0xff]
      %v5845 = vld [vmem:[%s5214 + $0xf2] sm:$0xff]
      %v5846 = vld [vmem:[%s5214 + $0xfa] sm:$0xff]
      %v5847 = vld [vmem:[%s5214 + $0x10a] sm:$0xff]
      %v5848 = vld [vmem:[%s5214 + $0x112] sm:$0xff]
      %v5849 = vld [vmem:[%s5214 + $0x122] sm:$0xff]
      %v5850 = vld [vmem:[%s5214 + $0x12a] sm:$0xff]
      %v5851 = vld [vmem:[%s5214 + $0x13a] sm:$0xff]
      %v5852 = vld [vmem:[%s5214 + $0x142] sm:$0xff]
      %v5853 = vld [vmem:[%s5214 + $0x152] sm:$0xff]
      %v5854 = vld [vmem:[%s5214 + $0x15a] sm:$0xff]
      %v5855 = vld [vmem:[%s5214 + $0x16a] sm:$0xff]
      %v5856 = vld [vmem:[%s5214 + $0x172] sm:$0xff]
      %v5857 = vpack.c.bf16 %v5826, %v5825
      %v5858 = vpack.c.bf16 %v5828, %v5827
      %v5859 = vpack.c.bf16 %v5830, %v5829
      %v5860 = vpack.c.bf16 %v5832, %v5831
      %v5861 = vpack.c.bf16 %v5834, %v5833
      %v5862 = vpack.c.bf16 %v5836, %v5835
      %v5863 = vpack.c.bf16 %v5838, %v5837
      %v5864 = vpack.c.bf16 %v5840, %v5839
      %v5865 = vpack.c.bf16 %v5842, %v5841
      %v5866 = vpack.c.bf16 %v5844, %v5843
      %v5867 = vpack.c.bf16 %v5846, %v5845
      %v5868 = vpack.c.bf16 %v5848, %v5847
      %v5869 = vpack.c.bf16 %v5850, %v5849
      %v5870 = vpack.c.bf16 %v5852, %v5851
      %v5871 = vpack.c.bf16 %v5854, %v5853
      %v5872 = vpack.c.bf16 %v5856, %v5855
      %v5873 = vld [vmem:[%s4 + $0x200] sm:$0xf]
      %v5874 = vld [vmem:[%s4 + $0x204] sm:$0xf]
      %v5875 = vld [vmem:[%s4 + $0x208] sm:$0xf]
      %v5876 = vld [vmem:[%s4 + $0x20c] sm:$0xf]
      %v5877 = vld [vmem:[%s4 + $0x210] sm:$0xf]
      %v5878 = vld [vmem:[%s4 + $0x214] sm:$0xf]
      %v5879 = vld [vmem:[%s4 + $0x218] sm:$0xf]
      %v5880 = vld [vmem:[%s4 + $0x21c] sm:$0xf]
      %v5881 = vld [vmem:[%s4 + $0x220] sm:$0xf]
      %v5882 = vld [vmem:[%s4 + $0x224] sm:$0xf]
      %v5883 = vld [vmem:[%s4 + $0x228] sm:$0xf]
      %v5884 = vld [vmem:[%s4 + $0x22c] sm:$0xf]
      %v5885 = vld [vmem:[%s4 + $0x230] sm:$0xf]
      %v5886 = vld [vmem:[%s4 + $0x234] sm:$0xf]
      %v5887 = vld [vmem:[%s4 + $0x238] sm:$0xf]
      %v5888 = vld [vmem:[%s4 + $0x23c] sm:$0xf]
      %v5905 = vunpack.c.l.b16 %v5873
      %v5906 = vunpack.c.l.b16 %v5874
      %v5907 = vunpack.c.l.b16 %v5875
      %v5908 = vunpack.c.l.b16 %v5876
      %v5909 = vunpack.c.l.b16 %v5877
      %v5910 = vunpack.c.l.b16 %v5878
      %v5911 = vunpack.c.l.b16 %v5879
      %v5912 = vunpack.c.l.b16 %v5880
      %v5913 = vunpack.c.l.b16 %v5881
      %v5914 = vunpack.c.l.b16 %v5882
      %v5915 = vunpack.c.l.b16 %v5883
      %v5916 = vunpack.c.l.b16 %v5884
      %v5917 = vunpack.c.l.b16 %v5885
      %v5918 = vunpack.c.l.b16 %v5886
      %v5919 = vunpack.c.l.b16 %v5887
      %v5920 = vunpack.c.l.b16 %v5888
      %v5921 = vpack.c.b16 %v5906, %v5905
      %v5922 = vpack.c.b16 %v5908, %v5907
      %v5923 = vpack.c.b16 %v5910, %v5909
      %v5924 = vpack.c.b16 %v5912, %v5911
      %v5925 = vpack.c.b16 %v5914, %v5913
      %v5926 = vpack.c.b16 %v5916, %v5915
      %v5927 = vpack.c.b16 %v5918, %v5917
      %v5928 = vpack.c.b16 %v5920, %v5919
      %5937 = vmatprep.subr.bf16.mxu0 0
      %5938 = vmatpush1.bf16.msra.mxu0 %v5928
      %5939 = vmatprep.subr.bf16.mxu0 0
      %5940 = vmatpush1.bf16.msra.mxu0 %v5927
      %5941 = vmatprep.subr.bf16.mxu0 0
      %5942 = vmatpush1.bf16.msra.mxu0 %v5926
      %5943 = vmatprep.subr.bf16.mxu0 0
      %5944 = vmatpush1.bf16.msra.mxu0 %v5925
      %5945 = vmatprep.subr.bf16.mxu0 0
      %5946 = vmatpush1.bf16.msra.mxu0 %v5924
      %5947 = vmatprep.subr.bf16.mxu0 0
      %5948 = vmatpush1.bf16.msra.mxu0 %v5923
      %5949 = vmatprep.subr.bf16.mxu0 0
      %5950 = vmatpush1.bf16.msra.mxu0 %v5922
      %5951 = vmatprep.subr.bf16.mxu0 0
      %5952 = vmatpush1.bf16.msra.mxu0 %v5921
      %5953 = vmatprep.subr.bf16.mxu0 0
      %5954 = vmatpush2.bf16.msra.mxu0 0
      %5955 = vmatprep.subr.bf16.mxu0 0
      %5956 = vmatpush2.bf16.msra.mxu0 0
      %5957 = vmatprep.subr.bf16.mxu0 0
      %5958 = vmatpush2.bf16.msra.mxu0 0
      %5959 = vmatprep.subr.bf16.mxu0 0
      %5960 = vmatpush2.bf16.msra.mxu0 0
      %5961 = vmatprep.subr.bf16.mxu0 0
      %5962 = vmatpush2.bf16.msra.mxu0 0
      %5963 = vmatprep.subr.bf16.mxu0 0
      %5964 = vmatpush2.bf16.msra.mxu0 0
      %5965 = vmatprep.subr.bf16.mxu0 0
      %5966 = vmatpush2.bf16.msra.mxu0 0
      %5967 = vmatprep.subr.bf16.mxu0 0
      %5968 = vmatpush2.bf16.msra.mxu0 0
      %5969 = vmatprep.mubr.bf16.mxu0 0
      %5970 = vmatmul.mubr.bf16.gmra.mxu0 %v5857
      %v5971 = vpop.f32.mrf.mxu0
      %v5972 = vadd.f32 0.0, %v5971
      %v5973 = vpop.f32.mrf.mxu0
      %v5974 = vpop.f32.mrf.mxu0
      %v5975 = vadd.f32 0.0, %v5974
      %v5976 = vpop.f32.mrf.mxu0
      %5977 = vmatprep.mubr.bf16.mxu0 0
      %5978 = vmatmul.mubr.bf16.gmra.mxu0 %v5858
      %v5979 = vpop.f32.mrf.mxu0
      %v5980 = vadd.f32 0.0, %v5979
      %v5981 = vpop.f32.mrf.mxu0
      %v5982 = vpop.f32.mrf.mxu0
      %v5983 = vadd.f32 0.0, %v5982
      %v5984 = vpop.f32.mrf.mxu0
      %5985 = vmatprep.mubr.bf16.mxu0 0
      %5986 = vmatmul.mubr.bf16.gmra.mxu0 %v5859
      %v5987 = vpop.f32.mrf.mxu0
      %v5988 = vadd.f32 0.0, %v5987
      %v5989 = vpop.f32.mrf.mxu0
      %v5990 = vpop.f32.mrf.mxu0
      %v5991 = vadd.f32 0.0, %v5990
      %v5992 = vpop.f32.mrf.mxu0
      %5993 = vmatprep.mubr.bf16.mxu0 0
      %5994 = vmatmul.mubr.bf16.gmra.mxu0 %v5860
      %v5995 = vpop.f32.mrf.mxu0
      %v5996 = vadd.f32 0.0, %v5995
      %v5997 = vpop.f32.mrf.mxu0
      %v5998 = vpop.f32.mrf.mxu0
      %v5999 = vadd.f32 0.0, %v5998
      %v6000 = vpop.f32.mrf.mxu0
      %6001 = vmatprep.mubr.bf16.mxu0 0
      %6002 = vmatmul.mubr.bf16.gmra.mxu0 %v5861
      %v6003 = vpop.f32.mrf.mxu0
      %v6004 = vadd.f32 0.0, %v6003
      %v6005 = vpop.f32.mrf.mxu0
      %v6006 = vpop.f32.mrf.mxu0
      %v6007 = vadd.f32 0.0, %v6006
      %v6008 = vpop.f32.mrf.mxu0
      %6009 = vmatprep.mubr.bf16.mxu0 0
      %6010 = vmatmul.mubr.bf16.gmra.mxu0 %v5862
      %v6011 = vpop.f32.mrf.mxu0
      %v6012 = vadd.f32 0.0, %v6011
      %v6013 = vpop.f32.mrf.mxu0
      %v6014 = vpop.f32.mrf.mxu0
      %v6015 = vadd.f32 0.0, %v6014
      %v6016 = vpop.f32.mrf.mxu0
      %6017 = vmatprep.mubr.bf16.mxu0 0
      %6018 = vmatmul.mubr.bf16.gmra.mxu0 %v5863
      %v6019 = vpop.f32.mrf.mxu0
      %v6020 = vadd.f32 0.0, %v6019
      %v6021 = vpop.f32.mrf.mxu0
      %v6022 = vpop.f32.mrf.mxu0
      %v6023 = vadd.f32 0.0, %v6022
      %v6024 = vpop.f32.mrf.mxu0
      %6025 = vmatprep.mubr.bf16.mxu0 0
      %6026 = vmatmul.mubr.bf16.gmra.mxu0 %v5864
      %v6027 = vpop.f32.mrf.mxu0
      %v6028 = vadd.f32 0.0, %v6027
      %v6029 = vpop.f32.mrf.mxu0
      %v6030 = vpop.f32.mrf.mxu0
      %v6031 = vadd.f32 0.0, %v6030
      %v6032 = vpop.f32.mrf.mxu0
      %6033 = vmatprep.mubr.bf16.mxu0 0
      %6034 = vmatmul.mubr.bf16.gmra.mxu0 %v5865
      %v6035 = vpop.f32.mrf.mxu0
      %v6036 = vadd.f32 0.0, %v6035
      %v6037 = vpop.f32.mrf.mxu0
      %v6038 = vpop.f32.mrf.mxu0
      %v6039 = vadd.f32 0.0, %v6038
      %v6040 = vpop.f32.mrf.mxu0
      %6041 = vmatprep.mubr.bf16.mxu0 0
      %6042 = vmatmul.mubr.bf16.gmra.mxu0 %v5866
      %v6043 = vpop.f32.mrf.mxu0
      %v6044 = vadd.f32 0.0, %v6043
      %v6045 = vpop.f32.mrf.mxu0
      %v6046 = vpop.f32.mrf.mxu0
      %v6047 = vadd.f32 0.0, %v6046
      %v6048 = vpop.f32.mrf.mxu0
      %6049 = vmatprep.mubr.bf16.mxu0 0
      %6050 = vmatmul.mubr.bf16.gmra.mxu0 %v5867
      %v6051 = vpop.f32.mrf.mxu0
      %v6052 = vadd.f32 0.0, %v6051
      %v6053 = vpop.f32.mrf.mxu0
      %v6054 = vpop.f32.mrf.mxu0
      %v6055 = vadd.f32 0.0, %v6054
      %v6056 = vpop.f32.mrf.mxu0
      %6057 = vmatprep.mubr.bf16.mxu0 0
      %6058 = vmatmul.mubr.bf16.gmra.mxu0 %v5868
      %v6059 = vpop.f32.mrf.mxu0
      %v6060 = vadd.f32 0.0, %v6059
      %v6061 = vpop.f32.mrf.mxu0
      %v6062 = vpop.f32.mrf.mxu0
      %v6063 = vadd.f32 0.0, %v6062
      %v6064 = vpop.f32.mrf.mxu0
      %6065 = vmatprep.mubr.bf16.mxu0 0
      %6066 = vmatmul.mubr.bf16.gmra.mxu0 %v5869
      %v6067 = vpop.f32.mrf.mxu0
      %v6068 = vadd.f32 0.0, %v6067
      %v6069 = vpop.f32.mrf.mxu0
      %v6070 = vpop.f32.mrf.mxu0
      %v6071 = vadd.f32 0.0, %v6070
      %v6072 = vpop.f32.mrf.mxu0
      %6073 = vmatprep.mubr.bf16.mxu0 0
      %6074 = vmatmul.mubr.bf16.gmra.mxu0 %v5870
      %v6075 = vpop.f32.mrf.mxu0
      %v6076 = vadd.f32 0.0, %v6075
      %v6077 = vpop.f32.mrf.mxu0
      %v6078 = vpop.f32.mrf.mxu0
      %v6079 = vadd.f32 0.0, %v6078
      %v6080 = vpop.f32.mrf.mxu0
      %6081 = vmatprep.mubr.bf16.mxu0 0
      %6082 = vmatmul.mubr.bf16.gmra.mxu0 %v5871
      %v6083 = vpop.f32.mrf.mxu0
      %v6084 = vadd.f32 0.0, %v6083
      %v6085 = vpop.f32.mrf.mxu0
      %v6086 = vpop.f32.mrf.mxu0
      %v6087 = vadd.f32 0.0, %v6086
      %v6088 = vpop.f32.mrf.mxu0
      %6089 = vmatprep.mubr.bf16.mxu0 0
      %6090 = vmatmul.mubr.bf16.gmra.mxu0 %v5872
      %v6091 = vpop.f32.mrf.mxu0
      %v6092 = vadd.f32 0.0, %v6091
      %v6093 = vpop.f32.mrf.mxu0
      %v6094 = vpop.f32.mrf.mxu0
      %v6095 = vadd.f32 0.0, %v6094
      %v6096 = vpop.f32.mrf.mxu0
      %6097 = vdwg.mxu0
      %v6098 = vadd.f32 %v5793, %v5972
      %v6099 = vadd.f32 %v5794, %v5975
      %v6100 = vadd.f32 %v5795, %v5980
      %v6101 = vadd.f32 %v5796, %v5983
      %v6102 = vadd.f32 %v5797, %v5988
      %v6103 = vadd.f32 %v5798, %v5991
      %v6104 = vadd.f32 %v5799, %v5996
      %v6105 = vadd.f32 %v5800, %v5999
      %v6106 = vadd.f32 %v5801, %v6004
      %v6107 = vadd.f32 %v5802, %v6007
      %v6108 = vadd.f32 %v5803, %v6012
      %v6109 = vadd.f32 %v5804, %v6015
      %v6110 = vadd.f32 %v5805, %v6020
      %v6111 = vadd.f32 %v5806, %v6023
      %v6112 = vadd.f32 %v5807, %v6028
      %v6113 = vadd.f32 %v5808, %v6031
      %v6114 = vadd.f32 %v5809, %v6036
      %v6115 = vadd.f32 %v5810, %v6039
      %v6116 = vadd.f32 %v5811, %v6044
      %v6117 = vadd.f32 %v5812, %v6047
      %v6118 = vadd.f32 %v5813, %v6052
      %v6119 = vadd.f32 %v5814, %v6055
      %v6120 = vadd.f32 %v5815, %v6060
      %v6121 = vadd.f32 %v5816, %v6063
      %v6122 = vadd.f32 %v5817, %v6068
      %v6123 = vadd.f32 %v5818, %v6071
      %v6124 = vadd.f32 %v5819, %v6076
      %v6125 = vadd.f32 %v5820, %v6079
      %v6126 = vadd.f32 %v5821, %v6084
      %v6127 = vadd.f32 %v5822, %v6087
      %v6128 = vadd.f32 %v5823, %v6092
      %v6129 = vadd.f32 %v5824, %v6095
      %v6130 = vld [vmem:[%s5] sm:$0x1]
      %v6132 = vlaneseq
      %v6133 = vshrl.u32 %v6132, 7
      %v6134 = vsub.s32 0, %v6133
      %v6135 = vrot.slane %v6130, %v6134
      %v6137 = vmul.f32 %v6098, %v6135
      %v6138 = vmul.f32 %v6099, %v6135
      %v6139 = vmul.f32 %v6100, %v6135
      %v6140 = vmul.f32 %v6101, %v6135
      %v6141 = vmul.f32 %v6102, %v6135
      %v6142 = vmul.f32 %v6103, %v6135
      %v6143 = vmul.f32 %v6104, %v6135
      %v6144 = vmul.f32 %v6105, %v6135
      %v6145 = vmul.f32 %v6106, %v6135
      %v6146 = vmul.f32 %v6107, %v6135
      %v6147 = vmul.f32 %v6108, %v6135
      %v6148 = vmul.f32 %v6109, %v6135
      %v6149 = vmul.f32 %v6110, %v6135
      %v6150 = vmul.f32 %v6111, %v6135
      %v6151 = vmul.f32 %v6112, %v6135
      %v6152 = vmul.f32 %v6113, %v6135
      %v6153 = vmul.f32 %v6114, %v6135
      %v6154 = vmul.f32 %v6115, %v6135
      %v6155 = vmul.f32 %v6116, %v6135
      %v6156 = vmul.f32 %v6117, %v6135
      %v6157 = vmul.f32 %v6118, %v6135
      %v6158 = vmul.f32 %v6119, %v6135
      %v6159 = vmul.f32 %v6120, %v6135
      %v6160 = vmul.f32 %v6121, %v6135
      %v6161 = vmul.f32 %v6122, %v6135
      %v6162 = vmul.f32 %v6123, %v6135
      %v6163 = vmul.f32 %v6124, %v6135
      %v6164 = vmul.f32 %v6125, %v6135
      %v6165 = vmul.f32 %v6126, %v6135
      %v6166 = vmul.f32 %v6127, %v6135
      %v6167 = vmul.f32 %v6128, %v6135
      %v6168 = vmul.f32 %v6129, %v6135
      %v6169 = vld [vmem:[%s6] sm:$0x1]
      %v6171 = vlaneseq
      %v6172 = vshrl.u32 %v6171, 7
      %v6173 = vsub.s32 0, %v6172
      %v6174 = vrot.slane %v6169, %v6173
      %v6176 = vadd.f32 %v6137, %v6174
      %v6177 = vadd.f32 %v6138, %v6174
      %v6178 = vadd.f32 %v6139, %v6174
      %v6179 = vadd.f32 %v6140, %v6174
      %v6180 = vadd.f32 %v6141, %v6174
      %v6181 = vadd.f32 %v6142, %v6174
      %v6182 = vadd.f32 %v6143, %v6174
      %v6183 = vadd.f32 %v6144, %v6174
      %v6184 = vadd.f32 %v6145, %v6174
      %v6185 = vadd.f32 %v6146, %v6174
      %v6186 = vadd.f32 %v6147, %v6174
      %v6187 = vadd.f32 %v6148, %v6174
      %v6188 = vadd.f32 %v6149, %v6174
      %v6189 = vadd.f32 %v6150, %v6174
      %v6190 = vadd.f32 %v6151, %v6174
      %v6191 = vadd.f32 %v6152, %v6174
      %v6192 = vadd.f32 %v6153, %v6174
      %v6193 = vadd.f32 %v6154, %v6174
      %v6194 = vadd.f32 %v6155, %v6174
      %v6195 = vadd.f32 %v6156, %v6174
      %v6196 = vadd.f32 %v6157, %v6174
      %v6197 = vadd.f32 %v6158, %v6174
      %v6198 = vadd.f32 %v6159, %v6174
      %v6199 = vadd.f32 %v6160, %v6174
      %v6200 = vadd.f32 %v6161, %v6174
      %v6201 = vadd.f32 %v6162, %v6174
      %v6202 = vadd.f32 %v6163, %v6174
      %v6203 = vadd.f32 %v6164, %v6174
      %v6204 = vadd.f32 %v6165, %v6174
      %v6205 = vadd.f32 %v6166, %v6174
      %v6206 = vadd.f32 %v6167, %v6174
      %v6207 = vadd.f32 %v6168, %v6174
      %v6208 = vsub.f32 0.0, %v6176
      %v6209 = vsub.f32 0.0, %v6177
      %v6210 = vsub.f32 0.0, %v6178
      %v6211 = vsub.f32 0.0, %v6179
      %v6212 = vsub.f32 0.0, %v6180
      %v6213 = vsub.f32 0.0, %v6181
      %v6214 = vsub.f32 0.0, %v6182
      %v6215 = vsub.f32 0.0, %v6183
      %v6216 = vsub.f32 0.0, %v6184
      %v6217 = vsub.f32 0.0, %v6185
      %v6218 = vsub.f32 0.0, %v6186
      %v6219 = vsub.f32 0.0, %v6187
      %v6220 = vsub.f32 0.0, %v6188
      %v6221 = vsub.f32 0.0, %v6189
      %v6222 = vsub.f32 0.0, %v6190
      %v6223 = vsub.f32 0.0, %v6191
      %v6224 = vsub.f32 0.0, %v6192
      %v6225 = vsub.f32 0.0, %v6193
      %v6226 = vsub.f32 0.0, %v6194
      %v6227 = vsub.f32 0.0, %v6195
      %v6228 = vsub.f32 0.0, %v6196
      %v6229 = vsub.f32 0.0, %v6197
      %v6230 = vsub.f32 0.0, %v6198
      %v6231 = vsub.f32 0.0, %v6199
      %v6232 = vsub.f32 0.0, %v6200
      %v6233 = vsub.f32 0.0, %v6201
      %v6234 = vsub.f32 0.0, %v6202
      %v6235 = vsub.f32 0.0, %v6203
      %v6236 = vsub.f32 0.0, %v6204
      %v6237 = vsub.f32 0.0, %v6205
      %v6238 = vsub.f32 0.0, %v6206
      %v6239 = vsub.f32 0.0, %v6207
      %v6240 = vmul.f32 %v6208, 1.442695
      %v6241 = vpow.pop %v6240
      %v6242 = vmul.f32 %v6209, 1.442695
      %v6243 = vpow.pop %v6242
      %v6244 = vmul.f32 %v6210, 1.442695
      %v6245 = vpow.pop %v6244
      %v6246 = vmul.f32 %v6211, 1.442695
      %v6247 = vpow.pop %v6246
      %v6248 = vmul.f32 %v6212, 1.442695
      %v6249 = vpow.pop %v6248
      %v6250 = vmul.f32 %v6213, 1.442695
      %v6251 = vpow.pop %v6250
      %v6252 = vmul.f32 %v6214, 1.442695
      %v6253 = vpow.pop %v6252
      %v6254 = vmul.f32 %v6215, 1.442695
      %v6255 = vpow.pop %v6254
      %v6256 = vmul.f32 %v6216, 1.442695
      %v6257 = vpow.pop %v6256
      %v6258 = vmul.f32 %v6217, 1.442695
      %v6259 = vpow.pop %v6258
      %v6260 = vmul.f32 %v6218, 1.442695
      %v6261 = vpow.pop %v6260
      %v6262 = vmul.f32 %v6219, 1.442695
      %v6263 = vpow.pop %v6262
      %v6264 = vmul.f32 %v6220, 1.442695
      %v6265 = vpow.pop %v6264
      %v6266 = vmul.f32 %v6221, 1.442695
      %v6267 = vpow.pop %v6266
      %v6268 = vmul.f32 %v6222, 1.442695
      %v6269 = vpow.pop %v6268
      %v6270 = vmul.f32 %v6223, 1.442695
      %v6271 = vpow.pop %v6270
      %v6272 = vmul.f32 %v6224, 1.442695
      %v6273 = vpow.pop %v6272
      %v6274 = vmul.f32 %v6225, 1.442695
      %v6275 = vpow.pop %v6274
      %v6276 = vmul.f32 %v6226, 1.442695
      %v6277 = vpow.pop %v6276
      %v6278 = vmul.f32 %v6227, 1.442695
      %v6279 = vpow.pop %v6278
      %v6280 = vmul.f32 %v6228, 1.442695
      %v6281 = vpow.pop %v6280
      %v6282 = vmul.f32 %v6229, 1.442695
      %v6283 = vpow.pop %v6282
      %v6284 = vmul.f32 %v6230, 1.442695
      %v6285 = vpow.pop %v6284
      %v6286 = vmul.f32 %v6231, 1.442695
      %v6287 = vpow.pop %v6286
      %v6288 = vmul.f32 %v6232, 1.442695
      %v6289 = vpow.pop %v6288
      %v6290 = vmul.f32 %v6233, 1.442695
      %v6291 = vpow.pop %v6290
      %v6292 = vmul.f32 %v6234, 1.442695
      %v6293 = vpow.pop %v6292
      %v6294 = vmul.f32 %v6235, 1.442695
      %v6295 = vpow.pop %v6294
      %v6296 = vmul.f32 %v6236, 1.442695
      %v6297 = vpow.pop %v6296
      %v6298 = vmul.f32 %v6237, 1.442695
      %v6299 = vpow.pop %v6298
      %v6300 = vmul.f32 %v6238, 1.442695
      %v6301 = vpow.pop %v6300
      %v6302 = vmul.f32 %v6239, 1.442695
      %v6303 = vpow.pop %v6302
      %v6304 = vadd.f32 %v6241, 1.0
      %v6305 = vadd.f32 %v6243, 1.0
      %v6306 = vadd.f32 %v6245, 1.0
      %v6307 = vadd.f32 %v6247, 1.0
      %v6308 = vadd.f32 %v6249, 1.0
      %v6309 = vadd.f32 %v6251, 1.0
      %v6310 = vadd.f32 %v6253, 1.0
      %v6311 = vadd.f32 %v6255, 1.0
      %v6312 = vadd.f32 %v6257, 1.0
      %v6313 = vadd.f32 %v6259, 1.0
      %v6314 = vadd.f32 %v6261, 1.0
      %v6315 = vadd.f32 %v6263, 1.0
      %v6316 = vadd.f32 %v6265, 1.0
      %v6317 = vadd.f32 %v6267, 1.0
      %v6318 = vadd.f32 %v6269, 1.0
      %v6319 = vadd.f32 %v6271, 1.0
      %v6320 = vadd.f32 %v6273, 1.0
      %v6321 = vadd.f32 %v6275, 1.0
      %v6322 = vadd.f32 %v6277, 1.0
      %v6323 = vadd.f32 %v6279, 1.0
      %v6324 = vadd.f32 %v6281, 1.0
      %v6325 = vadd.f32 %v6283, 1.0
      %v6326 = vadd.f32 %v6285, 1.0
      %v6327 = vadd.f32 %v6287, 1.0
      %v6328 = vadd.f32 %v6289, 1.0
      %v6329 = vadd.f32 %v6291, 1.0
      %v6330 = vadd.f32 %v6293, 1.0
      %v6331 = vadd.f32 %v6295, 1.0
      %v6332 = vadd.f32 %v6297, 1.0
      %v6333 = vadd.f32 %v6299, 1.0
      %v6334 = vadd.f32 %v6301, 1.0
      %v6335 = vadd.f32 %v6303, 1.0
      %v6336 = vrcp.pop %v6304
      %v6337 = vrcp.pop %v6305
      %v6338 = vrcp.pop %v6306
      %v6339 = vrcp.pop %v6307
      %v6340 = vrcp.pop %v6308
      %v6341 = vrcp.pop %v6309
      %v6342 = vrcp.pop %v6310
      %v6343 = vrcp.pop %v6311
      %v6344 = vrcp.pop %v6312
      %v6345 = vrcp.pop %v6313
      %v6346 = vrcp.pop %v6314
      %v6347 = vrcp.pop %v6315
      %v6348 = vrcp.pop %v6316
      %v6349 = vrcp.pop %v6317
      %v6350 = vrcp.pop %v6318
      %v6351 = vrcp.pop %v6319
      %v6352 = vrcp.pop %v6320
      %v6353 = vrcp.pop %v6321
      %v6354 = vrcp.pop %v6322
      %v6355 = vrcp.pop %v6323
      %v6356 = vrcp.pop %v6324
      %v6357 = vrcp.pop %v6325
      %v6358 = vrcp.pop %v6326
      %v6359 = vrcp.pop %v6327
      %v6360 = vrcp.pop %v6328
      %v6361 = vrcp.pop %v6329
      %v6362 = vrcp.pop %v6330
      %v6363 = vrcp.pop %v6331
      %v6364 = vrcp.pop %v6332
      %v6365 = vrcp.pop %v6333
      %v6366 = vrcp.pop %v6334
      %v6367 = vrcp.pop %v6335
      %v6368 = vmul.f32 %v6176, %v6336
      %v6369 = vmul.f32 %v6177, %v6337
      %v6370 = vmul.f32 %v6178, %v6338
      %v6371 = vmul.f32 %v6179, %v6339
      %v6372 = vmul.f32 %v6180, %v6340
      %v6373 = vmul.f32 %v6181, %v6341
      %v6374 = vmul.f32 %v6182, %v6342
      %v6375 = vmul.f32 %v6183, %v6343
      %v6376 = vmul.f32 %v6184, %v6344
      %v6377 = vmul.f32 %v6185, %v6345
      %v6378 = vmul.f32 %v6186, %v6346
      %v6379 = vmul.f32 %v6187, %v6347
      %v6380 = vmul.f32 %v6188, %v6348
      %v6381 = vmul.f32 %v6189, %v6349
      %v6382 = vmul.f32 %v6190, %v6350
      %v6383 = vmul.f32 %v6191, %v6351
      %v6384 = vmul.f32 %v6192, %v6352
      %v6385 = vmul.f32 %v6193, %v6353
      %v6386 = vmul.f32 %v6194, %v6354
      %v6387 = vmul.f32 %v6195, %v6355
      %v6388 = vmul.f32 %v6196, %v6356
      %v6389 = vmul.f32 %v6197, %v6357
      %v6390 = vmul.f32 %v6198, %v6358
      %v6391 = vmul.f32 %v6199, %v6359
      %v6392 = vmul.f32 %v6200, %v6360
      %v6393 = vmul.f32 %v6201, %v6361
      %v6394 = vmul.f32 %v6202, %v6362
      %v6395 = vmul.f32 %v6203, %v6363
      %v6396 = vmul.f32 %v6204, %v6364
      %v6397 = vmul.f32 %v6205, %v6365
      %v6398 = vmul.f32 %v6206, %v6366
      %v6399 = vmul.f32 %v6207, %v6367
      %v6400 = vld [vmem:[%s430 + $0x1] sm:$0xff]
      %v6401 = vld [vmem:[%s430 + $0x9] sm:$0xff]
      %v6402 = vld [vmem:[%s430 + $0x19] sm:$0xff]
      %v6403 = vld [vmem:[%s430 + $0x21] sm:$0xff]
      %v6404 = vld [vmem:[%s430 + $0x31] sm:$0xff]
      %v6405 = vld [vmem:[%s430 + $0x39] sm:$0xff]
      %v6406 = vld [vmem:[%s430 + $0x49] sm:$0xff]
      %v6407 = vld [vmem:[%s430 + $0x51] sm:$0xff]
      %v6408 = vld [vmem:[%s430 + $0x61] sm:$0xff]
      %v6409 = vld [vmem:[%s430 + $0x69] sm:$0xff]
      %v6410 = vld [vmem:[%s430 + $0x79] sm:$0xff]
      %v6411 = vld [vmem:[%s430 + $0x81] sm:$0xff]
      %v6412 = vld [vmem:[%s430 + $0x91] sm:$0xff]
      %v6413 = vld [vmem:[%s430 + $0x99] sm:$0xff]
      %v6414 = vld [vmem:[%s430 + $0xa9] sm:$0xff]
      %v6415 = vld [vmem:[%s430 + $0xb1] sm:$0xff]
      %v6416 = vld [vmem:[%s430 + $0xc1] sm:$0xff]
      %v6417 = vld [vmem:[%s430 + $0xc9] sm:$0xff]
      %v6418 = vld [vmem:[%s430 + $0xd9] sm:$0xff]
      %v6419 = vld [vmem:[%s430 + $0xe1] sm:$0xff]
      %v6420 = vld [vmem:[%s430 + $0xf1] sm:$0xff]
      %v6421 = vld [vmem:[%s430 + $0xf9] sm:$0xff]
      %v6422 = vld [vmem:[%s430 + $0x109] sm:$0xff]
      %v6423 = vld [vmem:[%s430 + $0x111] sm:$0xff]
      %v6424 = vld [vmem:[%s430 + $0x121] sm:$0xff]
      %v6425 = vld [vmem:[%s430 + $0x129] sm:$0xff]
      %v6426 = vld [vmem:[%s430 + $0x139] sm:$0xff]
      %v6427 = vld [vmem:[%s430 + $0x141] sm:$0xff]
      %v6428 = vld [vmem:[%s430 + $0x151] sm:$0xff]
      %v6429 = vld [vmem:[%s430 + $0x159] sm:$0xff]
      %v6430 = vld [vmem:[%s430 + $0x169] sm:$0xff]
      %v6431 = vld [vmem:[%s430 + $0x171] sm:$0xff]
      %v6432 = vadd.f32 %v6368, %v6400
      %v6433 = vadd.f32 %v6369, %v6401
      %v6434 = vadd.f32 %v6370, %v6402
      %v6435 = vadd.f32 %v6371, %v6403
      %v6436 = vadd.f32 %v6372, %v6404
      %v6437 = vadd.f32 %v6373, %v6405
      %v6438 = vadd.f32 %v6374, %v6406
      %v6439 = vadd.f32 %v6375, %v6407
      %v6440 = vadd.f32 %v6376, %v6408
      %v6441 = vadd.f32 %v6377, %v6409
      %v6442 = vadd.f32 %v6378, %v6410
      %v6443 = vadd.f32 %v6379, %v6411
      %v6444 = vadd.f32 %v6380, %v6412
      %v6445 = vadd.f32 %v6381, %v6413
      %v6446 = vadd.f32 %v6382, %v6414
      %v6447 = vadd.f32 %v6383, %v6415
      %v6448 = vadd.f32 %v6384, %v6416
      %v6449 = vadd.f32 %v6385, %v6417
      %v6450 = vadd.f32 %v6386, %v6418
      %v6451 = vadd.f32 %v6387, %v6419
      %v6452 = vadd.f32 %v6388, %v6420
      %v6453 = vadd.f32 %v6389, %v6421
      %v6454 = vadd.f32 %v6390, %v6422
      %v6455 = vadd.f32 %v6391, %v6423
      %v6456 = vadd.f32 %v6392, %v6424
      %v6457 = vadd.f32 %v6393, %v6425
      %v6458 = vadd.f32 %v6394, %v6426
      %v6459 = vadd.f32 %v6395, %v6427
      %v6460 = vadd.f32 %v6396, %v6428
      %v6461 = vadd.f32 %v6397, %v6429
      %v6462 = vadd.f32 %v6398, %v6430
      %v6463 = vadd.f32 %v6399, %v6431
      %v6464 = vpack.c.bf16 %v6433, %v6432
      %v6465 = vpack.c.bf16 %v6435, %v6434
      %v6466 = vpack.c.bf16 %v6437, %v6436
      %v6467 = vpack.c.bf16 %v6439, %v6438
      %v6468 = vpack.c.bf16 %v6441, %v6440
      %v6469 = vpack.c.bf16 %v6443, %v6442
      %v6470 = vpack.c.bf16 %v6445, %v6444
      %v6471 = vpack.c.bf16 %v6447, %v6446
      %v6472 = vpack.c.bf16 %v6449, %v6448
      %v6473 = vpack.c.bf16 %v6451, %v6450
      %v6474 = vpack.c.bf16 %v6453, %v6452
      %v6475 = vpack.c.bf16 %v6455, %v6454
      %v6476 = vpack.c.bf16 %v6457, %v6456
      %v6477 = vpack.c.bf16 %v6459, %v6458
      %v6478 = vpack.c.bf16 %v6461, %v6460
      %v6479 = vpack.c.bf16 %v6463, %v6462
      %v6496 = vunpack.c.l.b16 %v6464
      %v6497 = vunpack.c.h.b16 %v6464
      %v6498 = vunpack.c.l.b16 %v6465
      %v6499 = vunpack.c.h.b16 %v6465
      %v6500 = vunpack.c.l.b16 %v6466
      %v6501 = vunpack.c.h.b16 %v6466
      %v6502 = vunpack.c.l.b16 %v6467
      %v6503 = vunpack.c.h.b16 %v6467
      %v6504 = vunpack.c.l.b16 %v6468
      %v6505 = vunpack.c.h.b16 %v6468
      %v6506 = vunpack.c.l.b16 %v6469
      %v6507 = vunpack.c.h.b16 %v6469
      %v6508 = vunpack.c.l.b16 %v6470
      %v6509 = vunpack.c.h.b16 %v6470
      %v6510 = vunpack.c.l.b16 %v6471
      %v6511 = vunpack.c.h.b16 %v6471
      %v6512 = vunpack.c.l.b16 %v6472
      %v6513 = vunpack.c.h.b16 %v6472
      %v6514 = vunpack.c.l.b16 %v6473
      %v6515 = vunpack.c.h.b16 %v6473
      %v6516 = vunpack.c.l.b16 %v6474
      %v6517 = vunpack.c.h.b16 %v6474
      %v6518 = vunpack.c.l.b16 %v6475
      %v6519 = vunpack.c.h.b16 %v6475
      %v6520 = vunpack.c.l.b16 %v6476
      %v6521 = vunpack.c.h.b16 %v6476
      %v6522 = vunpack.c.l.b16 %v6477
      %v6523 = vunpack.c.h.b16 %v6477
      %v6524 = vunpack.c.l.b16 %v6478
      %v6525 = vunpack.c.h.b16 %v6478
      %v6526 = vunpack.c.l.b16 %v6479
      %v6527 = vunpack.c.h.b16 %v6479
      %v6528 = vpack.c.b16 %v6496, %v6496
      %v6529 = vpack.c.b16 %v6497, %v6497
      %v6530 = vpack.c.b16 %v6498, %v6498
      %v6531 = vpack.c.b16 %v6499, %v6499
      %v6532 = vpack.c.b16 %v6500, %v6500
      %v6533 = vpack.c.b16 %v6501, %v6501
      %v6534 = vpack.c.b16 %v6502, %v6502
      %v6535 = vpack.c.b16 %v6503, %v6503
      %v6536 = vpack.c.b16 %v6504, %v6504
      %v6537 = vpack.c.b16 %v6505, %v6505
      %v6538 = vpack.c.b16 %v6506, %v6506
      %v6539 = vpack.c.b16 %v6507, %v6507
      %v6540 = vpack.c.b16 %v6508, %v6508
      %v6541 = vpack.c.b16 %v6509, %v6509
      %v6542 = vpack.c.b16 %v6510, %v6510
      %v6543 = vpack.c.b16 %v6511, %v6511
      %v6544 = vpack.c.b16 %v6512, %v6512
      %v6545 = vpack.c.b16 %v6513, %v6513
      %v6546 = vpack.c.b16 %v6514, %v6514
      %v6547 = vpack.c.b16 %v6515, %v6515
      %v6548 = vpack.c.b16 %v6516, %v6516
      %v6549 = vpack.c.b16 %v6517, %v6517
      %v6550 = vpack.c.b16 %v6518, %v6518
      %v6551 = vpack.c.b16 %v6519, %v6519
      %v6552 = vpack.c.b16 %v6520, %v6520
      %v6553 = vpack.c.b16 %v6521, %v6521
      %v6554 = vpack.c.b16 %v6522, %v6522
      %v6555 = vpack.c.b16 %v6523, %v6523
      %v6556 = vpack.c.b16 %v6524, %v6524
      %v6557 = vpack.c.b16 %v6525, %v6525
      %v6558 = vpack.c.b16 %v6526, %v6526
      %v6559 = vpack.c.b16 %v6527, %v6527
      %6592 = vst [vmem:[%s278] sm:$0xf] %v6528
      %6593 = vst [vmem:[%s278 + $0x4] sm:$0xf] %v6529
      %6594 = vst [vmem:[%s278 + $0x8] sm:$0xf] %v6530
      %6595 = vst [vmem:[%s278 + $0xc] sm:$0xf] %v6531
      %6596 = vst [vmem:[%s278 + $0x10] sm:$0xf] %v6532
      %6597 = vst [vmem:[%s278 + $0x14] sm:$0xf] %v6533
      %6598 = vst [vmem:[%s278 + $0x18] sm:$0xf] %v6534
      %6599 = vst [vmem:[%s278 + $0x1c] sm:$0xf] %v6535
      %6600 = vst [vmem:[%s278 + $0x20] sm:$0xf] %v6536
      %6601 = vst [vmem:[%s278 + $0x24] sm:$0xf] %v6537
      %6602 = vst [vmem:[%s278 + $0x28] sm:$0xf] %v6538
      %6603 = vst [vmem:[%s278 + $0x2c] sm:$0xf] %v6539
      %6604 = vst [vmem:[%s278 + $0x30] sm:$0xf] %v6540
      %6605 = vst [vmem:[%s278 + $0x34] sm:$0xf] %v6541
      %6606 = vst [vmem:[%s278 + $0x38] sm:$0xf] %v6542
      %6607 = vst [vmem:[%s278 + $0x3c] sm:$0xf] %v6543
      %6608 = vst [vmem:[%s278 + $0x40] sm:$0xf] %v6544
      %6609 = vst [vmem:[%s278 + $0x44] sm:$0xf] %v6545
      %6610 = vst [vmem:[%s278 + $0x48] sm:$0xf] %v6546
      %6611 = vst [vmem:[%s278 + $0x4c] sm:$0xf] %v6547
      %6612 = vst [vmem:[%s278 + $0x50] sm:$0xf] %v6548
      %6613 = vst [vmem:[%s278 + $0x54] sm:$0xf] %v6549
      %6614 = vst [vmem:[%s278 + $0x58] sm:$0xf] %v6550
      %6615 = vst [vmem:[%s278 + $0x5c] sm:$0xf] %v6551
      %6616 = vst [vmem:[%s278 + $0x60] sm:$0xf] %v6552
      %6617 = vst [vmem:[%s278 + $0x64] sm:$0xf] %v6553
      %6618 = vst [vmem:[%s278 + $0x68] sm:$0xf] %v6554
      %6619 = vst [vmem:[%s278 + $0x6c] sm:$0xf] %v6555
      %6620 = vst [vmem:[%s278 + $0x70] sm:$0xf] %v6556
      %6621 = vst [vmem:[%s278 + $0x74] sm:$0xf] %v6557
      %6622 = vst [vmem:[%s278 + $0x78] sm:$0xf] %v6558
      %6623 = vst [vmem:[%s278 + $0x7c] sm:$0xf] %v6559
      %p6624 = scmp.lt.s32.totalorder %s18, 1
      %s6625 = scalar_select %p6624, %s18, 1
      %s6626 = smul.addr %s6625, 32
      %s6627 = smul.addr %s6626, 4
      %s6628 = scalar_lea.vmem %s7, %s6627
      // Predicated region
      $region49: #{bottleneck_pallas.1} parent=47 // pred_check
        %p6629 = pneg %p188
      $region50: #{bottleneck_pallas.1} parent=47 // pred_check_branch
        %6631 = sbr.rel (%p6629) target = $region52
      $region51: #{bottleneck_pallas.1} parent=47 // pred_region
        _
      $region52: #{bottleneck_pallas.1} parent=47 // pred_fallthru
        _
    $region48: #{bottleneck_pallas.1} parent=5 // pred_fallthru
      _
    %p6632 = scmp.le.s32.totalorder 2, %s13
    // Predicated region
    $region53: #{bottleneck_pallas.1} parent=5 // pred_check
      %p6633 = pneg %p6632
    $region54: #{bottleneck_pallas.1} parent=5 // pred_check_branch
      %6635 = sbr.rel (%p6633) target = $region56
    $region55: #{bottleneck_pallas.1} parent=5 // pred_region
      %s6636 = ssub.s32 %s13, 2
      // Predicated region
      $region57: #{bottleneck_pallas.1} parent=55 // pred_check
        %p6637 = pneg %p194
      $region58: #{bottleneck_pallas.1} parent=55 // pred_check_branch
        %6639 = sbr.rel (%p6637) target = $region60
      $region59: #{bottleneck_pallas.1} parent=55 // pred_region
        %p6640 = scmp.lt.s32.totalorder %s19, 1
        %s6641 = scalar_select %p6640, %s19, 1
        %s6642 = smul.addr %s6641, 32
        %s6643 = smul.addr %s6642, 4
        %s6644 = scalar_lea.vmem %s7, %s6643
      $region60: #{bottleneck_pallas.1} parent=55 // pred_fallthru
        _
    $region56: #{bottleneck_pallas.1} parent=5 // pred_fallthru
      _
  $region6: #{bottleneck_pallas.1} parent=0 // loop_footer
    %s17 = sadd.s32 1, %s13
  $region7: #{bottleneck_pallas.1} parent=0 // loop_footer_branch
    %12 = sbr.rel target = $region3
  $region8: #{bottleneck_pallas.1} parent=0 // loop_exit
    _

</llo_original>
